<compile_context>
chip_gen: v5e
topology: v5e:2x2
jax: 0.10.0
libtpu: 0.0.40
codegen_flags: <defaults>
</compile_context>

<pallas_src>
import jax
import jax.numpy as jnp
import numpy as np
from jax import lax
from jax.experimental import pallas as pl
from jax.experimental.pallas import tpu as pltpu

BN_EPS = 1e-5          # nn.BatchNorm2d default eps
FEAT_DIM = 1536        # EfficientNet-B3 feature dim
ADJ_DIM = 512          # adjust_channel output dim
NUM_CLASSES = 2
NPAD = 128             # pad final Linear output to a full lane group

# lhs-transposed matmul dimension numbers (contract dim 0 of both operands)
TN_DIMS = (((0,), (0,)), ((), ()))


def head_kernel(x_ref, wc_ref, bc_ref, wl_ref, bl_ref, o_ref):
    """One grid step == one group of G images.

    x_ref  : [G, Cin, HW]  backbone features, channel-major (free reshape of NCHW), f32
    wc_ref : [Cin, Cout]   1x1-conv weight with BN folded in, bf16
    bc_ref : [1, Cout]     conv bias with BN folded in, f32
    wl_ref : [Cout, NPAD]  final Linear weight (zero-padded to 128 lanes), f32
    bl_ref : [1, NPAD]     final Linear bias (zero-padded), f32
    o_ref  : [1, G, NPAD]  logits; only the first NUM_CLASSES lanes are valid
    """
    G = x_ref.shape[0]
    wc = wc_ref[...]                                        # [Cin, Cout] bf16

    pooled_rows = []
    for g in range(G):                                      # static unroll, G small
        xg = x_ref[g].astype(jnp.bfloat16)                  # [Cin, HW] (cast on VPU)
        # 1x1 conv over channels == matmul contracting Cin (transposed-LHS, MXU),
        # f32 accumulation. BN is already folded into wc/bc.
        hg = lax.dot_general(xg, wc, TN_DIMS,
                             preferred_element_type=jnp.float32)   # [HW, Cout]
        hg = hg + bc_ref[...]                               # folded conv-bias + BN
        hg = jnp.maximum(hg, 0.0)                           # ReLU(inplace=True)
        # adaptive_avg_pool2d((1,1)) + flatten == mean over spatial rows
        pooled_rows.append(jnp.mean(hg, axis=0, keepdims=True))    # [1, Cout]

    pooled = jnp.concatenate(pooled_rows, axis=0)           # [G, Cout]

    # last_layer: Linear(512, 2), once per group (padded to 128 output lanes)
    logits = jnp.dot(pooled, wl_ref[...],
                     preferred_element_type=jnp.float32) + bl_ref[...]   # [G, NPAD]
    o_ref[0] = logits


def efficientnet_head(feat_nchw, params, group=4):
    """feat_nchw: [B, 1536, H, W] backbone feature map (NCHW, like PyTorch)."""
    wc, bc, gamma, beta, mean, var, wl, bl = params
    B, Cin, H, W = feat_nchw.shape
    HW = H * W
    Cout = wc.shape[1]

    # ---- parameter prep (tiny, once per call) -------------------------------
    # Fold inference BatchNorm (running stats) into the 1x1 conv: exact affine fold.
    scale = gamma * lax.rsqrt(var + BN_EPS)                 # [1, Cout]
    wc_fold = (wc * scale).astype(jnp.bfloat16)             # [Cin, Cout] bf16 for MXU
    bc_fold = (bc - mean) * scale + beta                    # [1, Cout]   f32
    wl_pad = jnp.zeros((Cout, NPAD), jnp.float32).at[:, :NUM_CLASSES].set(wl)
    bl_pad = jnp.zeros((1, NPAD), jnp.float32).at[0, :NUM_CLASSES].set(bl)

    # ---- feature layout: free reshape of NCHW (no HBM transpose) ------------
    x = feat_nchw.reshape(B, Cin, HW)

    # Group G images per grid step to fill the MXU / amortize per-step overhead.
    G = max(1, min(group, B))
    num_blocks = pl.cdiv(B, G)
    B_pad = num_blocks * G
    if B_pad != B:
        x = jnp.pad(x, ((0, B_pad - B), (0, 0), (0, 0)))

    out = pl.pallas_call(
        head_kernel,
        out_shape=jax.ShapeDtypeStruct((num_blocks, G, NPAD), jnp.float32),
        grid_spec=pltpu.PrefetchScalarGridSpec(
            num_scalar_prefetch=0,
            grid=(num_blocks,),
            in_specs=[
                pl.BlockSpec((G, Cin, HW), lambda b: (b, 0, 0)),   # features
                pl.BlockSpec((Cin, Cout), lambda b: (0, 0)),       # folded conv weight
                pl.BlockSpec((1, Cout), lambda b: (0, 0)),         # folded conv bias
                pl.BlockSpec((Cout, NPAD), lambda b: (0, 0)),      # linear weight (padded)
                pl.BlockSpec((1, NPAD), lambda b: (0, 0)),         # linear bias (padded)
            ],
            out_specs=pl.BlockSpec((1, G, NPAD), lambda b: (b, 0, 0)),
        ),
        compiler_params=pltpu.CompilerParams(
            dimension_semantics=("parallel",)),
    )(x, wc_fold, bc_fold, wl_pad, bl_pad)

    return out.reshape(B_pad, NPAD)[:B, :NUM_CLASSES]       # [B, 2]


def init_params(key):
    """Deterministic synthetic parameters matching the module's __init__ shapes."""
    ks = jax.random.split(key, 8)
    wc = 0.02 * jax.random.normal(ks[0], (FEAT_DIM, ADJ_DIM), jnp.float32)
    bc = 0.02 * jax.random.normal(ks[1], (1, ADJ_DIM), jnp.float32)
    gamma = 1.0 + 0.1 * jax.random.normal(ks[2], (1, ADJ_DIM), jnp.float32)
    beta = 0.1 * jax.random.normal(ks[3], (1, ADJ_DIM), jnp.float32)
    mean = 0.1 * jax.random.normal(ks[4], (1, ADJ_DIM), jnp.float32)
    var = jnp.abs(jax.random.normal(ks[5], (1, ADJ_DIM), jnp.float32)) + 0.5
    wl = 0.05 * jax.random.normal(ks[6], (ADJ_DIM, NUM_CLASSES), jnp.float32)
    bl = 0.05 * jax.random.normal(ks[7], (NUM_CLASSES,), jnp.float32)
    return (wc, bc, gamma, beta, mean, var, wl, bl)


def reference_forward(feat_nchw, params):
    wc, bc, gamma, beta, mean, var, wl, bl = params
    B, Cin, H, W = feat_nchw.shape
    x = jnp.transpose(feat_nchw, (0, 2, 3, 1)).reshape(B, H * W, Cin)
    h = jnp.einsum('bpc,cd->bpd', x, wc,
                   precision=jax.lax.Precision.HIGHEST) + bc
    h = (h - mean) * (gamma / jnp.sqrt(var + BN_EPS)) + beta
    h = jnp.maximum(h, 0.0)
    pooled = jnp.mean(h, axis=1)                            # [B, 512]
    return pooled @ wl + bl                                 # [B, 2]


if __name__ == "__main__":
    key = jax.random.PRNGKey(0)
    pkey, xkey = jax.random.split(key)

    params = init_params(pkey)

    # Backbone feature map (stand-in for efficientnet.extract_features output):
    # small spatial extent, EfficientNet-B3 channel count.
    B, H, W = 8, 8, 8
    feat = jax.random.normal(xkey, (B, FEAT_DIM, H, W), jnp.float32)

    fwd = jax.jit(efficientnet_head)
    out = fwd(feat, params)
    out = jax.block_until_ready(out)

    # Reference uses Precision.HIGHEST; kernel uses bf16 MXU inputs with f32
    # accumulation, so tolerances are bf16-class (well within 1e-2 here).
    ref = reference_forward(feat, params)
    np.testing.assert_allclose(np.asarray(out), np.asarray(ref),
                               rtol=1e-2, atol=1e-2)

    assert out.shape == (B, NUM_CLASSES)
    print("KERNEL_OK")
</pallas_src>

<mosaic_0001>
module attributes {stable_mosaic.version = 11 : i64} {
  func.func @head_kernel(%arg0: i32, %arg1: memref<4x1536x64xf32, #tpu.memory_space<vmem>>, %arg2: memref<1536x512xbf16, #tpu.memory_space<vmem>>, %arg3: memref<1x512xf32, #tpu.memory_space<vmem>>, %arg4: memref<512x128xf32, #tpu.memory_space<vmem>>, %arg5: memref<1x128xf32, #tpu.memory_space<vmem>>, %arg6: memref<1x4x128xf32, #tpu.memory_space<vmem>>) attributes {dimension_semantics = [#tpu.dimension_semantics<parallel>], iteration_bounds = array<i64: 2>, scalar_prefetch = 0 : i64, scratch_operands = 0 : i64, tpu.core_type = #tpu.core_type<tc>, window_params = [{transform_indices = @transform_0, window_bounds = array<i64: 4, 1536, 64>}, {pipeline_mode = #tpu.pipeline_mode<synchronous>, transform_indices = @transform_1, window_bounds = array<i64: 1536, 512>}, {pipeline_mode = #tpu.pipeline_mode<synchronous>, transform_indices = @transform_2, window_bounds = array<i64: 1, 512>}, {pipeline_mode = #tpu.pipeline_mode<synchronous>, transform_indices = @transform_3, window_bounds = array<i64: 512, 128>}, {pipeline_mode = #tpu.pipeline_mode<synchronous>, transform_indices = @transform_4, window_bounds = array<i64: 1, 128>}, {transform_indices = @transform_5, window_bounds = array<i64: 1, 4, 128>}]} {
    %c0 = arith.constant 0 : index
    %c0_0 = arith.constant 0 : index
    %0 = vector.load %arg2[%c0, %c0_0] : memref<1536x512xbf16, #tpu.memory_space<vmem>>, vector<1536x512xbf16>
    %c0_1 = arith.constant 0 : index
    %c0_2 = arith.constant 0 : index
    %c0_3 = arith.constant 0 : index
    %1 = vector.load %arg1[%c0_1, %c0_2, %c0_3] : memref<4x1536x64xf32, #tpu.memory_space<vmem>>, vector<1x1536x64xf32>
    %2 = vector.shape_cast %1 : vector<1x1536x64xf32> to vector<1536x64xf32>
    %3 = arith.truncf %2 : vector<1536x64xf32> to vector<1536x64xbf16>
    %cst = arith.constant dense<0.000000e+00> : vector<64x512xf32>
    %4 = tpu.matmul %3, %0, %cst {dimension_numbers = #tpu.dot_dimension_numbers<[0], [0], [1], [1], [0, 1, 1, 1], [], []>} : vector<1536x64xbf16>, vector<1536x512xbf16>, vector<64x512xf32> -> vector<64x512xf32>
    %c0_4 = arith.constant 0 : index
    %c0_5 = arith.constant 0 : index
    %5 = vector.load %arg3[%c0_4, %c0_5] : memref<1x512xf32, #tpu.memory_space<vmem>>, vector<1x512xf32>
    %6 = vector.broadcast %5 : vector<1x512xf32> to vector<64x512xf32>
    %7 = arith.addf %4, %6 : vector<64x512xf32>
    %cst_6 = arith.constant 0.000000e+00 : f32
    %8 = vector.broadcast %cst_6 : f32 to vector<64x512xf32>
    %9 = arith.maximumf %7, %8 : vector<64x512xf32>
    %cst_7 = arith.constant dense<0.000000e+00> : vector<512xf32>
    %10 = vector.multi_reduction <add>, %9, %cst_7 [0] : vector<64x512xf32> to vector<512xf32>
    %11 = vector.shape_cast %10 : vector<512xf32> to vector<1x512xf32>
    %cst_8 = arith.constant 6.400000e+01 : f32
    %12 = vector.broadcast %cst_8 : f32 to vector<1x512xf32>
    %13 = arith.divf %11, %12 : vector<1x512xf32>
    %c1 = arith.constant 1 : index
    %c0_9 = arith.constant 0 : index
    %c0_10 = arith.constant 0 : index
    %14 = vector.load %arg1[%c1, %c0_9, %c0_10] : memref<4x1536x64xf32, #tpu.memory_space<vmem>>, vector<1x1536x64xf32>
    %15 = vector.shape_cast %14 : vector<1x1536x64xf32> to vector<1536x64xf32>
    %16 = arith.truncf %15 : vector<1536x64xf32> to vector<1536x64xbf16>
    %cst_11 = arith.constant dense<0.000000e+00> : vector<64x512xf32>
    %17 = tpu.matmul %16, %0, %cst_11 {dimension_numbers = #tpu.dot_dimension_numbers<[0], [0], [1], [1], [0, 1, 1, 1], [], []>} : vector<1536x64xbf16>, vector<1536x512xbf16>, vector<64x512xf32> -> vector<64x512xf32>
    %c0_12 = arith.constant 0 : index
    %c0_13 = arith.constant 0 : index
    %18 = vector.load %arg3[%c0_12, %c0_13] : memref<1x512xf32, #tpu.memory_space<vmem>>, vector<1x512xf32>
    %19 = vector.broadcast %18 : vector<1x512xf32> to vector<64x512xf32>
    %20 = arith.addf %17, %19 : vector<64x512xf32>
    %cst_14 = arith.constant 0.000000e+00 : f32
    %21 = vector.broadcast %cst_14 : f32 to vector<64x512xf32>
    %22 = arith.maximumf %20, %21 : vector<64x512xf32>
    %cst_15 = arith.constant dense<0.000000e+00> : vector<512xf32>
    %23 = vector.multi_reduction <add>, %22, %cst_15 [0] : vector<64x512xf32> to vector<512xf32>
    %24 = vector.shape_cast %23 : vector<512xf32> to vector<1x512xf32>
    %cst_16 = arith.constant 6.400000e+01 : f32
    %25 = vector.broadcast %cst_16 : f32 to vector<1x512xf32>
    %26 = arith.divf %24, %25 : vector<1x512xf32>
    %c2 = arith.constant 2 : index
    %c0_17 = arith.constant 0 : index
    %c0_18 = arith.constant 0 : index
    %27 = vector.load %arg1[%c2, %c0_17, %c0_18] : memref<4x1536x64xf32, #tpu.memory_space<vmem>>, vector<1x1536x64xf32>
    %28 = vector.shape_cast %27 : vector<1x1536x64xf32> to vector<1536x64xf32>
    %29 = arith.truncf %28 : vector<1536x64xf32> to vector<1536x64xbf16>
    %cst_19 = arith.constant dense<0.000000e+00> : vector<64x512xf32>
    %30 = tpu.matmul %29, %0, %cst_19 {dimension_numbers = #tpu.dot_dimension_numbers<[0], [0], [1], [1], [0, 1, 1, 1], [], []>} : vector<1536x64xbf16>, vector<1536x512xbf16>, vector<64x512xf32> -> vector<64x512xf32>
    %c0_20 = arith.constant 0 : index
    %c0_21 = arith.constant 0 : index
    %31 = vector.load %arg3[%c0_20, %c0_21] : memref<1x512xf32, #tpu.memory_space<vmem>>, vector<1x512xf32>
    %32 = vector.broadcast %31 : vector<1x512xf32> to vector<64x512xf32>
    %33 = arith.addf %30, %32 : vector<64x512xf32>
    %cst_22 = arith.constant 0.000000e+00 : f32
    %34 = vector.broadcast %cst_22 : f32 to vector<64x512xf32>
    %35 = arith.maximumf %33, %34 : vector<64x512xf32>
    %cst_23 = arith.constant dense<0.000000e+00> : vector<512xf32>
    %36 = vector.multi_reduction <add>, %35, %cst_23 [0] : vector<64x512xf32> to vector<512xf32>
    %37 = vector.shape_cast %36 : vector<512xf32> to vector<1x512xf32>
    %cst_24 = arith.constant 6.400000e+01 : f32
    %38 = vector.broadcast %cst_24 : f32 to vector<1x512xf32>
    %39 = arith.divf %37, %38 : vector<1x512xf32>
    %c3 = arith.constant 3 : index
    %c0_25 = arith.constant 0 : index
    %c0_26 = arith.constant 0 : index
    %40 = vector.load %arg1[%c3, %c0_25, %c0_26] : memref<4x1536x64xf32, #tpu.memory_space<vmem>>, vector<1x1536x64xf32>
    %41 = vector.shape_cast %40 : vector<1x1536x64xf32> to vector<1536x64xf32>
    %42 = arith.truncf %41 : vector<1536x64xf32> to vector<1536x64xbf16>
    %cst_27 = arith.constant dense<0.000000e+00> : vector<64x512xf32>
    %43 = tpu.matmul %42, %0, %cst_27 {dimension_numbers = #tpu.dot_dimension_numbers<[0], [0], [1], [1], [0, 1, 1, 1], [], []>} : vector<1536x64xbf16>, vector<1536x512xbf16>, vector<64x512xf32> -> vector<64x512xf32>
    %c0_28 = arith.constant 0 : index
    %c0_29 = arith.constant 0 : index
    %44 = vector.load %arg3[%c0_28, %c0_29] : memref<1x512xf32, #tpu.memory_space<vmem>>, vector<1x512xf32>
    %45 = vector.broadcast %44 : vector<1x512xf32> to vector<64x512xf32>
    %46 = arith.addf %43, %45 : vector<64x512xf32>
    %cst_30 = arith.constant 0.000000e+00 : f32
    %47 = vector.broadcast %cst_30 : f32 to vector<64x512xf32>
    %48 = arith.maximumf %46, %47 : vector<64x512xf32>
    %cst_31 = arith.constant dense<0.000000e+00> : vector<512xf32>
    %49 = vector.multi_reduction <add>, %48, %cst_31 [0] : vector<64x512xf32> to vector<512xf32>
    %50 = vector.shape_cast %49 : vector<512xf32> to vector<1x512xf32>
    %cst_32 = arith.constant 6.400000e+01 : f32
    %51 = vector.broadcast %cst_32 : f32 to vector<1x512xf32>
    %52 = arith.divf %50, %51 : vector<1x512xf32>
    %53 = tpu.concatenate %13, %26, %39, %52 in 0 : vector<1x512xf32>, vector<1x512xf32>, vector<1x512xf32>, vector<1x512xf32> -> vector<4x512xf32>
    %c0_33 = arith.constant 0 : index
    %c0_34 = arith.constant 0 : index
    %54 = vector.load %arg4[%c0_33, %c0_34] : memref<512x128xf32, #tpu.memory_space<vmem>>, vector<512x128xf32>
    %cst_35 = arith.constant dense<0.000000e+00> : vector<4x128xf32>
    %55 = tpu.matmul %53, %54, %cst_35 {dimension_numbers = #tpu.dot_dimension_numbers<[1], [0], [0], [1], [0, 0, 1, 1], [], []>} : vector<4x512xf32>, vector<512x128xf32>, vector<4x128xf32> -> vector<4x128xf32>
    %c0_36 = arith.constant 0 : index
    %c0_37 = arith.constant 0 : index
    %56 = vector.load %arg5[%c0_36, %c0_37] : memref<1x128xf32, #tpu.memory_space<vmem>>, vector<1x128xf32>
    %57 = vector.broadcast %56 : vector<1x128xf32> to vector<4x128xf32>
    %58 = arith.addf %55, %57 : vector<4x128xf32>
    %c0_38 = arith.constant 0 : index
    %c0_39 = arith.constant 0 : index
    %c0_40 = arith.constant 0 : index
    %59 = vector.load %arg6[%c0_38, %c0_39, %c0_40] : memref<1x4x128xf32, #tpu.memory_space<vmem>>, vector<1x4x128xf32>
    %60 = vector.shape_cast %59 : vector<1x4x128xf32> to vector<4x128xf32>
    %61 = vector.shape_cast %58 : vector<4x128xf32> to vector<1x4x128xf32>
    tpu.vector_store %arg6[%c0_38, %c0_39, %c0_40], %61 {strides = array<i32>} : memref<1x4x128xf32, #tpu.memory_space<vmem>>, vector<1x4x128xf32>,
    return
  }
  func.func @transform_0(%arg0: i32) -> (i32, i32, i32) {
    %c0_i32 = arith.constant 0 : i32
    %c0_i32_0 = arith.constant 0 : i32
    %c0_i32_1 = arith.constant 0 : i32
    return %arg0, %c0_i32, %c0_i32_0 : i32, i32, i32
  }
  func.func @transform_1(%arg0: i32) -> (i32, i32) {
    %c0_i32 = arith.constant 0 : i32
    %c0_i32_0 = arith.constant 0 : i32
    %c0_i32_1 = arith.constant 0 : i32
    return %c0_i32, %c0_i32_0 : i32, i32
  }
  func.func @transform_2(%arg0: i32) -> (i32, i32) {
    %c0_i32 = arith.constant 0 : i32
    %c0_i32_0 = arith.constant 0 : i32
    %c0_i32_1 = arith.constant 0 : i32
    return %c0_i32, %c0_i32_0 : i32, i32
  }
  func.func @transform_3(%arg0: i32) -> (i32, i32) {
    %c0_i32 = arith.constant 0 : i32
    %c0_i32_0 = arith.constant 0 : i32
    %c0_i32_1 = arith.constant 0 : i32
    return %c0_i32, %c0_i32_0 : i32, i32
  }
  func.func @transform_4(%arg0: i32) -> (i32, i32) {
    %c0_i32 = arith.constant 0 : i32
    %c0_i32_0 = arith.constant 0 : i32
    %c0_i32_1 = arith.constant 0 : i32
    return %c0_i32, %c0_i32_0 : i32, i32
  }
  func.func @transform_5(%arg0: i32) -> (i32, i32, i32) {
    %c0_i32 = arith.constant 0 : i32
    %c0_i32_0 = arith.constant 0 : i32
    %c0_i32_1 = arith.constant 0 : i32
    return %arg0, %c0_i32, %c0_i32_0 : i32, i32, i32
  }
}

</mosaic_0001>

<llo_original>
// kernel: efficientnet_head.1
$region0: #{efficientnet_head.1}
  #allocation0 [shape = 'u32[]', space=smem, size = 0x4, offset = 0x4, fixed_abs, tag = 'smem constant byte address 0x4 - core index']
  #allocation1 [shape = 'u32[72,128]{1,0:T(1,128)}', space=vmem, size = 0x9000, scoped, tag = 'internal scratch']
  %s0 = inlined_call_operand.vmem [shape: f32[8,1536,64], index: 0, kind: input, shape index: {}]
  %s1 = inlined_call_operand.vmem [shape: bf16[1536,512], index: 1, kind: input, shape index: {}]
  %s2 = inlined_call_operand.vmem [shape: f32[1,512], index: 2, kind: input, shape index: {}]
  %s3 = inlined_call_operand.vmem [shape: f32[512,128], index: 3, kind: input, shape index: {}]
  %s4 = inlined_call_operand.vmem [shape: f32[1,128], index: 4, kind: input, shape index: {}]
  %s5 = inlined_call_operand.vmem [shape: f32[2,4,128], index: 5, kind: output, shape index: {}]
  %s6 = sld [smem:[#allocation0]]
  $region53: #{efficientnet_head.1} parent=0
    _
  %s8 = ssub.s32 1, %s6
  %s9 = scalar_select 0, %s8, %s6
  loop: start=0, step=1, limit=4
  $region2: #{efficientnet_head.1} parent=0 // loop_pre_header
    _
  $region3: #{efficientnet_head.1} parent=0 // loop_header
    %s11 = sphi 0, %s15
    %p12 = scmp.ge.s32.totalorder %s11, 4
    %s21 = sphi 0, %s23
    %s24 = sphi 0, %s21
    %s25 = sphi 0, %s24
    %s41 = sphi 0, %s25
    %s45 = sphi 0, %s45
    %s47 = sphi 0, %s45
    %s48 = sphi 0, %s47
    %s62 = sphi 0, %s48
    %s66 = sphi 0, %s66
    %s68 = sphi 0, %s66
    %s69 = sphi 0, %s68
    %s83 = sphi 0, %s69
    %s87 = sphi 0, %s87
    %s89 = sphi 0, %s87
    %s90 = sphi 0, %s89
    %s104 = sphi 0, %s90
    %s108 = sphi 0, %s108
    %s110 = sphi 0, %s108
    %s111 = sphi 0, %s110
    %s125 = sphi 0, %s111
    %s131 = sphi 0, %s133
    %s134 = sphi 0, %s131
    %s135 = sphi 0, %s134
    %s151 = sphi 0, %s135
  $region4: #{efficientnet_head.1} parent=0 // loop_header_branch
    %14 = sbr.rel (%p12) target = $region8
  $region5: #{efficientnet_head.1} parent=0 // loop_body
    %s16 = ssub.s32 %s11, 1
    %s17 = ssub.s32 %s11, 2
    %s18 = sadd.s32 %s11, 1
    %s19 = ssub.s32 %s11, %s18
    %p20 = scmp.eq.s32.totalorder %s19, 0
    %s22 = sadd.s32 %s21, 1
    %s23 = scalar_select %p20, %s21, %s22
    %p26 = pneg %p20
    %p27 = scmp.eq.s32.totalorder %s11, 1
    %p28 = por %p26, %p27
    %p29 = scmp.ne.s32.totalorder %s21, %s24
    %p30 = scmp.eq.s32.totalorder %s11, 0
    %p31 = por %p29, %p30
    %p32 = scmp.ne.s32.totalorder %s21, %s24
    %p33 = scmp.eq.s32.totalorder %s16, 1
    %p34 = por %p32, %p33
    %p35 = scmp.ne.s32.totalorder %s24, %s25
    %p36 = scmp.eq.s32.totalorder %s16, 0
    %p37 = por %p35, %p36
    %p38 = scmp.ne.s32.totalorder %s24, %s25
    %p39 = scmp.eq.s32.totalorder %s17, 1
    %p40 = por %p38, %p39
    %p42 = scmp.ne.s32.totalorder %s25, %s41
    %p43 = scmp.eq.s32.totalorder %s17, 0
    %p44 = por %p42, %p43
    %s46 = sadd.s32 %s45, 1
    %p49 = scmp.eq.s32.totalorder %s11, 1
    %p50 = scmp.ne.s32.totalorder %s45, %s47
    %p51 = scmp.eq.s32.totalorder %s11, 0
    %p52 = por %p50, %p51
    %p53 = scmp.ne.s32.totalorder %s45, %s47
    %p54 = scmp.eq.s32.totalorder %s16, 1
    %p55 = por %p53, %p54
    %p56 = scmp.ne.s32.totalorder %s47, %s48
    %p57 = scmp.eq.s32.totalorder %s16, 0
    %p58 = por %p56, %p57
    %p59 = scmp.ne.s32.totalorder %s47, %s48
    %p60 = scmp.eq.s32.totalorder %s17, 1
    %p61 = por %p59, %p60
    %p63 = scmp.ne.s32.totalorder %s48, %s62
    %p64 = scmp.eq.s32.totalorder %s17, 0
    %p65 = por %p63, %p64
    %s67 = sadd.s32 %s66, 1
    %p70 = scmp.eq.s32.totalorder %s11, 1
    %p71 = scmp.ne.s32.totalorder %s66, %s68
    %p72 = scmp.eq.s32.totalorder %s11, 0
    %p73 = por %p71, %p72
    %p74 = scmp.ne.s32.totalorder %s66, %s68
    %p75 = scmp.eq.s32.totalorder %s16, 1
    %p76 = por %p74, %p75
    %p77 = scmp.ne.s32.totalorder %s68, %s69
    %p78 = scmp.eq.s32.totalorder %s16, 0
    %p79 = por %p77, %p78
    %p80 = scmp.ne.s32.totalorder %s68, %s69
    %p81 = scmp.eq.s32.totalorder %s17, 1
    %p82 = por %p80, %p81
    %p84 = scmp.ne.s32.totalorder %s69, %s83
    %p85 = scmp.eq.s32.totalorder %s17, 0
    %p86 = por %p84, %p85
    %s88 = sadd.s32 %s87, 1
    %p91 = scmp.eq.s32.totalorder %s11, 1
    %p92 = scmp.ne.s32.totalorder %s87, %s89
    %p93 = scmp.eq.s32.totalorder %s11, 0
    %p94 = por %p92, %p93
    %p95 = scmp.ne.s32.totalorder %s87, %s89
    %p96 = scmp.eq.s32.totalorder %s16, 1
    %p97 = por %p95, %p96
    %p98 = scmp.ne.s32.totalorder %s89, %s90
    %p99 = scmp.eq.s32.totalorder %s16, 0
    %p100 = por %p98, %p99
    %p101 = scmp.ne.s32.totalorder %s89, %s90
    %p102 = scmp.eq.s32.totalorder %s17, 1
    %p103 = por %p101, %p102
    %p105 = scmp.ne.s32.totalorder %s90, %s104
    %p106 = scmp.eq.s32.totalorder %s17, 0
    %p107 = por %p105, %p106
    %s109 = sadd.s32 %s108, 1
    %p112 = scmp.eq.s32.totalorder %s11, 1
    %p113 = scmp.ne.s32.totalorder %s108, %s110
    %p114 = scmp.eq.s32.totalorder %s11, 0
    %p115 = por %p113, %p114
    %p116 = scmp.ne.s32.totalorder %s108, %s110
    %p117 = scmp.eq.s32.totalorder %s16, 1
    %p118 = por %p116, %p117
    %p119 = scmp.ne.s32.totalorder %s110, %s111
    %p120 = scmp.eq.s32.totalorder %s16, 0
    %p121 = por %p119, %p120
    %p122 = scmp.ne.s32.totalorder %s110, %s111
    %p123 = scmp.eq.s32.totalorder %s17, 1
    %p124 = por %p122, %p123
    %p126 = scmp.ne.s32.totalorder %s111, %s125
    %p127 = scmp.eq.s32.totalorder %s17, 0
    %p128 = por %p126, %p127
    %s129 = ssub.s32 %s11, %s18
    %p130 = scmp.eq.s32.totalorder %s129, 0
    %s132 = sadd.s32 %s131, 1
    %s133 = scalar_select %p130, %s131, %s132
    %p136 = pneg %p130
    %p137 = scmp.eq.s32.totalorder %s11, 1
    %p138 = por %p136, %p137
    %p139 = scmp.ne.s32.totalorder %s131, %s134
    %p140 = scmp.eq.s32.totalorder %s11, 0
    %p141 = por %p139, %p140
    %p142 = scmp.ne.s32.totalorder %s131, %s134
    %p143 = scmp.eq.s32.totalorder %s16, 1
    %p144 = por %p142, %p143
    %p145 = scmp.ne.s32.totalorder %s134, %s135
    %p146 = scmp.eq.s32.totalorder %s16, 0
    %p147 = por %p145, %p146
    %p148 = scmp.ne.s32.totalorder %s134, %s135
    %p149 = scmp.eq.s32.totalorder %s17, 1
    %p150 = por %p148, %p149
    %p152 = scmp.ne.s32.totalorder %s135, %s151
    %p153 = scmp.eq.s32.totalorder %s17, 0
    %p154 = por %p152, %p153
    %p155 = scmp.le.s32.totalorder 1, %s11
    %p156 = scmp.lt.s32.totalorder %s11, 3
    %p157 = pnand %p155, %p156
    %p158 = pneg %p157
    // Predicated region
    $region9: #{efficientnet_head.1} parent=5 // pred_check
      _
    $region10: #{efficientnet_head.1} parent=5 // pred_check_branch
      %160 = sbr.rel (%p157) target = $region12
    $region11: #{efficientnet_head.1} parent=5 // pred_region
      %s161 = ssub.s32 %s11, 1
      // Predicated region
      $region13: #{efficientnet_head.1} parent=11 // pred_check
        %p162 = pneg %p58
      $region14: #{efficientnet_head.1} parent=11 // pred_check_branch
        %164 = sbr.rel (%p162) target = $region16
      $region15: #{efficientnet_head.1} parent=11 // pred_region
        _
      $region16: #{efficientnet_head.1} parent=11 // pred_fallthru
        _
      // Predicated region
      $region17: #{efficientnet_head.1} parent=11 // pred_check
        %p165 = pneg %p79
      $region18: #{efficientnet_head.1} parent=11 // pred_check_branch
        %167 = sbr.rel (%p165) target = $region20
      $region19: #{efficientnet_head.1} parent=11 // pred_region
        _
      $region20: #{efficientnet_head.1} parent=11 // pred_fallthru
        _
      // Predicated region
      $region21: #{efficientnet_head.1} parent=11 // pred_check
        %p168 = pneg %p100
      $region22: #{efficientnet_head.1} parent=11 // pred_check_branch
        %170 = sbr.rel (%p168) target = $region24
      $region23: #{efficientnet_head.1} parent=11 // pred_region
        _
      $region24: #{efficientnet_head.1} parent=11 // pred_fallthru
        _
      // Predicated region
      $region25: #{efficientnet_head.1} parent=11 // pred_check
        %p171 = pneg %p121
      $region26: #{efficientnet_head.1} parent=11 // pred_check_branch
        %173 = sbr.rel (%p171) target = $region28
      $region27: #{efficientnet_head.1} parent=11 // pred_region
        _
      $region28: #{efficientnet_head.1} parent=11 // pred_fallthru
        _
    $region12: #{efficientnet_head.1} parent=5 // pred_fallthru
      _
    %p174 = scmp.lt.s32.totalorder %s11, 2
    // Predicated region
    $region29: #{efficientnet_head.1} parent=5 // pred_check
      %p175 = pneg %p174
    $region30: #{efficientnet_head.1} parent=5 // pred_check_branch
      %177 = sbr.rel (%p175) target = $region32
    $region31: #{efficientnet_head.1} parent=5 // pred_region
      // Predicated region
      $region33: #{efficientnet_head.1} parent=31 // pred_check
        %p178 = pneg %p31
      $region34: #{efficientnet_head.1} parent=31 // pred_check_branch
        %180 = sbr.rel (%p178) target = $region36
      $region35: #{efficientnet_head.1} parent=31 // pred_region
        %s181 = smul.u32 4, %s11
        %p182 = scmp.lt.s32.totalorder %s181, 7
        %s183 = scalar_select %p182, %s181, 7
        %s184 = smul.addr %s183, 192
        %s185 = smul.addr %s184, 8
        %s186 = scalar_lea.vmem %s0, %s185
        %s187 = smul.u32 4, %s11
      $region36: #{efficientnet_head.1} parent=31 // pred_fallthru
        _
    $region32: #{efficientnet_head.1} parent=5 // pred_fallthru
      _
    %p188 = scmp.le.s32.totalorder 1, %s11
    %p189 = scmp.lt.s32.totalorder %s11, 3
    %p190 = pnand %p188, %p189
    %p191 = pneg %p190
    // Predicated region
    $region37: #{efficientnet_head.1} parent=5 // pred_check
      _
    $region38: #{efficientnet_head.1} parent=5 // pred_check_branch
      %193 = sbr.rel (%p190) target = $region40
    $region39: #{efficientnet_head.1} parent=5 // pred_region
      %s194 = ssub.s32 %s11, 1
      %s195 = smul.u32 4, %s16
      %p196 = scmp.lt.s32.totalorder %s195, 7
      %s197 = scalar_select %p196, %s195, 7
      %s198 = smul.addr %s197, 192
      %s199 = smul.addr %s198, 8
      %s200 = scalar_lea.vmem %s0, %s199
      %p201 = pneg %p37
      %p202 = pneg %p34
      %p203 = pneg %p58
      %p204 = pneg %p55
      %p205 = pneg %p79
      %p206 = pneg %p76
      %p207 = pneg %p100
      %p208 = pneg %p97
      %p209 = pneg %p121
      %p210 = pneg %p118
      %p211 = pneg %p147
      %p212 = pneg %p144
      %p213 = scmp.lt.s32.totalorder %s16, 1
      %s214 = scalar_select %p213, %s16, 1
      %s215 = smul.addr %s214, 4
      %s216 = scalar_lea.vmem %s5, %s215
      %s217 = smul.u32 4, %s16
      %p218 = scmp.lt.s32.totalorder %s217, 7
      %s219 = scalar_select %p218, %s217, 7
      %s220 = smul.addr %s219, 192
      %s221 = smul.addr %s220, 8
      %s222 = scalar_lea.vmem %s0, %s221
      %s223 = smul.u32 4, %s16
      %p224 = scmp.lt.s32.totalorder %s16, 1
      %s225 = scalar_select %p224, %s16, 1
      %s226 = smul.addr %s225, 4
      %s227 = scalar_lea.vmem %s5, %s226
      %v228 = vld [vmem:[%s1] sm:$0xff]
      %v229 = vld [vmem:[%s1 + $0x8] sm:$0xff]
      %v230 = vld [vmem:[%s1 + $0x10] sm:$0xff]
      %v231 = vld [vmem:[%s1 + $0x18] sm:$0xff]
      %v232 = vld [vmem:[%s1 + $0x20] sm:$0xff]
      %v233 = vld [vmem:[%s1 + $0x28] sm:$0xff]
      %v234 = vld [vmem:[%s1 + $0x30] sm:$0xff]
      %v235 = vld [vmem:[%s1 + $0x38] sm:$0xff]
      %v236 = vld [vmem:[%s1 + $0x40] sm:$0xff]
      %v237 = vld [vmem:[%s1 + $0x48] sm:$0xff]
      %v238 = vld [vmem:[%s1 + $0x50] sm:$0xff]
      %v239 = vld [vmem:[%s1 + $0x58] sm:$0xff]
      %v240 = vld [vmem:[%s1 + $0x60] sm:$0xff]
      %v241 = vld [vmem:[%s1 + $0x68] sm:$0xff]
      %v242 = vld [vmem:[%s1 + $0x70] sm:$0xff]
      %v243 = vld [vmem:[%s1 + $0x78] sm:$0xff]
      %v244 = vld [vmem:[%s1 + $0x80] sm:$0xff]
      %v245 = vld [vmem:[%s1 + $0x88] sm:$0xff]
      %v246 = vld [vmem:[%s1 + $0x90] sm:$0xff]
      %v247 = vld [vmem:[%s1 + $0x98] sm:$0xff]
      %v248 = vld [vmem:[%s1 + $0xa0] sm:$0xff]
      %v249 = vld [vmem:[%s1 + $0xa8] sm:$0xff]
      %v250 = vld [vmem:[%s1 + $0xb0] sm:$0xff]
      %v251 = vld [vmem:[%s1 + $0xb8] sm:$0xff]
      %v252 = vld [vmem:[%s1 + $0xc0] sm:$0xff]
      %v253 = vld [vmem:[%s1 + $0xc8] sm:$0xff]
      %v254 = vld [vmem:[%s1 + $0xd0] sm:$0xff]
      %v255 = vld [vmem:[%s1 + $0xd8] sm:$0xff]
      %v256 = vld [vmem:[%s1 + $0xe0] sm:$0xff]
      %v257 = vld [vmem:[%s1 + $0xe8] sm:$0xff]
      %v258 = vld [vmem:[%s1 + $0xf0] sm:$0xff]
      %v259 = vld [vmem:[%s1 + $0xf8] sm:$0xff]
      %v260 = vld [vmem:[%s1 + $0x100] sm:$0xff]
      %v261 = vld [vmem:[%s1 + $0x108] sm:$0xff]
      %v262 = vld [vmem:[%s1 + $0x110] sm:$0xff]
      %v263 = vld [vmem:[%s1 + $0x118] sm:$0xff]
      %v264 = vld [vmem:[%s1 + $0x120] sm:$0xff]
      %v265 = vld [vmem:[%s1 + $0x128] sm:$0xff]
      %v266 = vld [vmem:[%s1 + $0x130] sm:$0xff]
      %v267 = vld [vmem:[%s1 + $0x138] sm:$0xff]
      %v268 = vld [vmem:[%s1 + $0x140] sm:$0xff]
      %v269 = vld [vmem:[%s1 + $0x148] sm:$0xff]
      %v270 = vld [vmem:[%s1 + $0x150] sm:$0xff]
      %v271 = vld [vmem:[%s1 + $0x158] sm:$0xff]
      %v272 = vld [vmem:[%s1 + $0x160] sm:$0xff]
      %v273 = vld [vmem:[%s1 + $0x168] sm:$0xff]
      %v274 = vld [vmem:[%s1 + $0x170] sm:$0xff]
      %v275 = vld [vmem:[%s1 + $0x178] sm:$0xff]
      %v276 = vld [vmem:[%s1 + $0x180] sm:$0xff]
      %v277 = vld [vmem:[%s1 + $0x188] sm:$0xff]
      %v278 = vld [vmem:[%s1 + $0x190] sm:$0xff]
      %v279 = vld [vmem:[%s1 + $0x198] sm:$0xff]
      %v280 = vld [vmem:[%s1 + $0x1a0] sm:$0xff]
      %v281 = vld [vmem:[%s1 + $0x1a8] sm:$0xff]
      %v282 = vld [vmem:[%s1 + $0x1b0] sm:$0xff]
      %v283 = vld [vmem:[%s1 + $0x1b8] sm:$0xff]
      %v284 = vld [vmem:[%s1 + $0x1c0] sm:$0xff]
      %v285 = vld [vmem:[%s1 + $0x1c8] sm:$0xff]
      %v286 = vld [vmem:[%s1 + $0x1d0] sm:$0xff]
      %v287 = vld [vmem:[%s1 + $0x1d8] sm:$0xff]
      %v288 = vld [vmem:[%s1 + $0x1e0] sm:$0xff]
      %v289 = vld [vmem:[%s1 + $0x1e8] sm:$0xff]
      %v290 = vld [vmem:[%s1 + $0x1f0] sm:$0xff]
      %v291 = vld [vmem:[%s1 + $0x1f8] sm:$0xff]
      %v292 = vld [vmem:[%s1 + $0x200] sm:$0xff]
      %v293 = vld [vmem:[%s1 + $0x208] sm:$0xff]
      %v294 = vld [vmem:[%s1 + $0x210] sm:$0xff]
      %v295 = vld [vmem:[%s1 + $0x218] sm:$0xff]
      %v296 = vld [vmem:[%s1 + $0x220] sm:$0xff]
      %v297 = vld [vmem:[%s1 + $0x228] sm:$0xff]
      %v298 = vld [vmem:[%s1 + $0x230] sm:$0xff]
      %v299 = vld [vmem:[%s1 + $0x238] sm:$0xff]
      %v300 = vld [vmem:[%s1 + $0x240] sm:$0xff]
      %v301 = vld [vmem:[%s1 + $0x248] sm:$0xff]
      %v302 = vld [vmem:[%s1 + $0x250] sm:$0xff]
      %v303 = vld [vmem:[%s1 + $0x258] sm:$0xff]
      %v304 = vld [vmem:[%s1 + $0x260] sm:$0xff]
      %v305 = vld [vmem:[%s1 + $0x268] sm:$0xff]
      %v306 = vld [vmem:[%s1 + $0x270] sm:$0xff]
      %v307 = vld [vmem:[%s1 + $0x278] sm:$0xff]
      %v308 = vld [vmem:[%s1 + $0x280] sm:$0xff]
      %v309 = vld [vmem:[%s1 + $0x288] sm:$0xff]
      %v310 = vld [vmem:[%s1 + $0x290] sm:$0xff]
      %v311 = vld [vmem:[%s1 + $0x298] sm:$0xff]
      %v312 = vld [vmem:[%s1 + $0x2a0] sm:$0xff]
      %v313 = vld [vmem:[%s1 + $0x2a8] sm:$0xff]
      %v314 = vld [vmem:[%s1 + $0x2b0] sm:$0xff]
      %v315 = vld [vmem:[%s1 + $0x2b8] sm:$0xff]
      %v316 = vld [vmem:[%s1 + $0x2c0] sm:$0xff]
      %v317 = vld [vmem:[%s1 + $0x2c8] sm:$0xff]
      %v318 = vld [vmem:[%s1 + $0x2d0] sm:$0xff]
      %v319 = vld [vmem:[%s1 + $0x2d8] sm:$0xff]
      %v320 = vld [vmem:[%s1 + $0x2e0] sm:$0xff]
      %v321 = vld [vmem:[%s1 + $0x2e8] sm:$0xff]
      %v322 = vld [vmem:[%s1 + $0x2f0] sm:$0xff]
      %v323 = vld [vmem:[%s1 + $0x2f8] sm:$0xff]
      %v324 = vld [vmem:[%s1 + $0x300] sm:$0xff]
      %v325 = vld [vmem:[%s1 + $0x308] sm:$0xff]
      %v326 = vld [vmem:[%s1 + $0x310] sm:$0xff]
      %v327 = vld [vmem:[%s1 + $0x318] sm:$0xff]
      %v328 = vld [vmem:[%s1 + $0x320] sm:$0xff]
      %v329 = vld [vmem:[%s1 + $0x328] sm:$0xff]
      %v330 = vld [vmem:[%s1 + $0x330] sm:$0xff]
      %v331 = vld [vmem:[%s1 + $0x338] sm:$0xff]
      %v332 = vld [vmem:[%s1 + $0x340] sm:$0xff]
      %v333 = vld [vmem:[%s1 + $0x348] sm:$0xff]
      %v334 = vld [vmem:[%s1 + $0x350] sm:$0xff]
      %v335 = vld [vmem:[%s1 + $0x358] sm:$0xff]
      %v336 = vld [vmem:[%s1 + $0x360] sm:$0xff]
      %v337 = vld [vmem:[%s1 + $0x368] sm:$0xff]
      %v338 = vld [vmem:[%s1 + $0x370] sm:$0xff]
      %v339 = vld [vmem:[%s1 + $0x378] sm:$0xff]
      %v340 = vld [vmem:[%s1 + $0x380] sm:$0xff]
      %v341 = vld [vmem:[%s1 + $0x388] sm:$0xff]
      %v342 = vld [vmem:[%s1 + $0x390] sm:$0xff]
      %v343 = vld [vmem:[%s1 + $0x398] sm:$0xff]
      %v344 = vld [vmem:[%s1 + $0x3a0] sm:$0xff]
      %v345 = vld [vmem:[%s1 + $0x3a8] sm:$0xff]
      %v346 = vld [vmem:[%s1 + $0x3b0] sm:$0xff]
      %v347 = vld [vmem:[%s1 + $0x3b8] sm:$0xff]
      %v348 = vld [vmem:[%s1 + $0x3c0] sm:$0xff]
      %v349 = vld [vmem:[%s1 + $0x3c8] sm:$0xff]
      %v350 = vld [vmem:[%s1 + $0x3d0] sm:$0xff]
      %v351 = vld [vmem:[%s1 + $0x3d8] sm:$0xff]
      %v352 = vld [vmem:[%s1 + $0x3e0] sm:$0xff]
      %v353 = vld [vmem:[%s1 + $0x3e8] sm:$0xff]
      %v354 = vld [vmem:[%s1 + $0x3f0] sm:$0xff]
      %v355 = vld [vmem:[%s1 + $0x3f8] sm:$0xff]
      %v356 = vld [vmem:[%s1 + $0x400] sm:$0xff]
      %v357 = vld [vmem:[%s1 + $0x408] sm:$0xff]
      %v358 = vld [vmem:[%s1 + $0x410] sm:$0xff]
      %v359 = vld [vmem:[%s1 + $0x418] sm:$0xff]
      %v360 = vld [vmem:[%s1 + $0x420] sm:$0xff]
      %v361 = vld [vmem:[%s1 + $0x428] sm:$0xff]
      %v362 = vld [vmem:[%s1 + $0x430] sm:$0xff]
      %v363 = vld [vmem:[%s1 + $0x438] sm:$0xff]
      %v364 = vld [vmem:[%s1 + $0x440] sm:$0xff]
      %v365 = vld [vmem:[%s1 + $0x448] sm:$0xff]
      %v366 = vld [vmem:[%s1 + $0x450] sm:$0xff]
      %v367 = vld [vmem:[%s1 + $0x458] sm:$0xff]
      %v368 = vld [vmem:[%s1 + $0x460] sm:$0xff]
      %v369 = vld [vmem:[%s1 + $0x468] sm:$0xff]
      %v370 = vld [vmem:[%s1 + $0x470] sm:$0xff]
      %v371 = vld [vmem:[%s1 + $0x478] sm:$0xff]
      %v372 = vld [vmem:[%s1 + $0x480] sm:$0xff]
      %v373 = vld [vmem:[%s1 + $0x488] sm:$0xff]
      %v374 = vld [vmem:[%s1 + $0x490] sm:$0xff]
      %v375 = vld [vmem:[%s1 + $0x498] sm:$0xff]
      %v376 = vld [vmem:[%s1 + $0x4a0] sm:$0xff]
      %v377 = vld [vmem:[%s1 + $0x4a8] sm:$0xff]
      %v378 = vld [vmem:[%s1 + $0x4b0] sm:$0xff]
      %v379 = vld [vmem:[%s1 + $0x4b8] sm:$0xff]
      %v380 = vld [vmem:[%s1 + $0x4c0] sm:$0xff]
      %v381 = vld [vmem:[%s1 + $0x4c8] sm:$0xff]
      %v382 = vld [vmem:[%s1 + $0x4d0] sm:$0xff]
      %v383 = vld [vmem:[%s1 + $0x4d8] sm:$0xff]
      %v384 = vld [vmem:[%s1 + $0x4e0] sm:$0xff]
      %v385 = vld [vmem:[%s1 + $0x4e8] sm:$0xff]
      %v386 = vld [vmem:[%s1 + $0x4f0] sm:$0xff]
      %v387 = vld [vmem:[%s1 + $0x4f8] sm:$0xff]
      %v388 = vld [vmem:[%s1 + $0x500] sm:$0xff]
      %v389 = vld [vmem:[%s1 + $0x508] sm:$0xff]
      %v390 = vld [vmem:[%s1 + $0x510] sm:$0xff]
      %v391 = vld [vmem:[%s1 + $0x518] sm:$0xff]
      %v392 = vld [vmem:[%s1 + $0x520] sm:$0xff]
      %v393 = vld [vmem:[%s1 + $0x528] sm:$0xff]
      %v394 = vld [vmem:[%s1 + $0x530] sm:$0xff]
      %v395 = vld [vmem:[%s1 + $0x538] sm:$0xff]
      %v396 = vld [vmem:[%s1 + $0x540] sm:$0xff]
      %v397 = vld [vmem:[%s1 + $0x548] sm:$0xff]
      %v398 = vld [vmem:[%s1 + $0x550] sm:$0xff]
      %v399 = vld [vmem:[%s1 + $0x558] sm:$0xff]
      %v400 = vld [vmem:[%s1 + $0x560] sm:$0xff]
      %v401 = vld [vmem:[%s1 + $0x568] sm:$0xff]
      %v402 = vld [vmem:[%s1 + $0x570] sm:$0xff]
      %v403 = vld [vmem:[%s1 + $0x578] sm:$0xff]
      %v404 = vld [vmem:[%s1 + $0x580] sm:$0xff]
      %v405 = vld [vmem:[%s1 + $0x588] sm:$0xff]
      %v406 = vld [vmem:[%s1 + $0x590] sm:$0xff]
      %v407 = vld [vmem:[%s1 + $0x598] sm:$0xff]
      %v408 = vld [vmem:[%s1 + $0x5a0] sm:$0xff]
      %v409 = vld [vmem:[%s1 + $0x5a8] sm:$0xff]
      %v410 = vld [vmem:[%s1 + $0x5b0] sm:$0xff]
      %v411 = vld [vmem:[%s1 + $0x5b8] sm:$0xff]
      %v412 = vld [vmem:[%s1 + $0x5c0] sm:$0xff]
      %v413 = vld [vmem:[%s1 + $0x5c8] sm:$0xff]
      %v414 = vld [vmem:[%s1 + $0x5d0] sm:$0xff]
      %v415 = vld [vmem:[%s1 + $0x5d8] sm:$0xff]
      %v416 = vld [vmem:[%s1 + $0x5e0] sm:$0xff]
      %v417 = vld [vmem:[%s1 + $0x5e8] sm:$0xff]
      %v418 = vld [vmem:[%s1 + $0x5f0] sm:$0xff]
      %v419 = vld [vmem:[%s1 + $0x5f8] sm:$0xff]
      %v420 = vld [vmem:[%s1 + $0x600] sm:$0xff]
      %v421 = vld [vmem:[%s1 + $0x608] sm:$0xff]
      %v422 = vld [vmem:[%s1 + $0x610] sm:$0xff]
      %v423 = vld [vmem:[%s1 + $0x618] sm:$0xff]
      %v424 = vld [vmem:[%s1 + $0x620] sm:$0xff]
      %v425 = vld [vmem:[%s1 + $0x628] sm:$0xff]
      %v426 = vld [vmem:[%s1 + $0x630] sm:$0xff]
      %v427 = vld [vmem:[%s1 + $0x638] sm:$0xff]
      %v428 = vld [vmem:[%s1 + $0x640] sm:$0xff]
      %v429 = vld [vmem:[%s1 + $0x648] sm:$0xff]
      %v430 = vld [vmem:[%s1 + $0x650] sm:$0xff]
      %v431 = vld [vmem:[%s1 + $0x658] sm:$0xff]
      %v432 = vld [vmem:[%s1 + $0x660] sm:$0xff]
      %v433 = vld [vmem:[%s1 + $0x668] sm:$0xff]
      %v434 = vld [vmem:[%s1 + $0x670] sm:$0xff]
      %v435 = vld [vmem:[%s1 + $0x678] sm:$0xff]
      %v436 = vld [vmem:[%s1 + $0x680] sm:$0xff]
      %v437 = vld [vmem:[%s1 + $0x688] sm:$0xff]
      %v438 = vld [vmem:[%s1 + $0x690] sm:$0xff]
      %v439 = vld [vmem:[%s1 + $0x698] sm:$0xff]
      %v440 = vld [vmem:[%s1 + $0x6a0] sm:$0xff]
      %v441 = vld [vmem:[%s1 + $0x6a8] sm:$0xff]
      %v442 = vld [vmem:[%s1 + $0x6b0] sm:$0xff]
      %v443 = vld [vmem:[%s1 + $0x6b8] sm:$0xff]
      %v444 = vld [vmem:[%s1 + $0x6c0] sm:$0xff]
      %v445 = vld [vmem:[%s1 + $0x6c8] sm:$0xff]
      %v446 = vld [vmem:[%s1 + $0x6d0] sm:$0xff]
      %v447 = vld [vmem:[%s1 + $0x6d8] sm:$0xff]
      %v448 = vld [vmem:[%s1 + $0x6e0] sm:$0xff]
      %v449 = vld [vmem:[%s1 + $0x6e8] sm:$0xff]
      %v450 = vld [vmem:[%s1 + $0x6f0] sm:$0xff]
      %v451 = vld [vmem:[%s1 + $0x6f8] sm:$0xff]
      %v452 = vld [vmem:[%s1 + $0x700] sm:$0xff]
      %v453 = vld [vmem:[%s1 + $0x708] sm:$0xff]
      %v454 = vld [vmem:[%s1 + $0x710] sm:$0xff]
      %v455 = vld [vmem:[%s1 + $0x718] sm:$0xff]
      %v456 = vld [vmem:[%s1 + $0x720] sm:$0xff]
      %v457 = vld [vmem:[%s1 + $0x728] sm:$0xff]
      %v458 = vld [vmem:[%s1 + $0x730] sm:$0xff]
      %v459 = vld [vmem:[%s1 + $0x738] sm:$0xff]
      %v460 = vld [vmem:[%s1 + $0x740] sm:$0xff]
      %v461 = vld [vmem:[%s1 + $0x748] sm:$0xff]
      %v462 = vld [vmem:[%s1 + $0x750] sm:$0xff]
      %v463 = vld [vmem:[%s1 + $0x758] sm:$0xff]
      %v464 = vld [vmem:[%s1 + $0x760] sm:$0xff]
      %v465 = vld [vmem:[%s1 + $0x768] sm:$0xff]
      %v466 = vld [vmem:[%s1 + $0x770] sm:$0xff]
      %v467 = vld [vmem:[%s1 + $0x778] sm:$0xff]
      %v468 = vld [vmem:[%s1 + $0x780] sm:$0xff]
      %v469 = vld [vmem:[%s1 + $0x788] sm:$0xff]
      %v470 = vld [vmem:[%s1 + $0x790] sm:$0xff]
      %v471 = vld [vmem:[%s1 + $0x798] sm:$0xff]
      %v472 = vld [vmem:[%s1 + $0x7a0] sm:$0xff]
      %v473 = vld [vmem:[%s1 + $0x7a8] sm:$0xff]
      %v474 = vld [vmem:[%s1 + $0x7b0] sm:$0xff]
      %v475 = vld [vmem:[%s1 + $0x7b8] sm:$0xff]
      %v476 = vld [vmem:[%s1 + $0x7c0] sm:$0xff]
      %v477 = vld [vmem:[%s1 + $0x7c8] sm:$0xff]
      %v478 = vld [vmem:[%s1 + $0x7d0] sm:$0xff]
      %v479 = vld [vmem:[%s1 + $0x7d8] sm:$0xff]
      %v480 = vld [vmem:[%s1 + $0x7e0] sm:$0xff]
      %v481 = vld [vmem:[%s1 + $0x7e8] sm:$0xff]
      %v482 = vld [vmem:[%s1 + $0x7f0] sm:$0xff]
      %v483 = vld [vmem:[%s1 + $0x7f8] sm:$0xff]
      %v484 = vld [vmem:[%s1 + $0x800] sm:$0xff]
      %v485 = vld [vmem:[%s1 + $0x808] sm:$0xff]
      %v486 = vld [vmem:[%s1 + $0x810] sm:$0xff]
      %v487 = vld [vmem:[%s1 + $0x818] sm:$0xff]
      %v488 = vld [vmem:[%s1 + $0x820] sm:$0xff]
      %v489 = vld [vmem:[%s1 + $0x828] sm:$0xff]
      %v490 = vld [vmem:[%s1 + $0x830] sm:$0xff]
      %v491 = vld [vmem:[%s1 + $0x838] sm:$0xff]
      %v492 = vld [vmem:[%s1 + $0x840] sm:$0xff]
      %v493 = vld [vmem:[%s1 + $0x848] sm:$0xff]
      %v494 = vld [vmem:[%s1 + $0x850] sm:$0xff]
      %v495 = vld [vmem:[%s1 + $0x858] sm:$0xff]
      %v496 = vld [vmem:[%s1 + $0x860] sm:$0xff]
      %v497 = vld [vmem:[%s1 + $0x868] sm:$0xff]
      %v498 = vld [vmem:[%s1 + $0x870] sm:$0xff]
      %v499 = vld [vmem:[%s1 + $0x878] sm:$0xff]
      %v500 = vld [vmem:[%s1 + $0x880] sm:$0xff]
      %v501 = vld [vmem:[%s1 + $0x888] sm:$0xff]
      %v502 = vld [vmem:[%s1 + $0x890] sm:$0xff]
      %v503 = vld [vmem:[%s1 + $0x898] sm:$0xff]
      %v504 = vld [vmem:[%s1 + $0x8a0] sm:$0xff]
      %v505 = vld [vmem:[%s1 + $0x8a8] sm:$0xff]
      %v506 = vld [vmem:[%s1 + $0x8b0] sm:$0xff]
      %v507 = vld [vmem:[%s1 + $0x8b8] sm:$0xff]
      %v508 = vld [vmem:[%s1 + $0x8c0] sm:$0xff]
      %v509 = vld [vmem:[%s1 + $0x8c8] sm:$0xff]
      %v510 = vld [vmem:[%s1 + $0x8d0] sm:$0xff]
      %v511 = vld [vmem:[%s1 + $0x8d8] sm:$0xff]
      %v512 = vld [vmem:[%s1 + $0x8e0] sm:$0xff]
      %v513 = vld [vmem:[%s1 + $0x8e8] sm:$0xff]
      %v514 = vld [vmem:[%s1 + $0x8f0] sm:$0xff]
      %v515 = vld [vmem:[%s1 + $0x8f8] sm:$0xff]
      %v516 = vld [vmem:[%s1 + $0x900] sm:$0xff]
      %v517 = vld [vmem:[%s1 + $0x908] sm:$0xff]
      %v518 = vld [vmem:[%s1 + $0x910] sm:$0xff]
      %v519 = vld [vmem:[%s1 + $0x918] sm:$0xff]
      %v520 = vld [vmem:[%s1 + $0x920] sm:$0xff]
      %v521 = vld [vmem:[%s1 + $0x928] sm:$0xff]
      %v522 = vld [vmem:[%s1 + $0x930] sm:$0xff]
      %v523 = vld [vmem:[%s1 + $0x938] sm:$0xff]
      %v524 = vld [vmem:[%s1 + $0x940] sm:$0xff]
      %v525 = vld [vmem:[%s1 + $0x948] sm:$0xff]
      %v526 = vld [vmem:[%s1 + $0x950] sm:$0xff]
      %v527 = vld [vmem:[%s1 + $0x958] sm:$0xff]
      %v528 = vld [vmem:[%s1 + $0x960] sm:$0xff]
      %v529 = vld [vmem:[%s1 + $0x968] sm:$0xff]
      %v530 = vld [vmem:[%s1 + $0x970] sm:$0xff]
      %v531 = vld [vmem:[%s1 + $0x978] sm:$0xff]
      %v532 = vld [vmem:[%s1 + $0x980] sm:$0xff]
      %v533 = vld [vmem:[%s1 + $0x988] sm:$0xff]
      %v534 = vld [vmem:[%s1 + $0x990] sm:$0xff]
      %v535 = vld [vmem:[%s1 + $0x998] sm:$0xff]
      %v536 = vld [vmem:[%s1 + $0x9a0] sm:$0xff]
      %v537 = vld [vmem:[%s1 + $0x9a8] sm:$0xff]
      %v538 = vld [vmem:[%s1 + $0x9b0] sm:$0xff]
      %v539 = vld [vmem:[%s1 + $0x9b8] sm:$0xff]
      %v540 = vld [vmem:[%s1 + $0x9c0] sm:$0xff]
      %v541 = vld [vmem:[%s1 + $0x9c8] sm:$0xff]
      %v542 = vld [vmem:[%s1 + $0x9d0] sm:$0xff]
      %v543 = vld [vmem:[%s1 + $0x9d8] sm:$0xff]
      %v544 = vld [vmem:[%s1 + $0x9e0] sm:$0xff]
      %v545 = vld [vmem:[%s1 + $0x9e8] sm:$0xff]
      %v546 = vld [vmem:[%s1 + $0x9f0] sm:$0xff]
      %v547 = vld [vmem:[%s1 + $0x9f8] sm:$0xff]
      %v548 = vld [vmem:[%s1 + $0xa00] sm:$0xff]
      %v549 = vld [vmem:[%s1 + $0xa08] sm:$0xff]
      %v550 = vld [vmem:[%s1 + $0xa10] sm:$0xff]
      %v551 = vld [vmem:[%s1 + $0xa18] sm:$0xff]
      %v552 = vld [vmem:[%s1 + $0xa20] sm:$0xff]
      %v553 = vld [vmem:[%s1 + $0xa28] sm:$0xff]
      %v554 = vld [vmem:[%s1 + $0xa30] sm:$0xff]
      %v555 = vld [vmem:[%s1 + $0xa38] sm:$0xff]
      %v556 = vld [vmem:[%s1 + $0xa40] sm:$0xff]
      %v557 = vld [vmem:[%s1 + $0xa48] sm:$0xff]
      %v558 = vld [vmem:[%s1 + $0xa50] sm:$0xff]
      %v559 = vld [vmem:[%s1 + $0xa58] sm:$0xff]
      %v560 = vld [vmem:[%s1 + $0xa60] sm:$0xff]
      %v561 = vld [vmem:[%s1 + $0xa68] sm:$0xff]
      %v562 = vld [vmem:[%s1 + $0xa70] sm:$0xff]
      %v563 = vld [vmem:[%s1 + $0xa78] sm:$0xff]
      %v564 = vld [vmem:[%s1 + $0xa80] sm:$0xff]
      %v565 = vld [vmem:[%s1 + $0xa88] sm:$0xff]
      %v566 = vld [vmem:[%s1 + $0xa90] sm:$0xff]
      %v567 = vld [vmem:[%s1 + $0xa98] sm:$0xff]
      %v568 = vld [vmem:[%s1 + $0xaa0] sm:$0xff]
      %v569 = vld [vmem:[%s1 + $0xaa8] sm:$0xff]
      %v570 = vld [vmem:[%s1 + $0xab0] sm:$0xff]
      %v571 = vld [vmem:[%s1 + $0xab8] sm:$0xff]
      %v572 = vld [vmem:[%s1 + $0xac0] sm:$0xff]
      %v573 = vld [vmem:[%s1 + $0xac8] sm:$0xff]
      %v574 = vld [vmem:[%s1 + $0xad0] sm:$0xff]
      %v575 = vld [vmem:[%s1 + $0xad8] sm:$0xff]
      %v576 = vld [vmem:[%s1 + $0xae0] sm:$0xff]
      %v577 = vld [vmem:[%s1 + $0xae8] sm:$0xff]
      %v578 = vld [vmem:[%s1 + $0xaf0] sm:$0xff]
      %v579 = vld [vmem:[%s1 + $0xaf8] sm:$0xff]
      %v580 = vld [vmem:[%s1 + $0xb00] sm:$0xff]
      %v581 = vld [vmem:[%s1 + $0xb08] sm:$0xff]
      %v582 = vld [vmem:[%s1 + $0xb10] sm:$0xff]
      %v583 = vld [vmem:[%s1 + $0xb18] sm:$0xff]
      %v584 = vld [vmem:[%s1 + $0xb20] sm:$0xff]
      %v585 = vld [vmem:[%s1 + $0xb28] sm:$0xff]
      %v586 = vld [vmem:[%s1 + $0xb30] sm:$0xff]
      %v587 = vld [vmem:[%s1 + $0xb38] sm:$0xff]
      %v588 = vld [vmem:[%s1 + $0xb40] sm:$0xff]
      %v589 = vld [vmem:[%s1 + $0xb48] sm:$0xff]
      %v590 = vld [vmem:[%s1 + $0xb50] sm:$0xff]
      %v591 = vld [vmem:[%s1 + $0xb58] sm:$0xff]
      %v592 = vld [vmem:[%s1 + $0xb60] sm:$0xff]
      %v593 = vld [vmem:[%s1 + $0xb68] sm:$0xff]
      %v594 = vld [vmem:[%s1 + $0xb70] sm:$0xff]
      %v595 = vld [vmem:[%s1 + $0xb78] sm:$0xff]
      %v596 = vld [vmem:[%s1 + $0xb80] sm:$0xff]
      %v597 = vld [vmem:[%s1 + $0xb88] sm:$0xff]
      %v598 = vld [vmem:[%s1 + $0xb90] sm:$0xff]
      %v599 = vld [vmem:[%s1 + $0xb98] sm:$0xff]
      %v600 = vld [vmem:[%s1 + $0xba0] sm:$0xff]
      %v601 = vld [vmem:[%s1 + $0xba8] sm:$0xff]
      %v602 = vld [vmem:[%s1 + $0xbb0] sm:$0xff]
      %v603 = vld [vmem:[%s1 + $0xbb8] sm:$0xff]
      %v604 = vld [vmem:[%s1 + $0xbc0] sm:$0xff]
      %v605 = vld [vmem:[%s1 + $0xbc8] sm:$0xff]
      %v606 = vld [vmem:[%s1 + $0xbd0] sm:$0xff]
      %v607 = vld [vmem:[%s1 + $0xbd8] sm:$0xff]
      %v608 = vld [vmem:[%s1 + $0xbe0] sm:$0xff]
      %v609 = vld [vmem:[%s1 + $0xbe8] sm:$0xff]
      %v610 = vld [vmem:[%s1 + $0xbf0] sm:$0xff]
      %v611 = vld [vmem:[%s1 + $0xbf8] sm:$0xff]
      %v612 = vld [vmem:[%s222] sm:$0xff]
      %v613 = vld [vmem:[%s222 + $0x8] sm:$0xff]
      %v614 = vld [vmem:[%s222 + $0x10] sm:$0xff]
      %v615 = vld [vmem:[%s222 + $0x18] sm:$0xff]
      %v616 = vld [vmem:[%s222 + $0x20] sm:$0xff]
      %v617 = vld [vmem:[%s222 + $0x28] sm:$0xff]
      %v618 = vld [vmem:[%s222 + $0x30] sm:$0xff]
      %v619 = vld [vmem:[%s222 + $0x38] sm:$0xff]
      %v620 = vld [vmem:[%s222 + $0x40] sm:$0xff]
      %v621 = vld [vmem:[%s222 + $0x48] sm:$0xff]
      %v622 = vld [vmem:[%s222 + $0x50] sm:$0xff]
      %v623 = vld [vmem:[%s222 + $0x58] sm:$0xff]
      %v624 = vld [vmem:[%s222 + $0x60] sm:$0xff]
      %v625 = vld [vmem:[%s222 + $0x68] sm:$0xff]
      %v626 = vld [vmem:[%s222 + $0x70] sm:$0xff]
      %v627 = vld [vmem:[%s222 + $0x78] sm:$0xff]
      %v628 = vld [vmem:[%s222 + $0x80] sm:$0xff]
      %v629 = vld [vmem:[%s222 + $0x88] sm:$0xff]
      %v630 = vld [vmem:[%s222 + $0x90] sm:$0xff]
      %v631 = vld [vmem:[%s222 + $0x98] sm:$0xff]
      %v632 = vld [vmem:[%s222 + $0xa0] sm:$0xff]
      %v633 = vld [vmem:[%s222 + $0xa8] sm:$0xff]
      %v634 = vld [vmem:[%s222 + $0xb0] sm:$0xff]
      %v635 = vld [vmem:[%s222 + $0xb8] sm:$0xff]
      %v636 = vld [vmem:[%s222 + $0xc0] sm:$0xff]
      %v637 = vld [vmem:[%s222 + $0xc8] sm:$0xff]
      %v638 = vld [vmem:[%s222 + $0xd0] sm:$0xff]
      %v639 = vld [vmem:[%s222 + $0xd8] sm:$0xff]
      %v640 = vld [vmem:[%s222 + $0xe0] sm:$0xff]
      %v641 = vld [vmem:[%s222 + $0xe8] sm:$0xff]
      %v642 = vld [vmem:[%s222 + $0xf0] sm:$0xff]
      %v643 = vld [vmem:[%s222 + $0xf8] sm:$0xff]
      %v644 = vld [vmem:[%s222 + $0x100] sm:$0xff]
      %v645 = vld [vmem:[%s222 + $0x108] sm:$0xff]
      %v646 = vld [vmem:[%s222 + $0x110] sm:$0xff]
      %v647 = vld [vmem:[%s222 + $0x118] sm:$0xff]
      %v648 = vld [vmem:[%s222 + $0x120] sm:$0xff]
      %v649 = vld [vmem:[%s222 + $0x128] sm:$0xff]
      %v650 = vld [vmem:[%s222 + $0x130] sm:$0xff]
      %v651 = vld [vmem:[%s222 + $0x138] sm:$0xff]
      %v652 = vld [vmem:[%s222 + $0x140] sm:$0xff]
      %v653 = vld [vmem:[%s222 + $0x148] sm:$0xff]
      %v654 = vld [vmem:[%s222 + $0x150] sm:$0xff]
      %v655 = vld [vmem:[%s222 + $0x158] sm:$0xff]
      %v656 = vld [vmem:[%s222 + $0x160] sm:$0xff]
      %v657 = vld [vmem:[%s222 + $0x168] sm:$0xff]
      %v658 = vld [vmem:[%s222 + $0x170] sm:$0xff]
      %v659 = vld [vmem:[%s222 + $0x178] sm:$0xff]
      %v660 = vld [vmem:[%s222 + $0x180] sm:$0xff]
      %v661 = vld [vmem:[%s222 + $0x188] sm:$0xff]
      %v662 = vld [vmem:[%s222 + $0x190] sm:$0xff]
      %v663 = vld [vmem:[%s222 + $0x198] sm:$0xff]
      %v664 = vld [vmem:[%s222 + $0x1a0] sm:$0xff]
      %v665 = vld [vmem:[%s222 + $0x1a8] sm:$0xff]
      %v666 = vld [vmem:[%s222 + $0x1b0] sm:$0xff]
      %v667 = vld [vmem:[%s222 + $0x1b8] sm:$0xff]
      %v668 = vld [vmem:[%s222 + $0x1c0] sm:$0xff]
      %v669 = vld [vmem:[%s222 + $0x1c8] sm:$0xff]
      %v670 = vld [vmem:[%s222 + $0x1d0] sm:$0xff]
      %v671 = vld [vmem:[%s222 + $0x1d8] sm:$0xff]
      %v672 = vld [vmem:[%s222 + $0x1e0] sm:$0xff]
      %v673 = vld [vmem:[%s222 + $0x1e8] sm:$0xff]
      %v674 = vld [vmem:[%s222 + $0x1f0] sm:$0xff]
      %v675 = vld [vmem:[%s222 + $0x1f8] sm:$0xff]
      %v676 = vld [vmem:[%s222 + $0x200] sm:$0xff]
      %v677 = vld [vmem:[%s222 + $0x208] sm:$0xff]
      %v678 = vld [vmem:[%s222 + $0x210] sm:$0xff]
      %v679 = vld [vmem:[%s222 + $0x218] sm:$0xff]
      %v680 = vld [vmem:[%s222 + $0x220] sm:$0xff]
      %v681 = vld [vmem:[%s222 + $0x228] sm:$0xff]
      %v682 = vld [vmem:[%s222 + $0x230] sm:$0xff]
      %v683 = vld [vmem:[%s222 + $0x238] sm:$0xff]
      %v684 = vld [vmem:[%s222 + $0x240] sm:$0xff]
      %v685 = vld [vmem:[%s222 + $0x248] sm:$0xff]
      %v686 = vld [vmem:[%s222 + $0x250] sm:$0xff]
      %v687 = vld [vmem:[%s222 + $0x258] sm:$0xff]
      %v688 = vld [vmem:[%s222 + $0x260] sm:$0xff]
      %v689 = vld [vmem:[%s222 + $0x268] sm:$0xff]
      %v690 = vld [vmem:[%s222 + $0x270] sm:$0xff]
      %v691 = vld [vmem:[%s222 + $0x278] sm:$0xff]
      %v692 = vld [vmem:[%s222 + $0x280] sm:$0xff]
      %v693 = vld [vmem:[%s222 + $0x288] sm:$0xff]
      %v694 = vld [vmem:[%s222 + $0x290] sm:$0xff]
      %v695 = vld [vmem:[%s222 + $0x298] sm:$0xff]
      %v696 = vld [vmem:[%s222 + $0x2a0] sm:$0xff]
      %v697 = vld [vmem:[%s222 + $0x2a8] sm:$0xff]
      %v698 = vld [vmem:[%s222 + $0x2b0] sm:$0xff]
      %v699 = vld [vmem:[%s222 + $0x2b8] sm:$0xff]
      %v700 = vld [vmem:[%s222 + $0x2c0] sm:$0xff]
      %v701 = vld [vmem:[%s222 + $0x2c8] sm:$0xff]
      %v702 = vld [vmem:[%s222 + $0x2d0] sm:$0xff]
      %v703 = vld [vmem:[%s222 + $0x2d8] sm:$0xff]
      %v704 = vld [vmem:[%s222 + $0x2e0] sm:$0xff]
      %v705 = vld [vmem:[%s222 + $0x2e8] sm:$0xff]
      %v706 = vld [vmem:[%s222 + $0x2f0] sm:$0xff]
      %v707 = vld [vmem:[%s222 + $0x2f8] sm:$0xff]
      %v708 = vld [vmem:[%s222 + $0x300] sm:$0xff]
      %v709 = vld [vmem:[%s222 + $0x308] sm:$0xff]
      %v710 = vld [vmem:[%s222 + $0x310] sm:$0xff]
      %v711 = vld [vmem:[%s222 + $0x318] sm:$0xff]
      %v712 = vld [vmem:[%s222 + $0x320] sm:$0xff]
      %v713 = vld [vmem:[%s222 + $0x328] sm:$0xff]
      %v714 = vld [vmem:[%s222 + $0x330] sm:$0xff]
      %v715 = vld [vmem:[%s222 + $0x338] sm:$0xff]
      %v716 = vld [vmem:[%s222 + $0x340] sm:$0xff]
      %v717 = vld [vmem:[%s222 + $0x348] sm:$0xff]
      %v718 = vld [vmem:[%s222 + $0x350] sm:$0xff]
      %v719 = vld [vmem:[%s222 + $0x358] sm:$0xff]
      %v720 = vld [vmem:[%s222 + $0x360] sm:$0xff]
      %v721 = vld [vmem:[%s222 + $0x368] sm:$0xff]
      %v722 = vld [vmem:[%s222 + $0x370] sm:$0xff]
      %v723 = vld [vmem:[%s222 + $0x378] sm:$0xff]
      %v724 = vld [vmem:[%s222 + $0x380] sm:$0xff]
      %v725 = vld [vmem:[%s222 + $0x388] sm:$0xff]
      %v726 = vld [vmem:[%s222 + $0x390] sm:$0xff]
      %v727 = vld [vmem:[%s222 + $0x398] sm:$0xff]
      %v728 = vld [vmem:[%s222 + $0x3a0] sm:$0xff]
      %v729 = vld [vmem:[%s222 + $0x3a8] sm:$0xff]
      %v730 = vld [vmem:[%s222 + $0x3b0] sm:$0xff]
      %v731 = vld [vmem:[%s222 + $0x3b8] sm:$0xff]
      %v732 = vld [vmem:[%s222 + $0x3c0] sm:$0xff]
      %v733 = vld [vmem:[%s222 + $0x3c8] sm:$0xff]
      %v734 = vld [vmem:[%s222 + $0x3d0] sm:$0xff]
      %v735 = vld [vmem:[%s222 + $0x3d8] sm:$0xff]
      %v736 = vld [vmem:[%s222 + $0x3e0] sm:$0xff]
      %v737 = vld [vmem:[%s222 + $0x3e8] sm:$0xff]
      %v738 = vld [vmem:[%s222 + $0x3f0] sm:$0xff]
      %v739 = vld [vmem:[%s222 + $0x3f8] sm:$0xff]
      %v740 = vld [vmem:[%s222 + $0x400] sm:$0xff]
      %v741 = vld [vmem:[%s222 + $0x408] sm:$0xff]
      %v742 = vld [vmem:[%s222 + $0x410] sm:$0xff]
      %v743 = vld [vmem:[%s222 + $0x418] sm:$0xff]
      %v744 = vld [vmem:[%s222 + $0x420] sm:$0xff]
      %v745 = vld [vmem:[%s222 + $0x428] sm:$0xff]
      %v746 = vld [vmem:[%s222 + $0x430] sm:$0xff]
      %v747 = vld [vmem:[%s222 + $0x438] sm:$0xff]
      %v748 = vld [vmem:[%s222 + $0x440] sm:$0xff]
      %v749 = vld [vmem:[%s222 + $0x448] sm:$0xff]
      %v750 = vld [vmem:[%s222 + $0x450] sm:$0xff]
      %v751 = vld [vmem:[%s222 + $0x458] sm:$0xff]
      %v752 = vld [vmem:[%s222 + $0x460] sm:$0xff]
      %v753 = vld [vmem:[%s222 + $0x468] sm:$0xff]
      %v754 = vld [vmem:[%s222 + $0x470] sm:$0xff]
      %v755 = vld [vmem:[%s222 + $0x478] sm:$0xff]
      %v756 = vld [vmem:[%s222 + $0x480] sm:$0xff]
      %v757 = vld [vmem:[%s222 + $0x488] sm:$0xff]
      %v758 = vld [vmem:[%s222 + $0x490] sm:$0xff]
      %v759 = vld [vmem:[%s222 + $0x498] sm:$0xff]
      %v760 = vld [vmem:[%s222 + $0x4a0] sm:$0xff]
      %v761 = vld [vmem:[%s222 + $0x4a8] sm:$0xff]
      %v762 = vld [vmem:[%s222 + $0x4b0] sm:$0xff]
      %v763 = vld [vmem:[%s222 + $0x4b8] sm:$0xff]
      %v764 = vld [vmem:[%s222 + $0x4c0] sm:$0xff]
      %v765 = vld [vmem:[%s222 + $0x4c8] sm:$0xff]
      %v766 = vld [vmem:[%s222 + $0x4d0] sm:$0xff]
      %v767 = vld [vmem:[%s222 + $0x4d8] sm:$0xff]
      %v768 = vld [vmem:[%s222 + $0x4e0] sm:$0xff]
      %v769 = vld [vmem:[%s222 + $0x4e8] sm:$0xff]
      %v770 = vld [vmem:[%s222 + $0x4f0] sm:$0xff]
      %v771 = vld [vmem:[%s222 + $0x4f8] sm:$0xff]
      %v772 = vld [vmem:[%s222 + $0x500] sm:$0xff]
      %v773 = vld [vmem:[%s222 + $0x508] sm:$0xff]
      %v774 = vld [vmem:[%s222 + $0x510] sm:$0xff]
      %v775 = vld [vmem:[%s222 + $0x518] sm:$0xff]
      %v776 = vld [vmem:[%s222 + $0x520] sm:$0xff]
      %v777 = vld [vmem:[%s222 + $0x528] sm:$0xff]
      %v778 = vld [vmem:[%s222 + $0x530] sm:$0xff]
      %v779 = vld [vmem:[%s222 + $0x538] sm:$0xff]
      %v780 = vld [vmem:[%s222 + $0x540] sm:$0xff]
      %v781 = vld [vmem:[%s222 + $0x548] sm:$0xff]
      %v782 = vld [vmem:[%s222 + $0x550] sm:$0xff]
      %v783 = vld [vmem:[%s222 + $0x558] sm:$0xff]
      %v784 = vld [vmem:[%s222 + $0x560] sm:$0xff]
      %v785 = vld [vmem:[%s222 + $0x568] sm:$0xff]
      %v786 = vld [vmem:[%s222 + $0x570] sm:$0xff]
      %v787 = vld [vmem:[%s222 + $0x578] sm:$0xff]
      %v788 = vld [vmem:[%s222 + $0x580] sm:$0xff]
      %v789 = vld [vmem:[%s222 + $0x588] sm:$0xff]
      %v790 = vld [vmem:[%s222 + $0x590] sm:$0xff]
      %v791 = vld [vmem:[%s222 + $0x598] sm:$0xff]
      %v792 = vld [vmem:[%s222 + $0x5a0] sm:$0xff]
      %v793 = vld [vmem:[%s222 + $0x5a8] sm:$0xff]
      %v794 = vld [vmem:[%s222 + $0x5b0] sm:$0xff]
      %v795 = vld [vmem:[%s222 + $0x5b8] sm:$0xff]
      %v796 = vld [vmem:[%s222 + $0x5c0] sm:$0xff]
      %v797 = vld [vmem:[%s222 + $0x5c8] sm:$0xff]
      %v798 = vld [vmem:[%s222 + $0x5d0] sm:$0xff]
      %v799 = vld [vmem:[%s222 + $0x5d8] sm:$0xff]
      %v800 = vld [vmem:[%s222 + $0x5e0] sm:$0xff]
      %v801 = vld [vmem:[%s222 + $0x5e8] sm:$0xff]
      %v802 = vld [vmem:[%s222 + $0x5f0] sm:$0xff]
      %v803 = vld [vmem:[%s222 + $0x5f8] sm:$0xff]
      %v804 = vpack.c.bf16 %v613, %v612
      %v805 = vpack.c.bf16 %v615, %v614
      %v806 = vpack.c.bf16 %v617, %v616
      %v807 = vpack.c.bf16 %v619, %v618
      %v808 = vpack.c.bf16 %v621, %v620
      %v809 = vpack.c.bf16 %v623, %v622
      %v810 = vpack.c.bf16 %v625, %v624
      %v811 = vpack.c.bf16 %v627, %v626
      %v812 = vpack.c.bf16 %v629, %v628
      %v813 = vpack.c.bf16 %v631, %v630
      %v814 = vpack.c.bf16 %v633, %v632
      %v815 = vpack.c.bf16 %v635, %v634
      %v816 = vpack.c.bf16 %v637, %v636
      %v817 = vpack.c.bf16 %v639, %v638
      %v818 = vpack.c.bf16 %v641, %v640
      %v819 = vpack.c.bf16 %v643, %v642
      %v820 = vpack.c.bf16 %v645, %v644
      %v821 = vpack.c.bf16 %v647, %v646
      %v822 = vpack.c.bf16 %v649, %v648
      %v823 = vpack.c.bf16 %v651, %v650
      %v824 = vpack.c.bf16 %v653, %v652
      %v825 = vpack.c.bf16 %v655, %v654
      %v826 = vpack.c.bf16 %v657, %v656
      %v827 = vpack.c.bf16 %v659, %v658
      %v828 = vpack.c.bf16 %v661, %v660
      %v829 = vpack.c.bf16 %v663, %v662
      %v830 = vpack.c.bf16 %v665, %v664
      %v831 = vpack.c.bf16 %v667, %v666
      %v832 = vpack.c.bf16 %v669, %v668
      %v833 = vpack.c.bf16 %v671, %v670
      %v834 = vpack.c.bf16 %v673, %v672
      %v835 = vpack.c.bf16 %v675, %v674
      %v836 = vpack.c.bf16 %v677, %v676
      %v837 = vpack.c.bf16 %v679, %v678
      %v838 = vpack.c.bf16 %v681, %v680
      %v839 = vpack.c.bf16 %v683, %v682
      %v840 = vpack.c.bf16 %v685, %v684
      %v841 = vpack.c.bf16 %v687, %v686
      %v842 = vpack.c.bf16 %v689, %v688
      %v843 = vpack.c.bf16 %v691, %v690
      %v844 = vpack.c.bf16 %v693, %v692
      %v845 = vpack.c.bf16 %v695, %v694
      %v846 = vpack.c.bf16 %v697, %v696
      %v847 = vpack.c.bf16 %v699, %v698
      %v848 = vpack.c.bf16 %v701, %v700
      %v849 = vpack.c.bf16 %v703, %v702
      %v850 = vpack.c.bf16 %v705, %v704
      %v851 = vpack.c.bf16 %v707, %v706
      %v852 = vpack.c.bf16 %v709, %v708
      %v853 = vpack.c.bf16 %v711, %v710
      %v854 = vpack.c.bf16 %v713, %v712
      %v855 = vpack.c.bf16 %v715, %v714
      %v856 = vpack.c.bf16 %v717, %v716
      %v857 = vpack.c.bf16 %v719, %v718
      %v858 = vpack.c.bf16 %v721, %v720
      %v859 = vpack.c.bf16 %v723, %v722
      %v860 = vpack.c.bf16 %v725, %v724
      %v861 = vpack.c.bf16 %v727, %v726
      %v862 = vpack.c.bf16 %v729, %v728
      %v863 = vpack.c.bf16 %v731, %v730
      %v864 = vpack.c.bf16 %v733, %v732
      %v865 = vpack.c.bf16 %v735, %v734
      %v866 = vpack.c.bf16 %v737, %v736
      %v867 = vpack.c.bf16 %v739, %v738
      %v868 = vpack.c.bf16 %v741, %v740
      %v869 = vpack.c.bf16 %v743, %v742
      %v870 = vpack.c.bf16 %v745, %v744
      %v871 = vpack.c.bf16 %v747, %v746
      %v872 = vpack.c.bf16 %v749, %v748
      %v873 = vpack.c.bf16 %v751, %v750
      %v874 = vpack.c.bf16 %v753, %v752
      %v875 = vpack.c.bf16 %v755, %v754
      %v876 = vpack.c.bf16 %v757, %v756
      %v877 = vpack.c.bf16 %v759, %v758
      %v878 = vpack.c.bf16 %v761, %v760
      %v879 = vpack.c.bf16 %v763, %v762
      %v880 = vpack.c.bf16 %v765, %v764
      %v881 = vpack.c.bf16 %v767, %v766
      %v882 = vpack.c.bf16 %v769, %v768
      %v883 = vpack.c.bf16 %v771, %v770
      %v884 = vpack.c.bf16 %v773, %v772
      %v885 = vpack.c.bf16 %v775, %v774
      %v886 = vpack.c.bf16 %v777, %v776
      %v887 = vpack.c.bf16 %v779, %v778
      %v888 = vpack.c.bf16 %v781, %v780
      %v889 = vpack.c.bf16 %v783, %v782
      %v890 = vpack.c.bf16 %v785, %v784
      %v891 = vpack.c.bf16 %v787, %v786
      %v892 = vpack.c.bf16 %v789, %v788
      %v893 = vpack.c.bf16 %v791, %v790
      %v894 = vpack.c.bf16 %v793, %v792
      %v895 = vpack.c.bf16 %v795, %v794
      %v896 = vpack.c.bf16 %v797, %v796
      %v897 = vpack.c.bf16 %v799, %v798
      %v898 = vpack.c.bf16 %v801, %v800
      %v899 = vpack.c.bf16 %v803, %v802
      %v900 = vld [vmem:[%s2] sm:$0xf]
      %v902 = vperm.slane %v900, 0
      %v903 = vperm.slane %v900, 1
      %v904 = vperm.slane %v900, 2
      %v905 = vperm.slane %v900, 3
      %910 = vxpose.xlu0.c.b16.start [1/8] %v804, 128
      %911 = vxpose.xlu0.c.b16.cont [2/8] %v805, 128
      %912 = vxpose.xlu0.c.b16.cont [3/8] %v806, 128
      %913 = vxpose.xlu0.c.b16.cont [4/8] %v807, 128
      %914 = vxpose.xlu0.c.b16.cont [5/8] %v808, 128
      %915 = vxpose.xlu0.c.b16.cont [6/8] %v809, 128
      %916 = vxpose.xlu0.c.b16.cont [7/8] %v810, 128
      %917 = vxpose.xlu0.c.b16.end [8/8] %v811, 128
      %v918 = vpop.trf.xlu0
      %v919 = vpop.trf.xlu0
      %v920 = vpop.trf.xlu0
      %v921 = vpop.trf.xlu0
      %v922 = vpop.trf.xlu0
      %v923 = vpop.trf.xlu0
      %v924 = vpop.trf.xlu0
      %v925 = vpop.trf.xlu0
      %926 = vxpose.xlu0.c.b16.start [1/8] %v812, 128
      %927 = vxpose.xlu0.c.b16.cont [2/8] %v813, 128
      %928 = vxpose.xlu0.c.b16.cont [3/8] %v814, 128
      %929 = vxpose.xlu0.c.b16.cont [4/8] %v815, 128
      %930 = vxpose.xlu0.c.b16.cont [5/8] %v816, 128
      %931 = vxpose.xlu0.c.b16.cont [6/8] %v817, 128
      %932 = vxpose.xlu0.c.b16.cont [7/8] %v818, 128
      %933 = vxpose.xlu0.c.b16.end [8/8] %v819, 128
      %v934 = vpop.trf.xlu0
      %v935 = vpop.trf.xlu0
      %v936 = vpop.trf.xlu0
      %v937 = vpop.trf.xlu0
      %v938 = vpop.trf.xlu0
      %v939 = vpop.trf.xlu0
      %v940 = vpop.trf.xlu0
      %v941 = vpop.trf.xlu0
      %942 = vxpose.xlu0.c.b16.start [1/8] %v820, 128
      %943 = vxpose.xlu0.c.b16.cont [2/8] %v821, 128
      %944 = vxpose.xlu0.c.b16.cont [3/8] %v822, 128
      %945 = vxpose.xlu0.c.b16.cont [4/8] %v823, 128
      %946 = vxpose.xlu0.c.b16.cont [5/8] %v824, 128
      %947 = vxpose.xlu0.c.b16.cont [6/8] %v825, 128
      %948 = vxpose.xlu0.c.b16.cont [7/8] %v826, 128
      %949 = vxpose.xlu0.c.b16.end [8/8] %v827, 128
      %v950 = vpop.trf.xlu0
      %v951 = vpop.trf.xlu0
      %v952 = vpop.trf.xlu0
      %v953 = vpop.trf.xlu0
      %v954 = vpop.trf.xlu0
      %v955 = vpop.trf.xlu0
      %v956 = vpop.trf.xlu0
      %v957 = vpop.trf.xlu0
      %958 = vxpose.xlu0.c.b16.start [1/8] %v828, 128
      %959 = vxpose.xlu0.c.b16.cont [2/8] %v829, 128
      %960 = vxpose.xlu0.c.b16.cont [3/8] %v830, 128
      %961 = vxpose.xlu0.c.b16.cont [4/8] %v831, 128
      %962 = vxpose.xlu0.c.b16.cont [5/8] %v832, 128
      %963 = vxpose.xlu0.c.b16.cont [6/8] %v833, 128
      %964 = vxpose.xlu0.c.b16.cont [7/8] %v834, 128
      %965 = vxpose.xlu0.c.b16.end [8/8] %v835, 128
      %v966 = vpop.trf.xlu0
      %v967 = vpop.trf.xlu0
      %v968 = vpop.trf.xlu0
      %v969 = vpop.trf.xlu0
      %v970 = vpop.trf.xlu0
      %v971 = vpop.trf.xlu0
      %v972 = vpop.trf.xlu0
      %v973 = vpop.trf.xlu0
      %974 = vxpose.xlu0.c.b16.start [1/8] %v836, 128
      %975 = vxpose.xlu0.c.b16.cont [2/8] %v837, 128
      %976 = vxpose.xlu0.c.b16.cont [3/8] %v838, 128
      %977 = vxpose.xlu0.c.b16.cont [4/8] %v839, 128
      %978 = vxpose.xlu0.c.b16.cont [5/8] %v840, 128
      %979 = vxpose.xlu0.c.b16.cont [6/8] %v841, 128
      %980 = vxpose.xlu0.c.b16.cont [7/8] %v842, 128
      %981 = vxpose.xlu0.c.b16.end [8/8] %v843, 128
      %v982 = vpop.trf.xlu0
      %v983 = vpop.trf.xlu0
      %v984 = vpop.trf.xlu0
      %v985 = vpop.trf.xlu0
      %v986 = vpop.trf.xlu0
      %v987 = vpop.trf.xlu0
      %v988 = vpop.trf.xlu0
      %v989 = vpop.trf.xlu0
      %990 = vxpose.xlu0.c.b16.start [1/8] %v844, 128
      %991 = vxpose.xlu0.c.b16.cont [2/8] %v845, 128
      %992 = vxpose.xlu0.c.b16.cont [3/8] %v846, 128
      %993 = vxpose.xlu0.c.b16.cont [4/8] %v847, 128
      %994 = vxpose.xlu0.c.b16.cont [5/8] %v848, 128
      %995 = vxpose.xlu0.c.b16.cont [6/8] %v849, 128
      %996 = vxpose.xlu0.c.b16.cont [7/8] %v850, 128
      %997 = vxpose.xlu0.c.b16.end [8/8] %v851, 128
      %v998 = vpop.trf.xlu0
      %v999 = vpop.trf.xlu0
      %v1000 = vpop.trf.xlu0
      %v1001 = vpop.trf.xlu0
      %v1002 = vpop.trf.xlu0
      %v1003 = vpop.trf.xlu0
      %v1004 = vpop.trf.xlu0
      %v1005 = vpop.trf.xlu0
      %1006 = vxpose.xlu0.c.b16.start [1/8] %v852, 128
      %1007 = vxpose.xlu0.c.b16.cont [2/8] %v853, 128
      %1008 = vxpose.xlu0.c.b16.cont [3/8] %v854, 128
      %1009 = vxpose.xlu0.c.b16.cont [4/8] %v855, 128
      %1010 = vxpose.xlu0.c.b16.cont [5/8] %v856, 128
      %1011 = vxpose.xlu0.c.b16.cont [6/8] %v857, 128
      %1012 = vxpose.xlu0.c.b16.cont [7/8] %v858, 128
      %1013 = vxpose.xlu0.c.b16.end [8/8] %v859, 128
      %v1014 = vpop.trf.xlu0
      %v1015 = vpop.trf.xlu0
      %v1016 = vpop.trf.xlu0
      %v1017 = vpop.trf.xlu0
      %v1018 = vpop.trf.xlu0
      %v1019 = vpop.trf.xlu0
      %v1020 = vpop.trf.xlu0
      %v1021 = vpop.trf.xlu0
      %1022 = vxpose.xlu0.c.b16.start [1/8] %v860, 128
      %1023 = vxpose.xlu0.c.b16.cont [2/8] %v861, 128
      %1024 = vxpose.xlu0.c.b16.cont [3/8] %v862, 128
      %1025 = vxpose.xlu0.c.b16.cont [4/8] %v863, 128
      %1026 = vxpose.xlu0.c.b16.cont [5/8] %v864, 128
      %1027 = vxpose.xlu0.c.b16.cont [6/8] %v865, 128
      %1028 = vxpose.xlu0.c.b16.cont [7/8] %v866, 128
      %1029 = vxpose.xlu0.c.b16.end [8/8] %v867, 128
      %v1030 = vpop.trf.xlu0
      %v1031 = vpop.trf.xlu0
      %v1032 = vpop.trf.xlu0
      %v1033 = vpop.trf.xlu0
      %v1034 = vpop.trf.xlu0
      %v1035 = vpop.trf.xlu0
      %v1036 = vpop.trf.xlu0
      %v1037 = vpop.trf.xlu0
      %1038 = vxpose.xlu0.c.b16.start [1/8] %v868, 128
      %1039 = vxpose.xlu0.c.b16.cont [2/8] %v869, 128
      %1040 = vxpose.xlu0.c.b16.cont [3/8] %v870, 128
      %1041 = vxpose.xlu0.c.b16.cont [4/8] %v871, 128
      %1042 = vxpose.xlu0.c.b16.cont [5/8] %v872, 128
      %1043 = vxpose.xlu0.c.b16.cont [6/8] %v873, 128
      %1044 = vxpose.xlu0.c.b16.cont [7/8] %v874, 128
      %1045 = vxpose.xlu0.c.b16.end [8/8] %v875, 128
      %v1046 = vpop.trf.xlu0
      %v1047 = vpop.trf.xlu0
      %v1048 = vpop.trf.xlu0
      %v1049 = vpop.trf.xlu0
      %v1050 = vpop.trf.xlu0
      %v1051 = vpop.trf.xlu0
      %v1052 = vpop.trf.xlu0
      %v1053 = vpop.trf.xlu0
      %1054 = vxpose.xlu0.c.b16.start [1/8] %v876, 128
      %1055 = vxpose.xlu0.c.b16.cont [2/8] %v877, 128
      %1056 = vxpose.xlu0.c.b16.cont [3/8] %v878, 128
      %1057 = vxpose.xlu0.c.b16.cont [4/8] %v879, 128
      %1058 = vxpose.xlu0.c.b16.cont [5/8] %v880, 128
      %1059 = vxpose.xlu0.c.b16.cont [6/8] %v881, 128
      %1060 = vxpose.xlu0.c.b16.cont [7/8] %v882, 128
      %1061 = vxpose.xlu0.c.b16.end [8/8] %v883, 128
      %v1062 = vpop.trf.xlu0
      %v1063 = vpop.trf.xlu0
      %v1064 = vpop.trf.xlu0
      %v1065 = vpop.trf.xlu0
      %v1066 = vpop.trf.xlu0
      %v1067 = vpop.trf.xlu0
      %v1068 = vpop.trf.xlu0
      %v1069 = vpop.trf.xlu0
      %1070 = vxpose.xlu0.c.b16.start [1/8] %v884, 128
      %1071 = vxpose.xlu0.c.b16.cont [2/8] %v885, 128
      %1072 = vxpose.xlu0.c.b16.cont [3/8] %v886, 128
      %1073 = vxpose.xlu0.c.b16.cont [4/8] %v887, 128
      %1074 = vxpose.xlu0.c.b16.cont [5/8] %v888, 128
      %1075 = vxpose.xlu0.c.b16.cont [6/8] %v889, 128
      %1076 = vxpose.xlu0.c.b16.cont [7/8] %v890, 128
      %1077 = vxpose.xlu0.c.b16.end [8/8] %v891, 128
      %v1078 = vpop.trf.xlu0
      %v1079 = vpop.trf.xlu0
      %v1080 = vpop.trf.xlu0
      %v1081 = vpop.trf.xlu0
      %v1082 = vpop.trf.xlu0
      %v1083 = vpop.trf.xlu0
      %v1084 = vpop.trf.xlu0
      %v1085 = vpop.trf.xlu0
      %1086 = vxpose.xlu0.c.b16.start [1/8] %v892, 128
      %1087 = vxpose.xlu0.c.b16.cont [2/8] %v893, 128
      %1088 = vxpose.xlu0.c.b16.cont [3/8] %v894, 128
      %1089 = vxpose.xlu0.c.b16.cont [4/8] %v895, 128
      %1090 = vxpose.xlu0.c.b16.cont [5/8] %v896, 128
      %1091 = vxpose.xlu0.c.b16.cont [6/8] %v897, 128
      %1092 = vxpose.xlu0.c.b16.cont [7/8] %v898, 128
      %1093 = vxpose.xlu0.c.b16.end [8/8] %v899, 128
      %v1094 = vpop.trf.xlu0
      %v1095 = vpop.trf.xlu0
      %v1096 = vpop.trf.xlu0
      %v1097 = vpop.trf.xlu0
      %v1098 = vpop.trf.xlu0
      %v1099 = vpop.trf.xlu0
      %v1100 = vpop.trf.xlu0
      %v1101 = vpop.trf.xlu0
      %v1486 = vunpack.c.l.b16 %v228
      %v1487 = vunpack.c.h.b16 %v228
      %v1488 = vunpack.c.l.b16 %v229
      %v1489 = vunpack.c.h.b16 %v229
      %v1490 = vunpack.c.l.b16 %v230
      %v1491 = vunpack.c.h.b16 %v230
      %v1492 = vunpack.c.l.b16 %v231
      %v1493 = vunpack.c.h.b16 %v231
      %v1494 = vunpack.c.l.b16 %v232
      %v1495 = vunpack.c.h.b16 %v232
      %v1496 = vunpack.c.l.b16 %v233
      %v1497 = vunpack.c.h.b16 %v233
      %v1498 = vunpack.c.l.b16 %v234
      %v1499 = vunpack.c.h.b16 %v234
      %v1500 = vunpack.c.l.b16 %v235
      %v1501 = vunpack.c.h.b16 %v235
      %v1502 = vunpack.c.l.b16 %v236
      %v1503 = vunpack.c.h.b16 %v236
      %v1504 = vunpack.c.l.b16 %v237
      %v1505 = vunpack.c.h.b16 %v237
      %v1506 = vunpack.c.l.b16 %v238
      %v1507 = vunpack.c.h.b16 %v238
      %v1508 = vunpack.c.l.b16 %v239
      %v1509 = vunpack.c.h.b16 %v239
      %v1510 = vunpack.c.l.b16 %v240
      %v1511 = vunpack.c.h.b16 %v240
      %v1512 = vunpack.c.l.b16 %v241
      %v1513 = vunpack.c.h.b16 %v241
      %v1514 = vunpack.c.l.b16 %v242
      %v1515 = vunpack.c.h.b16 %v242
      %v1516 = vunpack.c.l.b16 %v243
      %v1517 = vunpack.c.h.b16 %v243
      %v1518 = vunpack.c.l.b16 %v244
      %v1519 = vunpack.c.h.b16 %v244
      %v1520 = vunpack.c.l.b16 %v245
      %v1521 = vunpack.c.h.b16 %v245
      %v1522 = vunpack.c.l.b16 %v246
      %v1523 = vunpack.c.h.b16 %v246
      %v1524 = vunpack.c.l.b16 %v247
      %v1525 = vunpack.c.h.b16 %v247
      %v1526 = vunpack.c.l.b16 %v248
      %v1527 = vunpack.c.h.b16 %v248
      %v1528 = vunpack.c.l.b16 %v249
      %v1529 = vunpack.c.h.b16 %v249
      %v1530 = vunpack.c.l.b16 %v250
      %v1531 = vunpack.c.h.b16 %v250
      %v1532 = vunpack.c.l.b16 %v251
      %v1533 = vunpack.c.h.b16 %v251
      %v1534 = vunpack.c.l.b16 %v252
      %v1535 = vunpack.c.h.b16 %v252
      %v1536 = vunpack.c.l.b16 %v253
      %v1537 = vunpack.c.h.b16 %v253
      %v1538 = vunpack.c.l.b16 %v254
      %v1539 = vunpack.c.h.b16 %v254
      %v1540 = vunpack.c.l.b16 %v255
      %v1541 = vunpack.c.h.b16 %v255
      %v1542 = vunpack.c.l.b16 %v256
      %v1543 = vunpack.c.h.b16 %v256
      %v1544 = vunpack.c.l.b16 %v257
      %v1545 = vunpack.c.h.b16 %v257
      %v1546 = vunpack.c.l.b16 %v258
      %v1547 = vunpack.c.h.b16 %v258
      %v1548 = vunpack.c.l.b16 %v259
      %v1549 = vunpack.c.h.b16 %v259
      %v1550 = vunpack.c.l.b16 %v260
      %v1551 = vunpack.c.h.b16 %v260
      %v1552 = vunpack.c.l.b16 %v261
      %v1553 = vunpack.c.h.b16 %v261
      %v1554 = vunpack.c.l.b16 %v262
      %v1555 = vunpack.c.h.b16 %v262
      %v1556 = vunpack.c.l.b16 %v263
      %v1557 = vunpack.c.h.b16 %v263
      %v1558 = vunpack.c.l.b16 %v264
      %v1559 = vunpack.c.h.b16 %v264
      %v1560 = vunpack.c.l.b16 %v265
      %v1561 = vunpack.c.h.b16 %v265
      %v1562 = vunpack.c.l.b16 %v266
      %v1563 = vunpack.c.h.b16 %v266
      %v1564 = vunpack.c.l.b16 %v267
      %v1565 = vunpack.c.h.b16 %v267
      %v1566 = vunpack.c.l.b16 %v268
      %v1567 = vunpack.c.h.b16 %v268
      %v1568 = vunpack.c.l.b16 %v269
      %v1569 = vunpack.c.h.b16 %v269
      %v1570 = vunpack.c.l.b16 %v270
      %v1571 = vunpack.c.h.b16 %v270
      %v1572 = vunpack.c.l.b16 %v271
      %v1573 = vunpack.c.h.b16 %v271
      %v1574 = vunpack.c.l.b16 %v272
      %v1575 = vunpack.c.h.b16 %v272
      %v1576 = vunpack.c.l.b16 %v273
      %v1577 = vunpack.c.h.b16 %v273
      %v1578 = vunpack.c.l.b16 %v274
      %v1579 = vunpack.c.h.b16 %v274
      %v1580 = vunpack.c.l.b16 %v275
      %v1581 = vunpack.c.h.b16 %v275
      %v1582 = vunpack.c.l.b16 %v276
      %v1583 = vunpack.c.h.b16 %v276
      %v1584 = vunpack.c.l.b16 %v277
      %v1585 = vunpack.c.h.b16 %v277
      %v1586 = vunpack.c.l.b16 %v278
      %v1587 = vunpack.c.h.b16 %v278
      %v1588 = vunpack.c.l.b16 %v279
      %v1589 = vunpack.c.h.b16 %v279
      %v1590 = vunpack.c.l.b16 %v280
      %v1591 = vunpack.c.h.b16 %v280
      %v1592 = vunpack.c.l.b16 %v281
      %v1593 = vunpack.c.h.b16 %v281
      %v1594 = vunpack.c.l.b16 %v282
      %v1595 = vunpack.c.h.b16 %v282
      %v1596 = vunpack.c.l.b16 %v283
      %v1597 = vunpack.c.h.b16 %v283
      %v1598 = vunpack.c.l.b16 %v284
      %v1599 = vunpack.c.h.b16 %v284
      %v1600 = vunpack.c.l.b16 %v285
      %v1601 = vunpack.c.h.b16 %v285
      %v1602 = vunpack.c.l.b16 %v286
      %v1603 = vunpack.c.h.b16 %v286
      %v1604 = vunpack.c.l.b16 %v287
      %v1605 = vunpack.c.h.b16 %v287
      %v1606 = vunpack.c.l.b16 %v288
      %v1607 = vunpack.c.h.b16 %v288
      %v1608 = vunpack.c.l.b16 %v289
      %v1609 = vunpack.c.h.b16 %v289
      %v1610 = vunpack.c.l.b16 %v290
      %v1611 = vunpack.c.h.b16 %v290
      %v1612 = vunpack.c.l.b16 %v291
      %v1613 = vunpack.c.h.b16 %v291
      %v1614 = vunpack.c.l.b16 %v292
      %v1615 = vunpack.c.h.b16 %v292
      %v1616 = vunpack.c.l.b16 %v293
      %v1617 = vunpack.c.h.b16 %v293
      %v1618 = vunpack.c.l.b16 %v294
      %v1619 = vunpack.c.h.b16 %v294
      %v1620 = vunpack.c.l.b16 %v295
      %v1621 = vunpack.c.h.b16 %v295
      %v1622 = vunpack.c.l.b16 %v296
      %v1623 = vunpack.c.h.b16 %v296
      %v1624 = vunpack.c.l.b16 %v297
      %v1625 = vunpack.c.h.b16 %v297
      %v1626 = vunpack.c.l.b16 %v298
      %v1627 = vunpack.c.h.b16 %v298
      %v1628 = vunpack.c.l.b16 %v299
      %v1629 = vunpack.c.h.b16 %v299
      %v1630 = vunpack.c.l.b16 %v300
      %v1631 = vunpack.c.h.b16 %v300
      %v1632 = vunpack.c.l.b16 %v301
      %v1633 = vunpack.c.h.b16 %v301
      %v1634 = vunpack.c.l.b16 %v302
      %v1635 = vunpack.c.h.b16 %v302
      %v1636 = vunpack.c.l.b16 %v303
      %v1637 = vunpack.c.h.b16 %v303
      %v1638 = vunpack.c.l.b16 %v304
      %v1639 = vunpack.c.h.b16 %v304
      %v1640 = vunpack.c.l.b16 %v305
      %v1641 = vunpack.c.h.b16 %v305
      %v1642 = vunpack.c.l.b16 %v306
      %v1643 = vunpack.c.h.b16 %v306
      %v1644 = vunpack.c.l.b16 %v307
      %v1645 = vunpack.c.h.b16 %v307
      %v1646 = vunpack.c.l.b16 %v308
      %v1647 = vunpack.c.h.b16 %v308
      %v1648 = vunpack.c.l.b16 %v309
      %v1649 = vunpack.c.h.b16 %v309
      %v1650 = vunpack.c.l.b16 %v310
      %v1651 = vunpack.c.h.b16 %v310
      %v1652 = vunpack.c.l.b16 %v311
      %v1653 = vunpack.c.h.b16 %v311
      %v1654 = vunpack.c.l.b16 %v312
      %v1655 = vunpack.c.h.b16 %v312
      %v1656 = vunpack.c.l.b16 %v313
      %v1657 = vunpack.c.h.b16 %v313
      %v1658 = vunpack.c.l.b16 %v314
      %v1659 = vunpack.c.h.b16 %v314
      %v1660 = vunpack.c.l.b16 %v315
      %v1661 = vunpack.c.h.b16 %v315
      %v1662 = vunpack.c.l.b16 %v316
      %v1663 = vunpack.c.h.b16 %v316
      %v1664 = vunpack.c.l.b16 %v317
      %v1665 = vunpack.c.h.b16 %v317
      %v1666 = vunpack.c.l.b16 %v318
      %v1667 = vunpack.c.h.b16 %v318
      %v1668 = vunpack.c.l.b16 %v319
      %v1669 = vunpack.c.h.b16 %v319
      %v1670 = vunpack.c.l.b16 %v320
      %v1671 = vunpack.c.h.b16 %v320
      %v1672 = vunpack.c.l.b16 %v321
      %v1673 = vunpack.c.h.b16 %v321
      %v1674 = vunpack.c.l.b16 %v322
      %v1675 = vunpack.c.h.b16 %v322
      %v1676 = vunpack.c.l.b16 %v323
      %v1677 = vunpack.c.h.b16 %v323
      %v1678 = vunpack.c.l.b16 %v324
      %v1679 = vunpack.c.h.b16 %v324
      %v1680 = vunpack.c.l.b16 %v325
      %v1681 = vunpack.c.h.b16 %v325
      %v1682 = vunpack.c.l.b16 %v326
      %v1683 = vunpack.c.h.b16 %v326
      %v1684 = vunpack.c.l.b16 %v327
      %v1685 = vunpack.c.h.b16 %v327
      %v1686 = vunpack.c.l.b16 %v328
      %v1687 = vunpack.c.h.b16 %v328
      %v1688 = vunpack.c.l.b16 %v329
      %v1689 = vunpack.c.h.b16 %v329
      %v1690 = vunpack.c.l.b16 %v330
      %v1691 = vunpack.c.h.b16 %v330
      %v1692 = vunpack.c.l.b16 %v331
      %v1693 = vunpack.c.h.b16 %v331
      %v1694 = vunpack.c.l.b16 %v332
      %v1695 = vunpack.c.h.b16 %v332
      %v1696 = vunpack.c.l.b16 %v333
      %v1697 = vunpack.c.h.b16 %v333
      %v1698 = vunpack.c.l.b16 %v334
      %v1699 = vunpack.c.h.b16 %v334
      %v1700 = vunpack.c.l.b16 %v335
      %v1701 = vunpack.c.h.b16 %v335
      %v1702 = vunpack.c.l.b16 %v336
      %v1703 = vunpack.c.h.b16 %v336
      %v1704 = vunpack.c.l.b16 %v337
      %v1705 = vunpack.c.h.b16 %v337
      %v1706 = vunpack.c.l.b16 %v338
      %v1707 = vunpack.c.h.b16 %v338
      %v1708 = vunpack.c.l.b16 %v339
      %v1709 = vunpack.c.h.b16 %v339
      %v1710 = vunpack.c.l.b16 %v340
      %v1711 = vunpack.c.h.b16 %v340
      %v1712 = vunpack.c.l.b16 %v341
      %v1713 = vunpack.c.h.b16 %v341
      %v1714 = vunpack.c.l.b16 %v342
      %v1715 = vunpack.c.h.b16 %v342
      %v1716 = vunpack.c.l.b16 %v343
      %v1717 = vunpack.c.h.b16 %v343
      %v1718 = vunpack.c.l.b16 %v344
      %v1719 = vunpack.c.h.b16 %v344
      %v1720 = vunpack.c.l.b16 %v345
      %v1721 = vunpack.c.h.b16 %v345
      %v1722 = vunpack.c.l.b16 %v346
      %v1723 = vunpack.c.h.b16 %v346
      %v1724 = vunpack.c.l.b16 %v347
      %v1725 = vunpack.c.h.b16 %v347
      %v1726 = vunpack.c.l.b16 %v348
      %v1727 = vunpack.c.h.b16 %v348
      %v1728 = vunpack.c.l.b16 %v349
      %v1729 = vunpack.c.h.b16 %v349
      %v1730 = vunpack.c.l.b16 %v350
      %v1731 = vunpack.c.h.b16 %v350
      %v1732 = vunpack.c.l.b16 %v351
      %v1733 = vunpack.c.h.b16 %v351
      %v1734 = vunpack.c.l.b16 %v352
      %v1735 = vunpack.c.h.b16 %v352
      %v1736 = vunpack.c.l.b16 %v353
      %v1737 = vunpack.c.h.b16 %v353
      %v1738 = vunpack.c.l.b16 %v354
      %v1739 = vunpack.c.h.b16 %v354
      %v1740 = vunpack.c.l.b16 %v355
      %v1741 = vunpack.c.h.b16 %v355
      %v1742 = vunpack.c.l.b16 %v356
      %v1743 = vunpack.c.h.b16 %v356
      %v1744 = vunpack.c.l.b16 %v357
      %v1745 = vunpack.c.h.b16 %v357
      %v1746 = vunpack.c.l.b16 %v358
      %v1747 = vunpack.c.h.b16 %v358
      %v1748 = vunpack.c.l.b16 %v359
      %v1749 = vunpack.c.h.b16 %v359
      %v1750 = vunpack.c.l.b16 %v360
      %v1751 = vunpack.c.h.b16 %v360
      %v1752 = vunpack.c.l.b16 %v361
      %v1753 = vunpack.c.h.b16 %v361
      %v1754 = vunpack.c.l.b16 %v362
      %v1755 = vunpack.c.h.b16 %v362
      %v1756 = vunpack.c.l.b16 %v363
      %v1757 = vunpack.c.h.b16 %v363
      %v1758 = vunpack.c.l.b16 %v364
      %v1759 = vunpack.c.h.b16 %v364
      %v1760 = vunpack.c.l.b16 %v365
      %v1761 = vunpack.c.h.b16 %v365
      %v1762 = vunpack.c.l.b16 %v366
      %v1763 = vunpack.c.h.b16 %v366
      %v1764 = vunpack.c.l.b16 %v367
      %v1765 = vunpack.c.h.b16 %v367
      %v1766 = vunpack.c.l.b16 %v368
      %v1767 = vunpack.c.h.b16 %v368
      %v1768 = vunpack.c.l.b16 %v369
      %v1769 = vunpack.c.h.b16 %v369
      %v1770 = vunpack.c.l.b16 %v370
      %v1771 = vunpack.c.h.b16 %v370
      %v1772 = vunpack.c.l.b16 %v371
      %v1773 = vunpack.c.h.b16 %v371
      %v1774 = vunpack.c.l.b16 %v372
      %v1775 = vunpack.c.h.b16 %v372
      %v1776 = vunpack.c.l.b16 %v373
      %v1777 = vunpack.c.h.b16 %v373
      %v1778 = vunpack.c.l.b16 %v374
      %v1779 = vunpack.c.h.b16 %v374
      %v1780 = vunpack.c.l.b16 %v375
      %v1781 = vunpack.c.h.b16 %v375
      %v1782 = vunpack.c.l.b16 %v376
      %v1783 = vunpack.c.h.b16 %v376
      %v1784 = vunpack.c.l.b16 %v377
      %v1785 = vunpack.c.h.b16 %v377
      %v1786 = vunpack.c.l.b16 %v378
      %v1787 = vunpack.c.h.b16 %v378
      %v1788 = vunpack.c.l.b16 %v379
      %v1789 = vunpack.c.h.b16 %v379
      %v1790 = vunpack.c.l.b16 %v380
      %v1791 = vunpack.c.h.b16 %v380
      %v1792 = vunpack.c.l.b16 %v381
      %v1793 = vunpack.c.h.b16 %v381
      %v1794 = vunpack.c.l.b16 %v382
      %v1795 = vunpack.c.h.b16 %v382
      %v1796 = vunpack.c.l.b16 %v383
      %v1797 = vunpack.c.h.b16 %v383
      %v1798 = vunpack.c.l.b16 %v384
      %v1799 = vunpack.c.h.b16 %v384
      %v1800 = vunpack.c.l.b16 %v385
      %v1801 = vunpack.c.h.b16 %v385
      %v1802 = vunpack.c.l.b16 %v386
      %v1803 = vunpack.c.h.b16 %v386
      %v1804 = vunpack.c.l.b16 %v387
      %v1805 = vunpack.c.h.b16 %v387
      %v1806 = vunpack.c.l.b16 %v388
      %v1807 = vunpack.c.h.b16 %v388
      %v1808 = vunpack.c.l.b16 %v389
      %v1809 = vunpack.c.h.b16 %v389
      %v1810 = vunpack.c.l.b16 %v390
      %v1811 = vunpack.c.h.b16 %v390
      %v1812 = vunpack.c.l.b16 %v391
      %v1813 = vunpack.c.h.b16 %v391
      %v1814 = vunpack.c.l.b16 %v392
      %v1815 = vunpack.c.h.b16 %v392
      %v1816 = vunpack.c.l.b16 %v393
      %v1817 = vunpack.c.h.b16 %v393
      %v1818 = vunpack.c.l.b16 %v394
      %v1819 = vunpack.c.h.b16 %v394
      %v1820 = vunpack.c.l.b16 %v395
      %v1821 = vunpack.c.h.b16 %v395
      %v1822 = vunpack.c.l.b16 %v396
      %v1823 = vunpack.c.h.b16 %v396
      %v1824 = vunpack.c.l.b16 %v397
      %v1825 = vunpack.c.h.b16 %v397
      %v1826 = vunpack.c.l.b16 %v398
      %v1827 = vunpack.c.h.b16 %v398
      %v1828 = vunpack.c.l.b16 %v399
      %v1829 = vunpack.c.h.b16 %v399
      %v1830 = vunpack.c.l.b16 %v400
      %v1831 = vunpack.c.h.b16 %v400
      %v1832 = vunpack.c.l.b16 %v401
      %v1833 = vunpack.c.h.b16 %v401
      %v1834 = vunpack.c.l.b16 %v402
      %v1835 = vunpack.c.h.b16 %v402
      %v1836 = vunpack.c.l.b16 %v403
      %v1837 = vunpack.c.h.b16 %v403
      %v1838 = vunpack.c.l.b16 %v404
      %v1839 = vunpack.c.h.b16 %v404
      %v1840 = vunpack.c.l.b16 %v405
      %v1841 = vunpack.c.h.b16 %v405
      %v1842 = vunpack.c.l.b16 %v406
      %v1843 = vunpack.c.h.b16 %v406
      %v1844 = vunpack.c.l.b16 %v407
      %v1845 = vunpack.c.h.b16 %v407
      %v1846 = vunpack.c.l.b16 %v408
      %v1847 = vunpack.c.h.b16 %v408
      %v1848 = vunpack.c.l.b16 %v409
      %v1849 = vunpack.c.h.b16 %v409
      %v1850 = vunpack.c.l.b16 %v410
      %v1851 = vunpack.c.h.b16 %v410
      %v1852 = vunpack.c.l.b16 %v411
      %v1853 = vunpack.c.h.b16 %v411
      %v1854 = vunpack.c.l.b16 %v412
      %v1855 = vunpack.c.h.b16 %v412
      %v1856 = vunpack.c.l.b16 %v413
      %v1857 = vunpack.c.h.b16 %v413
      %v1858 = vunpack.c.l.b16 %v414
      %v1859 = vunpack.c.h.b16 %v414
      %v1860 = vunpack.c.l.b16 %v415
      %v1861 = vunpack.c.h.b16 %v415
      %v1862 = vunpack.c.l.b16 %v416
      %v1863 = vunpack.c.h.b16 %v416
      %v1864 = vunpack.c.l.b16 %v417
      %v1865 = vunpack.c.h.b16 %v417
      %v1866 = vunpack.c.l.b16 %v418
      %v1867 = vunpack.c.h.b16 %v418
      %v1868 = vunpack.c.l.b16 %v419
      %v1869 = vunpack.c.h.b16 %v419
      %v1870 = vunpack.c.l.b16 %v420
      %v1871 = vunpack.c.h.b16 %v420
      %v1872 = vunpack.c.l.b16 %v421
      %v1873 = vunpack.c.h.b16 %v421
      %v1874 = vunpack.c.l.b16 %v422
      %v1875 = vunpack.c.h.b16 %v422
      %v1876 = vunpack.c.l.b16 %v423
      %v1877 = vunpack.c.h.b16 %v423
      %v1878 = vunpack.c.l.b16 %v424
      %v1879 = vunpack.c.h.b16 %v424
      %v1880 = vunpack.c.l.b16 %v425
      %v1881 = vunpack.c.h.b16 %v425
      %v1882 = vunpack.c.l.b16 %v426
      %v1883 = vunpack.c.h.b16 %v426
      %v1884 = vunpack.c.l.b16 %v427
      %v1885 = vunpack.c.h.b16 %v427
      %v1886 = vunpack.c.l.b16 %v428
      %v1887 = vunpack.c.h.b16 %v428
      %v1888 = vunpack.c.l.b16 %v429
      %v1889 = vunpack.c.h.b16 %v429
      %v1890 = vunpack.c.l.b16 %v430
      %v1891 = vunpack.c.h.b16 %v430
      %v1892 = vunpack.c.l.b16 %v431
      %v1893 = vunpack.c.h.b16 %v431
      %v1894 = vunpack.c.l.b16 %v432
      %v1895 = vunpack.c.h.b16 %v432
      %v1896 = vunpack.c.l.b16 %v433
      %v1897 = vunpack.c.h.b16 %v433
      %v1898 = vunpack.c.l.b16 %v434
      %v1899 = vunpack.c.h.b16 %v434
      %v1900 = vunpack.c.l.b16 %v435
      %v1901 = vunpack.c.h.b16 %v435
      %v1902 = vunpack.c.l.b16 %v436
      %v1903 = vunpack.c.h.b16 %v436
      %v1904 = vunpack.c.l.b16 %v437
      %v1905 = vunpack.c.h.b16 %v437
      %v1906 = vunpack.c.l.b16 %v438
      %v1907 = vunpack.c.h.b16 %v438
      %v1908 = vunpack.c.l.b16 %v439
      %v1909 = vunpack.c.h.b16 %v439
      %v1910 = vunpack.c.l.b16 %v440
      %v1911 = vunpack.c.h.b16 %v440
      %v1912 = vunpack.c.l.b16 %v441
      %v1913 = vunpack.c.h.b16 %v441
      %v1914 = vunpack.c.l.b16 %v442
      %v1915 = vunpack.c.h.b16 %v442
      %v1916 = vunpack.c.l.b16 %v443
      %v1917 = vunpack.c.h.b16 %v443
      %v1918 = vunpack.c.l.b16 %v444
      %v1919 = vunpack.c.h.b16 %v444
      %v1920 = vunpack.c.l.b16 %v445
      %v1921 = vunpack.c.h.b16 %v445
      %v1922 = vunpack.c.l.b16 %v446
      %v1923 = vunpack.c.h.b16 %v446
      %v1924 = vunpack.c.l.b16 %v447
      %v1925 = vunpack.c.h.b16 %v447
      %v1926 = vunpack.c.l.b16 %v448
      %v1927 = vunpack.c.h.b16 %v448
      %v1928 = vunpack.c.l.b16 %v449
      %v1929 = vunpack.c.h.b16 %v449
      %v1930 = vunpack.c.l.b16 %v450
      %v1931 = vunpack.c.h.b16 %v450
      %v1932 = vunpack.c.l.b16 %v451
      %v1933 = vunpack.c.h.b16 %v451
      %v1934 = vunpack.c.l.b16 %v452
      %v1935 = vunpack.c.h.b16 %v452
      %v1936 = vunpack.c.l.b16 %v453
      %v1937 = vunpack.c.h.b16 %v453
      %v1938 = vunpack.c.l.b16 %v454
      %v1939 = vunpack.c.h.b16 %v454
      %v1940 = vunpack.c.l.b16 %v455
      %v1941 = vunpack.c.h.b16 %v455
      %v1942 = vunpack.c.l.b16 %v456
      %v1943 = vunpack.c.h.b16 %v456
      %v1944 = vunpack.c.l.b16 %v457
      %v1945 = vunpack.c.h.b16 %v457
      %v1946 = vunpack.c.l.b16 %v458
      %v1947 = vunpack.c.h.b16 %v458
      %v1948 = vunpack.c.l.b16 %v459
      %v1949 = vunpack.c.h.b16 %v459
      %v1950 = vunpack.c.l.b16 %v460
      %v1951 = vunpack.c.h.b16 %v460
      %v1952 = vunpack.c.l.b16 %v461
      %v1953 = vunpack.c.h.b16 %v461
      %v1954 = vunpack.c.l.b16 %v462
      %v1955 = vunpack.c.h.b16 %v462
      %v1956 = vunpack.c.l.b16 %v463
      %v1957 = vunpack.c.h.b16 %v463
      %v1958 = vunpack.c.l.b16 %v464
      %v1959 = vunpack.c.h.b16 %v464
      %v1960 = vunpack.c.l.b16 %v465
      %v1961 = vunpack.c.h.b16 %v465
      %v1962 = vunpack.c.l.b16 %v466
      %v1963 = vunpack.c.h.b16 %v466
      %v1964 = vunpack.c.l.b16 %v467
      %v1965 = vunpack.c.h.b16 %v467
      %v1966 = vunpack.c.l.b16 %v468
      %v1967 = vunpack.c.h.b16 %v468
      %v1968 = vunpack.c.l.b16 %v469
      %v1969 = vunpack.c.h.b16 %v469
      %v1970 = vunpack.c.l.b16 %v470
      %v1971 = vunpack.c.h.b16 %v470
      %v1972 = vunpack.c.l.b16 %v471
      %v1973 = vunpack.c.h.b16 %v471
      %v1974 = vunpack.c.l.b16 %v472
      %v1975 = vunpack.c.h.b16 %v472
      %v1976 = vunpack.c.l.b16 %v473
      %v1977 = vunpack.c.h.b16 %v473
      %v1978 = vunpack.c.l.b16 %v474
      %v1979 = vunpack.c.h.b16 %v474
      %v1980 = vunpack.c.l.b16 %v475
      %v1981 = vunpack.c.h.b16 %v475
      %v1982 = vunpack.c.l.b16 %v476
      %v1983 = vunpack.c.h.b16 %v476
      %v1984 = vunpack.c.l.b16 %v477
      %v1985 = vunpack.c.h.b16 %v477
      %v1986 = vunpack.c.l.b16 %v478
      %v1987 = vunpack.c.h.b16 %v478
      %v1988 = vunpack.c.l.b16 %v479
      %v1989 = vunpack.c.h.b16 %v479
      %v1990 = vunpack.c.l.b16 %v480
      %v1991 = vunpack.c.h.b16 %v480
      %v1992 = vunpack.c.l.b16 %v481
      %v1993 = vunpack.c.h.b16 %v481
      %v1994 = vunpack.c.l.b16 %v482
      %v1995 = vunpack.c.h.b16 %v482
      %v1996 = vunpack.c.l.b16 %v483
      %v1997 = vunpack.c.h.b16 %v483
      %v1998 = vunpack.c.l.b16 %v484
      %v1999 = vunpack.c.h.b16 %v484
      %v2000 = vunpack.c.l.b16 %v485
      %v2001 = vunpack.c.h.b16 %v485
      %v2002 = vunpack.c.l.b16 %v486
      %v2003 = vunpack.c.h.b16 %v486
      %v2004 = vunpack.c.l.b16 %v487
      %v2005 = vunpack.c.h.b16 %v487
      %v2006 = vunpack.c.l.b16 %v488
      %v2007 = vunpack.c.h.b16 %v488
      %v2008 = vunpack.c.l.b16 %v489
      %v2009 = vunpack.c.h.b16 %v489
      %v2010 = vunpack.c.l.b16 %v490
      %v2011 = vunpack.c.h.b16 %v490
      %v2012 = vunpack.c.l.b16 %v491
      %v2013 = vunpack.c.h.b16 %v491
      %v2014 = vunpack.c.l.b16 %v492
      %v2015 = vunpack.c.h.b16 %v492
      %v2016 = vunpack.c.l.b16 %v493
      %v2017 = vunpack.c.h.b16 %v493
      %v2018 = vunpack.c.l.b16 %v494
      %v2019 = vunpack.c.h.b16 %v494
      %v2020 = vunpack.c.l.b16 %v495
      %v2021 = vunpack.c.h.b16 %v495
      %v2022 = vunpack.c.l.b16 %v496
      %v2023 = vunpack.c.h.b16 %v496
      %v2024 = vunpack.c.l.b16 %v497
      %v2025 = vunpack.c.h.b16 %v497
      %v2026 = vunpack.c.l.b16 %v498
      %v2027 = vunpack.c.h.b16 %v498
      %v2028 = vunpack.c.l.b16 %v499
      %v2029 = vunpack.c.h.b16 %v499
      %v2030 = vunpack.c.l.b16 %v500
      %v2031 = vunpack.c.h.b16 %v500
      %v2032 = vunpack.c.l.b16 %v501
      %v2033 = vunpack.c.h.b16 %v501
      %v2034 = vunpack.c.l.b16 %v502
      %v2035 = vunpack.c.h.b16 %v502
      %v2036 = vunpack.c.l.b16 %v503
      %v2037 = vunpack.c.h.b16 %v503
      %v2038 = vunpack.c.l.b16 %v504
      %v2039 = vunpack.c.h.b16 %v504
      %v2040 = vunpack.c.l.b16 %v505
      %v2041 = vunpack.c.h.b16 %v505
      %v2042 = vunpack.c.l.b16 %v506
      %v2043 = vunpack.c.h.b16 %v506
      %v2044 = vunpack.c.l.b16 %v507
      %v2045 = vunpack.c.h.b16 %v507
      %v2046 = vunpack.c.l.b16 %v508
      %v2047 = vunpack.c.h.b16 %v508
      %v2048 = vunpack.c.l.b16 %v509
      %v2049 = vunpack.c.h.b16 %v509
      %v2050 = vunpack.c.l.b16 %v510
      %v2051 = vunpack.c.h.b16 %v510
      %v2052 = vunpack.c.l.b16 %v511
      %v2053 = vunpack.c.h.b16 %v511
      %v2054 = vunpack.c.l.b16 %v512
      %v2055 = vunpack.c.h.b16 %v512
      %v2056 = vunpack.c.l.b16 %v513
      %v2057 = vunpack.c.h.b16 %v513
      %v2058 = vunpack.c.l.b16 %v514
      %v2059 = vunpack.c.h.b16 %v514
      %v2060 = vunpack.c.l.b16 %v515
      %v2061 = vunpack.c.h.b16 %v515
      %v2062 = vunpack.c.l.b16 %v516
      %v2063 = vunpack.c.h.b16 %v516
      %v2064 = vunpack.c.l.b16 %v517
      %v2065 = vunpack.c.h.b16 %v517
      %v2066 = vunpack.c.l.b16 %v518
      %v2067 = vunpack.c.h.b16 %v518
      %v2068 = vunpack.c.l.b16 %v519
      %v2069 = vunpack.c.h.b16 %v519
      %v2070 = vunpack.c.l.b16 %v520
      %v2071 = vunpack.c.h.b16 %v520
      %v2072 = vunpack.c.l.b16 %v521
      %v2073 = vunpack.c.h.b16 %v521
      %v2074 = vunpack.c.l.b16 %v522
      %v2075 = vunpack.c.h.b16 %v522
      %v2076 = vunpack.c.l.b16 %v523
      %v2077 = vunpack.c.h.b16 %v523
      %v2078 = vunpack.c.l.b16 %v524
      %v2079 = vunpack.c.h.b16 %v524
      %v2080 = vunpack.c.l.b16 %v525
      %v2081 = vunpack.c.h.b16 %v525
      %v2082 = vunpack.c.l.b16 %v526
      %v2083 = vunpack.c.h.b16 %v526
      %v2084 = vunpack.c.l.b16 %v527
      %v2085 = vunpack.c.h.b16 %v527
      %v2086 = vunpack.c.l.b16 %v528
      %v2087 = vunpack.c.h.b16 %v528
      %v2088 = vunpack.c.l.b16 %v529
      %v2089 = vunpack.c.h.b16 %v529
      %v2090 = vunpack.c.l.b16 %v530
      %v2091 = vunpack.c.h.b16 %v530
      %v2092 = vunpack.c.l.b16 %v531
      %v2093 = vunpack.c.h.b16 %v531
      %v2094 = vunpack.c.l.b16 %v532
      %v2095 = vunpack.c.h.b16 %v532
      %v2096 = vunpack.c.l.b16 %v533
      %v2097 = vunpack.c.h.b16 %v533
      %v2098 = vunpack.c.l.b16 %v534
      %v2099 = vunpack.c.h.b16 %v534
      %v2100 = vunpack.c.l.b16 %v535
      %v2101 = vunpack.c.h.b16 %v535
      %v2102 = vunpack.c.l.b16 %v536
      %v2103 = vunpack.c.h.b16 %v536
      %v2104 = vunpack.c.l.b16 %v537
      %v2105 = vunpack.c.h.b16 %v537
      %v2106 = vunpack.c.l.b16 %v538
      %v2107 = vunpack.c.h.b16 %v538
      %v2108 = vunpack.c.l.b16 %v539
      %v2109 = vunpack.c.h.b16 %v539
      %v2110 = vunpack.c.l.b16 %v540
      %v2111 = vunpack.c.h.b16 %v540
      %v2112 = vunpack.c.l.b16 %v541
      %v2113 = vunpack.c.h.b16 %v541
      %v2114 = vunpack.c.l.b16 %v542
      %v2115 = vunpack.c.h.b16 %v542
      %v2116 = vunpack.c.l.b16 %v543
      %v2117 = vunpack.c.h.b16 %v543
      %v2118 = vunpack.c.l.b16 %v544
      %v2119 = vunpack.c.h.b16 %v544
      %v2120 = vunpack.c.l.b16 %v545
      %v2121 = vunpack.c.h.b16 %v545
      %v2122 = vunpack.c.l.b16 %v546
      %v2123 = vunpack.c.h.b16 %v546
      %v2124 = vunpack.c.l.b16 %v547
      %v2125 = vunpack.c.h.b16 %v547
      %v2126 = vunpack.c.l.b16 %v548
      %v2127 = vunpack.c.h.b16 %v548
      %v2128 = vunpack.c.l.b16 %v549
      %v2129 = vunpack.c.h.b16 %v549
      %v2130 = vunpack.c.l.b16 %v550
      %v2131 = vunpack.c.h.b16 %v550
      %v2132 = vunpack.c.l.b16 %v551
      %v2133 = vunpack.c.h.b16 %v551
      %v2134 = vunpack.c.l.b16 %v552
      %v2135 = vunpack.c.h.b16 %v552
      %v2136 = vunpack.c.l.b16 %v553
      %v2137 = vunpack.c.h.b16 %v553
      %v2138 = vunpack.c.l.b16 %v554
      %v2139 = vunpack.c.h.b16 %v554
      %v2140 = vunpack.c.l.b16 %v555
      %v2141 = vunpack.c.h.b16 %v555
      %v2142 = vunpack.c.l.b16 %v556
      %v2143 = vunpack.c.h.b16 %v556
      %v2144 = vunpack.c.l.b16 %v557
      %v2145 = vunpack.c.h.b16 %v557
      %v2146 = vunpack.c.l.b16 %v558
      %v2147 = vunpack.c.h.b16 %v558
      %v2148 = vunpack.c.l.b16 %v559
      %v2149 = vunpack.c.h.b16 %v559
      %v2150 = vunpack.c.l.b16 %v560
      %v2151 = vunpack.c.h.b16 %v560
      %v2152 = vunpack.c.l.b16 %v561
      %v2153 = vunpack.c.h.b16 %v561
      %v2154 = vunpack.c.l.b16 %v562
      %v2155 = vunpack.c.h.b16 %v562
      %v2156 = vunpack.c.l.b16 %v563
      %v2157 = vunpack.c.h.b16 %v563
      %v2158 = vunpack.c.l.b16 %v564
      %v2159 = vunpack.c.h.b16 %v564
      %v2160 = vunpack.c.l.b16 %v565
      %v2161 = vunpack.c.h.b16 %v565
      %v2162 = vunpack.c.l.b16 %v566
      %v2163 = vunpack.c.h.b16 %v566
      %v2164 = vunpack.c.l.b16 %v567
      %v2165 = vunpack.c.h.b16 %v567
      %v2166 = vunpack.c.l.b16 %v568
      %v2167 = vunpack.c.h.b16 %v568
      %v2168 = vunpack.c.l.b16 %v569
      %v2169 = vunpack.c.h.b16 %v569
      %v2170 = vunpack.c.l.b16 %v570
      %v2171 = vunpack.c.h.b16 %v570
      %v2172 = vunpack.c.l.b16 %v571
      %v2173 = vunpack.c.h.b16 %v571
      %v2174 = vunpack.c.l.b16 %v572
      %v2175 = vunpack.c.h.b16 %v572
      %v2176 = vunpack.c.l.b16 %v573
      %v2177 = vunpack.c.h.b16 %v573
      %v2178 = vunpack.c.l.b16 %v574
      %v2179 = vunpack.c.h.b16 %v574
      %v2180 = vunpack.c.l.b16 %v575
      %v2181 = vunpack.c.h.b16 %v575
      %v2182 = vunpack.c.l.b16 %v576
      %v2183 = vunpack.c.h.b16 %v576
      %v2184 = vunpack.c.l.b16 %v577
      %v2185 = vunpack.c.h.b16 %v577
      %v2186 = vunpack.c.l.b16 %v578
      %v2187 = vunpack.c.h.b16 %v578
      %v2188 = vunpack.c.l.b16 %v579
      %v2189 = vunpack.c.h.b16 %v579
      %v2190 = vunpack.c.l.b16 %v580
      %v2191 = vunpack.c.h.b16 %v580
      %v2192 = vunpack.c.l.b16 %v581
      %v2193 = vunpack.c.h.b16 %v581
      %v2194 = vunpack.c.l.b16 %v582
      %v2195 = vunpack.c.h.b16 %v582
      %v2196 = vunpack.c.l.b16 %v583
      %v2197 = vunpack.c.h.b16 %v583
      %v2198 = vunpack.c.l.b16 %v584
      %v2199 = vunpack.c.h.b16 %v584
      %v2200 = vunpack.c.l.b16 %v585
      %v2201 = vunpack.c.h.b16 %v585
      %v2202 = vunpack.c.l.b16 %v586
      %v2203 = vunpack.c.h.b16 %v586
      %v2204 = vunpack.c.l.b16 %v587
      %v2205 = vunpack.c.h.b16 %v587
      %v2206 = vunpack.c.l.b16 %v588
      %v2207 = vunpack.c.h.b16 %v588
      %v2208 = vunpack.c.l.b16 %v589
      %v2209 = vunpack.c.h.b16 %v589
      %v2210 = vunpack.c.l.b16 %v590
      %v2211 = vunpack.c.h.b16 %v590
      %v2212 = vunpack.c.l.b16 %v591
      %v2213 = vunpack.c.h.b16 %v591
      %v2214 = vunpack.c.l.b16 %v592
      %v2215 = vunpack.c.h.b16 %v592
      %v2216 = vunpack.c.l.b16 %v593
      %v2217 = vunpack.c.h.b16 %v593
      %v2218 = vunpack.c.l.b16 %v594
      %v2219 = vunpack.c.h.b16 %v594
      %v2220 = vunpack.c.l.b16 %v595
      %v2221 = vunpack.c.h.b16 %v595
      %v2222 = vunpack.c.l.b16 %v596
      %v2223 = vunpack.c.h.b16 %v596
      %v2224 = vunpack.c.l.b16 %v597
      %v2225 = vunpack.c.h.b16 %v597
      %v2226 = vunpack.c.l.b16 %v598
      %v2227 = vunpack.c.h.b16 %v598
      %v2228 = vunpack.c.l.b16 %v599
      %v2229 = vunpack.c.h.b16 %v599
      %v2230 = vunpack.c.l.b16 %v600
      %v2231 = vunpack.c.h.b16 %v600
      %v2232 = vunpack.c.l.b16 %v601
      %v2233 = vunpack.c.h.b16 %v601
      %v2234 = vunpack.c.l.b16 %v602
      %v2235 = vunpack.c.h.b16 %v602
      %v2236 = vunpack.c.l.b16 %v603
      %v2237 = vunpack.c.h.b16 %v603
      %v2238 = vunpack.c.l.b16 %v604
      %v2239 = vunpack.c.h.b16 %v604
      %v2240 = vunpack.c.l.b16 %v605
      %v2241 = vunpack.c.h.b16 %v605
      %v2242 = vunpack.c.l.b16 %v606
      %v2243 = vunpack.c.h.b16 %v606
      %v2244 = vunpack.c.l.b16 %v607
      %v2245 = vunpack.c.h.b16 %v607
      %v2246 = vunpack.c.l.b16 %v608
      %v2247 = vunpack.c.h.b16 %v608
      %v2248 = vunpack.c.l.b16 %v609
      %v2249 = vunpack.c.h.b16 %v609
      %v2250 = vunpack.c.l.b16 %v610
      %v2251 = vunpack.c.h.b16 %v610
      %v2252 = vunpack.c.l.b16 %v611
      %v2253 = vunpack.c.h.b16 %v611
      %v2254 = vpack.c.b16 %v1490, %v1486
      %v2255 = vpack.c.b16 %v1491, %v1487
      %v2256 = vpack.c.b16 %v1492, %v1488
      %v2257 = vpack.c.b16 %v1493, %v1489
      %v2258 = vpack.c.b16 %v1498, %v1494
      %v2259 = vpack.c.b16 %v1499, %v1495
      %v2260 = vpack.c.b16 %v1500, %v1496
      %v2261 = vpack.c.b16 %v1501, %v1497
      %v2262 = vpack.c.b16 %v1506, %v1502
      %v2263 = vpack.c.b16 %v1507, %v1503
      %v2264 = vpack.c.b16 %v1508, %v1504
      %v2265 = vpack.c.b16 %v1509, %v1505
      %v2266 = vpack.c.b16 %v1514, %v1510
      %v2267 = vpack.c.b16 %v1515, %v1511
      %v2268 = vpack.c.b16 %v1516, %v1512
      %v2269 = vpack.c.b16 %v1517, %v1513
      %v2270 = vpack.c.b16 %v1522, %v1518
      %v2271 = vpack.c.b16 %v1523, %v1519
      %v2272 = vpack.c.b16 %v1524, %v1520
      %v2273 = vpack.c.b16 %v1525, %v1521
      %v2274 = vpack.c.b16 %v1530, %v1526
      %v2275 = vpack.c.b16 %v1531, %v1527
      %v2276 = vpack.c.b16 %v1532, %v1528
      %v2277 = vpack.c.b16 %v1533, %v1529
      %v2278 = vpack.c.b16 %v1538, %v1534
      %v2279 = vpack.c.b16 %v1539, %v1535
      %v2280 = vpack.c.b16 %v1540, %v1536
      %v2281 = vpack.c.b16 %v1541, %v1537
      %v2282 = vpack.c.b16 %v1546, %v1542
      %v2283 = vpack.c.b16 %v1547, %v1543
      %v2284 = vpack.c.b16 %v1548, %v1544
      %v2285 = vpack.c.b16 %v1549, %v1545
      %v2286 = vpack.c.b16 %v1554, %v1550
      %v2287 = vpack.c.b16 %v1555, %v1551
      %v2288 = vpack.c.b16 %v1556, %v1552
      %v2289 = vpack.c.b16 %v1557, %v1553
      %v2290 = vpack.c.b16 %v1562, %v1558
      %v2291 = vpack.c.b16 %v1563, %v1559
      %v2292 = vpack.c.b16 %v1564, %v1560
      %v2293 = vpack.c.b16 %v1565, %v1561
      %v2294 = vpack.c.b16 %v1570, %v1566
      %v2295 = vpack.c.b16 %v1571, %v1567
      %v2296 = vpack.c.b16 %v1572, %v1568
      %v2297 = vpack.c.b16 %v1573, %v1569
      %v2298 = vpack.c.b16 %v1578, %v1574
      %v2299 = vpack.c.b16 %v1579, %v1575
      %v2300 = vpack.c.b16 %v1580, %v1576
      %v2301 = vpack.c.b16 %v1581, %v1577
      %v2302 = vpack.c.b16 %v1586, %v1582
      %v2303 = vpack.c.b16 %v1587, %v1583
      %v2304 = vpack.c.b16 %v1588, %v1584
      %v2305 = vpack.c.b16 %v1589, %v1585
      %v2306 = vpack.c.b16 %v1594, %v1590
      %v2307 = vpack.c.b16 %v1595, %v1591
      %v2308 = vpack.c.b16 %v1596, %v1592
      %v2309 = vpack.c.b16 %v1597, %v1593
      %v2310 = vpack.c.b16 %v1602, %v1598
      %v2311 = vpack.c.b16 %v1603, %v1599
      %v2312 = vpack.c.b16 %v1604, %v1600
      %v2313 = vpack.c.b16 %v1605, %v1601
      %v2314 = vpack.c.b16 %v1610, %v1606
      %v2315 = vpack.c.b16 %v1611, %v1607
      %v2316 = vpack.c.b16 %v1612, %v1608
      %v2317 = vpack.c.b16 %v1613, %v1609
      %v2318 = vpack.c.b16 %v1618, %v1614
      %v2319 = vpack.c.b16 %v1619, %v1615
      %v2320 = vpack.c.b16 %v1620, %v1616
      %v2321 = vpack.c.b16 %v1621, %v1617
      %v2322 = vpack.c.b16 %v1626, %v1622
      %v2323 = vpack.c.b16 %v1627, %v1623
      %v2324 = vpack.c.b16 %v1628, %v1624
      %v2325 = vpack.c.b16 %v1629, %v1625
      %v2326 = vpack.c.b16 %v1634, %v1630
      %v2327 = vpack.c.b16 %v1635, %v1631
      %v2328 = vpack.c.b16 %v1636, %v1632
      %v2329 = vpack.c.b16 %v1637, %v1633
      %v2330 = vpack.c.b16 %v1642, %v1638
      %v2331 = vpack.c.b16 %v1643, %v1639
      %v2332 = vpack.c.b16 %v1644, %v1640
      %v2333 = vpack.c.b16 %v1645, %v1641
      %v2334 = vpack.c.b16 %v1650, %v1646
      %v2335 = vpack.c.b16 %v1651, %v1647
      %v2336 = vpack.c.b16 %v1652, %v1648
      %v2337 = vpack.c.b16 %v1653, %v1649
      %v2338 = vpack.c.b16 %v1658, %v1654
      %v2339 = vpack.c.b16 %v1659, %v1655
      %v2340 = vpack.c.b16 %v1660, %v1656
      %v2341 = vpack.c.b16 %v1661, %v1657
      %v2342 = vpack.c.b16 %v1666, %v1662
      %v2343 = vpack.c.b16 %v1667, %v1663
      %v2344 = vpack.c.b16 %v1668, %v1664
      %v2345 = vpack.c.b16 %v1669, %v1665
      %v2346 = vpack.c.b16 %v1674, %v1670
      %v2347 = vpack.c.b16 %v1675, %v1671
      %v2348 = vpack.c.b16 %v1676, %v1672
      %v2349 = vpack.c.b16 %v1677, %v1673
      %v2350 = vpack.c.b16 %v1682, %v1678
      %v2351 = vpack.c.b16 %v1683, %v1679
      %v2352 = vpack.c.b16 %v1684, %v1680
      %v2353 = vpack.c.b16 %v1685, %v1681
      %v2354 = vpack.c.b16 %v1690, %v1686
      %v2355 = vpack.c.b16 %v1691, %v1687
      %v2356 = vpack.c.b16 %v1692, %v1688
      %v2357 = vpack.c.b16 %v1693, %v1689
      %v2358 = vpack.c.b16 %v1698, %v1694
      %v2359 = vpack.c.b16 %v1699, %v1695
      %v2360 = vpack.c.b16 %v1700, %v1696
      %v2361 = vpack.c.b16 %v1701, %v1697
      %v2362 = vpack.c.b16 %v1706, %v1702
      %v2363 = vpack.c.b16 %v1707, %v1703
      %v2364 = vpack.c.b16 %v1708, %v1704
      %v2365 = vpack.c.b16 %v1709, %v1705
      %v2366 = vpack.c.b16 %v1714, %v1710
      %v2367 = vpack.c.b16 %v1715, %v1711
      %v2368 = vpack.c.b16 %v1716, %v1712
      %v2369 = vpack.c.b16 %v1717, %v1713
      %v2370 = vpack.c.b16 %v1722, %v1718
      %v2371 = vpack.c.b16 %v1723, %v1719
      %v2372 = vpack.c.b16 %v1724, %v1720
      %v2373 = vpack.c.b16 %v1725, %v1721
      %v2374 = vpack.c.b16 %v1730, %v1726
      %v2375 = vpack.c.b16 %v1731, %v1727
      %v2376 = vpack.c.b16 %v1732, %v1728
      %v2377 = vpack.c.b16 %v1733, %v1729
      %v2378 = vpack.c.b16 %v1738, %v1734
      %v2379 = vpack.c.b16 %v1739, %v1735
      %v2380 = vpack.c.b16 %v1740, %v1736
      %v2381 = vpack.c.b16 %v1741, %v1737
      %v2382 = vpack.c.b16 %v1746, %v1742
      %v2383 = vpack.c.b16 %v1747, %v1743
      %v2384 = vpack.c.b16 %v1748, %v1744
      %v2385 = vpack.c.b16 %v1749, %v1745
      %v2386 = vpack.c.b16 %v1754, %v1750
      %v2387 = vpack.c.b16 %v1755, %v1751
      %v2388 = vpack.c.b16 %v1756, %v1752
      %v2389 = vpack.c.b16 %v1757, %v1753
      %v2390 = vpack.c.b16 %v1762, %v1758
      %v2391 = vpack.c.b16 %v1763, %v1759
      %v2392 = vpack.c.b16 %v1764, %v1760
      %v2393 = vpack.c.b16 %v1765, %v1761
      %v2394 = vpack.c.b16 %v1770, %v1766
      %v2395 = vpack.c.b16 %v1771, %v1767
      %v2396 = vpack.c.b16 %v1772, %v1768
      %v2397 = vpack.c.b16 %v1773, %v1769
      %v2398 = vpack.c.b16 %v1778, %v1774
      %v2399 = vpack.c.b16 %v1779, %v1775
      %v2400 = vpack.c.b16 %v1780, %v1776
      %v2401 = vpack.c.b16 %v1781, %v1777
      %v2402 = vpack.c.b16 %v1786, %v1782
      %v2403 = vpack.c.b16 %v1787, %v1783
      %v2404 = vpack.c.b16 %v1788, %v1784
      %v2405 = vpack.c.b16 %v1789, %v1785
      %v2406 = vpack.c.b16 %v1794, %v1790
      %v2407 = vpack.c.b16 %v1795, %v1791
      %v2408 = vpack.c.b16 %v1796, %v1792
      %v2409 = vpack.c.b16 %v1797, %v1793
      %v2410 = vpack.c.b16 %v1802, %v1798
      %v2411 = vpack.c.b16 %v1803, %v1799
      %v2412 = vpack.c.b16 %v1804, %v1800
      %v2413 = vpack.c.b16 %v1805, %v1801
      %v2414 = vpack.c.b16 %v1810, %v1806
      %v2415 = vpack.c.b16 %v1811, %v1807
      %v2416 = vpack.c.b16 %v1812, %v1808
      %v2417 = vpack.c.b16 %v1813, %v1809
      %v2418 = vpack.c.b16 %v1818, %v1814
      %v2419 = vpack.c.b16 %v1819, %v1815
      %v2420 = vpack.c.b16 %v1820, %v1816
      %v2421 = vpack.c.b16 %v1821, %v1817
      %v2422 = vpack.c.b16 %v1826, %v1822
      %v2423 = vpack.c.b16 %v1827, %v1823
      %v2424 = vpack.c.b16 %v1828, %v1824
      %v2425 = vpack.c.b16 %v1829, %v1825
      %v2426 = vpack.c.b16 %v1834, %v1830
      %v2427 = vpack.c.b16 %v1835, %v1831
      %v2428 = vpack.c.b16 %v1836, %v1832
      %v2429 = vpack.c.b16 %v1837, %v1833
      %v2430 = vpack.c.b16 %v1842, %v1838
      %v2431 = vpack.c.b16 %v1843, %v1839
      %v2432 = vpack.c.b16 %v1844, %v1840
      %v2433 = vpack.c.b16 %v1845, %v1841
      %v2434 = vpack.c.b16 %v1850, %v1846
      %v2435 = vpack.c.b16 %v1851, %v1847
      %v2436 = vpack.c.b16 %v1852, %v1848
      %v2437 = vpack.c.b16 %v1853, %v1849
      %v2438 = vpack.c.b16 %v1858, %v1854
      %v2439 = vpack.c.b16 %v1859, %v1855
      %v2440 = vpack.c.b16 %v1860, %v1856
      %v2441 = vpack.c.b16 %v1861, %v1857
      %v2442 = vpack.c.b16 %v1866, %v1862
      %v2443 = vpack.c.b16 %v1867, %v1863
      %v2444 = vpack.c.b16 %v1868, %v1864
      %v2445 = vpack.c.b16 %v1869, %v1865
      %v2446 = vpack.c.b16 %v1874, %v1870
      %v2447 = vpack.c.b16 %v1875, %v1871
      %v2448 = vpack.c.b16 %v1876, %v1872
      %v2449 = vpack.c.b16 %v1877, %v1873
      %v2450 = vpack.c.b16 %v1882, %v1878
      %v2451 = vpack.c.b16 %v1883, %v1879
      %v2452 = vpack.c.b16 %v1884, %v1880
      %v2453 = vpack.c.b16 %v1885, %v1881
      %v2454 = vpack.c.b16 %v1890, %v1886
      %v2455 = vpack.c.b16 %v1891, %v1887
      %v2456 = vpack.c.b16 %v1892, %v1888
      %v2457 = vpack.c.b16 %v1893, %v1889
      %v2458 = vpack.c.b16 %v1898, %v1894
      %v2459 = vpack.c.b16 %v1899, %v1895
      %v2460 = vpack.c.b16 %v1900, %v1896
      %v2461 = vpack.c.b16 %v1901, %v1897
      %v2462 = vpack.c.b16 %v1906, %v1902
      %v2463 = vpack.c.b16 %v1907, %v1903
      %v2464 = vpack.c.b16 %v1908, %v1904
      %v2465 = vpack.c.b16 %v1909, %v1905
      %v2466 = vpack.c.b16 %v1914, %v1910
      %v2467 = vpack.c.b16 %v1915, %v1911
      %v2468 = vpack.c.b16 %v1916, %v1912
      %v2469 = vpack.c.b16 %v1917, %v1913
      %v2470 = vpack.c.b16 %v1922, %v1918
      %v2471 = vpack.c.b16 %v1923, %v1919
      %v2472 = vpack.c.b16 %v1924, %v1920
      %v2473 = vpack.c.b16 %v1925, %v1921
      %v2474 = vpack.c.b16 %v1930, %v1926
      %v2475 = vpack.c.b16 %v1931, %v1927
      %v2476 = vpack.c.b16 %v1932, %v1928
      %v2477 = vpack.c.b16 %v1933, %v1929
      %v2478 = vpack.c.b16 %v1938, %v1934
      %v2479 = vpack.c.b16 %v1939, %v1935
      %v2480 = vpack.c.b16 %v1940, %v1936
      %v2481 = vpack.c.b16 %v1941, %v1937
      %v2482 = vpack.c.b16 %v1946, %v1942
      %v2483 = vpack.c.b16 %v1947, %v1943
      %v2484 = vpack.c.b16 %v1948, %v1944
      %v2485 = vpack.c.b16 %v1949, %v1945
      %v2486 = vpack.c.b16 %v1954, %v1950
      %v2487 = vpack.c.b16 %v1955, %v1951
      %v2488 = vpack.c.b16 %v1956, %v1952
      %v2489 = vpack.c.b16 %v1957, %v1953
      %v2490 = vpack.c.b16 %v1962, %v1958
      %v2491 = vpack.c.b16 %v1963, %v1959
      %v2492 = vpack.c.b16 %v1964, %v1960
      %v2493 = vpack.c.b16 %v1965, %v1961
      %v2494 = vpack.c.b16 %v1970, %v1966
      %v2495 = vpack.c.b16 %v1971, %v1967
      %v2496 = vpack.c.b16 %v1972, %v1968
      %v2497 = vpack.c.b16 %v1973, %v1969
      %v2498 = vpack.c.b16 %v1978, %v1974
      %v2499 = vpack.c.b16 %v1979, %v1975
      %v2500 = vpack.c.b16 %v1980, %v1976
      %v2501 = vpack.c.b16 %v1981, %v1977
      %v2502 = vpack.c.b16 %v1986, %v1982
      %v2503 = vpack.c.b16 %v1987, %v1983
      %v2504 = vpack.c.b16 %v1988, %v1984
      %v2505 = vpack.c.b16 %v1989, %v1985
      %v2506 = vpack.c.b16 %v1994, %v1990
      %v2507 = vpack.c.b16 %v1995, %v1991
      %v2508 = vpack.c.b16 %v1996, %v1992
      %v2509 = vpack.c.b16 %v1997, %v1993
      %v2510 = vpack.c.b16 %v2002, %v1998
      %v2511 = vpack.c.b16 %v2003, %v1999
      %v2512 = vpack.c.b16 %v2004, %v2000
      %v2513 = vpack.c.b16 %v2005, %v2001
      %v2514 = vpack.c.b16 %v2010, %v2006
      %v2515 = vpack.c.b16 %v2011, %v2007
      %v2516 = vpack.c.b16 %v2012, %v2008
      %v2517 = vpack.c.b16 %v2013, %v2009
      %v2518 = vpack.c.b16 %v2018, %v2014
      %v2519 = vpack.c.b16 %v2019, %v2015
      %v2520 = vpack.c.b16 %v2020, %v2016
      %v2521 = vpack.c.b16 %v2021, %v2017
      %v2522 = vpack.c.b16 %v2026, %v2022
      %v2523 = vpack.c.b16 %v2027, %v2023
      %v2524 = vpack.c.b16 %v2028, %v2024
      %v2525 = vpack.c.b16 %v2029, %v2025
      %v2526 = vpack.c.b16 %v2034, %v2030
      %v2527 = vpack.c.b16 %v2035, %v2031
      %v2528 = vpack.c.b16 %v2036, %v2032
      %v2529 = vpack.c.b16 %v2037, %v2033
      %v2530 = vpack.c.b16 %v2042, %v2038
      %v2531 = vpack.c.b16 %v2043, %v2039
      %v2532 = vpack.c.b16 %v2044, %v2040
      %v2533 = vpack.c.b16 %v2045, %v2041
      %v2534 = vpack.c.b16 %v2050, %v2046
      %v2535 = vpack.c.b16 %v2051, %v2047
      %v2536 = vpack.c.b16 %v2052, %v2048
      %v2537 = vpack.c.b16 %v2053, %v2049
      %v2538 = vpack.c.b16 %v2058, %v2054
      %v2539 = vpack.c.b16 %v2059, %v2055
      %v2540 = vpack.c.b16 %v2060, %v2056
      %v2541 = vpack.c.b16 %v2061, %v2057
      %v2542 = vpack.c.b16 %v2066, %v2062
      %v2543 = vpack.c.b16 %v2067, %v2063
      %v2544 = vpack.c.b16 %v2068, %v2064
      %v2545 = vpack.c.b16 %v2069, %v2065
      %v2546 = vpack.c.b16 %v2074, %v2070
      %v2547 = vpack.c.b16 %v2075, %v2071
      %v2548 = vpack.c.b16 %v2076, %v2072
      %v2549 = vpack.c.b16 %v2077, %v2073
      %v2550 = vpack.c.b16 %v2082, %v2078
      %v2551 = vpack.c.b16 %v2083, %v2079
      %v2552 = vpack.c.b16 %v2084, %v2080
      %v2553 = vpack.c.b16 %v2085, %v2081
      %v2554 = vpack.c.b16 %v2090, %v2086
      %v2555 = vpack.c.b16 %v2091, %v2087
      %v2556 = vpack.c.b16 %v2092, %v2088
      %v2557 = vpack.c.b16 %v2093, %v2089
      %v2558 = vpack.c.b16 %v2098, %v2094
      %v2559 = vpack.c.b16 %v2099, %v2095
      %v2560 = vpack.c.b16 %v2100, %v2096
      %v2561 = vpack.c.b16 %v2101, %v2097
      %v2562 = vpack.c.b16 %v2106, %v2102
      %v2563 = vpack.c.b16 %v2107, %v2103
      %v2564 = vpack.c.b16 %v2108, %v2104
      %v2565 = vpack.c.b16 %v2109, %v2105
      %v2566 = vpack.c.b16 %v2114, %v2110
      %v2567 = vpack.c.b16 %v2115, %v2111
      %v2568 = vpack.c.b16 %v2116, %v2112
      %v2569 = vpack.c.b16 %v2117, %v2113
      %v2570 = vpack.c.b16 %v2122, %v2118
      %v2571 = vpack.c.b16 %v2123, %v2119
      %v2572 = vpack.c.b16 %v2124, %v2120
      %v2573 = vpack.c.b16 %v2125, %v2121
      %v2574 = vpack.c.b16 %v2130, %v2126
      %v2575 = vpack.c.b16 %v2131, %v2127
      %v2576 = vpack.c.b16 %v2132, %v2128
      %v2577 = vpack.c.b16 %v2133, %v2129
      %v2578 = vpack.c.b16 %v2138, %v2134
      %v2579 = vpack.c.b16 %v2139, %v2135
      %v2580 = vpack.c.b16 %v2140, %v2136
      %v2581 = vpack.c.b16 %v2141, %v2137
      %v2582 = vpack.c.b16 %v2146, %v2142
      %v2583 = vpack.c.b16 %v2147, %v2143
      %v2584 = vpack.c.b16 %v2148, %v2144
      %v2585 = vpack.c.b16 %v2149, %v2145
      %v2586 = vpack.c.b16 %v2154, %v2150
      %v2587 = vpack.c.b16 %v2155, %v2151
      %v2588 = vpack.c.b16 %v2156, %v2152
      %v2589 = vpack.c.b16 %v2157, %v2153
      %v2590 = vpack.c.b16 %v2162, %v2158
      %v2591 = vpack.c.b16 %v2163, %v2159
      %v2592 = vpack.c.b16 %v2164, %v2160
      %v2593 = vpack.c.b16 %v2165, %v2161
      %v2594 = vpack.c.b16 %v2170, %v2166
      %v2595 = vpack.c.b16 %v2171, %v2167
      %v2596 = vpack.c.b16 %v2172, %v2168
      %v2597 = vpack.c.b16 %v2173, %v2169
      %v2598 = vpack.c.b16 %v2178, %v2174
      %v2599 = vpack.c.b16 %v2179, %v2175
      %v2600 = vpack.c.b16 %v2180, %v2176
      %v2601 = vpack.c.b16 %v2181, %v2177
      %v2602 = vpack.c.b16 %v2186, %v2182
      %v2603 = vpack.c.b16 %v2187, %v2183
      %v2604 = vpack.c.b16 %v2188, %v2184
      %v2605 = vpack.c.b16 %v2189, %v2185
      %v2606 = vpack.c.b16 %v2194, %v2190
      %v2607 = vpack.c.b16 %v2195, %v2191
      %v2608 = vpack.c.b16 %v2196, %v2192
      %v2609 = vpack.c.b16 %v2197, %v2193
      %v2610 = vpack.c.b16 %v2202, %v2198
      %v2611 = vpack.c.b16 %v2203, %v2199
      %v2612 = vpack.c.b16 %v2204, %v2200
      %v2613 = vpack.c.b16 %v2205, %v2201
      %v2614 = vpack.c.b16 %v2210, %v2206
      %v2615 = vpack.c.b16 %v2211, %v2207
      %v2616 = vpack.c.b16 %v2212, %v2208
      %v2617 = vpack.c.b16 %v2213, %v2209
      %v2618 = vpack.c.b16 %v2218, %v2214
      %v2619 = vpack.c.b16 %v2219, %v2215
      %v2620 = vpack.c.b16 %v2220, %v2216
      %v2621 = vpack.c.b16 %v2221, %v2217
      %v2622 = vpack.c.b16 %v2226, %v2222
      %v2623 = vpack.c.b16 %v2227, %v2223
      %v2624 = vpack.c.b16 %v2228, %v2224
      %v2625 = vpack.c.b16 %v2229, %v2225
      %v2626 = vpack.c.b16 %v2234, %v2230
      %v2627 = vpack.c.b16 %v2235, %v2231
      %v2628 = vpack.c.b16 %v2236, %v2232
      %v2629 = vpack.c.b16 %v2237, %v2233
      %v2630 = vpack.c.b16 %v2242, %v2238
      %v2631 = vpack.c.b16 %v2243, %v2239
      %v2632 = vpack.c.b16 %v2244, %v2240
      %v2633 = vpack.c.b16 %v2245, %v2241
      %v2634 = vpack.c.b16 %v2250, %v2246
      %v2635 = vpack.c.b16 %v2251, %v2247
      %v2636 = vpack.c.b16 %v2252, %v2248
      %v2637 = vpack.c.b16 %v2253, %v2249
      %3022 = vmatpush.bf16.msra.mxu0 %v2282
      %3023 = vmatpush.bf16.msra.mxu0 %v2278
      %3024 = vmatpush.bf16.msra.mxu0 %v2274
      %3025 = vmatpush.bf16.msra.mxu0 %v2270
      %3026 = vmatpush.bf16.msra.mxu0 %v2266
      %3027 = vmatpush.bf16.msra.mxu0 %v2262
      %3028 = vmatpush.bf16.msra.mxu0 %v2258
      %3029 = vmatpush.bf16.msra.mxu0 %v2254
      %3030 = vmatmul.bf16.gmra.mxu0 %v918
      %v3031 = vpop.f32.mrf.mxu0
      %v3032 = vadd.f32 %v902, %v3031
      %v3033 = vpop.f32.mrf.mxu0
      %v3034 = vadd.f32 %v902, %v3033
      %3035 = vmatmul.bf16.gmra.mxu0 %v919
      %v3036 = vpop.f32.mrf.mxu0
      %v3037 = vadd.f32 %v902, %v3036
      %v3038 = vpop.f32.mrf.mxu0
      %v3039 = vadd.f32 %v902, %v3038
      %3040 = vmatmul.bf16.gmra.mxu0 %v920
      %v3041 = vpop.f32.mrf.mxu0
      %v3042 = vadd.f32 %v902, %v3041
      %v3043 = vpop.f32.mrf.mxu0
      %v3044 = vadd.f32 %v902, %v3043
      %3045 = vmatmul.bf16.gmra.mxu0 %v921
      %v3046 = vpop.f32.mrf.mxu0
      %v3047 = vadd.f32 %v902, %v3046
      %v3048 = vpop.f32.mrf.mxu0
      %v3049 = vadd.f32 %v902, %v3048
      %3050 = vdwg.mxu0
      %3051 = vmatpush.bf16.msra.mxu0 %v2314
      %3052 = vmatpush.bf16.msra.mxu0 %v2310
      %3053 = vmatpush.bf16.msra.mxu0 %v2306
      %3054 = vmatpush.bf16.msra.mxu0 %v2302
      %3055 = vmatpush.bf16.msra.mxu0 %v2298
      %3056 = vmatpush.bf16.msra.mxu0 %v2294
      %3057 = vmatpush.bf16.msra.mxu0 %v2290
      %3058 = vmatpush.bf16.msra.mxu0 %v2286
      %3059 = vmatmul.bf16.gmra.mxu0 %v934
      %v3060 = vpop.f32.mrf.mxu0
      %v3061 = vadd.f32 %v3032, %v3060
      %v3062 = vpop.f32.mrf.mxu0
      %v3063 = vadd.f32 %v3034, %v3062
      %3064 = vmatmul.bf16.gmra.mxu0 %v935
      %v3065 = vpop.f32.mrf.mxu0
      %v3066 = vadd.f32 %v3037, %v3065
      %v3067 = vpop.f32.mrf.mxu0
      %v3068 = vadd.f32 %v3039, %v3067
      %3069 = vmatmul.bf16.gmra.mxu0 %v936
      %v3070 = vpop.f32.mrf.mxu0
      %v3071 = vadd.f32 %v3042, %v3070
      %v3072 = vpop.f32.mrf.mxu0
      %v3073 = vadd.f32 %v3044, %v3072
      %3074 = vmatmul.bf16.gmra.mxu0 %v937
      %v3075 = vpop.f32.mrf.mxu0
      %v3076 = vadd.f32 %v3047, %v3075
      %v3077 = vpop.f32.mrf.mxu0
      %v3078 = vadd.f32 %v3049, %v3077
      %3079 = vdwg.mxu0
      %3080 = vmatpush.bf16.msra.mxu0 %v2346
      %3081 = vmatpush.bf16.msra.mxu0 %v2342
      %3082 = vmatpush.bf16.msra.mxu0 %v2338
      %3083 = vmatpush.bf16.msra.mxu0 %v2334
      %3084 = vmatpush.bf16.msra.mxu0 %v2330
      %3085 = vmatpush.bf16.msra.mxu0 %v2326
      %3086 = vmatpush.bf16.msra.mxu0 %v2322
      %3087 = vmatpush.bf16.msra.mxu0 %v2318
      %3088 = vmatmul.bf16.gmra.mxu0 %v950
      %v3089 = vpop.f32.mrf.mxu0
      %v3090 = vadd.f32 %v3061, %v3089
      %v3091 = vpop.f32.mrf.mxu0
      %v3092 = vadd.f32 %v3063, %v3091
      %3093 = vmatmul.bf16.gmra.mxu0 %v951
      %v3094 = vpop.f32.mrf.mxu0
      %v3095 = vadd.f32 %v3066, %v3094
      %v3096 = vpop.f32.mrf.mxu0
      %v3097 = vadd.f32 %v3068, %v3096
      %3098 = vmatmul.bf16.gmra.mxu0 %v952
      %v3099 = vpop.f32.mrf.mxu0
      %v3100 = vadd.f32 %v3071, %v3099
      %v3101 = vpop.f32.mrf.mxu0
      %v3102 = vadd.f32 %v3073, %v3101
      %3103 = vmatmul.bf16.gmra.mxu0 %v953
      %v3104 = vpop.f32.mrf.mxu0
      %v3105 = vadd.f32 %v3076, %v3104
      %v3106 = vpop.f32.mrf.mxu0
      %v3107 = vadd.f32 %v3078, %v3106
      %3108 = vdwg.mxu0
      %3109 = vmatpush.bf16.msra.mxu0 %v2378
      %3110 = vmatpush.bf16.msra.mxu0 %v2374
      %3111 = vmatpush.bf16.msra.mxu0 %v2370
      %3112 = vmatpush.bf16.msra.mxu0 %v2366
      %3113 = vmatpush.bf16.msra.mxu0 %v2362
      %3114 = vmatpush.bf16.msra.mxu0 %v2358
      %3115 = vmatpush.bf16.msra.mxu0 %v2354
      %3116 = vmatpush.bf16.msra.mxu0 %v2350
      %3117 = vmatmul.bf16.gmra.mxu0 %v966
      %v3118 = vpop.f32.mrf.mxu0
      %v3119 = vadd.f32 %v3090, %v3118
      %v3120 = vpop.f32.mrf.mxu0
      %v3121 = vadd.f32 %v3092, %v3120
      %3122 = vmatmul.bf16.gmra.mxu0 %v967
      %v3123 = vpop.f32.mrf.mxu0
      %v3124 = vadd.f32 %v3095, %v3123
      %v3125 = vpop.f32.mrf.mxu0
      %v3126 = vadd.f32 %v3097, %v3125
      %3127 = vmatmul.bf16.gmra.mxu0 %v968
      %v3128 = vpop.f32.mrf.mxu0
      %v3129 = vadd.f32 %v3100, %v3128
      %v3130 = vpop.f32.mrf.mxu0
      %v3131 = vadd.f32 %v3102, %v3130
      %3132 = vmatmul.bf16.gmra.mxu0 %v969
      %v3133 = vpop.f32.mrf.mxu0
      %v3134 = vadd.f32 %v3105, %v3133
      %v3135 = vpop.f32.mrf.mxu0
      %v3136 = vadd.f32 %v3107, %v3135
      %3137 = vdwg.mxu0
      %3138 = vmatpush.bf16.msra.mxu0 %v2410
      %3139 = vmatpush.bf16.msra.mxu0 %v2406
      %3140 = vmatpush.bf16.msra.mxu0 %v2402
      %3141 = vmatpush.bf16.msra.mxu0 %v2398
      %3142 = vmatpush.bf16.msra.mxu0 %v2394
      %3143 = vmatpush.bf16.msra.mxu0 %v2390
      %3144 = vmatpush.bf16.msra.mxu0 %v2386
      %3145 = vmatpush.bf16.msra.mxu0 %v2382
      %3146 = vmatmul.bf16.gmra.mxu0 %v982
      %v3147 = vpop.f32.mrf.mxu0
      %v3148 = vadd.f32 %v3119, %v3147
      %v3149 = vpop.f32.mrf.mxu0
      %v3150 = vadd.f32 %v3121, %v3149
      %3151 = vmatmul.bf16.gmra.mxu0 %v983
      %v3152 = vpop.f32.mrf.mxu0
      %v3153 = vadd.f32 %v3124, %v3152
      %v3154 = vpop.f32.mrf.mxu0
      %v3155 = vadd.f32 %v3126, %v3154
      %3156 = vmatmul.bf16.gmra.mxu0 %v984
      %v3157 = vpop.f32.mrf.mxu0
      %v3158 = vadd.f32 %v3129, %v3157
      %v3159 = vpop.f32.mrf.mxu0
      %v3160 = vadd.f32 %v3131, %v3159
      %3161 = vmatmul.bf16.gmra.mxu0 %v985
      %v3162 = vpop.f32.mrf.mxu0
      %v3163 = vadd.f32 %v3134, %v3162
      %v3164 = vpop.f32.mrf.mxu0
      %v3165 = vadd.f32 %v3136, %v3164
      %3166 = vdwg.mxu0
      %3167 = vmatpush.bf16.msra.mxu0 %v2442
      %3168 = vmatpush.bf16.msra.mxu0 %v2438
      %3169 = vmatpush.bf16.msra.mxu0 %v2434
      %3170 = vmatpush.bf16.msra.mxu0 %v2430
      %3171 = vmatpush.bf16.msra.mxu0 %v2426
      %3172 = vmatpush.bf16.msra.mxu0 %v2422
      %3173 = vmatpush.bf16.msra.mxu0 %v2418
      %3174 = vmatpush.bf16.msra.mxu0 %v2414
      %3175 = vmatmul.bf16.gmra.mxu0 %v998
      %v3176 = vpop.f32.mrf.mxu0
      %v3177 = vadd.f32 %v3148, %v3176
      %v3178 = vpop.f32.mrf.mxu0
      %v3179 = vadd.f32 %v3150, %v3178
      %3180 = vmatmul.bf16.gmra.mxu0 %v999
      %v3181 = vpop.f32.mrf.mxu0
      %v3182 = vadd.f32 %v3153, %v3181
      %v3183 = vpop.f32.mrf.mxu0
      %v3184 = vadd.f32 %v3155, %v3183
      %3185 = vmatmul.bf16.gmra.mxu0 %v1000
      %v3186 = vpop.f32.mrf.mxu0
      %v3187 = vadd.f32 %v3158, %v3186
      %v3188 = vpop.f32.mrf.mxu0
      %v3189 = vadd.f32 %v3160, %v3188
      %3190 = vmatmul.bf16.gmra.mxu0 %v1001
      %v3191 = vpop.f32.mrf.mxu0
      %v3192 = vadd.f32 %v3163, %v3191
      %v3193 = vpop.f32.mrf.mxu0
      %v3194 = vadd.f32 %v3165, %v3193
      %3195 = vdwg.mxu0
      %3196 = vmatpush.bf16.msra.mxu0 %v2474
      %3197 = vmatpush.bf16.msra.mxu0 %v2470
      %3198 = vmatpush.bf16.msra.mxu0 %v2466
      %3199 = vmatpush.bf16.msra.mxu0 %v2462
      %3200 = vmatpush.bf16.msra.mxu0 %v2458
      %3201 = vmatpush.bf16.msra.mxu0 %v2454
      %3202 = vmatpush.bf16.msra.mxu0 %v2450
      %3203 = vmatpush.bf16.msra.mxu0 %v2446
      %3204 = vmatmul.bf16.gmra.mxu0 %v1014
      %v3205 = vpop.f32.mrf.mxu0
      %v3206 = vadd.f32 %v3177, %v3205
      %v3207 = vpop.f32.mrf.mxu0
      %v3208 = vadd.f32 %v3179, %v3207
      %3209 = vmatmul.bf16.gmra.mxu0 %v1015
      %v3210 = vpop.f32.mrf.mxu0
      %v3211 = vadd.f32 %v3182, %v3210
      %v3212 = vpop.f32.mrf.mxu0
      %v3213 = vadd.f32 %v3184, %v3212
      %3214 = vmatmul.bf16.gmra.mxu0 %v1016
      %v3215 = vpop.f32.mrf.mxu0
      %v3216 = vadd.f32 %v3187, %v3215
      %v3217 = vpop.f32.mrf.mxu0
      %v3218 = vadd.f32 %v3189, %v3217
      %3219 = vmatmul.bf16.gmra.mxu0 %v1017
      %v3220 = vpop.f32.mrf.mxu0
      %v3221 = vadd.f32 %v3192, %v3220
      %v3222 = vpop.f32.mrf.mxu0
      %v3223 = vadd.f32 %v3194, %v3222
      %3224 = vdwg.mxu0
      %3225 = vmatpush.bf16.msra.mxu0 %v2506
      %3226 = vmatpush.bf16.msra.mxu0 %v2502
      %3227 = vmatpush.bf16.msra.mxu0 %v2498
      %3228 = vmatpush.bf16.msra.mxu0 %v2494
      %3229 = vmatpush.bf16.msra.mxu0 %v2490
      %3230 = vmatpush.bf16.msra.mxu0 %v2486
      %3231 = vmatpush.bf16.msra.mxu0 %v2482
      %3232 = vmatpush.bf16.msra.mxu0 %v2478
      %3233 = vmatmul.bf16.gmra.mxu0 %v1030
      %v3234 = vpop.f32.mrf.mxu0
      %v3235 = vadd.f32 %v3206, %v3234
      %v3236 = vpop.f32.mrf.mxu0
      %v3237 = vadd.f32 %v3208, %v3236
      %3238 = vmatmul.bf16.gmra.mxu0 %v1031
      %v3239 = vpop.f32.mrf.mxu0
      %v3240 = vadd.f32 %v3211, %v3239
      %v3241 = vpop.f32.mrf.mxu0
      %v3242 = vadd.f32 %v3213, %v3241
      %3243 = vmatmul.bf16.gmra.mxu0 %v1032
      %v3244 = vpop.f32.mrf.mxu0
      %v3245 = vadd.f32 %v3216, %v3244
      %v3246 = vpop.f32.mrf.mxu0
      %v3247 = vadd.f32 %v3218, %v3246
      %3248 = vmatmul.bf16.gmra.mxu0 %v1033
      %v3249 = vpop.f32.mrf.mxu0
      %v3250 = vadd.f32 %v3221, %v3249
      %v3251 = vpop.f32.mrf.mxu0
      %v3252 = vadd.f32 %v3223, %v3251
      %3253 = vdwg.mxu0
      %3254 = vmatpush.bf16.msra.mxu0 %v2538
      %3255 = vmatpush.bf16.msra.mxu0 %v2534
      %3256 = vmatpush.bf16.msra.mxu0 %v2530
      %3257 = vmatpush.bf16.msra.mxu0 %v2526
      %3258 = vmatpush.bf16.msra.mxu0 %v2522
      %3259 = vmatpush.bf16.msra.mxu0 %v2518
      %3260 = vmatpush.bf16.msra.mxu0 %v2514
      %3261 = vmatpush.bf16.msra.mxu0 %v2510
      %3262 = vmatmul.bf16.gmra.mxu0 %v1046
      %v3263 = vpop.f32.mrf.mxu0
      %v3264 = vadd.f32 %v3235, %v3263
      %v3265 = vpop.f32.mrf.mxu0
      %v3266 = vadd.f32 %v3237, %v3265
      %3267 = vmatmul.bf16.gmra.mxu0 %v1047
      %v3268 = vpop.f32.mrf.mxu0
      %v3269 = vadd.f32 %v3240, %v3268
      %v3270 = vpop.f32.mrf.mxu0
      %v3271 = vadd.f32 %v3242, %v3270
      %3272 = vmatmul.bf16.gmra.mxu0 %v1048
      %v3273 = vpop.f32.mrf.mxu0
      %v3274 = vadd.f32 %v3245, %v3273
      %v3275 = vpop.f32.mrf.mxu0
      %v3276 = vadd.f32 %v3247, %v3275
      %3277 = vmatmul.bf16.gmra.mxu0 %v1049
      %v3278 = vpop.f32.mrf.mxu0
      %v3279 = vadd.f32 %v3250, %v3278
      %v3280 = vpop.f32.mrf.mxu0
      %v3281 = vadd.f32 %v3252, %v3280
      %3282 = vdwg.mxu0
      %3283 = vmatpush.bf16.msra.mxu0 %v2570
      %3284 = vmatpush.bf16.msra.mxu0 %v2566
      %3285 = vmatpush.bf16.msra.mxu0 %v2562
      %3286 = vmatpush.bf16.msra.mxu0 %v2558
      %3287 = vmatpush.bf16.msra.mxu0 %v2554
      %3288 = vmatpush.bf16.msra.mxu0 %v2550
      %3289 = vmatpush.bf16.msra.mxu0 %v2546
      %3290 = vmatpush.bf16.msra.mxu0 %v2542
      %3291 = vmatmul.bf16.gmra.mxu0 %v1062
      %v3292 = vpop.f32.mrf.mxu0
      %v3293 = vadd.f32 %v3264, %v3292
      %v3294 = vpop.f32.mrf.mxu0
      %v3295 = vadd.f32 %v3266, %v3294
      %3296 = vmatmul.bf16.gmra.mxu0 %v1063
      %v3297 = vpop.f32.mrf.mxu0
      %v3298 = vadd.f32 %v3269, %v3297
      %v3299 = vpop.f32.mrf.mxu0
      %v3300 = vadd.f32 %v3271, %v3299
      %3301 = vmatmul.bf16.gmra.mxu0 %v1064
      %v3302 = vpop.f32.mrf.mxu0
      %v3303 = vadd.f32 %v3274, %v3302
      %v3304 = vpop.f32.mrf.mxu0
      %v3305 = vadd.f32 %v3276, %v3304
      %3306 = vmatmul.bf16.gmra.mxu0 %v1065
      %v3307 = vpop.f32.mrf.mxu0
      %v3308 = vadd.f32 %v3279, %v3307
      %v3309 = vpop.f32.mrf.mxu0
      %v3310 = vadd.f32 %v3281, %v3309
      %3311 = vdwg.mxu0
      %3312 = vmatpush.bf16.msra.mxu0 %v2602
      %3313 = vmatpush.bf16.msra.mxu0 %v2598
      %3314 = vmatpush.bf16.msra.mxu0 %v2594
      %3315 = vmatpush.bf16.msra.mxu0 %v2590
      %3316 = vmatpush.bf16.msra.mxu0 %v2586
      %3317 = vmatpush.bf16.msra.mxu0 %v2582
      %3318 = vmatpush.bf16.msra.mxu0 %v2578
      %3319 = vmatpush.bf16.msra.mxu0 %v2574
      %3320 = vmatmul.bf16.gmra.mxu0 %v1078
      %v3321 = vpop.f32.mrf.mxu0
      %v3322 = vadd.f32 %v3293, %v3321
      %v3323 = vpop.f32.mrf.mxu0
      %v3324 = vadd.f32 %v3295, %v3323
      %3325 = vmatmul.bf16.gmra.mxu0 %v1079
      %v3326 = vpop.f32.mrf.mxu0
      %v3327 = vadd.f32 %v3298, %v3326
      %v3328 = vpop.f32.mrf.mxu0
      %v3329 = vadd.f32 %v3300, %v3328
      %3330 = vmatmul.bf16.gmra.mxu0 %v1080
      %v3331 = vpop.f32.mrf.mxu0
      %v3332 = vadd.f32 %v3303, %v3331
      %v3333 = vpop.f32.mrf.mxu0
      %v3334 = vadd.f32 %v3305, %v3333
      %3335 = vmatmul.bf16.gmra.mxu0 %v1081
      %v3336 = vpop.f32.mrf.mxu0
      %v3337 = vadd.f32 %v3308, %v3336
      %v3338 = vpop.f32.mrf.mxu0
      %v3339 = vadd.f32 %v3310, %v3338
      %3340 = vdwg.mxu0
      %3341 = vmatpush.bf16.msra.mxu0 %v2634
      %3342 = vmatpush.bf16.msra.mxu0 %v2630
      %3343 = vmatpush.bf16.msra.mxu0 %v2626
      %3344 = vmatpush.bf16.msra.mxu0 %v2622
      %3345 = vmatpush.bf16.msra.mxu0 %v2618
      %3346 = vmatpush.bf16.msra.mxu0 %v2614
      %3347 = vmatpush.bf16.msra.mxu0 %v2610
      %3348 = vmatpush.bf16.msra.mxu0 %v2606
      %3349 = vmatmul.bf16.gmra.mxu0 %v1094
      %v3350 = vpop.f32.mrf.mxu0
      %v3351 = vadd.f32 %v3322, %v3350
      %v3352 = vpop.f32.mrf.mxu0
      %v3353 = vadd.f32 %v3324, %v3352
      %3354 = vmatmul.bf16.gmra.mxu0 %v1095
      %v3355 = vpop.f32.mrf.mxu0
      %v3356 = vadd.f32 %v3327, %v3355
      %v3357 = vpop.f32.mrf.mxu0
      %v3358 = vadd.f32 %v3329, %v3357
      %3359 = vmatmul.bf16.gmra.mxu0 %v1096
      %v3360 = vpop.f32.mrf.mxu0
      %v3361 = vadd.f32 %v3332, %v3360
      %v3362 = vpop.f32.mrf.mxu0
      %v3363 = vadd.f32 %v3334, %v3362
      %3364 = vmatmul.bf16.gmra.mxu0 %v1097
      %v3365 = vpop.f32.mrf.mxu0
      %v3366 = vadd.f32 %v3337, %v3365
      %v3367 = vpop.f32.mrf.mxu0
      %v3368 = vadd.f32 %v3339, %v3367
      %3369 = vdwg.mxu0
      %3370 = vmatpush.bf16.msra.mxu0 %v2283
      %3371 = vmatpush.bf16.msra.mxu0 %v2279
      %3372 = vmatpush.bf16.msra.mxu0 %v2275
      %3373 = vmatpush.bf16.msra.mxu0 %v2271
      %3374 = vmatpush.bf16.msra.mxu0 %v2267
      %3375 = vmatpush.bf16.msra.mxu0 %v2263
      %3376 = vmatpush.bf16.msra.mxu0 %v2259
      %3377 = vmatpush.bf16.msra.mxu0 %v2255
      %3378 = vmatmul.bf16.gmra.mxu0 %v918
      %v3379 = vpop.f32.mrf.mxu0
      %v3380 = vadd.f32 %v903, %v3379
      %v3381 = vpop.f32.mrf.mxu0
      %v3382 = vadd.f32 %v903, %v3381
      %3383 = vmatmul.bf16.gmra.mxu0 %v919
      %v3384 = vpop.f32.mrf.mxu0
      %v3385 = vadd.f32 %v903, %v3384
      %v3386 = vpop.f32.mrf.mxu0
      %v3387 = vadd.f32 %v903, %v3386
      %3388 = vmatmul.bf16.gmra.mxu0 %v920
      %v3389 = vpop.f32.mrf.mxu0
      %v3390 = vadd.f32 %v903, %v3389
      %v3391 = vpop.f32.mrf.mxu0
      %v3392 = vadd.f32 %v903, %v3391
      %3393 = vmatmul.bf16.gmra.mxu0 %v921
      %v3394 = vpop.f32.mrf.mxu0
      %v3395 = vadd.f32 %v903, %v3394
      %v3396 = vpop.f32.mrf.mxu0
      %v3397 = vadd.f32 %v903, %v3396
      %3398 = vdwg.mxu0
      %3399 = vmatpush.bf16.msra.mxu0 %v2315
      %3400 = vmatpush.bf16.msra.mxu0 %v2311
      %3401 = vmatpush.bf16.msra.mxu0 %v2307
      %3402 = vmatpush.bf16.msra.mxu0 %v2303
      %3403 = vmatpush.bf16.msra.mxu0 %v2299
      %3404 = vmatpush.bf16.msra.mxu0 %v2295
      %3405 = vmatpush.bf16.msra.mxu0 %v2291
      %3406 = vmatpush.bf16.msra.mxu0 %v2287
      %3407 = vmatmul.bf16.gmra.mxu0 %v934
      %v3408 = vpop.f32.mrf.mxu0
      %v3409 = vadd.f32 %v3380, %v3408
      %v3410 = vpop.f32.mrf.mxu0
      %v3411 = vadd.f32 %v3382, %v3410
      %3412 = vmatmul.bf16.gmra.mxu0 %v935
      %v3413 = vpop.f32.mrf.mxu0
      %v3414 = vadd.f32 %v3385, %v3413
      %v3415 = vpop.f32.mrf.mxu0
      %v3416 = vadd.f32 %v3387, %v3415
      %3417 = vmatmul.bf16.gmra.mxu0 %v936
      %v3418 = vpop.f32.mrf.mxu0
      %v3419 = vadd.f32 %v3390, %v3418
      %v3420 = vpop.f32.mrf.mxu0
      %v3421 = vadd.f32 %v3392, %v3420
      %3422 = vmatmul.bf16.gmra.mxu0 %v937
      %v3423 = vpop.f32.mrf.mxu0
      %v3424 = vadd.f32 %v3395, %v3423
      %v3425 = vpop.f32.mrf.mxu0
      %v3426 = vadd.f32 %v3397, %v3425
      %3427 = vdwg.mxu0
      %3428 = vmatpush.bf16.msra.mxu0 %v2347
      %3429 = vmatpush.bf16.msra.mxu0 %v2343
      %3430 = vmatpush.bf16.msra.mxu0 %v2339
      %3431 = vmatpush.bf16.msra.mxu0 %v2335
      %3432 = vmatpush.bf16.msra.mxu0 %v2331
      %3433 = vmatpush.bf16.msra.mxu0 %v2327
      %3434 = vmatpush.bf16.msra.mxu0 %v2323
      %3435 = vmatpush.bf16.msra.mxu0 %v2319
      %3436 = vmatmul.bf16.gmra.mxu0 %v950
      %v3437 = vpop.f32.mrf.mxu0
      %v3438 = vadd.f32 %v3409, %v3437
      %v3439 = vpop.f32.mrf.mxu0
      %v3440 = vadd.f32 %v3411, %v3439
      %3441 = vmatmul.bf16.gmra.mxu0 %v951
      %v3442 = vpop.f32.mrf.mxu0
      %v3443 = vadd.f32 %v3414, %v3442
      %v3444 = vpop.f32.mrf.mxu0
      %v3445 = vadd.f32 %v3416, %v3444
      %3446 = vmatmul.bf16.gmra.mxu0 %v952
      %v3447 = vpop.f32.mrf.mxu0
      %v3448 = vadd.f32 %v3419, %v3447
      %v3449 = vpop.f32.mrf.mxu0
      %v3450 = vadd.f32 %v3421, %v3449
      %3451 = vmatmul.bf16.gmra.mxu0 %v953
      %v3452 = vpop.f32.mrf.mxu0
      %v3453 = vadd.f32 %v3424, %v3452
      %v3454 = vpop.f32.mrf.mxu0
      %v3455 = vadd.f32 %v3426, %v3454
      %3456 = vdwg.mxu0
      %3457 = vmatpush.bf16.msra.mxu0 %v2379
      %3458 = vmatpush.bf16.msra.mxu0 %v2375
      %3459 = vmatpush.bf16.msra.mxu0 %v2371
      %3460 = vmatpush.bf16.msra.mxu0 %v2367
      %3461 = vmatpush.bf16.msra.mxu0 %v2363
      %3462 = vmatpush.bf16.msra.mxu0 %v2359
      %3463 = vmatpush.bf16.msra.mxu0 %v2355
      %3464 = vmatpush.bf16.msra.mxu0 %v2351
      %3465 = vmatmul.bf16.gmra.mxu0 %v966
      %v3466 = vpop.f32.mrf.mxu0
      %v3467 = vadd.f32 %v3438, %v3466
      %v3468 = vpop.f32.mrf.mxu0
      %v3469 = vadd.f32 %v3440, %v3468
      %3470 = vmatmul.bf16.gmra.mxu0 %v967
      %v3471 = vpop.f32.mrf.mxu0
      %v3472 = vadd.f32 %v3443, %v3471
      %v3473 = vpop.f32.mrf.mxu0
      %v3474 = vadd.f32 %v3445, %v3473
      %3475 = vmatmul.bf16.gmra.mxu0 %v968
      %v3476 = vpop.f32.mrf.mxu0
      %v3477 = vadd.f32 %v3448, %v3476
      %v3478 = vpop.f32.mrf.mxu0
      %v3479 = vadd.f32 %v3450, %v3478
      %3480 = vmatmul.bf16.gmra.mxu0 %v969
      %v3481 = vpop.f32.mrf.mxu0
      %v3482 = vadd.f32 %v3453, %v3481
      %v3483 = vpop.f32.mrf.mxu0
      %v3484 = vadd.f32 %v3455, %v3483
      %3485 = vdwg.mxu0
      %3486 = vmatpush.bf16.msra.mxu0 %v2411
      %3487 = vmatpush.bf16.msra.mxu0 %v2407
      %3488 = vmatpush.bf16.msra.mxu0 %v2403
      %3489 = vmatpush.bf16.msra.mxu0 %v2399
      %3490 = vmatpush.bf16.msra.mxu0 %v2395
      %3491 = vmatpush.bf16.msra.mxu0 %v2391
      %3492 = vmatpush.bf16.msra.mxu0 %v2387
      %3493 = vmatpush.bf16.msra.mxu0 %v2383
      %3494 = vmatmul.bf16.gmra.mxu0 %v982
      %v3495 = vpop.f32.mrf.mxu0
      %v3496 = vadd.f32 %v3467, %v3495
      %v3497 = vpop.f32.mrf.mxu0
      %v3498 = vadd.f32 %v3469, %v3497
      %3499 = vmatmul.bf16.gmra.mxu0 %v983
      %v3500 = vpop.f32.mrf.mxu0
      %v3501 = vadd.f32 %v3472, %v3500
      %v3502 = vpop.f32.mrf.mxu0
      %v3503 = vadd.f32 %v3474, %v3502
      %3504 = vmatmul.bf16.gmra.mxu0 %v984
      %v3505 = vpop.f32.mrf.mxu0
      %v3506 = vadd.f32 %v3477, %v3505
      %v3507 = vpop.f32.mrf.mxu0
      %v3508 = vadd.f32 %v3479, %v3507
      %3509 = vmatmul.bf16.gmra.mxu0 %v985
      %v3510 = vpop.f32.mrf.mxu0
      %v3511 = vadd.f32 %v3482, %v3510
      %v3512 = vpop.f32.mrf.mxu0
      %v3513 = vadd.f32 %v3484, %v3512
      %3514 = vdwg.mxu0
      %3515 = vmatpush.bf16.msra.mxu0 %v2443
      %3516 = vmatpush.bf16.msra.mxu0 %v2439
      %3517 = vmatpush.bf16.msra.mxu0 %v2435
      %3518 = vmatpush.bf16.msra.mxu0 %v2431
      %3519 = vmatpush.bf16.msra.mxu0 %v2427
      %3520 = vmatpush.bf16.msra.mxu0 %v2423
      %3521 = vmatpush.bf16.msra.mxu0 %v2419
      %3522 = vmatpush.bf16.msra.mxu0 %v2415
      %3523 = vmatmul.bf16.gmra.mxu0 %v998
      %v3524 = vpop.f32.mrf.mxu0
      %v3525 = vadd.f32 %v3496, %v3524
      %v3526 = vpop.f32.mrf.mxu0
      %v3527 = vadd.f32 %v3498, %v3526
      %3528 = vmatmul.bf16.gmra.mxu0 %v999
      %v3529 = vpop.f32.mrf.mxu0
      %v3530 = vadd.f32 %v3501, %v3529
      %v3531 = vpop.f32.mrf.mxu0
      %v3532 = vadd.f32 %v3503, %v3531
      %3533 = vmatmul.bf16.gmra.mxu0 %v1000
      %v3534 = vpop.f32.mrf.mxu0
      %v3535 = vadd.f32 %v3506, %v3534
      %v3536 = vpop.f32.mrf.mxu0
      %v3537 = vadd.f32 %v3508, %v3536
      %3538 = vmatmul.bf16.gmra.mxu0 %v1001
      %v3539 = vpop.f32.mrf.mxu0
      %v3540 = vadd.f32 %v3511, %v3539
      %v3541 = vpop.f32.mrf.mxu0
      %v3542 = vadd.f32 %v3513, %v3541
      %3543 = vdwg.mxu0
      %3544 = vmatpush.bf16.msra.mxu0 %v2475
      %3545 = vmatpush.bf16.msra.mxu0 %v2471
      %3546 = vmatpush.bf16.msra.mxu0 %v2467
      %3547 = vmatpush.bf16.msra.mxu0 %v2463
      %3548 = vmatpush.bf16.msra.mxu0 %v2459
      %3549 = vmatpush.bf16.msra.mxu0 %v2455
      %3550 = vmatpush.bf16.msra.mxu0 %v2451
      %3551 = vmatpush.bf16.msra.mxu0 %v2447
      %3552 = vmatmul.bf16.gmra.mxu0 %v1014
      %v3553 = vpop.f32.mrf.mxu0
      %v3554 = vadd.f32 %v3525, %v3553
      %v3555 = vpop.f32.mrf.mxu0
      %v3556 = vadd.f32 %v3527, %v3555
      %3557 = vmatmul.bf16.gmra.mxu0 %v1015
      %v3558 = vpop.f32.mrf.mxu0
      %v3559 = vadd.f32 %v3530, %v3558
      %v3560 = vpop.f32.mrf.mxu0
      %v3561 = vadd.f32 %v3532, %v3560
      %3562 = vmatmul.bf16.gmra.mxu0 %v1016
      %v3563 = vpop.f32.mrf.mxu0
      %v3564 = vadd.f32 %v3535, %v3563
      %v3565 = vpop.f32.mrf.mxu0
      %v3566 = vadd.f32 %v3537, %v3565
      %3567 = vmatmul.bf16.gmra.mxu0 %v1017
      %v3568 = vpop.f32.mrf.mxu0
      %v3569 = vadd.f32 %v3540, %v3568
      %v3570 = vpop.f32.mrf.mxu0
      %v3571 = vadd.f32 %v3542, %v3570
      %3572 = vdwg.mxu0
      %3573 = vmatpush.bf16.msra.mxu0 %v2507
      %3574 = vmatpush.bf16.msra.mxu0 %v2503
      %3575 = vmatpush.bf16.msra.mxu0 %v2499
      %3576 = vmatpush.bf16.msra.mxu0 %v2495
      %3577 = vmatpush.bf16.msra.mxu0 %v2491
      %3578 = vmatpush.bf16.msra.mxu0 %v2487
      %3579 = vmatpush.bf16.msra.mxu0 %v2483
      %3580 = vmatpush.bf16.msra.mxu0 %v2479
      %3581 = vmatmul.bf16.gmra.mxu0 %v1030
      %v3582 = vpop.f32.mrf.mxu0
      %v3583 = vadd.f32 %v3554, %v3582
      %v3584 = vpop.f32.mrf.mxu0
      %v3585 = vadd.f32 %v3556, %v3584
      %3586 = vmatmul.bf16.gmra.mxu0 %v1031
      %v3587 = vpop.f32.mrf.mxu0
      %v3588 = vadd.f32 %v3559, %v3587
      %v3589 = vpop.f32.mrf.mxu0
      %v3590 = vadd.f32 %v3561, %v3589
      %3591 = vmatmul.bf16.gmra.mxu0 %v1032
      %v3592 = vpop.f32.mrf.mxu0
      %v3593 = vadd.f32 %v3564, %v3592
      %v3594 = vpop.f32.mrf.mxu0
      %v3595 = vadd.f32 %v3566, %v3594
      %3596 = vmatmul.bf16.gmra.mxu0 %v1033
      %v3597 = vpop.f32.mrf.mxu0
      %v3598 = vadd.f32 %v3569, %v3597
      %v3599 = vpop.f32.mrf.mxu0
      %v3600 = vadd.f32 %v3571, %v3599
      %3601 = vdwg.mxu0
      %3602 = vmatpush.bf16.msra.mxu0 %v2539
      %3603 = vmatpush.bf16.msra.mxu0 %v2535
      %3604 = vmatpush.bf16.msra.mxu0 %v2531
      %3605 = vmatpush.bf16.msra.mxu0 %v2527
      %3606 = vmatpush.bf16.msra.mxu0 %v2523
      %3607 = vmatpush.bf16.msra.mxu0 %v2519
      %3608 = vmatpush.bf16.msra.mxu0 %v2515
      %3609 = vmatpush.bf16.msra.mxu0 %v2511
      %3610 = vmatmul.bf16.gmra.mxu0 %v1046
      %v3611 = vpop.f32.mrf.mxu0
      %v3612 = vadd.f32 %v3583, %v3611
      %v3613 = vpop.f32.mrf.mxu0
      %v3614 = vadd.f32 %v3585, %v3613
      %3615 = vmatmul.bf16.gmra.mxu0 %v1047
      %v3616 = vpop.f32.mrf.mxu0
      %v3617 = vadd.f32 %v3588, %v3616
      %v3618 = vpop.f32.mrf.mxu0
      %v3619 = vadd.f32 %v3590, %v3618
      %3620 = vmatmul.bf16.gmra.mxu0 %v1048
      %v3621 = vpop.f32.mrf.mxu0
      %v3622 = vadd.f32 %v3593, %v3621
      %v3623 = vpop.f32.mrf.mxu0
      %v3624 = vadd.f32 %v3595, %v3623
      %3625 = vmatmul.bf16.gmra.mxu0 %v1049
      %v3626 = vpop.f32.mrf.mxu0
      %v3627 = vadd.f32 %v3598, %v3626
      %v3628 = vpop.f32.mrf.mxu0
      %v3629 = vadd.f32 %v3600, %v3628
      %3630 = vdwg.mxu0
      %3631 = vmatpush.bf16.msra.mxu0 %v2571
      %3632 = vmatpush.bf16.msra.mxu0 %v2567
      %3633 = vmatpush.bf16.msra.mxu0 %v2563
      %3634 = vmatpush.bf16.msra.mxu0 %v2559
      %3635 = vmatpush.bf16.msra.mxu0 %v2555
      %3636 = vmatpush.bf16.msra.mxu0 %v2551
      %3637 = vmatpush.bf16.msra.mxu0 %v2547
      %3638 = vmatpush.bf16.msra.mxu0 %v2543
      %3639 = vmatmul.bf16.gmra.mxu0 %v1062
      %v3640 = vpop.f32.mrf.mxu0
      %v3641 = vadd.f32 %v3612, %v3640
      %v3642 = vpop.f32.mrf.mxu0
      %v3643 = vadd.f32 %v3614, %v3642
      %3644 = vmatmul.bf16.gmra.mxu0 %v1063
      %v3645 = vpop.f32.mrf.mxu0
      %v3646 = vadd.f32 %v3617, %v3645
      %v3647 = vpop.f32.mrf.mxu0
      %v3648 = vadd.f32 %v3619, %v3647
      %3649 = vmatmul.bf16.gmra.mxu0 %v1064
      %v3650 = vpop.f32.mrf.mxu0
      %v3651 = vadd.f32 %v3622, %v3650
      %v3652 = vpop.f32.mrf.mxu0
      %v3653 = vadd.f32 %v3624, %v3652
      %3654 = vmatmul.bf16.gmra.mxu0 %v1065
      %v3655 = vpop.f32.mrf.mxu0
      %v3656 = vadd.f32 %v3627, %v3655
      %v3657 = vpop.f32.mrf.mxu0
      %v3658 = vadd.f32 %v3629, %v3657
      %3659 = vdwg.mxu0
      %3660 = vmatpush.bf16.msra.mxu0 %v2603
      %3661 = vmatpush.bf16.msra.mxu0 %v2599
      %3662 = vmatpush.bf16.msra.mxu0 %v2595
      %3663 = vmatpush.bf16.msra.mxu0 %v2591
      %3664 = vmatpush.bf16.msra.mxu0 %v2587
      %3665 = vmatpush.bf16.msra.mxu0 %v2583
      %3666 = vmatpush.bf16.msra.mxu0 %v2579
      %3667 = vmatpush.bf16.msra.mxu0 %v2575
      %3668 = vmatmul.bf16.gmra.mxu0 %v1078
      %v3669 = vpop.f32.mrf.mxu0
      %v3670 = vadd.f32 %v3641, %v3669
      %v3671 = vpop.f32.mrf.mxu0
      %v3672 = vadd.f32 %v3643, %v3671
      %3673 = vmatmul.bf16.gmra.mxu0 %v1079
      %v3674 = vpop.f32.mrf.mxu0
      %v3675 = vadd.f32 %v3646, %v3674
      %v3676 = vpop.f32.mrf.mxu0
      %v3677 = vadd.f32 %v3648, %v3676
      %3678 = vmatmul.bf16.gmra.mxu0 %v1080
      %v3679 = vpop.f32.mrf.mxu0
      %v3680 = vadd.f32 %v3651, %v3679
      %v3681 = vpop.f32.mrf.mxu0
      %v3682 = vadd.f32 %v3653, %v3681
      %3683 = vmatmul.bf16.gmra.mxu0 %v1081
      %v3684 = vpop.f32.mrf.mxu0
      %v3685 = vadd.f32 %v3656, %v3684
      %v3686 = vpop.f32.mrf.mxu0
      %v3687 = vadd.f32 %v3658, %v3686
      %3688 = vdwg.mxu0
      %3689 = vmatpush.bf16.msra.mxu0 %v2635
      %3690 = vmatpush.bf16.msra.mxu0 %v2631
      %3691 = vmatpush.bf16.msra.mxu0 %v2627
      %3692 = vmatpush.bf16.msra.mxu0 %v2623
      %3693 = vmatpush.bf16.msra.mxu0 %v2619
      %3694 = vmatpush.bf16.msra.mxu0 %v2615
      %3695 = vmatpush.bf16.msra.mxu0 %v2611
      %3696 = vmatpush.bf16.msra.mxu0 %v2607
      %3697 = vmatmul.bf16.gmra.mxu0 %v1094
      %v3698 = vpop.f32.mrf.mxu0
      %v3699 = vadd.f32 %v3670, %v3698
      %v3700 = vpop.f32.mrf.mxu0
      %v3701 = vadd.f32 %v3672, %v3700
      %3702 = vmatmul.bf16.gmra.mxu0 %v1095
      %v3703 = vpop.f32.mrf.mxu0
      %v3704 = vadd.f32 %v3675, %v3703
      %v3705 = vpop.f32.mrf.mxu0
      %v3706 = vadd.f32 %v3677, %v3705
      %3707 = vmatmul.bf16.gmra.mxu0 %v1096
      %v3708 = vpop.f32.mrf.mxu0
      %v3709 = vadd.f32 %v3680, %v3708
      %v3710 = vpop.f32.mrf.mxu0
      %v3711 = vadd.f32 %v3682, %v3710
      %3712 = vmatmul.bf16.gmra.mxu0 %v1097
      %v3713 = vpop.f32.mrf.mxu0
      %v3714 = vadd.f32 %v3685, %v3713
      %v3715 = vpop.f32.mrf.mxu0
      %v3716 = vadd.f32 %v3687, %v3715
      %3717 = vdwg.mxu0
      %3718 = vmatpush.bf16.msra.mxu0 %v2284
      %3719 = vmatpush.bf16.msra.mxu0 %v2280
      %3720 = vmatpush.bf16.msra.mxu0 %v2276
      %3721 = vmatpush.bf16.msra.mxu0 %v2272
      %3722 = vmatpush.bf16.msra.mxu0 %v2268
      %3723 = vmatpush.bf16.msra.mxu0 %v2264
      %3724 = vmatpush.bf16.msra.mxu0 %v2260
      %3725 = vmatpush.bf16.msra.mxu0 %v2256
      %3726 = vmatmul.bf16.gmra.mxu0 %v918
      %v3727 = vpop.f32.mrf.mxu0
      %v3728 = vadd.f32 %v904, %v3727
      %v3729 = vpop.f32.mrf.mxu0
      %v3730 = vadd.f32 %v904, %v3729
      %3731 = vmatmul.bf16.gmra.mxu0 %v919
      %v3732 = vpop.f32.mrf.mxu0
      %v3733 = vadd.f32 %v904, %v3732
      %v3734 = vpop.f32.mrf.mxu0
      %v3735 = vadd.f32 %v904, %v3734
      %3736 = vmatmul.bf16.gmra.mxu0 %v920
      %v3737 = vpop.f32.mrf.mxu0
      %v3738 = vadd.f32 %v904, %v3737
      %v3739 = vpop.f32.mrf.mxu0
      %v3740 = vadd.f32 %v904, %v3739
      %3741 = vmatmul.bf16.gmra.mxu0 %v921
      %v3742 = vpop.f32.mrf.mxu0
      %v3743 = vadd.f32 %v904, %v3742
      %v3744 = vpop.f32.mrf.mxu0
      %v3745 = vadd.f32 %v904, %v3744
      %3746 = vdwg.mxu0
      %3747 = vmatpush.bf16.msra.mxu0 %v2316
      %3748 = vmatpush.bf16.msra.mxu0 %v2312
      %3749 = vmatpush.bf16.msra.mxu0 %v2308
      %3750 = vmatpush.bf16.msra.mxu0 %v2304
      %3751 = vmatpush.bf16.msra.mxu0 %v2300
      %3752 = vmatpush.bf16.msra.mxu0 %v2296
      %3753 = vmatpush.bf16.msra.mxu0 %v2292
      %3754 = vmatpush.bf16.msra.mxu0 %v2288
      %3755 = vmatmul.bf16.gmra.mxu0 %v934
      %v3756 = vpop.f32.mrf.mxu0
      %v3757 = vadd.f32 %v3728, %v3756
      %v3758 = vpop.f32.mrf.mxu0
      %v3759 = vadd.f32 %v3730, %v3758
      %3760 = vmatmul.bf16.gmra.mxu0 %v935
      %v3761 = vpop.f32.mrf.mxu0
      %v3762 = vadd.f32 %v3733, %v3761
      %v3763 = vpop.f32.mrf.mxu0
      %v3764 = vadd.f32 %v3735, %v3763
      %3765 = vmatmul.bf16.gmra.mxu0 %v936
      %v3766 = vpop.f32.mrf.mxu0
      %v3767 = vadd.f32 %v3738, %v3766
      %v3768 = vpop.f32.mrf.mxu0
      %v3769 = vadd.f32 %v3740, %v3768
      %3770 = vmatmul.bf16.gmra.mxu0 %v937
      %v3771 = vpop.f32.mrf.mxu0
      %v3772 = vadd.f32 %v3743, %v3771
      %v3773 = vpop.f32.mrf.mxu0
      %v3774 = vadd.f32 %v3745, %v3773
      %3775 = vdwg.mxu0
      %3776 = vmatpush.bf16.msra.mxu0 %v2348
      %3777 = vmatpush.bf16.msra.mxu0 %v2344
      %3778 = vmatpush.bf16.msra.mxu0 %v2340
      %3779 = vmatpush.bf16.msra.mxu0 %v2336
      %3780 = vmatpush.bf16.msra.mxu0 %v2332
      %3781 = vmatpush.bf16.msra.mxu0 %v2328
      %3782 = vmatpush.bf16.msra.mxu0 %v2324
      %3783 = vmatpush.bf16.msra.mxu0 %v2320
      %3784 = vmatmul.bf16.gmra.mxu0 %v950
      %v3785 = vpop.f32.mrf.mxu0
      %v3786 = vadd.f32 %v3757, %v3785
      %v3787 = vpop.f32.mrf.mxu0
      %v3788 = vadd.f32 %v3759, %v3787
      %3789 = vmatmul.bf16.gmra.mxu0 %v951
      %v3790 = vpop.f32.mrf.mxu0
      %v3791 = vadd.f32 %v3762, %v3790
      %v3792 = vpop.f32.mrf.mxu0
      %v3793 = vadd.f32 %v3764, %v3792
      %3794 = vmatmul.bf16.gmra.mxu0 %v952
      %v3795 = vpop.f32.mrf.mxu0
      %v3796 = vadd.f32 %v3767, %v3795
      %v3797 = vpop.f32.mrf.mxu0
      %v3798 = vadd.f32 %v3769, %v3797
      %3799 = vmatmul.bf16.gmra.mxu0 %v953
      %v3800 = vpop.f32.mrf.mxu0
      %v3801 = vadd.f32 %v3772, %v3800
      %v3802 = vpop.f32.mrf.mxu0
      %v3803 = vadd.f32 %v3774, %v3802
      %3804 = vdwg.mxu0
      %3805 = vmatpush.bf16.msra.mxu0 %v2380
      %3806 = vmatpush.bf16.msra.mxu0 %v2376
      %3807 = vmatpush.bf16.msra.mxu0 %v2372
      %3808 = vmatpush.bf16.msra.mxu0 %v2368
      %3809 = vmatpush.bf16.msra.mxu0 %v2364
      %3810 = vmatpush.bf16.msra.mxu0 %v2360
      %3811 = vmatpush.bf16.msra.mxu0 %v2356
      %3812 = vmatpush.bf16.msra.mxu0 %v2352
      %3813 = vmatmul.bf16.gmra.mxu0 %v966
      %v3814 = vpop.f32.mrf.mxu0
      %v3815 = vadd.f32 %v3786, %v3814
      %v3816 = vpop.f32.mrf.mxu0
      %v3817 = vadd.f32 %v3788, %v3816
      %3818 = vmatmul.bf16.gmra.mxu0 %v967
      %v3819 = vpop.f32.mrf.mxu0
      %v3820 = vadd.f32 %v3791, %v3819
      %v3821 = vpop.f32.mrf.mxu0
      %v3822 = vadd.f32 %v3793, %v3821
      %3823 = vmatmul.bf16.gmra.mxu0 %v968
      %v3824 = vpop.f32.mrf.mxu0
      %v3825 = vadd.f32 %v3796, %v3824
      %v3826 = vpop.f32.mrf.mxu0
      %v3827 = vadd.f32 %v3798, %v3826
      %3828 = vmatmul.bf16.gmra.mxu0 %v969
      %v3829 = vpop.f32.mrf.mxu0
      %v3830 = vadd.f32 %v3801, %v3829
      %v3831 = vpop.f32.mrf.mxu0
      %v3832 = vadd.f32 %v3803, %v3831
      %3833 = vdwg.mxu0
      %3834 = vmatpush.bf16.msra.mxu0 %v2412
      %3835 = vmatpush.bf16.msra.mxu0 %v2408
      %3836 = vmatpush.bf16.msra.mxu0 %v2404
      %3837 = vmatpush.bf16.msra.mxu0 %v2400
      %3838 = vmatpush.bf16.msra.mxu0 %v2396
      %3839 = vmatpush.bf16.msra.mxu0 %v2392
      %3840 = vmatpush.bf16.msra.mxu0 %v2388
      %3841 = vmatpush.bf16.msra.mxu0 %v2384
      %3842 = vmatmul.bf16.gmra.mxu0 %v982
      %v3843 = vpop.f32.mrf.mxu0
      %v3844 = vadd.f32 %v3815, %v3843
      %v3845 = vpop.f32.mrf.mxu0
      %v3846 = vadd.f32 %v3817, %v3845
      %3847 = vmatmul.bf16.gmra.mxu0 %v983
      %v3848 = vpop.f32.mrf.mxu0
      %v3849 = vadd.f32 %v3820, %v3848
      %v3850 = vpop.f32.mrf.mxu0
      %v3851 = vadd.f32 %v3822, %v3850
      %3852 = vmatmul.bf16.gmra.mxu0 %v984
      %v3853 = vpop.f32.mrf.mxu0
      %v3854 = vadd.f32 %v3825, %v3853
      %v3855 = vpop.f32.mrf.mxu0
      %v3856 = vadd.f32 %v3827, %v3855
      %3857 = vmatmul.bf16.gmra.mxu0 %v985
      %v3858 = vpop.f32.mrf.mxu0
      %v3859 = vadd.f32 %v3830, %v3858
      %v3860 = vpop.f32.mrf.mxu0
      %v3861 = vadd.f32 %v3832, %v3860
      %3862 = vdwg.mxu0
      %3863 = vmatpush.bf16.msra.mxu0 %v2444
      %3864 = vmatpush.bf16.msra.mxu0 %v2440
      %3865 = vmatpush.bf16.msra.mxu0 %v2436
      %3866 = vmatpush.bf16.msra.mxu0 %v2432
      %3867 = vmatpush.bf16.msra.mxu0 %v2428
      %3868 = vmatpush.bf16.msra.mxu0 %v2424
      %3869 = vmatpush.bf16.msra.mxu0 %v2420
      %3870 = vmatpush.bf16.msra.mxu0 %v2416
      %3871 = vmatmul.bf16.gmra.mxu0 %v998
      %v3872 = vpop.f32.mrf.mxu0
      %v3873 = vadd.f32 %v3844, %v3872
      %v3874 = vpop.f32.mrf.mxu0
      %v3875 = vadd.f32 %v3846, %v3874
      %3876 = vmatmul.bf16.gmra.mxu0 %v999
      %v3877 = vpop.f32.mrf.mxu0
      %v3878 = vadd.f32 %v3849, %v3877
      %v3879 = vpop.f32.mrf.mxu0
      %v3880 = vadd.f32 %v3851, %v3879
      %3881 = vmatmul.bf16.gmra.mxu0 %v1000
      %v3882 = vpop.f32.mrf.mxu0
      %v3883 = vadd.f32 %v3854, %v3882
      %v3884 = vpop.f32.mrf.mxu0
      %v3885 = vadd.f32 %v3856, %v3884
      %3886 = vmatmul.bf16.gmra.mxu0 %v1001
      %v3887 = vpop.f32.mrf.mxu0
      %v3888 = vadd.f32 %v3859, %v3887
      %v3889 = vpop.f32.mrf.mxu0
      %v3890 = vadd.f32 %v3861, %v3889
      %3891 = vdwg.mxu0
      %3892 = vmatpush.bf16.msra.mxu0 %v2476
      %3893 = vmatpush.bf16.msra.mxu0 %v2472
      %3894 = vmatpush.bf16.msra.mxu0 %v2468
      %3895 = vmatpush.bf16.msra.mxu0 %v2464
      %3896 = vmatpush.bf16.msra.mxu0 %v2460
      %3897 = vmatpush.bf16.msra.mxu0 %v2456
      %3898 = vmatpush.bf16.msra.mxu0 %v2452
      %3899 = vmatpush.bf16.msra.mxu0 %v2448
      %3900 = vmatmul.bf16.gmra.mxu0 %v1014
      %v3901 = vpop.f32.mrf.mxu0
      %v3902 = vadd.f32 %v3873, %v3901
      %v3903 = vpop.f32.mrf.mxu0
      %v3904 = vadd.f32 %v3875, %v3903
      %3905 = vmatmul.bf16.gmra.mxu0 %v1015
      %v3906 = vpop.f32.mrf.mxu0
      %v3907 = vadd.f32 %v3878, %v3906
      %v3908 = vpop.f32.mrf.mxu0
      %v3909 = vadd.f32 %v3880, %v3908
      %3910 = vmatmul.bf16.gmra.mxu0 %v1016
      %v3911 = vpop.f32.mrf.mxu0
      %v3912 = vadd.f32 %v3883, %v3911
      %v3913 = vpop.f32.mrf.mxu0
      %v3914 = vadd.f32 %v3885, %v3913
      %3915 = vmatmul.bf16.gmra.mxu0 %v1017
      %v3916 = vpop.f32.mrf.mxu0
      %v3917 = vadd.f32 %v3888, %v3916
      %v3918 = vpop.f32.mrf.mxu0
      %v3919 = vadd.f32 %v3890, %v3918
      %3920 = vdwg.mxu0
      %3921 = vmatpush.bf16.msra.mxu0 %v2508
      %3922 = vmatpush.bf16.msra.mxu0 %v2504
      %3923 = vmatpush.bf16.msra.mxu0 %v2500
      %3924 = vmatpush.bf16.msra.mxu0 %v2496
      %3925 = vmatpush.bf16.msra.mxu0 %v2492
      %3926 = vmatpush.bf16.msra.mxu0 %v2488
      %3927 = vmatpush.bf16.msra.mxu0 %v2484
      %3928 = vmatpush.bf16.msra.mxu0 %v2480
      %3929 = vmatmul.bf16.gmra.mxu0 %v1030
      %v3930 = vpop.f32.mrf.mxu0
      %v3931 = vadd.f32 %v3902, %v3930
      %v3932 = vpop.f32.mrf.mxu0
      %v3933 = vadd.f32 %v3904, %v3932
      %3934 = vmatmul.bf16.gmra.mxu0 %v1031
      %v3935 = vpop.f32.mrf.mxu0
      %v3936 = vadd.f32 %v3907, %v3935
      %v3937 = vpop.f32.mrf.mxu0
      %v3938 = vadd.f32 %v3909, %v3937
      %3939 = vmatmul.bf16.gmra.mxu0 %v1032
      %v3940 = vpop.f32.mrf.mxu0
      %v3941 = vadd.f32 %v3912, %v3940
      %v3942 = vpop.f32.mrf.mxu0
      %v3943 = vadd.f32 %v3914, %v3942
      %3944 = vmatmul.bf16.gmra.mxu0 %v1033
      %v3945 = vpop.f32.mrf.mxu0
      %v3946 = vadd.f32 %v3917, %v3945
      %v3947 = vpop.f32.mrf.mxu0
      %v3948 = vadd.f32 %v3919, %v3947
      %3949 = vdwg.mxu0
      %3950 = vmatpush.bf16.msra.mxu0 %v2540
      %3951 = vmatpush.bf16.msra.mxu0 %v2536
      %3952 = vmatpush.bf16.msra.mxu0 %v2532
      %3953 = vmatpush.bf16.msra.mxu0 %v2528
      %3954 = vmatpush.bf16.msra.mxu0 %v2524
      %3955 = vmatpush.bf16.msra.mxu0 %v2520
      %3956 = vmatpush.bf16.msra.mxu0 %v2516
      %3957 = vmatpush.bf16.msra.mxu0 %v2512
      %3958 = vmatmul.bf16.gmra.mxu0 %v1046
      %v3959 = vpop.f32.mrf.mxu0
      %v3960 = vadd.f32 %v3931, %v3959
      %v3961 = vpop.f32.mrf.mxu0
      %v3962 = vadd.f32 %v3933, %v3961
      %3963 = vmatmul.bf16.gmra.mxu0 %v1047
      %v3964 = vpop.f32.mrf.mxu0
      %v3965 = vadd.f32 %v3936, %v3964
      %v3966 = vpop.f32.mrf.mxu0
      %v3967 = vadd.f32 %v3938, %v3966
      %3968 = vmatmul.bf16.gmra.mxu0 %v1048
      %v3969 = vpop.f32.mrf.mxu0
      %v3970 = vadd.f32 %v3941, %v3969
      %v3971 = vpop.f32.mrf.mxu0
      %v3972 = vadd.f32 %v3943, %v3971
      %3973 = vmatmul.bf16.gmra.mxu0 %v1049
      %v3974 = vpop.f32.mrf.mxu0
      %v3975 = vadd.f32 %v3946, %v3974
      %v3976 = vpop.f32.mrf.mxu0
      %v3977 = vadd.f32 %v3948, %v3976
      %3978 = vdwg.mxu0
      %3979 = vmatpush.bf16.msra.mxu0 %v2572
      %3980 = vmatpush.bf16.msra.mxu0 %v2568
      %3981 = vmatpush.bf16.msra.mxu0 %v2564
      %3982 = vmatpush.bf16.msra.mxu0 %v2560
      %3983 = vmatpush.bf16.msra.mxu0 %v2556
      %3984 = vmatpush.bf16.msra.mxu0 %v2552
      %3985 = vmatpush.bf16.msra.mxu0 %v2548
      %3986 = vmatpush.bf16.msra.mxu0 %v2544
      %3987 = vmatmul.bf16.gmra.mxu0 %v1062
      %v3988 = vpop.f32.mrf.mxu0
      %v3989 = vadd.f32 %v3960, %v3988
      %v3990 = vpop.f32.mrf.mxu0
      %v3991 = vadd.f32 %v3962, %v3990
      %3992 = vmatmul.bf16.gmra.mxu0 %v1063
      %v3993 = vpop.f32.mrf.mxu0
      %v3994 = vadd.f32 %v3965, %v3993
      %v3995 = vpop.f32.mrf.mxu0
      %v3996 = vadd.f32 %v3967, %v3995
      %3997 = vmatmul.bf16.gmra.mxu0 %v1064
      %v3998 = vpop.f32.mrf.mxu0
      %v3999 = vadd.f32 %v3970, %v3998
      %v4000 = vpop.f32.mrf.mxu0
      %v4001 = vadd.f32 %v3972, %v4000
      %4002 = vmatmul.bf16.gmra.mxu0 %v1065
      %v4003 = vpop.f32.mrf.mxu0
      %v4004 = vadd.f32 %v3975, %v4003
      %v4005 = vpop.f32.mrf.mxu0
      %v4006 = vadd.f32 %v3977, %v4005
      %4007 = vdwg.mxu0
      %4008 = vmatpush.bf16.msra.mxu0 %v2604
      %4009 = vmatpush.bf16.msra.mxu0 %v2600
      %4010 = vmatpush.bf16.msra.mxu0 %v2596
      %4011 = vmatpush.bf16.msra.mxu0 %v2592
      %4012 = vmatpush.bf16.msra.mxu0 %v2588
      %4013 = vmatpush.bf16.msra.mxu0 %v2584
      %4014 = vmatpush.bf16.msra.mxu0 %v2580
      %4015 = vmatpush.bf16.msra.mxu0 %v2576
      %4016 = vmatmul.bf16.gmra.mxu0 %v1078
      %v4017 = vpop.f32.mrf.mxu0
      %v4018 = vadd.f32 %v3989, %v4017
      %v4019 = vpop.f32.mrf.mxu0
      %v4020 = vadd.f32 %v3991, %v4019
      %4021 = vmatmul.bf16.gmra.mxu0 %v1079
      %v4022 = vpop.f32.mrf.mxu0
      %v4023 = vadd.f32 %v3994, %v4022
      %v4024 = vpop.f32.mrf.mxu0
      %v4025 = vadd.f32 %v3996, %v4024
      %4026 = vmatmul.bf16.gmra.mxu0 %v1080
      %v4027 = vpop.f32.mrf.mxu0
      %v4028 = vadd.f32 %v3999, %v4027
      %v4029 = vpop.f32.mrf.mxu0
      %v4030 = vadd.f32 %v4001, %v4029
      %4031 = vmatmul.bf16.gmra.mxu0 %v1081
      %v4032 = vpop.f32.mrf.mxu0
      %v4033 = vadd.f32 %v4004, %v4032
      %v4034 = vpop.f32.mrf.mxu0
      %v4035 = vadd.f32 %v4006, %v4034
      %4036 = vdwg.mxu0
      %4037 = vmatpush.bf16.msra.mxu0 %v2636
      %4038 = vmatpush.bf16.msra.mxu0 %v2632
      %4039 = vmatpush.bf16.msra.mxu0 %v2628
      %4040 = vmatpush.bf16.msra.mxu0 %v2624
      %4041 = vmatpush.bf16.msra.mxu0 %v2620
      %4042 = vmatpush.bf16.msra.mxu0 %v2616
      %4043 = vmatpush.bf16.msra.mxu0 %v2612
      %4044 = vmatpush.bf16.msra.mxu0 %v2608
      %4045 = vmatmul.bf16.gmra.mxu0 %v1094
      %v4046 = vpop.f32.mrf.mxu0
      %v4047 = vadd.f32 %v4018, %v4046
      %v4048 = vpop.f32.mrf.mxu0
      %v4049 = vadd.f32 %v4020, %v4048
      %4050 = vmatmul.bf16.gmra.mxu0 %v1095
      %v4051 = vpop.f32.mrf.mxu0
      %v4052 = vadd.f32 %v4023, %v4051
      %v4053 = vpop.f32.mrf.mxu0
      %v4054 = vadd.f32 %v4025, %v4053
      %4055 = vmatmul.bf16.gmra.mxu0 %v1096
      %v4056 = vpop.f32.mrf.mxu0
      %v4057 = vadd.f32 %v4028, %v4056
      %v4058 = vpop.f32.mrf.mxu0
      %v4059 = vadd.f32 %v4030, %v4058
      %4060 = vmatmul.bf16.gmra.mxu0 %v1097
      %v4061 = vpop.f32.mrf.mxu0
      %v4062 = vadd.f32 %v4033, %v4061
      %v4063 = vpop.f32.mrf.mxu0
      %v4064 = vadd.f32 %v4035, %v4063
      %4065 = vdwg.mxu0
      %4066 = vmatpush.bf16.msra.mxu0 %v2285
      %4067 = vmatpush.bf16.msra.mxu0 %v2281
      %4068 = vmatpush.bf16.msra.mxu0 %v2277
      %4069 = vmatpush.bf16.msra.mxu0 %v2273
      %4070 = vmatpush.bf16.msra.mxu0 %v2269
      %4071 = vmatpush.bf16.msra.mxu0 %v2265
      %4072 = vmatpush.bf16.msra.mxu0 %v2261
      %4073 = vmatpush.bf16.msra.mxu0 %v2257
      %4074 = vmatmul.bf16.gmra.mxu0 %v918
      %v4075 = vpop.f32.mrf.mxu0
      %v4076 = vadd.f32 %v905, %v4075
      %v4077 = vpop.f32.mrf.mxu0
      %v4078 = vadd.f32 %v905, %v4077
      %4079 = vmatmul.bf16.gmra.mxu0 %v919
      %v4080 = vpop.f32.mrf.mxu0
      %v4081 = vadd.f32 %v905, %v4080
      %v4082 = vpop.f32.mrf.mxu0
      %v4083 = vadd.f32 %v905, %v4082
      %4084 = vmatmul.bf16.gmra.mxu0 %v920
      %v4085 = vpop.f32.mrf.mxu0
      %v4086 = vadd.f32 %v905, %v4085
      %v4087 = vpop.f32.mrf.mxu0
      %v4088 = vadd.f32 %v905, %v4087
      %4089 = vmatmul.bf16.gmra.mxu0 %v921
      %v4090 = vpop.f32.mrf.mxu0
      %v4091 = vadd.f32 %v905, %v4090
      %v4092 = vpop.f32.mrf.mxu0
      %v4093 = vadd.f32 %v905, %v4092
      %4094 = vdwg.mxu0
      %4095 = vmatpush.bf16.msra.mxu0 %v2317
      %4096 = vmatpush.bf16.msra.mxu0 %v2313
      %4097 = vmatpush.bf16.msra.mxu0 %v2309
      %4098 = vmatpush.bf16.msra.mxu0 %v2305
      %4099 = vmatpush.bf16.msra.mxu0 %v2301
      %4100 = vmatpush.bf16.msra.mxu0 %v2297
      %4101 = vmatpush.bf16.msra.mxu0 %v2293
      %4102 = vmatpush.bf16.msra.mxu0 %v2289
      %4103 = vmatmul.bf16.gmra.mxu0 %v934
      %v4104 = vpop.f32.mrf.mxu0
      %v4105 = vadd.f32 %v4076, %v4104
      %v4106 = vpop.f32.mrf.mxu0
      %v4107 = vadd.f32 %v4078, %v4106
      %4108 = vmatmul.bf16.gmra.mxu0 %v935
      %v4109 = vpop.f32.mrf.mxu0
      %v4110 = vadd.f32 %v4081, %v4109
      %v4111 = vpop.f32.mrf.mxu0
      %v4112 = vadd.f32 %v4083, %v4111
      %4113 = vmatmul.bf16.gmra.mxu0 %v936
      %v4114 = vpop.f32.mrf.mxu0
      %v4115 = vadd.f32 %v4086, %v4114
      %v4116 = vpop.f32.mrf.mxu0
      %v4117 = vadd.f32 %v4088, %v4116
      %4118 = vmatmul.bf16.gmra.mxu0 %v937
      %v4119 = vpop.f32.mrf.mxu0
      %v4120 = vadd.f32 %v4091, %v4119
      %v4121 = vpop.f32.mrf.mxu0
      %v4122 = vadd.f32 %v4093, %v4121
      %4123 = vdwg.mxu0
      %4124 = vmatpush.bf16.msra.mxu0 %v2349
      %4125 = vmatpush.bf16.msra.mxu0 %v2345
      %4126 = vmatpush.bf16.msra.mxu0 %v2341
      %4127 = vmatpush.bf16.msra.mxu0 %v2337
      %4128 = vmatpush.bf16.msra.mxu0 %v2333
      %4129 = vmatpush.bf16.msra.mxu0 %v2329
      %4130 = vmatpush.bf16.msra.mxu0 %v2325
      %4131 = vmatpush.bf16.msra.mxu0 %v2321
      %4132 = vmatmul.bf16.gmra.mxu0 %v950
      %v4133 = vpop.f32.mrf.mxu0
      %v4134 = vadd.f32 %v4105, %v4133
      %v4135 = vpop.f32.mrf.mxu0
      %v4136 = vadd.f32 %v4107, %v4135
      %4137 = vmatmul.bf16.gmra.mxu0 %v951
      %v4138 = vpop.f32.mrf.mxu0
      %v4139 = vadd.f32 %v4110, %v4138
      %v4140 = vpop.f32.mrf.mxu0
      %v4141 = vadd.f32 %v4112, %v4140
      %4142 = vmatmul.bf16.gmra.mxu0 %v952
      %v4143 = vpop.f32.mrf.mxu0
      %v4144 = vadd.f32 %v4115, %v4143
      %v4145 = vpop.f32.mrf.mxu0
      %v4146 = vadd.f32 %v4117, %v4145
      %4147 = vmatmul.bf16.gmra.mxu0 %v953
      %v4148 = vpop.f32.mrf.mxu0
      %v4149 = vadd.f32 %v4120, %v4148
      %v4150 = vpop.f32.mrf.mxu0
      %v4151 = vadd.f32 %v4122, %v4150
      %4152 = vdwg.mxu0
      %4153 = vmatpush.bf16.msra.mxu0 %v2381
      %4154 = vmatpush.bf16.msra.mxu0 %v2377
      %4155 = vmatpush.bf16.msra.mxu0 %v2373
      %4156 = vmatpush.bf16.msra.mxu0 %v2369
      %4157 = vmatpush.bf16.msra.mxu0 %v2365
      %4158 = vmatpush.bf16.msra.mxu0 %v2361
      %4159 = vmatpush.bf16.msra.mxu0 %v2357
      %4160 = vmatpush.bf16.msra.mxu0 %v2353
      %4161 = vmatmul.bf16.gmra.mxu0 %v966
      %v4162 = vpop.f32.mrf.mxu0
      %v4163 = vadd.f32 %v4134, %v4162
      %v4164 = vpop.f32.mrf.mxu0
      %v4165 = vadd.f32 %v4136, %v4164
      %4166 = vmatmul.bf16.gmra.mxu0 %v967
      %v4167 = vpop.f32.mrf.mxu0
      %v4168 = vadd.f32 %v4139, %v4167
      %v4169 = vpop.f32.mrf.mxu0
      %v4170 = vadd.f32 %v4141, %v4169
      %4171 = vmatmul.bf16.gmra.mxu0 %v968
      %v4172 = vpop.f32.mrf.mxu0
      %v4173 = vadd.f32 %v4144, %v4172
      %v4174 = vpop.f32.mrf.mxu0
      %v4175 = vadd.f32 %v4146, %v4174
      %4176 = vmatmul.bf16.gmra.mxu0 %v969
      %v4177 = vpop.f32.mrf.mxu0
      %v4178 = vadd.f32 %v4149, %v4177
      %v4179 = vpop.f32.mrf.mxu0
      %v4180 = vadd.f32 %v4151, %v4179
      %4181 = vdwg.mxu0
      %4182 = vmatpush.bf16.msra.mxu0 %v2413
      %4183 = vmatpush.bf16.msra.mxu0 %v2409
      %4184 = vmatpush.bf16.msra.mxu0 %v2405
      %4185 = vmatpush.bf16.msra.mxu0 %v2401
      %4186 = vmatpush.bf16.msra.mxu0 %v2397
      %4187 = vmatpush.bf16.msra.mxu0 %v2393
      %4188 = vmatpush.bf16.msra.mxu0 %v2389
      %4189 = vmatpush.bf16.msra.mxu0 %v2385
      %4190 = vmatmul.bf16.gmra.mxu0 %v982
      %v4191 = vpop.f32.mrf.mxu0
      %v4192 = vadd.f32 %v4163, %v4191
      %v4193 = vpop.f32.mrf.mxu0
      %v4194 = vadd.f32 %v4165, %v4193
      %4195 = vmatmul.bf16.gmra.mxu0 %v983
      %v4196 = vpop.f32.mrf.mxu0
      %v4197 = vadd.f32 %v4168, %v4196
      %v4198 = vpop.f32.mrf.mxu0
      %v4199 = vadd.f32 %v4170, %v4198
      %4200 = vmatmul.bf16.gmra.mxu0 %v984
      %v4201 = vpop.f32.mrf.mxu0
      %v4202 = vadd.f32 %v4173, %v4201
      %v4203 = vpop.f32.mrf.mxu0
      %v4204 = vadd.f32 %v4175, %v4203
      %4205 = vmatmul.bf16.gmra.mxu0 %v985
      %v4206 = vpop.f32.mrf.mxu0
      %v4207 = vadd.f32 %v4178, %v4206
      %v4208 = vpop.f32.mrf.mxu0
      %v4209 = vadd.f32 %v4180, %v4208
      %4210 = vdwg.mxu0
      %4211 = vmatpush.bf16.msra.mxu0 %v2445
      %4212 = vmatpush.bf16.msra.mxu0 %v2441
      %4213 = vmatpush.bf16.msra.mxu0 %v2437
      %4214 = vmatpush.bf16.msra.mxu0 %v2433
      %4215 = vmatpush.bf16.msra.mxu0 %v2429
      %4216 = vmatpush.bf16.msra.mxu0 %v2425
      %4217 = vmatpush.bf16.msra.mxu0 %v2421
      %4218 = vmatpush.bf16.msra.mxu0 %v2417
      %4219 = vmatmul.bf16.gmra.mxu0 %v998
      %v4220 = vpop.f32.mrf.mxu0
      %v4221 = vadd.f32 %v4192, %v4220
      %v4222 = vpop.f32.mrf.mxu0
      %v4223 = vadd.f32 %v4194, %v4222
      %4224 = vmatmul.bf16.gmra.mxu0 %v999
      %v4225 = vpop.f32.mrf.mxu0
      %v4226 = vadd.f32 %v4197, %v4225
      %v4227 = vpop.f32.mrf.mxu0
      %v4228 = vadd.f32 %v4199, %v4227
      %4229 = vmatmul.bf16.gmra.mxu0 %v1000
      %v4230 = vpop.f32.mrf.mxu0
      %v4231 = vadd.f32 %v4202, %v4230
      %v4232 = vpop.f32.mrf.mxu0
      %v4233 = vadd.f32 %v4204, %v4232
      %4234 = vmatmul.bf16.gmra.mxu0 %v1001
      %v4235 = vpop.f32.mrf.mxu0
      %v4236 = vadd.f32 %v4207, %v4235
      %v4237 = vpop.f32.mrf.mxu0
      %v4238 = vadd.f32 %v4209, %v4237
      %4239 = vdwg.mxu0
      %4240 = vmatpush.bf16.msra.mxu0 %v2477
      %4241 = vmatpush.bf16.msra.mxu0 %v2473
      %4242 = vmatpush.bf16.msra.mxu0 %v2469
      %4243 = vmatpush.bf16.msra.mxu0 %v2465
      %4244 = vmatpush.bf16.msra.mxu0 %v2461
      %4245 = vmatpush.bf16.msra.mxu0 %v2457
      %4246 = vmatpush.bf16.msra.mxu0 %v2453
      %4247 = vmatpush.bf16.msra.mxu0 %v2449
      %4248 = vmatmul.bf16.gmra.mxu0 %v1014
      %v4249 = vpop.f32.mrf.mxu0
      %v4250 = vadd.f32 %v4221, %v4249
      %v4251 = vpop.f32.mrf.mxu0
      %v4252 = vadd.f32 %v4223, %v4251
      %4253 = vmatmul.bf16.gmra.mxu0 %v1015
      %v4254 = vpop.f32.mrf.mxu0
      %v4255 = vadd.f32 %v4226, %v4254
      %v4256 = vpop.f32.mrf.mxu0
      %v4257 = vadd.f32 %v4228, %v4256
      %4258 = vmatmul.bf16.gmra.mxu0 %v1016
      %v4259 = vpop.f32.mrf.mxu0
      %v4260 = vadd.f32 %v4231, %v4259
      %v4261 = vpop.f32.mrf.mxu0
      %v4262 = vadd.f32 %v4233, %v4261
      %4263 = vmatmul.bf16.gmra.mxu0 %v1017
      %v4264 = vpop.f32.mrf.mxu0
      %v4265 = vadd.f32 %v4236, %v4264
      %v4266 = vpop.f32.mrf.mxu0
      %v4267 = vadd.f32 %v4238, %v4266
      %4268 = vdwg.mxu0
      %4269 = vmatpush.bf16.msra.mxu0 %v2509
      %4270 = vmatpush.bf16.msra.mxu0 %v2505
      %4271 = vmatpush.bf16.msra.mxu0 %v2501
      %4272 = vmatpush.bf16.msra.mxu0 %v2497
      %4273 = vmatpush.bf16.msra.mxu0 %v2493
      %4274 = vmatpush.bf16.msra.mxu0 %v2489
      %4275 = vmatpush.bf16.msra.mxu0 %v2485
      %4276 = vmatpush.bf16.msra.mxu0 %v2481
      %4277 = vmatmul.bf16.gmra.mxu0 %v1030
      %v4278 = vpop.f32.mrf.mxu0
      %v4279 = vadd.f32 %v4250, %v4278
      %v4280 = vpop.f32.mrf.mxu0
      %v4281 = vadd.f32 %v4252, %v4280
      %4282 = vmatmul.bf16.gmra.mxu0 %v1031
      %v4283 = vpop.f32.mrf.mxu0
      %v4284 = vadd.f32 %v4255, %v4283
      %v4285 = vpop.f32.mrf.mxu0
      %v4286 = vadd.f32 %v4257, %v4285
      %4287 = vmatmul.bf16.gmra.mxu0 %v1032
      %v4288 = vpop.f32.mrf.mxu0
      %v4289 = vadd.f32 %v4260, %v4288
      %v4290 = vpop.f32.mrf.mxu0
      %v4291 = vadd.f32 %v4262, %v4290
      %4292 = vmatmul.bf16.gmra.mxu0 %v1033
      %v4293 = vpop.f32.mrf.mxu0
      %v4294 = vadd.f32 %v4265, %v4293
      %v4295 = vpop.f32.mrf.mxu0
      %v4296 = vadd.f32 %v4267, %v4295
      %4297 = vdwg.mxu0
      %4298 = vmatpush.bf16.msra.mxu0 %v2541
      %4299 = vmatpush.bf16.msra.mxu0 %v2537
      %4300 = vmatpush.bf16.msra.mxu0 %v2533
      %4301 = vmatpush.bf16.msra.mxu0 %v2529
      %4302 = vmatpush.bf16.msra.mxu0 %v2525
      %4303 = vmatpush.bf16.msra.mxu0 %v2521
      %4304 = vmatpush.bf16.msra.mxu0 %v2517
      %4305 = vmatpush.bf16.msra.mxu0 %v2513
      %4306 = vmatmul.bf16.gmra.mxu0 %v1046
      %v4307 = vpop.f32.mrf.mxu0
      %v4308 = vadd.f32 %v4279, %v4307
      %v4309 = vpop.f32.mrf.mxu0
      %v4310 = vadd.f32 %v4281, %v4309
      %4311 = vmatmul.bf16.gmra.mxu0 %v1047
      %v4312 = vpop.f32.mrf.mxu0
      %v4313 = vadd.f32 %v4284, %v4312
      %v4314 = vpop.f32.mrf.mxu0
      %v4315 = vadd.f32 %v4286, %v4314
      %4316 = vmatmul.bf16.gmra.mxu0 %v1048
      %v4317 = vpop.f32.mrf.mxu0
      %v4318 = vadd.f32 %v4289, %v4317
      %v4319 = vpop.f32.mrf.mxu0
      %v4320 = vadd.f32 %v4291, %v4319
      %4321 = vmatmul.bf16.gmra.mxu0 %v1049
      %v4322 = vpop.f32.mrf.mxu0
      %v4323 = vadd.f32 %v4294, %v4322
      %v4324 = vpop.f32.mrf.mxu0
      %v4325 = vadd.f32 %v4296, %v4324
      %4326 = vdwg.mxu0
      %4327 = vmatpush.bf16.msra.mxu0 %v2573
      %4328 = vmatpush.bf16.msra.mxu0 %v2569
      %4329 = vmatpush.bf16.msra.mxu0 %v2565
      %4330 = vmatpush.bf16.msra.mxu0 %v2561
      %4331 = vmatpush.bf16.msra.mxu0 %v2557
      %4332 = vmatpush.bf16.msra.mxu0 %v2553
      %4333 = vmatpush.bf16.msra.mxu0 %v2549
      %4334 = vmatpush.bf16.msra.mxu0 %v2545
      %4335 = vmatmul.bf16.gmra.mxu0 %v1062
      %v4336 = vpop.f32.mrf.mxu0
      %v4337 = vadd.f32 %v4308, %v4336
      %v4338 = vpop.f32.mrf.mxu0
      %v4339 = vadd.f32 %v4310, %v4338
      %4340 = vmatmul.bf16.gmra.mxu0 %v1063
      %v4341 = vpop.f32.mrf.mxu0
      %v4342 = vadd.f32 %v4313, %v4341
      %v4343 = vpop.f32.mrf.mxu0
      %v4344 = vadd.f32 %v4315, %v4343
      %4345 = vmatmul.bf16.gmra.mxu0 %v1064
      %v4346 = vpop.f32.mrf.mxu0
      %v4347 = vadd.f32 %v4318, %v4346
      %v4348 = vpop.f32.mrf.mxu0
      %v4349 = vadd.f32 %v4320, %v4348
      %4350 = vmatmul.bf16.gmra.mxu0 %v1065
      %v4351 = vpop.f32.mrf.mxu0
      %v4352 = vadd.f32 %v4323, %v4351
      %v4353 = vpop.f32.mrf.mxu0
      %v4354 = vadd.f32 %v4325, %v4353
      %4355 = vdwg.mxu0
      %4356 = vmatpush.bf16.msra.mxu0 %v2605
      %4357 = vmatpush.bf16.msra.mxu0 %v2601
      %4358 = vmatpush.bf16.msra.mxu0 %v2597
      %4359 = vmatpush.bf16.msra.mxu0 %v2593
      %4360 = vmatpush.bf16.msra.mxu0 %v2589
      %4361 = vmatpush.bf16.msra.mxu0 %v2585
      %4362 = vmatpush.bf16.msra.mxu0 %v2581
      %4363 = vmatpush.bf16.msra.mxu0 %v2577
      %4364 = vmatmul.bf16.gmra.mxu0 %v1078
      %v4365 = vpop.f32.mrf.mxu0
      %v4366 = vadd.f32 %v4337, %v4365
      %v4367 = vpop.f32.mrf.mxu0
      %v4368 = vadd.f32 %v4339, %v4367
      %4369 = vmatmul.bf16.gmra.mxu0 %v1079
      %v4370 = vpop.f32.mrf.mxu0
      %v4371 = vadd.f32 %v4342, %v4370
      %v4372 = vpop.f32.mrf.mxu0
      %v4373 = vadd.f32 %v4344, %v4372
      %4374 = vmatmul.bf16.gmra.mxu0 %v1080
      %v4375 = vpop.f32.mrf.mxu0
      %v4376 = vadd.f32 %v4347, %v4375
      %v4377 = vpop.f32.mrf.mxu0
      %v4378 = vadd.f32 %v4349, %v4377
      %4379 = vmatmul.bf16.gmra.mxu0 %v1081
      %v4380 = vpop.f32.mrf.mxu0
      %v4381 = vadd.f32 %v4352, %v4380
      %v4382 = vpop.f32.mrf.mxu0
      %v4383 = vadd.f32 %v4354, %v4382
      %4384 = vdwg.mxu0
      %4385 = vmatpush.bf16.msra.mxu0 %v2637
      %4386 = vmatpush.bf16.msra.mxu0 %v2633
      %4387 = vmatpush.bf16.msra.mxu0 %v2629
      %4388 = vmatpush.bf16.msra.mxu0 %v2625
      %4389 = vmatpush.bf16.msra.mxu0 %v2621
      %4390 = vmatpush.bf16.msra.mxu0 %v2617
      %4391 = vmatpush.bf16.msra.mxu0 %v2613
      %4392 = vmatpush.bf16.msra.mxu0 %v2609
      %4393 = vmatmul.bf16.gmra.mxu0 %v1094
      %v4394 = vpop.f32.mrf.mxu0
      %v4395 = vadd.f32 %v4366, %v4394
      %v4396 = vpop.f32.mrf.mxu0
      %v4397 = vadd.f32 %v4368, %v4396
      %4398 = vmatmul.bf16.gmra.mxu0 %v1095
      %v4399 = vpop.f32.mrf.mxu0
      %v4400 = vadd.f32 %v4371, %v4399
      %v4401 = vpop.f32.mrf.mxu0
      %v4402 = vadd.f32 %v4373, %v4401
      %4403 = vmatmul.bf16.gmra.mxu0 %v1096
      %v4404 = vpop.f32.mrf.mxu0
      %v4405 = vadd.f32 %v4376, %v4404
      %v4406 = vpop.f32.mrf.mxu0
      %v4407 = vadd.f32 %v4378, %v4406
      %4408 = vmatmul.bf16.gmra.mxu0 %v1097
      %v4409 = vpop.f32.mrf.mxu0
      %v4410 = vadd.f32 %v4381, %v4409
      %v4411 = vpop.f32.mrf.mxu0
      %v4412 = vadd.f32 %v4383, %v4411
      %4413 = vdwg.mxu0
      %v4414 = vmax.f32 %v3351, 0.0
      %v4415 = vmax.f32 %v3699, 0.0
      %v4416 = vmax.f32 %v4047, 0.0
      %v4417 = vmax.f32 %v4395, 0.0
      %v4418 = vmax.f32 %v3353, 0.0
      %v4419 = vmax.f32 %v3701, 0.0
      %v4420 = vmax.f32 %v4049, 0.0
      %v4421 = vmax.f32 %v4397, 0.0
      %v4422 = vmax.f32 %v3356, 0.0
      %v4423 = vmax.f32 %v3704, 0.0
      %v4424 = vmax.f32 %v4052, 0.0
      %v4425 = vmax.f32 %v4400, 0.0
      %v4426 = vmax.f32 %v3358, 0.0
      %v4427 = vmax.f32 %v3706, 0.0
      %v4428 = vmax.f32 %v4054, 0.0
      %v4429 = vmax.f32 %v4402, 0.0
      %v4430 = vmax.f32 %v3361, 0.0
      %v4431 = vmax.f32 %v3709, 0.0
      %v4432 = vmax.f32 %v4057, 0.0
      %v4433 = vmax.f32 %v4405, 0.0
      %v4434 = vmax.f32 %v3363, 0.0
      %v4435 = vmax.f32 %v3711, 0.0
      %v4436 = vmax.f32 %v4059, 0.0
      %v4437 = vmax.f32 %v4407, 0.0
      %v4438 = vmax.f32 %v3366, 0.0
      %v4439 = vmax.f32 %v3714, 0.0
      %v4440 = vmax.f32 %v4062, 0.0
      %v4441 = vmax.f32 %v4410, 0.0
      %v4442 = vmax.f32 %v3368, 0.0
      %v4443 = vmax.f32 %v3716, 0.0
      %v4444 = vmax.f32 %v4064, 0.0
      %v4445 = vmax.f32 %v4412, 0.0
      %v4446 = vadd.f32 %v4414, %v4418
      %v4447 = vadd.f32 %v4446, %v4422
      %v4448 = vadd.f32 %v4447, %v4426
      %v4449 = vadd.f32 %v4448, %v4430
      %v4450 = vadd.f32 %v4449, %v4434
      %v4451 = vadd.f32 %v4450, %v4438
      %v4452 = vadd.f32 %v4451, %v4442
      %v4453 = vrot.slane %v4452, 4
      %v4454 = vadd.f32 %v4452, %v4453
      %v4455 = vrot.slane %v4454, 2
      %v4456 = vadd.f32 %v4454, %v4455
      %v4457 = vrot.slane %v4456, 1
      %v4458 = vadd.f32 %v4456, %v4457
      %v4459 = vadd.f32 %v4415, %v4419
      %v4460 = vadd.f32 %v4459, %v4423
      %v4461 = vadd.f32 %v4460, %v4427
      %v4462 = vadd.f32 %v4461, %v4431
      %v4463 = vadd.f32 %v4462, %v4435
      %v4464 = vadd.f32 %v4463, %v4439
      %v4465 = vadd.f32 %v4464, %v4443
      %v4466 = vrot.slane %v4465, 4
      %v4467 = vadd.f32 %v4465, %v4466
      %v4468 = vrot.slane %v4467, 2
      %v4469 = vadd.f32 %v4467, %v4468
      %v4470 = vrot.slane %v4469, 1
      %v4471 = vadd.f32 %v4469, %v4470
      %v4472 = vadd.f32 %v4416, %v4420
      %v4473 = vadd.f32 %v4472, %v4424
      %v4474 = vadd.f32 %v4473, %v4428
      %v4475 = vadd.f32 %v4474, %v4432
      %v4476 = vadd.f32 %v4475, %v4436
      %v4477 = vadd.f32 %v4476, %v4440
      %v4478 = vadd.f32 %v4477, %v4444
      %v4479 = vrot.slane %v4478, 4
      %v4480 = vadd.f32 %v4478, %v4479
      %v4481 = vrot.slane %v4480, 2
      %v4482 = vadd.f32 %v4480, %v4481
      %v4483 = vrot.slane %v4482, 1
      %v4484 = vadd.f32 %v4482, %v4483
      %v4485 = vadd.f32 %v4417, %v4421
      %v4486 = vadd.f32 %v4485, %v4425
      %v4487 = vadd.f32 %v4486, %v4429
      %v4488 = vadd.f32 %v4487, %v4433
      %v4489 = vadd.f32 %v4488, %v4437
      %v4490 = vadd.f32 %v4489, %v4441
      %v4491 = vadd.f32 %v4490, %v4445
      %v4492 = vrot.slane %v4491, 4
      %v4493 = vadd.f32 %v4491, %v4492
      %v4494 = vrot.slane %v4493, 2
      %v4495 = vadd.f32 %v4493, %v4494
      %v4496 = vrot.slane %v4495, 1
      %v4497 = vadd.f32 %v4495, %v4496
      %v4498 = vrcp.pop 64.0
      %v4499 = vmul.f32 64.0, %v4498
      %v4500 = vsub.f32 1.0, %v4499
      %v4501 = vmul.f32 %v4498, %v4500
      %v4502 = vadd.f32 %v4498, %v4501
      %vm4503 = vweird.f32 %v4498
      %v4504 = vsel %vm4503, %v4498, %v4502
      %v4505 = vmul.f32 %v4458, %v4504
      %v4506 = vmul.f32 %v4471, %v4504
      %v4507 = vmul.f32 %v4484, %v4504
      %v4508 = vmul.f32 %v4497, %v4504
      %s4509 = scalar_lea.vmem %s222, 1536
      %v4510 = vld [vmem:[%s4509] sm:$0xff]
      %v4511 = vld [vmem:[%s4509 + $0x8] sm:$0xff]
      %v4512 = vld [vmem:[%s4509 + $0x10] sm:$0xff]
      %v4513 = vld [vmem:[%s4509 + $0x18] sm:$0xff]
      %v4514 = vld [vmem:[%s4509 + $0x20] sm:$0xff]
      %v4515 = vld [vmem:[%s4509 + $0x28] sm:$0xff]
      %v4516 = vld [vmem:[%s4509 + $0x30] sm:$0xff]
      %v4517 = vld [vmem:[%s4509 + $0x38] sm:$0xff]
      %v4518 = vld [vmem:[%s4509 + $0x40] sm:$0xff]
      %v4519 = vld [vmem:[%s4509 + $0x48] sm:$0xff]
      %v4520 = vld [vmem:[%s4509 + $0x50] sm:$0xff]
      %v4521 = vld [vmem:[%s4509 + $0x58] sm:$0xff]
      %v4522 = vld [vmem:[%s4509 + $0x60] sm:$0xff]
      %v4523 = vld [vmem:[%s4509 + $0x68] sm:$0xff]
      %v4524 = vld [vmem:[%s4509 + $0x70] sm:$0xff]
      %v4525 = vld [vmem:[%s4509 + $0x78] sm:$0xff]
      %v4526 = vld [vmem:[%s4509 + $0x80] sm:$0xff]
      %v4527 = vld [vmem:[%s4509 + $0x88] sm:$0xff]
      %v4528 = vld [vmem:[%s4509 + $0x90] sm:$0xff]
      %v4529 = vld [vmem:[%s4509 + $0x98] sm:$0xff]
      %v4530 = vld [vmem:[%s4509 + $0xa0] sm:$0xff]
      %v4531 = vld [vmem:[%s4509 + $0xa8] sm:$0xff]
      %v4532 = vld [vmem:[%s4509 + $0xb0] sm:$0xff]
      %v4533 = vld [vmem:[%s4509 + $0xb8] sm:$0xff]
      %v4534 = vld [vmem:[%s4509 + $0xc0] sm:$0xff]
      %v4535 = vld [vmem:[%s4509 + $0xc8] sm:$0xff]
      %v4536 = vld [vmem:[%s4509 + $0xd0] sm:$0xff]
      %v4537 = vld [vmem:[%s4509 + $0xd8] sm:$0xff]
      %v4538 = vld [vmem:[%s4509 + $0xe0] sm:$0xff]
      %v4539 = vld [vmem:[%s4509 + $0xe8] sm:$0xff]
      %v4540 = vld [vmem:[%s4509 + $0xf0] sm:$0xff]
      %v4541 = vld [vmem:[%s4509 + $0xf8] sm:$0xff]
      %v4542 = vld [vmem:[%s4509 + $0x100] sm:$0xff]
      %v4543 = vld [vmem:[%s4509 + $0x108] sm:$0xff]
      %v4544 = vld [vmem:[%s4509 + $0x110] sm:$0xff]
      %v4545 = vld [vmem:[%s4509 + $0x118] sm:$0xff]
      %v4546 = vld [vmem:[%s4509 + $0x120] sm:$0xff]
      %v4547 = vld [vmem:[%s4509 + $0x128] sm:$0xff]
      %v4548 = vld [vmem:[%s4509 + $0x130] sm:$0xff]
      %v4549 = vld [vmem:[%s4509 + $0x138] sm:$0xff]
      %v4550 = vld [vmem:[%s4509 + $0x140] sm:$0xff]
      %v4551 = vld [vmem:[%s4509 + $0x148] sm:$0xff]
      %v4552 = vld [vmem:[%s4509 + $0x150] sm:$0xff]
      %v4553 = vld [vmem:[%s4509 + $0x158] sm:$0xff]
      %v4554 = vld [vmem:[%s4509 + $0x160] sm:$0xff]
      %v4555 = vld [vmem:[%s4509 + $0x168] sm:$0xff]
      %v4556 = vld [vmem:[%s4509 + $0x170] sm:$0xff]
      %v4557 = vld [vmem:[%s4509 + $0x178] sm:$0xff]
      %v4558 = vld [vmem:[%s4509 + $0x180] sm:$0xff]
      %v4559 = vld [vmem:[%s4509 + $0x188] sm:$0xff]
      %v4560 = vld [vmem:[%s4509 + $0x190] sm:$0xff]
      %v4561 = vld [vmem:[%s4509 + $0x198] sm:$0xff]
      %v4562 = vld [vmem:[%s4509 + $0x1a0] sm:$0xff]
      %v4563 = vld [vmem:[%s4509 + $0x1a8] sm:$0xff]
      %v4564 = vld [vmem:[%s4509 + $0x1b0] sm:$0xff]
      %v4565 = vld [vmem:[%s4509 + $0x1b8] sm:$0xff]
      %v4566 = vld [vmem:[%s4509 + $0x1c0] sm:$0xff]
      %v4567 = vld [vmem:[%s4509 + $0x1c8] sm:$0xff]
      %v4568 = vld [vmem:[%s4509 + $0x1d0] sm:$0xff]
      %v4569 = vld [vmem:[%s4509 + $0x1d8] sm:$0xff]
      %v4570 = vld [vmem:[%s4509 + $0x1e0] sm:$0xff]
      %v4571 = vld [vmem:[%s4509 + $0x1e8] sm:$0xff]
      %v4572 = vld [vmem:[%s4509 + $0x1f0] sm:$0xff]
      %v4573 = vld [vmem:[%s4509 + $0x1f8] sm:$0xff]
      %v4574 = vld [vmem:[%s4509 + $0x200] sm:$0xff]
      %v4575 = vld [vmem:[%s4509 + $0x208] sm:$0xff]
      %v4576 = vld [vmem:[%s4509 + $0x210] sm:$0xff]
      %v4577 = vld [vmem:[%s4509 + $0x218] sm:$0xff]
      %v4578 = vld [vmem:[%s4509 + $0x220] sm:$0xff]
      %v4579 = vld [vmem:[%s4509 + $0x228] sm:$0xff]
      %v4580 = vld [vmem:[%s4509 + $0x230] sm:$0xff]
      %v4581 = vld [vmem:[%s4509 + $0x238] sm:$0xff]
      %v4582 = vld [vmem:[%s4509 + $0x240] sm:$0xff]
      %v4583 = vld [vmem:[%s4509 + $0x248] sm:$0xff]
      %v4584 = vld [vmem:[%s4509 + $0x250] sm:$0xff]
      %v4585 = vld [vmem:[%s4509 + $0x258] sm:$0xff]
      %v4586 = vld [vmem:[%s4509 + $0x260] sm:$0xff]
      %v4587 = vld [vmem:[%s4509 + $0x268] sm:$0xff]
      %v4588 = vld [vmem:[%s4509 + $0x270] sm:$0xff]
      %v4589 = vld [vmem:[%s4509 + $0x278] sm:$0xff]
      %v4590 = vld [vmem:[%s4509 + $0x280] sm:$0xff]
      %v4591 = vld [vmem:[%s4509 + $0x288] sm:$0xff]
      %v4592 = vld [vmem:[%s4509 + $0x290] sm:$0xff]
      %v4593 = vld [vmem:[%s4509 + $0x298] sm:$0xff]
      %v4594 = vld [vmem:[%s4509 + $0x2a0] sm:$0xff]
      %v4595 = vld [vmem:[%s4509 + $0x2a8] sm:$0xff]
      %v4596 = vld [vmem:[%s4509 + $0x2b0] sm:$0xff]
      %v4597 = vld [vmem:[%s4509 + $0x2b8] sm:$0xff]
      %v4598 = vld [vmem:[%s4509 + $0x2c0] sm:$0xff]
      %v4599 = vld [vmem:[%s4509 + $0x2c8] sm:$0xff]
      %v4600 = vld [vmem:[%s4509 + $0x2d0] sm:$0xff]
      %v4601 = vld [vmem:[%s4509 + $0x2d8] sm:$0xff]
      %v4602 = vld [vmem:[%s4509 + $0x2e0] sm:$0xff]
      %v4603 = vld [vmem:[%s4509 + $0x2e8] sm:$0xff]
      %v4604 = vld [vmem:[%s4509 + $0x2f0] sm:$0xff]
      %v4605 = vld [vmem:[%s4509 + $0x2f8] sm:$0xff]
      %v4606 = vld [vmem:[%s4509 + $0x300] sm:$0xff]
      %v4607 = vld [vmem:[%s4509 + $0x308] sm:$0xff]
      %v4608 = vld [vmem:[%s4509 + $0x310] sm:$0xff]
      %v4609 = vld [vmem:[%s4509 + $0x318] sm:$0xff]
      %v4610 = vld [vmem:[%s4509 + $0x320] sm:$0xff]
      %v4611 = vld [vmem:[%s4509 + $0x328] sm:$0xff]
      %v4612 = vld [vmem:[%s4509 + $0x330] sm:$0xff]
      %v4613 = vld [vmem:[%s4509 + $0x338] sm:$0xff]
      %v4614 = vld [vmem:[%s4509 + $0x340] sm:$0xff]
      %v4615 = vld [vmem:[%s4509 + $0x348] sm:$0xff]
      %v4616 = vld [vmem:[%s4509 + $0x350] sm:$0xff]
      %v4617 = vld [vmem:[%s4509 + $0x358] sm:$0xff]
      %v4618 = vld [vmem:[%s4509 + $0x360] sm:$0xff]
      %v4619 = vld [vmem:[%s4509 + $0x368] sm:$0xff]
      %v4620 = vld [vmem:[%s4509 + $0x370] sm:$0xff]
      %v4621 = vld [vmem:[%s4509 + $0x378] sm:$0xff]
      %v4622 = vld [vmem:[%s4509 + $0x380] sm:$0xff]
      %v4623 = vld [vmem:[%s4509 + $0x388] sm:$0xff]
      %v4624 = vld [vmem:[%s4509 + $0x390] sm:$0xff]
      %v4625 = vld [vmem:[%s4509 + $0x398] sm:$0xff]
      %v4626 = vld [vmem:[%s4509 + $0x3a0] sm:$0xff]
      %v4627 = vld [vmem:[%s4509 + $0x3a8] sm:$0xff]
      %v4628 = vld [vmem:[%s4509 + $0x3b0] sm:$0xff]
      %v4629 = vld [vmem:[%s4509 + $0x3b8] sm:$0xff]
      %v4630 = vld [vmem:[%s4509 + $0x3c0] sm:$0xff]
      %v4631 = vld [vmem:[%s4509 + $0x3c8] sm:$0xff]
      %v4632 = vld [vmem:[%s4509 + $0x3d0] sm:$0xff]
      %v4633 = vld [vmem:[%s4509 + $0x3d8] sm:$0xff]
      %v4634 = vld [vmem:[%s4509 + $0x3e0] sm:$0xff]
      %v4635 = vld [vmem:[%s4509 + $0x3e8] sm:$0xff]
      %v4636 = vld [vmem:[%s4509 + $0x3f0] sm:$0xff]
      %v4637 = vld [vmem:[%s4509 + $0x3f8] sm:$0xff]
      %v4638 = vld [vmem:[%s4509 + $0x400] sm:$0xff]
      %v4639 = vld [vmem:[%s4509 + $0x408] sm:$0xff]
      %v4640 = vld [vmem:[%s4509 + $0x410] sm:$0xff]
      %v4641 = vld [vmem:[%s4509 + $0x418] sm:$0xff]
      %v4642 = vld [vmem:[%s4509 + $0x420] sm:$0xff]
      %v4643 = vld [vmem:[%s4509 + $0x428] sm:$0xff]
      %v4644 = vld [vmem:[%s4509 + $0x430] sm:$0xff]
      %v4645 = vld [vmem:[%s4509 + $0x438] sm:$0xff]
      %v4646 = vld [vmem:[%s4509 + $0x440] sm:$0xff]
      %v4647 = vld [vmem:[%s4509 + $0x448] sm:$0xff]
      %v4648 = vld [vmem:[%s4509 + $0x450] sm:$0xff]
      %v4649 = vld [vmem:[%s4509 + $0x458] sm:$0xff]
      %v4650 = vld [vmem:[%s4509 + $0x460] sm:$0xff]
      %v4651 = vld [vmem:[%s4509 + $0x468] sm:$0xff]
      %v4652 = vld [vmem:[%s4509 + $0x470] sm:$0xff]
      %v4653 = vld [vmem:[%s4509 + $0x478] sm:$0xff]
      %v4654 = vld [vmem:[%s4509 + $0x480] sm:$0xff]
      %v4655 = vld [vmem:[%s4509 + $0x488] sm:$0xff]
      %v4656 = vld [vmem:[%s4509 + $0x490] sm:$0xff]
      %v4657 = vld [vmem:[%s4509 + $0x498] sm:$0xff]
      %v4658 = vld [vmem:[%s4509 + $0x4a0] sm:$0xff]
      %v4659 = vld [vmem:[%s4509 + $0x4a8] sm:$0xff]
      %v4660 = vld [vmem:[%s4509 + $0x4b0] sm:$0xff]
      %v4661 = vld [vmem:[%s4509 + $0x4b8] sm:$0xff]
      %v4662 = vld [vmem:[%s4509 + $0x4c0] sm:$0xff]
      %v4663 = vld [vmem:[%s4509 + $0x4c8] sm:$0xff]
      %v4664 = vld [vmem:[%s4509 + $0x4d0] sm:$0xff]
      %v4665 = vld [vmem:[%s4509 + $0x4d8] sm:$0xff]
      %v4666 = vld [vmem:[%s4509 + $0x4e0] sm:$0xff]
      %v4667 = vld [vmem:[%s4509 + $0x4e8] sm:$0xff]
      %v4668 = vld [vmem:[%s4509 + $0x4f0] sm:$0xff]
      %v4669 = vld [vmem:[%s4509 + $0x4f8] sm:$0xff]
      %v4670 = vld [vmem:[%s4509 + $0x500] sm:$0xff]
      %v4671 = vld [vmem:[%s4509 + $0x508] sm:$0xff]
      %v4672 = vld [vmem:[%s4509 + $0x510] sm:$0xff]
      %v4673 = vld [vmem:[%s4509 + $0x518] sm:$0xff]
      %v4674 = vld [vmem:[%s4509 + $0x520] sm:$0xff]
      %v4675 = vld [vmem:[%s4509 + $0x528] sm:$0xff]
      %v4676 = vld [vmem:[%s4509 + $0x530] sm:$0xff]
      %v4677 = vld [vmem:[%s4509 + $0x538] sm:$0xff]
      %v4678 = vld [vmem:[%s4509 + $0x540] sm:$0xff]
      %v4679 = vld [vmem:[%s4509 + $0x548] sm:$0xff]
      %v4680 = vld [vmem:[%s4509 + $0x550] sm:$0xff]
      %v4681 = vld [vmem:[%s4509 + $0x558] sm:$0xff]
      %v4682 = vld [vmem:[%s4509 + $0x560] sm:$0xff]
      %v4683 = vld [vmem:[%s4509 + $0x568] sm:$0xff]
      %v4684 = vld [vmem:[%s4509 + $0x570] sm:$0xff]
      %v4685 = vld [vmem:[%s4509 + $0x578] sm:$0xff]
      %v4686 = vld [vmem:[%s4509 + $0x580] sm:$0xff]
      %v4687 = vld [vmem:[%s4509 + $0x588] sm:$0xff]
      %v4688 = vld [vmem:[%s4509 + $0x590] sm:$0xff]
      %v4689 = vld [vmem:[%s4509 + $0x598] sm:$0xff]
      %v4690 = vld [vmem:[%s4509 + $0x5a0] sm:$0xff]
      %v4691 = vld [vmem:[%s4509 + $0x5a8] sm:$0xff]
      %v4692 = vld [vmem:[%s4509 + $0x5b0] sm:$0xff]
      %v4693 = vld [vmem:[%s4509 + $0x5b8] sm:$0xff]
      %v4694 = vld [vmem:[%s4509 + $0x5c0] sm:$0xff]
      %v4695 = vld [vmem:[%s4509 + $0x5c8] sm:$0xff]
      %v4696 = vld [vmem:[%s4509 + $0x5d0] sm:$0xff]
      %v4697 = vld [vmem:[%s4509 + $0x5d8] sm:$0xff]
      %v4698 = vld [vmem:[%s4509 + $0x5e0] sm:$0xff]
      %v4699 = vld [vmem:[%s4509 + $0x5e8] sm:$0xff]
      %v4700 = vld [vmem:[%s4509 + $0x5f0] sm:$0xff]
      %v4701 = vld [vmem:[%s4509 + $0x5f8] sm:$0xff]
      %v4702 = vpack.c.bf16 %v4511, %v4510
      %v4703 = vpack.c.bf16 %v4513, %v4512
      %v4704 = vpack.c.bf16 %v4515, %v4514
      %v4705 = vpack.c.bf16 %v4517, %v4516
      %v4706 = vpack.c.bf16 %v4519, %v4518
      %v4707 = vpack.c.bf16 %v4521, %v4520
      %v4708 = vpack.c.bf16 %v4523, %v4522
      %v4709 = vpack.c.bf16 %v4525, %v4524
      %v4710 = vpack.c.bf16 %v4527, %v4526
      %v4711 = vpack.c.bf16 %v4529, %v4528
      %v4712 = vpack.c.bf16 %v4531, %v4530
      %v4713 = vpack.c.bf16 %v4533, %v4532
      %v4714 = vpack.c.bf16 %v4535, %v4534
      %v4715 = vpack.c.bf16 %v4537, %v4536
      %v4716 = vpack.c.bf16 %v4539, %v4538
      %v4717 = vpack.c.bf16 %v4541, %v4540
      %v4718 = vpack.c.bf16 %v4543, %v4542
      %v4719 = vpack.c.bf16 %v4545, %v4544
      %v4720 = vpack.c.bf16 %v4547, %v4546
      %v4721 = vpack.c.bf16 %v4549, %v4548
      %v4722 = vpack.c.bf16 %v4551, %v4550
      %v4723 = vpack.c.bf16 %v4553, %v4552
      %v4724 = vpack.c.bf16 %v4555, %v4554
      %v4725 = vpack.c.bf16 %v4557, %v4556
      %v4726 = vpack.c.bf16 %v4559, %v4558
      %v4727 = vpack.c.bf16 %v4561, %v4560
      %v4728 = vpack.c.bf16 %v4563, %v4562
      %v4729 = vpack.c.bf16 %v4565, %v4564
      %v4730 = vpack.c.bf16 %v4567, %v4566
      %v4731 = vpack.c.bf16 %v4569, %v4568
      %v4732 = vpack.c.bf16 %v4571, %v4570
      %v4733 = vpack.c.bf16 %v4573, %v4572
      %v4734 = vpack.c.bf16 %v4575, %v4574
      %v4735 = vpack.c.bf16 %v4577, %v4576
      %v4736 = vpack.c.bf16 %v4579, %v4578
      %v4737 = vpack.c.bf16 %v4581, %v4580
      %v4738 = vpack.c.bf16 %v4583, %v4582
      %v4739 = vpack.c.bf16 %v4585, %v4584
      %v4740 = vpack.c.bf16 %v4587, %v4586
      %v4741 = vpack.c.bf16 %v4589, %v4588
      %v4742 = vpack.c.bf16 %v4591, %v4590
      %v4743 = vpack.c.bf16 %v4593, %v4592
      %v4744 = vpack.c.bf16 %v4595, %v4594
      %v4745 = vpack.c.bf16 %v4597, %v4596
      %v4746 = vpack.c.bf16 %v4599, %v4598
      %v4747 = vpack.c.bf16 %v4601, %v4600
      %v4748 = vpack.c.bf16 %v4603, %v4602
      %v4749 = vpack.c.bf16 %v4605, %v4604
      %v4750 = vpack.c.bf16 %v4607, %v4606
      %v4751 = vpack.c.bf16 %v4609, %v4608
      %v4752 = vpack.c.bf16 %v4611, %v4610
      %v4753 = vpack.c.bf16 %v4613, %v4612
      %v4754 = vpack.c.bf16 %v4615, %v4614
      %v4755 = vpack.c.bf16 %v4617, %v4616
      %v4756 = vpack.c.bf16 %v4619, %v4618
      %v4757 = vpack.c.bf16 %v4621, %v4620
      %v4758 = vpack.c.bf16 %v4623, %v4622
      %v4759 = vpack.c.bf16 %v4625, %v4624
      %v4760 = vpack.c.bf16 %v4627, %v4626
      %v4761 = vpack.c.bf16 %v4629, %v4628
      %v4762 = vpack.c.bf16 %v4631, %v4630
      %v4763 = vpack.c.bf16 %v4633, %v4632
      %v4764 = vpack.c.bf16 %v4635, %v4634
      %v4765 = vpack.c.bf16 %v4637, %v4636
      %v4766 = vpack.c.bf16 %v4639, %v4638
      %v4767 = vpack.c.bf16 %v4641, %v4640
      %v4768 = vpack.c.bf16 %v4643, %v4642
      %v4769 = vpack.c.bf16 %v4645, %v4644
      %v4770 = vpack.c.bf16 %v4647, %v4646
      %v4771 = vpack.c.bf16 %v4649, %v4648
      %v4772 = vpack.c.bf16 %v4651, %v4650
      %v4773 = vpack.c.bf16 %v4653, %v4652
      %v4774 = vpack.c.bf16 %v4655, %v4654
      %v4775 = vpack.c.bf16 %v4657, %v4656
      %v4776 = vpack.c.bf16 %v4659, %v4658
      %v4777 = vpack.c.bf16 %v4661, %v4660
      %v4778 = vpack.c.bf16 %v4663, %v4662
      %v4779 = vpack.c.bf16 %v4665, %v4664
      %v4780 = vpack.c.bf16 %v4667, %v4666
      %v4781 = vpack.c.bf16 %v4669, %v4668
      %v4782 = vpack.c.bf16 %v4671, %v4670
      %v4783 = vpack.c.bf16 %v4673, %v4672
      %v4784 = vpack.c.bf16 %v4675, %v4674
      %v4785 = vpack.c.bf16 %v4677, %v4676
      %v4786 = vpack.c.bf16 %v4679, %v4678
      %v4787 = vpack.c.bf16 %v4681, %v4680
      %v4788 = vpack.c.bf16 %v4683, %v4682
      %v4789 = vpack.c.bf16 %v4685, %v4684
      %v4790 = vpack.c.bf16 %v4687, %v4686
      %v4791 = vpack.c.bf16 %v4689, %v4688
      %v4792 = vpack.c.bf16 %v4691, %v4690
      %v4793 = vpack.c.bf16 %v4693, %v4692
      %v4794 = vpack.c.bf16 %v4695, %v4694
      %v4795 = vpack.c.bf16 %v4697, %v4696
      %v4796 = vpack.c.bf16 %v4699, %v4698
      %v4797 = vpack.c.bf16 %v4701, %v4700
      %4798 = vxpose.xlu0.c.b16.start [1/8] %v4702, 128
      %4799 = vxpose.xlu0.c.b16.cont [2/8] %v4703, 128
      %4800 = vxpose.xlu0.c.b16.cont [3/8] %v4704, 128
      %4801 = vxpose.xlu0.c.b16.cont [4/8] %v4705, 128
      %4802 = vxpose.xlu0.c.b16.cont [5/8] %v4706, 128
      %4803 = vxpose.xlu0.c.b16.cont [6/8] %v4707, 128
      %4804 = vxpose.xlu0.c.b16.cont [7/8] %v4708, 128
      %4805 = vxpose.xlu0.c.b16.end [8/8] %v4709, 128
      %v4806 = vpop.trf.xlu0
      %v4807 = vpop.trf.xlu0
      %v4808 = vpop.trf.xlu0
      %v4809 = vpop.trf.xlu0
      %v4810 = vpop.trf.xlu0
      %v4811 = vpop.trf.xlu0
      %v4812 = vpop.trf.xlu0
      %v4813 = vpop.trf.xlu0
      %4814 = vxpose.xlu0.c.b16.start [1/8] %v4710, 128
      %4815 = vxpose.xlu0.c.b16.cont [2/8] %v4711, 128
      %4816 = vxpose.xlu0.c.b16.cont [3/8] %v4712, 128
      %4817 = vxpose.xlu0.c.b16.cont [4/8] %v4713, 128
      %4818 = vxpose.xlu0.c.b16.cont [5/8] %v4714, 128
      %4819 = vxpose.xlu0.c.b16.cont [6/8] %v4715, 128
      %4820 = vxpose.xlu0.c.b16.cont [7/8] %v4716, 128
      %4821 = vxpose.xlu0.c.b16.end [8/8] %v4717, 128
      %v4822 = vpop.trf.xlu0
      %v4823 = vpop.trf.xlu0
      %v4824 = vpop.trf.xlu0
      %v4825 = vpop.trf.xlu0
      %v4826 = vpop.trf.xlu0
      %v4827 = vpop.trf.xlu0
      %v4828 = vpop.trf.xlu0
      %v4829 = vpop.trf.xlu0
      %4830 = vxpose.xlu0.c.b16.start [1/8] %v4718, 128
      %4831 = vxpose.xlu0.c.b16.cont [2/8] %v4719, 128
      %4832 = vxpose.xlu0.c.b16.cont [3/8] %v4720, 128
      %4833 = vxpose.xlu0.c.b16.cont [4/8] %v4721, 128
      %4834 = vxpose.xlu0.c.b16.cont [5/8] %v4722, 128
      %4835 = vxpose.xlu0.c.b16.cont [6/8] %v4723, 128
      %4836 = vxpose.xlu0.c.b16.cont [7/8] %v4724, 128
      %4837 = vxpose.xlu0.c.b16.end [8/8] %v4725, 128
      %v4838 = vpop.trf.xlu0
      %v4839 = vpop.trf.xlu0
      %v4840 = vpop.trf.xlu0
      %v4841 = vpop.trf.xlu0
      %v4842 = vpop.trf.xlu0
      %v4843 = vpop.trf.xlu0
      %v4844 = vpop.trf.xlu0
      %v4845 = vpop.trf.xlu0
      %4846 = vxpose.xlu0.c.b16.start [1/8] %v4726, 128
      %4847 = vxpose.xlu0.c.b16.cont [2/8] %v4727, 128
      %4848 = vxpose.xlu0.c.b16.cont [3/8] %v4728, 128
      %4849 = vxpose.xlu0.c.b16.cont [4/8] %v4729, 128
      %4850 = vxpose.xlu0.c.b16.cont [5/8] %v4730, 128
      %4851 = vxpose.xlu0.c.b16.cont [6/8] %v4731, 128
      %4852 = vxpose.xlu0.c.b16.cont [7/8] %v4732, 128
      %4853 = vxpose.xlu0.c.b16.end [8/8] %v4733, 128
      %v4854 = vpop.trf.xlu0
      %v4855 = vpop.trf.xlu0
      %v4856 = vpop.trf.xlu0
      %v4857 = vpop.trf.xlu0
      %v4858 = vpop.trf.xlu0
      %v4859 = vpop.trf.xlu0
      %v4860 = vpop.trf.xlu0
      %v4861 = vpop.trf.xlu0
      %4862 = vxpose.xlu0.c.b16.start [1/8] %v4734, 128
      %4863 = vxpose.xlu0.c.b16.cont [2/8] %v4735, 128
      %4864 = vxpose.xlu0.c.b16.cont [3/8] %v4736, 128
      %4865 = vxpose.xlu0.c.b16.cont [4/8] %v4737, 128
      %4866 = vxpose.xlu0.c.b16.cont [5/8] %v4738, 128
      %4867 = vxpose.xlu0.c.b16.cont [6/8] %v4739, 128
      %4868 = vxpose.xlu0.c.b16.cont [7/8] %v4740, 128
      %4869 = vxpose.xlu0.c.b16.end [8/8] %v4741, 128
      %v4870 = vpop.trf.xlu0
      %v4871 = vpop.trf.xlu0
      %v4872 = vpop.trf.xlu0
      %v4873 = vpop.trf.xlu0
      %v4874 = vpop.trf.xlu0
      %v4875 = vpop.trf.xlu0
      %v4876 = vpop.trf.xlu0
      %v4877 = vpop.trf.xlu0
      %4878 = vxpose.xlu0.c.b16.start [1/8] %v4742, 128
      %4879 = vxpose.xlu0.c.b16.cont [2/8] %v4743, 128
      %4880 = vxpose.xlu0.c.b16.cont [3/8] %v4744, 128
      %4881 = vxpose.xlu0.c.b16.cont [4/8] %v4745, 128
      %4882 = vxpose.xlu0.c.b16.cont [5/8] %v4746, 128
      %4883 = vxpose.xlu0.c.b16.cont [6/8] %v4747, 128
      %4884 = vxpose.xlu0.c.b16.cont [7/8] %v4748, 128
      %4885 = vxpose.xlu0.c.b16.end [8/8] %v4749, 128
      %v4886 = vpop.trf.xlu0
      %v4887 = vpop.trf.xlu0
      %v4888 = vpop.trf.xlu0
      %v4889 = vpop.trf.xlu0
      %v4890 = vpop.trf.xlu0
      %v4891 = vpop.trf.xlu0
      %v4892 = vpop.trf.xlu0
      %v4893 = vpop.trf.xlu0
      %4894 = vxpose.xlu0.c.b16.start [1/8] %v4750, 128
      %4895 = vxpose.xlu0.c.b16.cont [2/8] %v4751, 128
      %4896 = vxpose.xlu0.c.b16.cont [3/8] %v4752, 128
      %4897 = vxpose.xlu0.c.b16.cont [4/8] %v4753, 128
      %4898 = vxpose.xlu0.c.b16.cont [5/8] %v4754, 128
      %4899 = vxpose.xlu0.c.b16.cont [6/8] %v4755, 128
      %4900 = vxpose.xlu0.c.b16.cont [7/8] %v4756, 128
      %4901 = vxpose.xlu0.c.b16.end [8/8] %v4757, 128
      %v4902 = vpop.trf.xlu0
      %v4903 = vpop.trf.xlu0
      %v4904 = vpop.trf.xlu0
      %v4905 = vpop.trf.xlu0
      %v4906 = vpop.trf.xlu0
      %v4907 = vpop.trf.xlu0
      %v4908 = vpop.trf.xlu0
      %v4909 = vpop.trf.xlu0
      %4910 = vxpose.xlu0.c.b16.start [1/8] %v4758, 128
      %4911 = vxpose.xlu0.c.b16.cont [2/8] %v4759, 128
      %4912 = vxpose.xlu0.c.b16.cont [3/8] %v4760, 128
      %4913 = vxpose.xlu0.c.b16.cont [4/8] %v4761, 128
      %4914 = vxpose.xlu0.c.b16.cont [5/8] %v4762, 128
      %4915 = vxpose.xlu0.c.b16.cont [6/8] %v4763, 128
      %4916 = vxpose.xlu0.c.b16.cont [7/8] %v4764, 128
      %4917 = vxpose.xlu0.c.b16.end [8/8] %v4765, 128
      %v4918 = vpop.trf.xlu0
      %v4919 = vpop.trf.xlu0
      %v4920 = vpop.trf.xlu0
      %v4921 = vpop.trf.xlu0
      %v4922 = vpop.trf.xlu0
      %v4923 = vpop.trf.xlu0
      %v4924 = vpop.trf.xlu0
      %v4925 = vpop.trf.xlu0
      %4926 = vxpose.xlu0.c.b16.start [1/8] %v4766, 128
      %4927 = vxpose.xlu0.c.b16.cont [2/8] %v4767, 128
      %4928 = vxpose.xlu0.c.b16.cont [3/8] %v4768, 128
      %4929 = vxpose.xlu0.c.b16.cont [4/8] %v4769, 128
      %4930 = vxpose.xlu0.c.b16.cont [5/8] %v4770, 128
      %4931 = vxpose.xlu0.c.b16.cont [6/8] %v4771, 128
      %4932 = vxpose.xlu0.c.b16.cont [7/8] %v4772, 128
      %4933 = vxpose.xlu0.c.b16.end [8/8] %v4773, 128
      %v4934 = vpop.trf.xlu0
      %v4935 = vpop.trf.xlu0
      %v4936 = vpop.trf.xlu0
      %v4937 = vpop.trf.xlu0
      %v4938 = vpop.trf.xlu0
      %v4939 = vpop.trf.xlu0
      %v4940 = vpop.trf.xlu0
      %v4941 = vpop.trf.xlu0
      %4942 = vxpose.xlu0.c.b16.start [1/8] %v4774, 128
      %4943 = vxpose.xlu0.c.b16.cont [2/8] %v4775, 128
      %4944 = vxpose.xlu0.c.b16.cont [3/8] %v4776, 128
      %4945 = vxpose.xlu0.c.b16.cont [4/8] %v4777, 128
      %4946 = vxpose.xlu0.c.b16.cont [5/8] %v4778, 128
      %4947 = vxpose.xlu0.c.b16.cont [6/8] %v4779, 128
      %4948 = vxpose.xlu0.c.b16.cont [7/8] %v4780, 128
      %4949 = vxpose.xlu0.c.b16.end [8/8] %v4781, 128
      %v4950 = vpop.trf.xlu0
      %v4951 = vpop.trf.xlu0
      %v4952 = vpop.trf.xlu0
      %v4953 = vpop.trf.xlu0
      %v4954 = vpop.trf.xlu0
      %v4955 = vpop.trf.xlu0
      %v4956 = vpop.trf.xlu0
      %v4957 = vpop.trf.xlu0
      %4958 = vxpose.xlu0.c.b16.start [1/8] %v4782, 128
      %4959 = vxpose.xlu0.c.b16.cont [2/8] %v4783, 128
      %4960 = vxpose.xlu0.c.b16.cont [3/8] %v4784, 128
      %4961 = vxpose.xlu0.c.b16.cont [4/8] %v4785, 128
      %4962 = vxpose.xlu0.c.b16.cont [5/8] %v4786, 128
      %4963 = vxpose.xlu0.c.b16.cont [6/8] %v4787, 128
      %4964 = vxpose.xlu0.c.b16.cont [7/8] %v4788, 128
      %4965 = vxpose.xlu0.c.b16.end [8/8] %v4789, 128
      %v4966 = vpop.trf.xlu0
      %v4967 = vpop.trf.xlu0
      %v4968 = vpop.trf.xlu0
      %v4969 = vpop.trf.xlu0
      %v4970 = vpop.trf.xlu0
      %v4971 = vpop.trf.xlu0
      %v4972 = vpop.trf.xlu0
      %v4973 = vpop.trf.xlu0
      %4974 = vxpose.xlu0.c.b16.start [1/8] %v4790, 128
      %4975 = vxpose.xlu0.c.b16.cont [2/8] %v4791, 128
      %4976 = vxpose.xlu0.c.b16.cont [3/8] %v4792, 128
      %4977 = vxpose.xlu0.c.b16.cont [4/8] %v4793, 128
      %4978 = vxpose.xlu0.c.b16.cont [5/8] %v4794, 128
      %4979 = vxpose.xlu0.c.b16.cont [6/8] %v4795, 128
      %4980 = vxpose.xlu0.c.b16.cont [7/8] %v4796, 128
      %4981 = vxpose.xlu0.c.b16.end [8/8] %v4797, 128
      %v4982 = vpop.trf.xlu0
      %v4983 = vpop.trf.xlu0
      %v4984 = vpop.trf.xlu0
      %v4985 = vpop.trf.xlu0
      %v4986 = vpop.trf.xlu0
      %v4987 = vpop.trf.xlu0
      %v4988 = vpop.trf.xlu0
      %v4989 = vpop.trf.xlu0
      %4990 = vmatpush.bf16.msra.mxu0 %v2282
      %4991 = vmatpush.bf16.msra.mxu0 %v2278
      %4992 = vmatpush.bf16.msra.mxu0 %v2274
      %4993 = vmatpush.bf16.msra.mxu0 %v2270
      %4994 = vmatpush.bf16.msra.mxu0 %v2266
      %4995 = vmatpush.bf16.msra.mxu0 %v2262
      %4996 = vmatpush.bf16.msra.mxu0 %v2258
      %4997 = vmatpush.bf16.msra.mxu0 %v2254
      %4998 = vmatmul.bf16.gmra.mxu0 %v4806
      %v4999 = vpop.f32.mrf.mxu0
      %v5000 = vadd.f32 %v902, %v4999
      %v5001 = vpop.f32.mrf.mxu0
      %v5002 = vadd.f32 %v902, %v5001
      %5003 = vmatmul.bf16.gmra.mxu0 %v4807
      %v5004 = vpop.f32.mrf.mxu0
      %v5005 = vadd.f32 %v902, %v5004
      %v5006 = vpop.f32.mrf.mxu0
      %v5007 = vadd.f32 %v902, %v5006
      %5008 = vmatmul.bf16.gmra.mxu0 %v4808
      %v5009 = vpop.f32.mrf.mxu0
      %v5010 = vadd.f32 %v902, %v5009
      %v5011 = vpop.f32.mrf.mxu0
      %v5012 = vadd.f32 %v902, %v5011
      %5013 = vmatmul.bf16.gmra.mxu0 %v4809
      %v5014 = vpop.f32.mrf.mxu0
      %v5015 = vadd.f32 %v902, %v5014
      %v5016 = vpop.f32.mrf.mxu0
      %v5017 = vadd.f32 %v902, %v5016
      %5018 = vdwg.mxu0
      %5019 = vmatpush.bf16.msra.mxu0 %v2314
      %5020 = vmatpush.bf16.msra.mxu0 %v2310
      %5021 = vmatpush.bf16.msra.mxu0 %v2306
      %5022 = vmatpush.bf16.msra.mxu0 %v2302
      %5023 = vmatpush.bf16.msra.mxu0 %v2298
      %5024 = vmatpush.bf16.msra.mxu0 %v2294
      %5025 = vmatpush.bf16.msra.mxu0 %v2290
      %5026 = vmatpush.bf16.msra.mxu0 %v2286
      %5027 = vmatmul.bf16.gmra.mxu0 %v4822
      %v5028 = vpop.f32.mrf.mxu0
      %v5029 = vadd.f32 %v5000, %v5028
      %v5030 = vpop.f32.mrf.mxu0
      %v5031 = vadd.f32 %v5002, %v5030
      %5032 = vmatmul.bf16.gmra.mxu0 %v4823
      %v5033 = vpop.f32.mrf.mxu0
      %v5034 = vadd.f32 %v5005, %v5033
      %v5035 = vpop.f32.mrf.mxu0
      %v5036 = vadd.f32 %v5007, %v5035
      %5037 = vmatmul.bf16.gmra.mxu0 %v4824
      %v5038 = vpop.f32.mrf.mxu0
      %v5039 = vadd.f32 %v5010, %v5038
      %v5040 = vpop.f32.mrf.mxu0
      %v5041 = vadd.f32 %v5012, %v5040
      %5042 = vmatmul.bf16.gmra.mxu0 %v4825
      %v5043 = vpop.f32.mrf.mxu0
      %v5044 = vadd.f32 %v5015, %v5043
      %v5045 = vpop.f32.mrf.mxu0
      %v5046 = vadd.f32 %v5017, %v5045
      %5047 = vdwg.mxu0
      %5048 = vmatpush.bf16.msra.mxu0 %v2346
      %5049 = vmatpush.bf16.msra.mxu0 %v2342
      %5050 = vmatpush.bf16.msra.mxu0 %v2338
      %5051 = vmatpush.bf16.msra.mxu0 %v2334
      %5052 = vmatpush.bf16.msra.mxu0 %v2330
      %5053 = vmatpush.bf16.msra.mxu0 %v2326
      %5054 = vmatpush.bf16.msra.mxu0 %v2322
      %5055 = vmatpush.bf16.msra.mxu0 %v2318
      %5056 = vmatmul.bf16.gmra.mxu0 %v4838
      %v5057 = vpop.f32.mrf.mxu0
      %v5058 = vadd.f32 %v5029, %v5057
      %v5059 = vpop.f32.mrf.mxu0
      %v5060 = vadd.f32 %v5031, %v5059
      %5061 = vmatmul.bf16.gmra.mxu0 %v4839
      %v5062 = vpop.f32.mrf.mxu0
      %v5063 = vadd.f32 %v5034, %v5062
      %v5064 = vpop.f32.mrf.mxu0
      %v5065 = vadd.f32 %v5036, %v5064
      %5066 = vmatmul.bf16.gmra.mxu0 %v4840
      %v5067 = vpop.f32.mrf.mxu0
      %v5068 = vadd.f32 %v5039, %v5067
      %v5069 = vpop.f32.mrf.mxu0
      %v5070 = vadd.f32 %v5041, %v5069
      %5071 = vmatmul.bf16.gmra.mxu0 %v4841
      %v5072 = vpop.f32.mrf.mxu0
      %v5073 = vadd.f32 %v5044, %v5072
      %v5074 = vpop.f32.mrf.mxu0
      %v5075 = vadd.f32 %v5046, %v5074
      %5076 = vdwg.mxu0
      %5077 = vmatpush.bf16.msra.mxu0 %v2378
      %5078 = vmatpush.bf16.msra.mxu0 %v2374
      %5079 = vmatpush.bf16.msra.mxu0 %v2370
      %5080 = vmatpush.bf16.msra.mxu0 %v2366
      %5081 = vmatpush.bf16.msra.mxu0 %v2362
      %5082 = vmatpush.bf16.msra.mxu0 %v2358
      %5083 = vmatpush.bf16.msra.mxu0 %v2354
      %5084 = vmatpush.bf16.msra.mxu0 %v2350
      %5085 = vmatmul.bf16.gmra.mxu0 %v4854
      %v5086 = vpop.f32.mrf.mxu0
      %v5087 = vadd.f32 %v5058, %v5086
      %v5088 = vpop.f32.mrf.mxu0
      %v5089 = vadd.f32 %v5060, %v5088
      %5090 = vmatmul.bf16.gmra.mxu0 %v4855
      %v5091 = vpop.f32.mrf.mxu0
      %v5092 = vadd.f32 %v5063, %v5091
      %v5093 = vpop.f32.mrf.mxu0
      %v5094 = vadd.f32 %v5065, %v5093
      %5095 = vmatmul.bf16.gmra.mxu0 %v4856
      %v5096 = vpop.f32.mrf.mxu0
      %v5097 = vadd.f32 %v5068, %v5096
      %v5098 = vpop.f32.mrf.mxu0
      %v5099 = vadd.f32 %v5070, %v5098
      %5100 = vmatmul.bf16.gmra.mxu0 %v4857
      %v5101 = vpop.f32.mrf.mxu0
      %v5102 = vadd.f32 %v5073, %v5101
      %v5103 = vpop.f32.mrf.mxu0
      %v5104 = vadd.f32 %v5075, %v5103
      %5105 = vdwg.mxu0
      %5106 = vmatpush.bf16.msra.mxu0 %v2410
      %5107 = vmatpush.bf16.msra.mxu0 %v2406
      %5108 = vmatpush.bf16.msra.mxu0 %v2402
      %5109 = vmatpush.bf16.msra.mxu0 %v2398
      %5110 = vmatpush.bf16.msra.mxu0 %v2394
      %5111 = vmatpush.bf16.msra.mxu0 %v2390
      %5112 = vmatpush.bf16.msra.mxu0 %v2386
      %5113 = vmatpush.bf16.msra.mxu0 %v2382
      %5114 = vmatmul.bf16.gmra.mxu0 %v4870
      %v5115 = vpop.f32.mrf.mxu0
      %v5116 = vadd.f32 %v5087, %v5115
      %v5117 = vpop.f32.mrf.mxu0
      %v5118 = vadd.f32 %v5089, %v5117
      %5119 = vmatmul.bf16.gmra.mxu0 %v4871
      %v5120 = vpop.f32.mrf.mxu0
      %v5121 = vadd.f32 %v5092, %v5120
      %v5122 = vpop.f32.mrf.mxu0
      %v5123 = vadd.f32 %v5094, %v5122
      %5124 = vmatmul.bf16.gmra.mxu0 %v4872
      %v5125 = vpop.f32.mrf.mxu0
      %v5126 = vadd.f32 %v5097, %v5125
      %v5127 = vpop.f32.mrf.mxu0
      %v5128 = vadd.f32 %v5099, %v5127
      %5129 = vmatmul.bf16.gmra.mxu0 %v4873
      %v5130 = vpop.f32.mrf.mxu0
      %v5131 = vadd.f32 %v5102, %v5130
      %v5132 = vpop.f32.mrf.mxu0
      %v5133 = vadd.f32 %v5104, %v5132
      %5134 = vdwg.mxu0
      %5135 = vmatpush.bf16.msra.mxu0 %v2442
      %5136 = vmatpush.bf16.msra.mxu0 %v2438
      %5137 = vmatpush.bf16.msra.mxu0 %v2434
      %5138 = vmatpush.bf16.msra.mxu0 %v2430
      %5139 = vmatpush.bf16.msra.mxu0 %v2426
      %5140 = vmatpush.bf16.msra.mxu0 %v2422
      %5141 = vmatpush.bf16.msra.mxu0 %v2418
      %5142 = vmatpush.bf16.msra.mxu0 %v2414
      %5143 = vmatmul.bf16.gmra.mxu0 %v4886
      %v5144 = vpop.f32.mrf.mxu0
      %v5145 = vadd.f32 %v5116, %v5144
      %v5146 = vpop.f32.mrf.mxu0
      %v5147 = vadd.f32 %v5118, %v5146
      %5148 = vmatmul.bf16.gmra.mxu0 %v4887
      %v5149 = vpop.f32.mrf.mxu0
      %v5150 = vadd.f32 %v5121, %v5149
      %v5151 = vpop.f32.mrf.mxu0
      %v5152 = vadd.f32 %v5123, %v5151
      %5153 = vmatmul.bf16.gmra.mxu0 %v4888
      %v5154 = vpop.f32.mrf.mxu0
      %v5155 = vadd.f32 %v5126, %v5154
      %v5156 = vpop.f32.mrf.mxu0
      %v5157 = vadd.f32 %v5128, %v5156
      %5158 = vmatmul.bf16.gmra.mxu0 %v4889
      %v5159 = vpop.f32.mrf.mxu0
      %v5160 = vadd.f32 %v5131, %v5159
      %v5161 = vpop.f32.mrf.mxu0
      %v5162 = vadd.f32 %v5133, %v5161
      %5163 = vdwg.mxu0
      %5164 = vmatpush.bf16.msra.mxu0 %v2474
      %5165 = vmatpush.bf16.msra.mxu0 %v2470
      %5166 = vmatpush.bf16.msra.mxu0 %v2466
      %5167 = vmatpush.bf16.msra.mxu0 %v2462
      %5168 = vmatpush.bf16.msra.mxu0 %v2458
      %5169 = vmatpush.bf16.msra.mxu0 %v2454
      %5170 = vmatpush.bf16.msra.mxu0 %v2450
      %5171 = vmatpush.bf16.msra.mxu0 %v2446
      %5172 = vmatmul.bf16.gmra.mxu0 %v4902
      %v5173 = vpop.f32.mrf.mxu0
      %v5174 = vadd.f32 %v5145, %v5173
      %v5175 = vpop.f32.mrf.mxu0
      %v5176 = vadd.f32 %v5147, %v5175
      %5177 = vmatmul.bf16.gmra.mxu0 %v4903
      %v5178 = vpop.f32.mrf.mxu0
      %v5179 = vadd.f32 %v5150, %v5178
      %v5180 = vpop.f32.mrf.mxu0
      %v5181 = vadd.f32 %v5152, %v5180
      %5182 = vmatmul.bf16.gmra.mxu0 %v4904
      %v5183 = vpop.f32.mrf.mxu0
      %v5184 = vadd.f32 %v5155, %v5183
      %v5185 = vpop.f32.mrf.mxu0
      %v5186 = vadd.f32 %v5157, %v5185
      %5187 = vmatmul.bf16.gmra.mxu0 %v4905
      %v5188 = vpop.f32.mrf.mxu0
      %v5189 = vadd.f32 %v5160, %v5188
      %v5190 = vpop.f32.mrf.mxu0
      %v5191 = vadd.f32 %v5162, %v5190
      %5192 = vdwg.mxu0
      %5193 = vmatpush.bf16.msra.mxu0 %v2506
      %5194 = vmatpush.bf16.msra.mxu0 %v2502
      %5195 = vmatpush.bf16.msra.mxu0 %v2498
      %5196 = vmatpush.bf16.msra.mxu0 %v2494
      %5197 = vmatpush.bf16.msra.mxu0 %v2490
      %5198 = vmatpush.bf16.msra.mxu0 %v2486
      %5199 = vmatpush.bf16.msra.mxu0 %v2482
      %5200 = vmatpush.bf16.msra.mxu0 %v2478
      %5201 = vmatmul.bf16.gmra.mxu0 %v4918
      %v5202 = vpop.f32.mrf.mxu0
      %v5203 = vadd.f32 %v5174, %v5202
      %v5204 = vpop.f32.mrf.mxu0
      %v5205 = vadd.f32 %v5176, %v5204
      %5206 = vmatmul.bf16.gmra.mxu0 %v4919
      %v5207 = vpop.f32.mrf.mxu0
      %v5208 = vadd.f32 %v5179, %v5207
      %v5209 = vpop.f32.mrf.mxu0
      %v5210 = vadd.f32 %v5181, %v5209
      %5211 = vmatmul.bf16.gmra.mxu0 %v4920
      %v5212 = vpop.f32.mrf.mxu0
      %v5213 = vadd.f32 %v5184, %v5212
      %v5214 = vpop.f32.mrf.mxu0
      %v5215 = vadd.f32 %v5186, %v5214
      %5216 = vmatmul.bf16.gmra.mxu0 %v4921
      %v5217 = vpop.f32.mrf.mxu0
      %v5218 = vadd.f32 %v5189, %v5217
      %v5219 = vpop.f32.mrf.mxu0
      %v5220 = vadd.f32 %v5191, %v5219
      %5221 = vdwg.mxu0
      %5222 = vmatpush.bf16.msra.mxu0 %v2538
      %5223 = vmatpush.bf16.msra.mxu0 %v2534
      %5224 = vmatpush.bf16.msra.mxu0 %v2530
      %5225 = vmatpush.bf16.msra.mxu0 %v2526
      %5226 = vmatpush.bf16.msra.mxu0 %v2522
      %5227 = vmatpush.bf16.msra.mxu0 %v2518
      %5228 = vmatpush.bf16.msra.mxu0 %v2514
      %5229 = vmatpush.bf16.msra.mxu0 %v2510
      %5230 = vmatmul.bf16.gmra.mxu0 %v4934
      %v5231 = vpop.f32.mrf.mxu0
      %v5232 = vadd.f32 %v5203, %v5231
      %v5233 = vpop.f32.mrf.mxu0
      %v5234 = vadd.f32 %v5205, %v5233
      %5235 = vmatmul.bf16.gmra.mxu0 %v4935
      %v5236 = vpop.f32.mrf.mxu0
      %v5237 = vadd.f32 %v5208, %v5236
      %v5238 = vpop.f32.mrf.mxu0
      %v5239 = vadd.f32 %v5210, %v5238
      %5240 = vmatmul.bf16.gmra.mxu0 %v4936
      %v5241 = vpop.f32.mrf.mxu0
      %v5242 = vadd.f32 %v5213, %v5241
      %v5243 = vpop.f32.mrf.mxu0
      %v5244 = vadd.f32 %v5215, %v5243
      %5245 = vmatmul.bf16.gmra.mxu0 %v4937
      %v5246 = vpop.f32.mrf.mxu0
      %v5247 = vadd.f32 %v5218, %v5246
      %v5248 = vpop.f32.mrf.mxu0
      %v5249 = vadd.f32 %v5220, %v5248
      %5250 = vdwg.mxu0
      %5251 = vmatpush.bf16.msra.mxu0 %v2570
      %5252 = vmatpush.bf16.msra.mxu0 %v2566
      %5253 = vmatpush.bf16.msra.mxu0 %v2562
      %5254 = vmatpush.bf16.msra.mxu0 %v2558
      %5255 = vmatpush.bf16.msra.mxu0 %v2554
      %5256 = vmatpush.bf16.msra.mxu0 %v2550
      %5257 = vmatpush.bf16.msra.mxu0 %v2546
      %5258 = vmatpush.bf16.msra.mxu0 %v2542
      %5259 = vmatmul.bf16.gmra.mxu0 %v4950
      %v5260 = vpop.f32.mrf.mxu0
      %v5261 = vadd.f32 %v5232, %v5260
      %v5262 = vpop.f32.mrf.mxu0
      %v5263 = vadd.f32 %v5234, %v5262
      %5264 = vmatmul.bf16.gmra.mxu0 %v4951
      %v5265 = vpop.f32.mrf.mxu0
      %v5266 = vadd.f32 %v5237, %v5265
      %v5267 = vpop.f32.mrf.mxu0
      %v5268 = vadd.f32 %v5239, %v5267
      %5269 = vmatmul.bf16.gmra.mxu0 %v4952
      %v5270 = vpop.f32.mrf.mxu0
      %v5271 = vadd.f32 %v5242, %v5270
      %v5272 = vpop.f32.mrf.mxu0
      %v5273 = vadd.f32 %v5244, %v5272
      %5274 = vmatmul.bf16.gmra.mxu0 %v4953
      %v5275 = vpop.f32.mrf.mxu0
      %v5276 = vadd.f32 %v5247, %v5275
      %v5277 = vpop.f32.mrf.mxu0
      %v5278 = vadd.f32 %v5249, %v5277
      %5279 = vdwg.mxu0
      %5280 = vmatpush.bf16.msra.mxu0 %v2602
      %5281 = vmatpush.bf16.msra.mxu0 %v2598
      %5282 = vmatpush.bf16.msra.mxu0 %v2594
      %5283 = vmatpush.bf16.msra.mxu0 %v2590
      %5284 = vmatpush.bf16.msra.mxu0 %v2586
      %5285 = vmatpush.bf16.msra.mxu0 %v2582
      %5286 = vmatpush.bf16.msra.mxu0 %v2578
      %5287 = vmatpush.bf16.msra.mxu0 %v2574
      %5288 = vmatmul.bf16.gmra.mxu0 %v4966
      %v5289 = vpop.f32.mrf.mxu0
      %v5290 = vadd.f32 %v5261, %v5289
      %v5291 = vpop.f32.mrf.mxu0
      %v5292 = vadd.f32 %v5263, %v5291
      %5293 = vmatmul.bf16.gmra.mxu0 %v4967
      %v5294 = vpop.f32.mrf.mxu0
      %v5295 = vadd.f32 %v5266, %v5294
      %v5296 = vpop.f32.mrf.mxu0
      %v5297 = vadd.f32 %v5268, %v5296
      %5298 = vmatmul.bf16.gmra.mxu0 %v4968
      %v5299 = vpop.f32.mrf.mxu0
      %v5300 = vadd.f32 %v5271, %v5299
      %v5301 = vpop.f32.mrf.mxu0
      %v5302 = vadd.f32 %v5273, %v5301
      %5303 = vmatmul.bf16.gmra.mxu0 %v4969
      %v5304 = vpop.f32.mrf.mxu0
      %v5305 = vadd.f32 %v5276, %v5304
      %v5306 = vpop.f32.mrf.mxu0
      %v5307 = vadd.f32 %v5278, %v5306
      %5308 = vdwg.mxu0
      %5309 = vmatpush.bf16.msra.mxu0 %v2634
      %5310 = vmatpush.bf16.msra.mxu0 %v2630
      %5311 = vmatpush.bf16.msra.mxu0 %v2626
      %5312 = vmatpush.bf16.msra.mxu0 %v2622
      %5313 = vmatpush.bf16.msra.mxu0 %v2618
      %5314 = vmatpush.bf16.msra.mxu0 %v2614
      %5315 = vmatpush.bf16.msra.mxu0 %v2610
      %5316 = vmatpush.bf16.msra.mxu0 %v2606
      %5317 = vmatmul.bf16.gmra.mxu0 %v4982
      %v5318 = vpop.f32.mrf.mxu0
      %v5319 = vadd.f32 %v5290, %v5318
      %v5320 = vpop.f32.mrf.mxu0
      %v5321 = vadd.f32 %v5292, %v5320
      %5322 = vmatmul.bf16.gmra.mxu0 %v4983
      %v5323 = vpop.f32.mrf.mxu0
      %v5324 = vadd.f32 %v5295, %v5323
      %v5325 = vpop.f32.mrf.mxu0
      %v5326 = vadd.f32 %v5297, %v5325
      %5327 = vmatmul.bf16.gmra.mxu0 %v4984
      %v5328 = vpop.f32.mrf.mxu0
      %v5329 = vadd.f32 %v5300, %v5328
      %v5330 = vpop.f32.mrf.mxu0
      %v5331 = vadd.f32 %v5302, %v5330
      %5332 = vmatmul.bf16.gmra.mxu0 %v4985
      %v5333 = vpop.f32.mrf.mxu0
      %v5334 = vadd.f32 %v5305, %v5333
      %v5335 = vpop.f32.mrf.mxu0
      %v5336 = vadd.f32 %v5307, %v5335
      %5337 = vdwg.mxu0
      %5338 = vmatpush.bf16.msra.mxu0 %v2283
      %5339 = vmatpush.bf16.msra.mxu0 %v2279
      %5340 = vmatpush.bf16.msra.mxu0 %v2275
      %5341 = vmatpush.bf16.msra.mxu0 %v2271
      %5342 = vmatpush.bf16.msra.mxu0 %v2267
      %5343 = vmatpush.bf16.msra.mxu0 %v2263
      %5344 = vmatpush.bf16.msra.mxu0 %v2259
      %5345 = vmatpush.bf16.msra.mxu0 %v2255
      %5346 = vmatmul.bf16.gmra.mxu0 %v4806
      %v5347 = vpop.f32.mrf.mxu0
      %v5348 = vadd.f32 %v903, %v5347
      %v5349 = vpop.f32.mrf.mxu0
      %v5350 = vadd.f32 %v903, %v5349
      %5351 = vmatmul.bf16.gmra.mxu0 %v4807
      %v5352 = vpop.f32.mrf.mxu0
      %v5353 = vadd.f32 %v903, %v5352
      %v5354 = vpop.f32.mrf.mxu0
      %v5355 = vadd.f32 %v903, %v5354
      %5356 = vmatmul.bf16.gmra.mxu0 %v4808
      %v5357 = vpop.f32.mrf.mxu0
      %v5358 = vadd.f32 %v903, %v5357
      %v5359 = vpop.f32.mrf.mxu0
      %v5360 = vadd.f32 %v903, %v5359
      %5361 = vmatmul.bf16.gmra.mxu0 %v4809
      %v5362 = vpop.f32.mrf.mxu0
      %v5363 = vadd.f32 %v903, %v5362
      %v5364 = vpop.f32.mrf.mxu0
      %v5365 = vadd.f32 %v903, %v5364
      %5366 = vdwg.mxu0
      %5367 = vmatpush.bf16.msra.mxu0 %v2315
      %5368 = vmatpush.bf16.msra.mxu0 %v2311
      %5369 = vmatpush.bf16.msra.mxu0 %v2307
      %5370 = vmatpush.bf16.msra.mxu0 %v2303
      %5371 = vmatpush.bf16.msra.mxu0 %v2299
      %5372 = vmatpush.bf16.msra.mxu0 %v2295
      %5373 = vmatpush.bf16.msra.mxu0 %v2291
      %5374 = vmatpush.bf16.msra.mxu0 %v2287
      %5375 = vmatmul.bf16.gmra.mxu0 %v4822
      %v5376 = vpop.f32.mrf.mxu0
      %v5377 = vadd.f32 %v5348, %v5376
      %v5378 = vpop.f32.mrf.mxu0
      %v5379 = vadd.f32 %v5350, %v5378
      %5380 = vmatmul.bf16.gmra.mxu0 %v4823
      %v5381 = vpop.f32.mrf.mxu0
      %v5382 = vadd.f32 %v5353, %v5381
      %v5383 = vpop.f32.mrf.mxu0
      %v5384 = vadd.f32 %v5355, %v5383
      %5385 = vmatmul.bf16.gmra.mxu0 %v4824
      %v5386 = vpop.f32.mrf.mxu0
      %v5387 = vadd.f32 %v5358, %v5386
      %v5388 = vpop.f32.mrf.mxu0
      %v5389 = vadd.f32 %v5360, %v5388
      %5390 = vmatmul.bf16.gmra.mxu0 %v4825
      %v5391 = vpop.f32.mrf.mxu0
      %v5392 = vadd.f32 %v5363, %v5391
      %v5393 = vpop.f32.mrf.mxu0
      %v5394 = vadd.f32 %v5365, %v5393
      %5395 = vdwg.mxu0
      %5396 = vmatpush.bf16.msra.mxu0 %v2347
      %5397 = vmatpush.bf16.msra.mxu0 %v2343
      %5398 = vmatpush.bf16.msra.mxu0 %v2339
      %5399 = vmatpush.bf16.msra.mxu0 %v2335
      %5400 = vmatpush.bf16.msra.mxu0 %v2331
      %5401 = vmatpush.bf16.msra.mxu0 %v2327
      %5402 = vmatpush.bf16.msra.mxu0 %v2323
      %5403 = vmatpush.bf16.msra.mxu0 %v2319
      %5404 = vmatmul.bf16.gmra.mxu0 %v4838
      %v5405 = vpop.f32.mrf.mxu0
      %v5406 = vadd.f32 %v5377, %v5405
      %v5407 = vpop.f32.mrf.mxu0
      %v5408 = vadd.f32 %v5379, %v5407
      %5409 = vmatmul.bf16.gmra.mxu0 %v4839
      %v5410 = vpop.f32.mrf.mxu0
      %v5411 = vadd.f32 %v5382, %v5410
      %v5412 = vpop.f32.mrf.mxu0
      %v5413 = vadd.f32 %v5384, %v5412
      %5414 = vmatmul.bf16.gmra.mxu0 %v4840
      %v5415 = vpop.f32.mrf.mxu0
      %v5416 = vadd.f32 %v5387, %v5415
      %v5417 = vpop.f32.mrf.mxu0
      %v5418 = vadd.f32 %v5389, %v5417
      %5419 = vmatmul.bf16.gmra.mxu0 %v4841
      %v5420 = vpop.f32.mrf.mxu0
      %v5421 = vadd.f32 %v5392, %v5420
      %v5422 = vpop.f32.mrf.mxu0
      %v5423 = vadd.f32 %v5394, %v5422
      %5424 = vdwg.mxu0
      %5425 = vmatpush.bf16.msra.mxu0 %v2379
      %5426 = vmatpush.bf16.msra.mxu0 %v2375
      %5427 = vmatpush.bf16.msra.mxu0 %v2371
      %5428 = vmatpush.bf16.msra.mxu0 %v2367
      %5429 = vmatpush.bf16.msra.mxu0 %v2363
      %5430 = vmatpush.bf16.msra.mxu0 %v2359
      %5431 = vmatpush.bf16.msra.mxu0 %v2355
      %5432 = vmatpush.bf16.msra.mxu0 %v2351
      %5433 = vmatmul.bf16.gmra.mxu0 %v4854
      %v5434 = vpop.f32.mrf.mxu0
      %v5435 = vadd.f32 %v5406, %v5434
      %v5436 = vpop.f32.mrf.mxu0
      %v5437 = vadd.f32 %v5408, %v5436
      %5438 = vmatmul.bf16.gmra.mxu0 %v4855
      %v5439 = vpop.f32.mrf.mxu0
      %v5440 = vadd.f32 %v5411, %v5439
      %v5441 = vpop.f32.mrf.mxu0
      %v5442 = vadd.f32 %v5413, %v5441
      %5443 = vmatmul.bf16.gmra.mxu0 %v4856
      %v5444 = vpop.f32.mrf.mxu0
      %v5445 = vadd.f32 %v5416, %v5444
      %v5446 = vpop.f32.mrf.mxu0
      %v5447 = vadd.f32 %v5418, %v5446
      %5448 = vmatmul.bf16.gmra.mxu0 %v4857
      %v5449 = vpop.f32.mrf.mxu0
      %v5450 = vadd.f32 %v5421, %v5449
      %v5451 = vpop.f32.mrf.mxu0
      %v5452 = vadd.f32 %v5423, %v5451
      %5453 = vdwg.mxu0
      %5454 = vmatpush.bf16.msra.mxu0 %v2411
      %5455 = vmatpush.bf16.msra.mxu0 %v2407
      %5456 = vmatpush.bf16.msra.mxu0 %v2403
      %5457 = vmatpush.bf16.msra.mxu0 %v2399
      %5458 = vmatpush.bf16.msra.mxu0 %v2395
      %5459 = vmatpush.bf16.msra.mxu0 %v2391
      %5460 = vmatpush.bf16.msra.mxu0 %v2387
      %5461 = vmatpush.bf16.msra.mxu0 %v2383
      %5462 = vmatmul.bf16.gmra.mxu0 %v4870
      %v5463 = vpop.f32.mrf.mxu0
      %v5464 = vadd.f32 %v5435, %v5463
      %v5465 = vpop.f32.mrf.mxu0
      %v5466 = vadd.f32 %v5437, %v5465
      %5467 = vmatmul.bf16.gmra.mxu0 %v4871
      %v5468 = vpop.f32.mrf.mxu0
      %v5469 = vadd.f32 %v5440, %v5468
      %v5470 = vpop.f32.mrf.mxu0
      %v5471 = vadd.f32 %v5442, %v5470
      %5472 = vmatmul.bf16.gmra.mxu0 %v4872
      %v5473 = vpop.f32.mrf.mxu0
      %v5474 = vadd.f32 %v5445, %v5473
      %v5475 = vpop.f32.mrf.mxu0
      %v5476 = vadd.f32 %v5447, %v5475
      %5477 = vmatmul.bf16.gmra.mxu0 %v4873
      %v5478 = vpop.f32.mrf.mxu0
      %v5479 = vadd.f32 %v5450, %v5478
      %v5480 = vpop.f32.mrf.mxu0
      %v5481 = vadd.f32 %v5452, %v5480
      %5482 = vdwg.mxu0
      %5483 = vmatpush.bf16.msra.mxu0 %v2443
      %5484 = vmatpush.bf16.msra.mxu0 %v2439
      %5485 = vmatpush.bf16.msra.mxu0 %v2435
      %5486 = vmatpush.bf16.msra.mxu0 %v2431
      %5487 = vmatpush.bf16.msra.mxu0 %v2427
      %5488 = vmatpush.bf16.msra.mxu0 %v2423
      %5489 = vmatpush.bf16.msra.mxu0 %v2419
      %5490 = vmatpush.bf16.msra.mxu0 %v2415
      %5491 = vmatmul.bf16.gmra.mxu0 %v4886
      %v5492 = vpop.f32.mrf.mxu0
      %v5493 = vadd.f32 %v5464, %v5492
      %v5494 = vpop.f32.mrf.mxu0
      %v5495 = vadd.f32 %v5466, %v5494
      %5496 = vmatmul.bf16.gmra.mxu0 %v4887
      %v5497 = vpop.f32.mrf.mxu0
      %v5498 = vadd.f32 %v5469, %v5497
      %v5499 = vpop.f32.mrf.mxu0
      %v5500 = vadd.f32 %v5471, %v5499
      %5501 = vmatmul.bf16.gmra.mxu0 %v4888
      %v5502 = vpop.f32.mrf.mxu0
      %v5503 = vadd.f32 %v5474, %v5502
      %v5504 = vpop.f32.mrf.mxu0
      %v5505 = vadd.f32 %v5476, %v5504
      %5506 = vmatmul.bf16.gmra.mxu0 %v4889
      %v5507 = vpop.f32.mrf.mxu0
      %v5508 = vadd.f32 %v5479, %v5507
      %v5509 = vpop.f32.mrf.mxu0
      %v5510 = vadd.f32 %v5481, %v5509
      %5511 = vdwg.mxu0
      %5512 = vmatpush.bf16.msra.mxu0 %v2475
      %5513 = vmatpush.bf16.msra.mxu0 %v2471
      %5514 = vmatpush.bf16.msra.mxu0 %v2467
      %5515 = vmatpush.bf16.msra.mxu0 %v2463
      %5516 = vmatpush.bf16.msra.mxu0 %v2459
      %5517 = vmatpush.bf16.msra.mxu0 %v2455
      %5518 = vmatpush.bf16.msra.mxu0 %v2451
      %5519 = vmatpush.bf16.msra.mxu0 %v2447
      %5520 = vmatmul.bf16.gmra.mxu0 %v4902
      %v5521 = vpop.f32.mrf.mxu0
      %v5522 = vadd.f32 %v5493, %v5521
      %v5523 = vpop.f32.mrf.mxu0
      %v5524 = vadd.f32 %v5495, %v5523
      %5525 = vmatmul.bf16.gmra.mxu0 %v4903
      %v5526 = vpop.f32.mrf.mxu0
      %v5527 = vadd.f32 %v5498, %v5526
      %v5528 = vpop.f32.mrf.mxu0
      %v5529 = vadd.f32 %v5500, %v5528
      %5530 = vmatmul.bf16.gmra.mxu0 %v4904
      %v5531 = vpop.f32.mrf.mxu0
      %v5532 = vadd.f32 %v5503, %v5531
      %v5533 = vpop.f32.mrf.mxu0
      %v5534 = vadd.f32 %v5505, %v5533
      %5535 = vmatmul.bf16.gmra.mxu0 %v4905
      %v5536 = vpop.f32.mrf.mxu0
      %v5537 = vadd.f32 %v5508, %v5536
      %v5538 = vpop.f32.mrf.mxu0
      %v5539 = vadd.f32 %v5510, %v5538
      %5540 = vdwg.mxu0
      %5541 = vmatpush.bf16.msra.mxu0 %v2507
      %5542 = vmatpush.bf16.msra.mxu0 %v2503
      %5543 = vmatpush.bf16.msra.mxu0 %v2499
      %5544 = vmatpush.bf16.msra.mxu0 %v2495
      %5545 = vmatpush.bf16.msra.mxu0 %v2491
      %5546 = vmatpush.bf16.msra.mxu0 %v2487
      %5547 = vmatpush.bf16.msra.mxu0 %v2483
      %5548 = vmatpush.bf16.msra.mxu0 %v2479
      %5549 = vmatmul.bf16.gmra.mxu0 %v4918
      %v5550 = vpop.f32.mrf.mxu0
      %v5551 = vadd.f32 %v5522, %v5550
      %v5552 = vpop.f32.mrf.mxu0
      %v5553 = vadd.f32 %v5524, %v5552
      %5554 = vmatmul.bf16.gmra.mxu0 %v4919
      %v5555 = vpop.f32.mrf.mxu0
      %v5556 = vadd.f32 %v5527, %v5555
      %v5557 = vpop.f32.mrf.mxu0
      %v5558 = vadd.f32 %v5529, %v5557
      %5559 = vmatmul.bf16.gmra.mxu0 %v4920
      %v5560 = vpop.f32.mrf.mxu0
      %v5561 = vadd.f32 %v5532, %v5560
      %v5562 = vpop.f32.mrf.mxu0
      %v5563 = vadd.f32 %v5534, %v5562
      %5564 = vmatmul.bf16.gmra.mxu0 %v4921
      %v5565 = vpop.f32.mrf.mxu0
      %v5566 = vadd.f32 %v5537, %v5565
      %v5567 = vpop.f32.mrf.mxu0
      %v5568 = vadd.f32 %v5539, %v5567
      %5569 = vdwg.mxu0
      %5570 = vmatpush.bf16.msra.mxu0 %v2539
      %5571 = vmatpush.bf16.msra.mxu0 %v2535
      %5572 = vmatpush.bf16.msra.mxu0 %v2531
      %5573 = vmatpush.bf16.msra.mxu0 %v2527
      %5574 = vmatpush.bf16.msra.mxu0 %v2523
      %5575 = vmatpush.bf16.msra.mxu0 %v2519
      %5576 = vmatpush.bf16.msra.mxu0 %v2515
      %5577 = vmatpush.bf16.msra.mxu0 %v2511
      %5578 = vmatmul.bf16.gmra.mxu0 %v4934
      %v5579 = vpop.f32.mrf.mxu0
      %v5580 = vadd.f32 %v5551, %v5579
      %v5581 = vpop.f32.mrf.mxu0
      %v5582 = vadd.f32 %v5553, %v5581
      %5583 = vmatmul.bf16.gmra.mxu0 %v4935
      %v5584 = vpop.f32.mrf.mxu0
      %v5585 = vadd.f32 %v5556, %v5584
      %v5586 = vpop.f32.mrf.mxu0
      %v5587 = vadd.f32 %v5558, %v5586
      %5588 = vmatmul.bf16.gmra.mxu0 %v4936
      %v5589 = vpop.f32.mrf.mxu0
      %v5590 = vadd.f32 %v5561, %v5589
      %v5591 = vpop.f32.mrf.mxu0
      %v5592 = vadd.f32 %v5563, %v5591
      %5593 = vmatmul.bf16.gmra.mxu0 %v4937
      %v5594 = vpop.f32.mrf.mxu0
      %v5595 = vadd.f32 %v5566, %v5594
      %v5596 = vpop.f32.mrf.mxu0
      %v5597 = vadd.f32 %v5568, %v5596
      %5598 = vdwg.mxu0
      %5599 = vmatpush.bf16.msra.mxu0 %v2571
      %5600 = vmatpush.bf16.msra.mxu0 %v2567
      %5601 = vmatpush.bf16.msra.mxu0 %v2563
      %5602 = vmatpush.bf16.msra.mxu0 %v2559
      %5603 = vmatpush.bf16.msra.mxu0 %v2555
      %5604 = vmatpush.bf16.msra.mxu0 %v2551
      %5605 = vmatpush.bf16.msra.mxu0 %v2547
      %5606 = vmatpush.bf16.msra.mxu0 %v2543
      %5607 = vmatmul.bf16.gmra.mxu0 %v4950
      %v5608 = vpop.f32.mrf.mxu0
      %v5609 = vadd.f32 %v5580, %v5608
      %v5610 = vpop.f32.mrf.mxu0
      %v5611 = vadd.f32 %v5582, %v5610
      %5612 = vmatmul.bf16.gmra.mxu0 %v4951
      %v5613 = vpop.f32.mrf.mxu0
      %v5614 = vadd.f32 %v5585, %v5613
      %v5615 = vpop.f32.mrf.mxu0
      %v5616 = vadd.f32 %v5587, %v5615
      %5617 = vmatmul.bf16.gmra.mxu0 %v4952
      %v5618 = vpop.f32.mrf.mxu0
      %v5619 = vadd.f32 %v5590, %v5618
      %v5620 = vpop.f32.mrf.mxu0
      %v5621 = vadd.f32 %v5592, %v5620
      %5622 = vmatmul.bf16.gmra.mxu0 %v4953
      %v5623 = vpop.f32.mrf.mxu0
      %v5624 = vadd.f32 %v5595, %v5623
      %v5625 = vpop.f32.mrf.mxu0
      %v5626 = vadd.f32 %v5597, %v5625
      %5627 = vdwg.mxu0
      %5628 = vmatpush.bf16.msra.mxu0 %v2603
      %5629 = vmatpush.bf16.msra.mxu0 %v2599
      %5630 = vmatpush.bf16.msra.mxu0 %v2595
      %5631 = vmatpush.bf16.msra.mxu0 %v2591
      %5632 = vmatpush.bf16.msra.mxu0 %v2587
      %5633 = vmatpush.bf16.msra.mxu0 %v2583
      %5634 = vmatpush.bf16.msra.mxu0 %v2579
      %5635 = vmatpush.bf16.msra.mxu0 %v2575
      %5636 = vmatmul.bf16.gmra.mxu0 %v4966
      %v5637 = vpop.f32.mrf.mxu0
      %v5638 = vadd.f32 %v5609, %v5637
      %v5639 = vpop.f32.mrf.mxu0
      %v5640 = vadd.f32 %v5611, %v5639
      %5641 = vmatmul.bf16.gmra.mxu0 %v4967
      %v5642 = vpop.f32.mrf.mxu0
      %v5643 = vadd.f32 %v5614, %v5642
      %v5644 = vpop.f32.mrf.mxu0
      %v5645 = vadd.f32 %v5616, %v5644
      %5646 = vmatmul.bf16.gmra.mxu0 %v4968
      %v5647 = vpop.f32.mrf.mxu0
      %v5648 = vadd.f32 %v5619, %v5647
      %v5649 = vpop.f32.mrf.mxu0
      %v5650 = vadd.f32 %v5621, %v5649
      %5651 = vmatmul.bf16.gmra.mxu0 %v4969
      %v5652 = vpop.f32.mrf.mxu0
      %v5653 = vadd.f32 %v5624, %v5652
      %v5654 = vpop.f32.mrf.mxu0
      %v5655 = vadd.f32 %v5626, %v5654
      %5656 = vdwg.mxu0
      %5657 = vmatpush.bf16.msra.mxu0 %v2635
      %5658 = vmatpush.bf16.msra.mxu0 %v2631
      %5659 = vmatpush.bf16.msra.mxu0 %v2627
      %5660 = vmatpush.bf16.msra.mxu0 %v2623
      %5661 = vmatpush.bf16.msra.mxu0 %v2619
      %5662 = vmatpush.bf16.msra.mxu0 %v2615
      %5663 = vmatpush.bf16.msra.mxu0 %v2611
      %5664 = vmatpush.bf16.msra.mxu0 %v2607
      %5665 = vmatmul.bf16.gmra.mxu0 %v4982
      %v5666 = vpop.f32.mrf.mxu0
      %v5667 = vadd.f32 %v5638, %v5666
      %v5668 = vpop.f32.mrf.mxu0
      %v5669 = vadd.f32 %v5640, %v5668
      %5670 = vmatmul.bf16.gmra.mxu0 %v4983
      %v5671 = vpop.f32.mrf.mxu0
      %v5672 = vadd.f32 %v5643, %v5671
      %v5673 = vpop.f32.mrf.mxu0
      %v5674 = vadd.f32 %v5645, %v5673
      %5675 = vmatmul.bf16.gmra.mxu0 %v4984
      %v5676 = vpop.f32.mrf.mxu0
      %v5677 = vadd.f32 %v5648, %v5676
      %v5678 = vpop.f32.mrf.mxu0
      %v5679 = vadd.f32 %v5650, %v5678
      %5680 = vmatmul.bf16.gmra.mxu0 %v4985
      %v5681 = vpop.f32.mrf.mxu0
      %v5682 = vadd.f32 %v5653, %v5681
      %v5683 = vpop.f32.mrf.mxu0
      %v5684 = vadd.f32 %v5655, %v5683
      %5685 = vdwg.mxu0
      %5686 = vmatpush.bf16.msra.mxu0 %v2284
      %5687 = vmatpush.bf16.msra.mxu0 %v2280
      %5688 = vmatpush.bf16.msra.mxu0 %v2276
      %5689 = vmatpush.bf16.msra.mxu0 %v2272
      %5690 = vmatpush.bf16.msra.mxu0 %v2268
      %5691 = vmatpush.bf16.msra.mxu0 %v2264
      %5692 = vmatpush.bf16.msra.mxu0 %v2260
      %5693 = vmatpush.bf16.msra.mxu0 %v2256
      %5694 = vmatmul.bf16.gmra.mxu0 %v4806
      %v5695 = vpop.f32.mrf.mxu0
      %v5696 = vadd.f32 %v904, %v5695
      %v5697 = vpop.f32.mrf.mxu0
      %v5698 = vadd.f32 %v904, %v5697
      %5699 = vmatmul.bf16.gmra.mxu0 %v4807
      %v5700 = vpop.f32.mrf.mxu0
      %v5701 = vadd.f32 %v904, %v5700
      %v5702 = vpop.f32.mrf.mxu0
      %v5703 = vadd.f32 %v904, %v5702
      %5704 = vmatmul.bf16.gmra.mxu0 %v4808
      %v5705 = vpop.f32.mrf.mxu0
      %v5706 = vadd.f32 %v904, %v5705
      %v5707 = vpop.f32.mrf.mxu0
      %v5708 = vadd.f32 %v904, %v5707
      %5709 = vmatmul.bf16.gmra.mxu0 %v4809
      %v5710 = vpop.f32.mrf.mxu0
      %v5711 = vadd.f32 %v904, %v5710
      %v5712 = vpop.f32.mrf.mxu0
      %v5713 = vadd.f32 %v904, %v5712
      %5714 = vdwg.mxu0
      %5715 = vmatpush.bf16.msra.mxu0 %v2316
      %5716 = vmatpush.bf16.msra.mxu0 %v2312
      %5717 = vmatpush.bf16.msra.mxu0 %v2308
      %5718 = vmatpush.bf16.msra.mxu0 %v2304
      %5719 = vmatpush.bf16.msra.mxu0 %v2300
      %5720 = vmatpush.bf16.msra.mxu0 %v2296
      %5721 = vmatpush.bf16.msra.mxu0 %v2292
      %5722 = vmatpush.bf16.msra.mxu0 %v2288
      %5723 = vmatmul.bf16.gmra.mxu0 %v4822
      %v5724 = vpop.f32.mrf.mxu0
      %v5725 = vadd.f32 %v5696, %v5724
      %v5726 = vpop.f32.mrf.mxu0
      %v5727 = vadd.f32 %v5698, %v5726
      %5728 = vmatmul.bf16.gmra.mxu0 %v4823
      %v5729 = vpop.f32.mrf.mxu0
      %v5730 = vadd.f32 %v5701, %v5729
      %v5731 = vpop.f32.mrf.mxu0
      %v5732 = vadd.f32 %v5703, %v5731
      %5733 = vmatmul.bf16.gmra.mxu0 %v4824
      %v5734 = vpop.f32.mrf.mxu0
      %v5735 = vadd.f32 %v5706, %v5734
      %v5736 = vpop.f32.mrf.mxu0
      %v5737 = vadd.f32 %v5708, %v5736
      %5738 = vmatmul.bf16.gmra.mxu0 %v4825
      %v5739 = vpop.f32.mrf.mxu0
      %v5740 = vadd.f32 %v5711, %v5739
      %v5741 = vpop.f32.mrf.mxu0
      %v5742 = vadd.f32 %v5713, %v5741
      %5743 = vdwg.mxu0
      %5744 = vmatpush.bf16.msra.mxu0 %v2348
      %5745 = vmatpush.bf16.msra.mxu0 %v2344
      %5746 = vmatpush.bf16.msra.mxu0 %v2340
      %5747 = vmatpush.bf16.msra.mxu0 %v2336
      %5748 = vmatpush.bf16.msra.mxu0 %v2332
      %5749 = vmatpush.bf16.msra.mxu0 %v2328
      %5750 = vmatpush.bf16.msra.mxu0 %v2324
      %5751 = vmatpush.bf16.msra.mxu0 %v2320
      %5752 = vmatmul.bf16.gmra.mxu0 %v4838
      %v5753 = vpop.f32.mrf.mxu0
      %v5754 = vadd.f32 %v5725, %v5753
      %v5755 = vpop.f32.mrf.mxu0
      %v5756 = vadd.f32 %v5727, %v5755
      %5757 = vmatmul.bf16.gmra.mxu0 %v4839
      %v5758 = vpop.f32.mrf.mxu0
      %v5759 = vadd.f32 %v5730, %v5758
      %v5760 = vpop.f32.mrf.mxu0
      %v5761 = vadd.f32 %v5732, %v5760
      %5762 = vmatmul.bf16.gmra.mxu0 %v4840
      %v5763 = vpop.f32.mrf.mxu0
      %v5764 = vadd.f32 %v5735, %v5763
      %v5765 = vpop.f32.mrf.mxu0
      %v5766 = vadd.f32 %v5737, %v5765
      %5767 = vmatmul.bf16.gmra.mxu0 %v4841
      %v5768 = vpop.f32.mrf.mxu0
      %v5769 = vadd.f32 %v5740, %v5768
      %v5770 = vpop.f32.mrf.mxu0
      %v5771 = vadd.f32 %v5742, %v5770
      %5772 = vdwg.mxu0
      %5773 = vmatpush.bf16.msra.mxu0 %v2380
      %5774 = vmatpush.bf16.msra.mxu0 %v2376
      %5775 = vmatpush.bf16.msra.mxu0 %v2372
      %5776 = vmatpush.bf16.msra.mxu0 %v2368
      %5777 = vmatpush.bf16.msra.mxu0 %v2364
      %5778 = vmatpush.bf16.msra.mxu0 %v2360
      %5779 = vmatpush.bf16.msra.mxu0 %v2356
      %5780 = vmatpush.bf16.msra.mxu0 %v2352
      %5781 = vmatmul.bf16.gmra.mxu0 %v4854
      %v5782 = vpop.f32.mrf.mxu0
      %v5783 = vadd.f32 %v5754, %v5782
      %v5784 = vpop.f32.mrf.mxu0
      %v5785 = vadd.f32 %v5756, %v5784
      %5786 = vmatmul.bf16.gmra.mxu0 %v4855
      %v5787 = vpop.f32.mrf.mxu0
      %v5788 = vadd.f32 %v5759, %v5787
      %v5789 = vpop.f32.mrf.mxu0
      %v5790 = vadd.f32 %v5761, %v5789
      %5791 = vmatmul.bf16.gmra.mxu0 %v4856
      %v5792 = vpop.f32.mrf.mxu0
      %v5793 = vadd.f32 %v5764, %v5792
      %v5794 = vpop.f32.mrf.mxu0
      %v5795 = vadd.f32 %v5766, %v5794
      %5796 = vmatmul.bf16.gmra.mxu0 %v4857
      %v5797 = vpop.f32.mrf.mxu0
      %v5798 = vadd.f32 %v5769, %v5797
      %v5799 = vpop.f32.mrf.mxu0
      %v5800 = vadd.f32 %v5771, %v5799
      %5801 = vdwg.mxu0
      %5802 = vmatpush.bf16.msra.mxu0 %v2412
      %5803 = vmatpush.bf16.msra.mxu0 %v2408
      %5804 = vmatpush.bf16.msra.mxu0 %v2404
      %5805 = vmatpush.bf16.msra.mxu0 %v2400
      %5806 = vmatpush.bf16.msra.mxu0 %v2396
      %5807 = vmatpush.bf16.msra.mxu0 %v2392
      %5808 = vmatpush.bf16.msra.mxu0 %v2388
      %5809 = vmatpush.bf16.msra.mxu0 %v2384
      %5810 = vmatmul.bf16.gmra.mxu0 %v4870
      %v5811 = vpop.f32.mrf.mxu0
      %v5812 = vadd.f32 %v5783, %v5811
      %v5813 = vpop.f32.mrf.mxu0
      %v5814 = vadd.f32 %v5785, %v5813
      %5815 = vmatmul.bf16.gmra.mxu0 %v4871
      %v5816 = vpop.f32.mrf.mxu0
      %v5817 = vadd.f32 %v5788, %v5816
      %v5818 = vpop.f32.mrf.mxu0
      %v5819 = vadd.f32 %v5790, %v5818
      %5820 = vmatmul.bf16.gmra.mxu0 %v4872
      %v5821 = vpop.f32.mrf.mxu0
      %v5822 = vadd.f32 %v5793, %v5821
      %v5823 = vpop.f32.mrf.mxu0
      %v5824 = vadd.f32 %v5795, %v5823
      %5825 = vmatmul.bf16.gmra.mxu0 %v4873
      %v5826 = vpop.f32.mrf.mxu0
      %v5827 = vadd.f32 %v5798, %v5826
      %v5828 = vpop.f32.mrf.mxu0
      %v5829 = vadd.f32 %v5800, %v5828
      %5830 = vdwg.mxu0
      %5831 = vmatpush.bf16.msra.mxu0 %v2444
      %5832 = vmatpush.bf16.msra.mxu0 %v2440
      %5833 = vmatpush.bf16.msra.mxu0 %v2436
      %5834 = vmatpush.bf16.msra.mxu0 %v2432
      %5835 = vmatpush.bf16.msra.mxu0 %v2428
      %5836 = vmatpush.bf16.msra.mxu0 %v2424
      %5837 = vmatpush.bf16.msra.mxu0 %v2420
      %5838 = vmatpush.bf16.msra.mxu0 %v2416
      %5839 = vmatmul.bf16.gmra.mxu0 %v4886
      %v5840 = vpop.f32.mrf.mxu0
      %v5841 = vadd.f32 %v5812, %v5840
      %v5842 = vpop.f32.mrf.mxu0
      %v5843 = vadd.f32 %v5814, %v5842
      %5844 = vmatmul.bf16.gmra.mxu0 %v4887
      %v5845 = vpop.f32.mrf.mxu0
      %v5846 = vadd.f32 %v5817, %v5845
      %v5847 = vpop.f32.mrf.mxu0
      %v5848 = vadd.f32 %v5819, %v5847
      %5849 = vmatmul.bf16.gmra.mxu0 %v4888
      %v5850 = vpop.f32.mrf.mxu0
      %v5851 = vadd.f32 %v5822, %v5850
      %v5852 = vpop.f32.mrf.mxu0
      %v5853 = vadd.f32 %v5824, %v5852
      %5854 = vmatmul.bf16.gmra.mxu0 %v4889
      %v5855 = vpop.f32.mrf.mxu0
      %v5856 = vadd.f32 %v5827, %v5855
      %v5857 = vpop.f32.mrf.mxu0
      %v5858 = vadd.f32 %v5829, %v5857
      %5859 = vdwg.mxu0
      %5860 = vmatpush.bf16.msra.mxu0 %v2476
      %5861 = vmatpush.bf16.msra.mxu0 %v2472
      %5862 = vmatpush.bf16.msra.mxu0 %v2468
      %5863 = vmatpush.bf16.msra.mxu0 %v2464
      %5864 = vmatpush.bf16.msra.mxu0 %v2460
      %5865 = vmatpush.bf16.msra.mxu0 %v2456
      %5866 = vmatpush.bf16.msra.mxu0 %v2452
      %5867 = vmatpush.bf16.msra.mxu0 %v2448
      %5868 = vmatmul.bf16.gmra.mxu0 %v4902
      %v5869 = vpop.f32.mrf.mxu0
      %v5870 = vadd.f32 %v5841, %v5869
      %v5871 = vpop.f32.mrf.mxu0
      %v5872 = vadd.f32 %v5843, %v5871
      %5873 = vmatmul.bf16.gmra.mxu0 %v4903
      %v5874 = vpop.f32.mrf.mxu0
      %v5875 = vadd.f32 %v5846, %v5874
      %v5876 = vpop.f32.mrf.mxu0
      %v5877 = vadd.f32 %v5848, %v5876
      %5878 = vmatmul.bf16.gmra.mxu0 %v4904
      %v5879 = vpop.f32.mrf.mxu0
      %v5880 = vadd.f32 %v5851, %v5879
      %v5881 = vpop.f32.mrf.mxu0
      %v5882 = vadd.f32 %v5853, %v5881
      %5883 = vmatmul.bf16.gmra.mxu0 %v4905
      %v5884 = vpop.f32.mrf.mxu0
      %v5885 = vadd.f32 %v5856, %v5884
      %v5886 = vpop.f32.mrf.mxu0
      %v5887 = vadd.f32 %v5858, %v5886
      %5888 = vdwg.mxu0
      %5889 = vmatpush.bf16.msra.mxu0 %v2508
      %5890 = vmatpush.bf16.msra.mxu0 %v2504
      %5891 = vmatpush.bf16.msra.mxu0 %v2500
      %5892 = vmatpush.bf16.msra.mxu0 %v2496
      %5893 = vmatpush.bf16.msra.mxu0 %v2492
      %5894 = vmatpush.bf16.msra.mxu0 %v2488
      %5895 = vmatpush.bf16.msra.mxu0 %v2484
      %5896 = vmatpush.bf16.msra.mxu0 %v2480
      %5897 = vmatmul.bf16.gmra.mxu0 %v4918
      %v5898 = vpop.f32.mrf.mxu0
      %v5899 = vadd.f32 %v5870, %v5898
      %v5900 = vpop.f32.mrf.mxu0
      %v5901 = vadd.f32 %v5872, %v5900
      %5902 = vmatmul.bf16.gmra.mxu0 %v4919
      %v5903 = vpop.f32.mrf.mxu0
      %v5904 = vadd.f32 %v5875, %v5903
      %v5905 = vpop.f32.mrf.mxu0
      %v5906 = vadd.f32 %v5877, %v5905
      %5907 = vmatmul.bf16.gmra.mxu0 %v4920
      %v5908 = vpop.f32.mrf.mxu0
      %v5909 = vadd.f32 %v5880, %v5908
      %v5910 = vpop.f32.mrf.mxu0
      %v5911 = vadd.f32 %v5882, %v5910
      %5912 = vmatmul.bf16.gmra.mxu0 %v4921
      %v5913 = vpop.f32.mrf.mxu0
      %v5914 = vadd.f32 %v5885, %v5913
      %v5915 = vpop.f32.mrf.mxu0
      %v5916 = vadd.f32 %v5887, %v5915
      %5917 = vdwg.mxu0
      %5918 = vmatpush.bf16.msra.mxu0 %v2540
      %5919 = vmatpush.bf16.msra.mxu0 %v2536
      %5920 = vmatpush.bf16.msra.mxu0 %v2532
      %5921 = vmatpush.bf16.msra.mxu0 %v2528
      %5922 = vmatpush.bf16.msra.mxu0 %v2524
      %5923 = vmatpush.bf16.msra.mxu0 %v2520
      %5924 = vmatpush.bf16.msra.mxu0 %v2516
      %5925 = vmatpush.bf16.msra.mxu0 %v2512
      %5926 = vmatmul.bf16.gmra.mxu0 %v4934
      %v5927 = vpop.f32.mrf.mxu0
      %v5928 = vadd.f32 %v5899, %v5927
      %v5929 = vpop.f32.mrf.mxu0
      %v5930 = vadd.f32 %v5901, %v5929
      %5931 = vmatmul.bf16.gmra.mxu0 %v4935
      %v5932 = vpop.f32.mrf.mxu0
      %v5933 = vadd.f32 %v5904, %v5932
      %v5934 = vpop.f32.mrf.mxu0
      %v5935 = vadd.f32 %v5906, %v5934
      %5936 = vmatmul.bf16.gmra.mxu0 %v4936
      %v5937 = vpop.f32.mrf.mxu0
      %v5938 = vadd.f32 %v5909, %v5937
      %v5939 = vpop.f32.mrf.mxu0
      %v5940 = vadd.f32 %v5911, %v5939
      %5941 = vmatmul.bf16.gmra.mxu0 %v4937
      %v5942 = vpop.f32.mrf.mxu0
      %v5943 = vadd.f32 %v5914, %v5942
      %v5944 = vpop.f32.mrf.mxu0
      %v5945 = vadd.f32 %v5916, %v5944
      %5946 = vdwg.mxu0
      %5947 = vmatpush.bf16.msra.mxu0 %v2572
      %5948 = vmatpush.bf16.msra.mxu0 %v2568
      %5949 = vmatpush.bf16.msra.mxu0 %v2564
      %5950 = vmatpush.bf16.msra.mxu0 %v2560
      %5951 = vmatpush.bf16.msra.mxu0 %v2556
      %5952 = vmatpush.bf16.msra.mxu0 %v2552
      %5953 = vmatpush.bf16.msra.mxu0 %v2548
      %5954 = vmatpush.bf16.msra.mxu0 %v2544
      %5955 = vmatmul.bf16.gmra.mxu0 %v4950
      %v5956 = vpop.f32.mrf.mxu0
      %v5957 = vadd.f32 %v5928, %v5956
      %v5958 = vpop.f32.mrf.mxu0
      %v5959 = vadd.f32 %v5930, %v5958
      %5960 = vmatmul.bf16.gmra.mxu0 %v4951
      %v5961 = vpop.f32.mrf.mxu0
      %v5962 = vadd.f32 %v5933, %v5961
      %v5963 = vpop.f32.mrf.mxu0
      %v5964 = vadd.f32 %v5935, %v5963
      %5965 = vmatmul.bf16.gmra.mxu0 %v4952
      %v5966 = vpop.f32.mrf.mxu0
      %v5967 = vadd.f32 %v5938, %v5966
      %v5968 = vpop.f32.mrf.mxu0
      %v5969 = vadd.f32 %v5940, %v5968
      %5970 = vmatmul.bf16.gmra.mxu0 %v4953
      %v5971 = vpop.f32.mrf.mxu0
      %v5972 = vadd.f32 %v5943, %v5971
      %v5973 = vpop.f32.mrf.mxu0
      %v5974 = vadd.f32 %v5945, %v5973
      %5975 = vdwg.mxu0
      %5976 = vmatpush.bf16.msra.mxu0 %v2604
      %5977 = vmatpush.bf16.msra.mxu0 %v2600
      %5978 = vmatpush.bf16.msra.mxu0 %v2596
      %5979 = vmatpush.bf16.msra.mxu0 %v2592
      %5980 = vmatpush.bf16.msra.mxu0 %v2588
      %5981 = vmatpush.bf16.msra.mxu0 %v2584
      %5982 = vmatpush.bf16.msra.mxu0 %v2580
      %5983 = vmatpush.bf16.msra.mxu0 %v2576
      %5984 = vmatmul.bf16.gmra.mxu0 %v4966
      %v5985 = vpop.f32.mrf.mxu0
      %v5986 = vadd.f32 %v5957, %v5985
      %v5987 = vpop.f32.mrf.mxu0
      %v5988 = vadd.f32 %v5959, %v5987
      %5989 = vmatmul.bf16.gmra.mxu0 %v4967
      %v5990 = vpop.f32.mrf.mxu0
      %v5991 = vadd.f32 %v5962, %v5990
      %v5992 = vpop.f32.mrf.mxu0
      %v5993 = vadd.f32 %v5964, %v5992
      %5994 = vmatmul.bf16.gmra.mxu0 %v4968
      %v5995 = vpop.f32.mrf.mxu0
      %v5996 = vadd.f32 %v5967, %v5995
      %v5997 = vpop.f32.mrf.mxu0
      %v5998 = vadd.f32 %v5969, %v5997
      %5999 = vmatmul.bf16.gmra.mxu0 %v4969
      %v6000 = vpop.f32.mrf.mxu0
      %v6001 = vadd.f32 %v5972, %v6000
      %v6002 = vpop.f32.mrf.mxu0
      %v6003 = vadd.f32 %v5974, %v6002
      %6004 = vdwg.mxu0
      %6005 = vmatpush.bf16.msra.mxu0 %v2636
      %6006 = vmatpush.bf16.msra.mxu0 %v2632
      %6007 = vmatpush.bf16.msra.mxu0 %v2628
      %6008 = vmatpush.bf16.msra.mxu0 %v2624
      %6009 = vmatpush.bf16.msra.mxu0 %v2620
      %6010 = vmatpush.bf16.msra.mxu0 %v2616
      %6011 = vmatpush.bf16.msra.mxu0 %v2612
      %6012 = vmatpush.bf16.msra.mxu0 %v2608
      %6013 = vmatmul.bf16.gmra.mxu0 %v4982
      %v6014 = vpop.f32.mrf.mxu0
      %v6015 = vadd.f32 %v5986, %v6014
      %v6016 = vpop.f32.mrf.mxu0
      %v6017 = vadd.f32 %v5988, %v6016
      %6018 = vmatmul.bf16.gmra.mxu0 %v4983
      %v6019 = vpop.f32.mrf.mxu0
      %v6020 = vadd.f32 %v5991, %v6019
      %v6021 = vpop.f32.mrf.mxu0
      %v6022 = vadd.f32 %v5993, %v6021
      %6023 = vmatmul.bf16.gmra.mxu0 %v4984
      %v6024 = vpop.f32.mrf.mxu0
      %v6025 = vadd.f32 %v5996, %v6024
      %v6026 = vpop.f32.mrf.mxu0
      %v6027 = vadd.f32 %v5998, %v6026
      %6028 = vmatmul.bf16.gmra.mxu0 %v4985
      %v6029 = vpop.f32.mrf.mxu0
      %v6030 = vadd.f32 %v6001, %v6029
      %v6031 = vpop.f32.mrf.mxu0
      %v6032 = vadd.f32 %v6003, %v6031
      %6033 = vdwg.mxu0
      %6034 = vmatpush.bf16.msra.mxu0 %v2285
      %6035 = vmatpush.bf16.msra.mxu0 %v2281
      %6036 = vmatpush.bf16.msra.mxu0 %v2277
      %6037 = vmatpush.bf16.msra.mxu0 %v2273
      %6038 = vmatpush.bf16.msra.mxu0 %v2269
      %6039 = vmatpush.bf16.msra.mxu0 %v2265
      %6040 = vmatpush.bf16.msra.mxu0 %v2261
      %6041 = vmatpush.bf16.msra.mxu0 %v2257
      %6042 = vmatmul.bf16.gmra.mxu0 %v4806
      %v6043 = vpop.f32.mrf.mxu0
      %v6044 = vadd.f32 %v905, %v6043
      %v6045 = vpop.f32.mrf.mxu0
      %v6046 = vadd.f32 %v905, %v6045
      %6047 = vmatmul.bf16.gmra.mxu0 %v4807
      %v6048 = vpop.f32.mrf.mxu0
      %v6049 = vadd.f32 %v905, %v6048
      %v6050 = vpop.f32.mrf.mxu0
      %v6051 = vadd.f32 %v905, %v6050
      %6052 = vmatmul.bf16.gmra.mxu0 %v4808
      %v6053 = vpop.f32.mrf.mxu0
      %v6054 = vadd.f32 %v905, %v6053
      %v6055 = vpop.f32.mrf.mxu0
      %v6056 = vadd.f32 %v905, %v6055
      %6057 = vmatmul.bf16.gmra.mxu0 %v4809
      %v6058 = vpop.f32.mrf.mxu0
      %v6059 = vadd.f32 %v905, %v6058
      %v6060 = vpop.f32.mrf.mxu0
      %v6061 = vadd.f32 %v905, %v6060
      %6062 = vdwg.mxu0
      %6063 = vmatpush.bf16.msra.mxu0 %v2317
      %6064 = vmatpush.bf16.msra.mxu0 %v2313
      %6065 = vmatpush.bf16.msra.mxu0 %v2309
      %6066 = vmatpush.bf16.msra.mxu0 %v2305
      %6067 = vmatpush.bf16.msra.mxu0 %v2301
      %6068 = vmatpush.bf16.msra.mxu0 %v2297
      %6069 = vmatpush.bf16.msra.mxu0 %v2293
      %6070 = vmatpush.bf16.msra.mxu0 %v2289
      %6071 = vmatmul.bf16.gmra.mxu0 %v4822
      %v6072 = vpop.f32.mrf.mxu0
      %v6073 = vadd.f32 %v6044, %v6072
      %v6074 = vpop.f32.mrf.mxu0
      %v6075 = vadd.f32 %v6046, %v6074
      %6076 = vmatmul.bf16.gmra.mxu0 %v4823
      %v6077 = vpop.f32.mrf.mxu0
      %v6078 = vadd.f32 %v6049, %v6077
      %v6079 = vpop.f32.mrf.mxu0
      %v6080 = vadd.f32 %v6051, %v6079
      %6081 = vmatmul.bf16.gmra.mxu0 %v4824
      %v6082 = vpop.f32.mrf.mxu0
      %v6083 = vadd.f32 %v6054, %v6082
      %v6084 = vpop.f32.mrf.mxu0
      %v6085 = vadd.f32 %v6056, %v6084
      %6086 = vmatmul.bf16.gmra.mxu0 %v4825
      %v6087 = vpop.f32.mrf.mxu0
      %v6088 = vadd.f32 %v6059, %v6087
      %v6089 = vpop.f32.mrf.mxu0
      %v6090 = vadd.f32 %v6061, %v6089
      %6091 = vdwg.mxu0
      %6092 = vmatpush.bf16.msra.mxu0 %v2349
      %6093 = vmatpush.bf16.msra.mxu0 %v2345
      %6094 = vmatpush.bf16.msra.mxu0 %v2341
      %6095 = vmatpush.bf16.msra.mxu0 %v2337
      %6096 = vmatpush.bf16.msra.mxu0 %v2333
      %6097 = vmatpush.bf16.msra.mxu0 %v2329
      %6098 = vmatpush.bf16.msra.mxu0 %v2325
      %6099 = vmatpush.bf16.msra.mxu0 %v2321
      %6100 = vmatmul.bf16.gmra.mxu0 %v4838
      %v6101 = vpop.f32.mrf.mxu0
      %v6102 = vadd.f32 %v6073, %v6101
      %v6103 = vpop.f32.mrf.mxu0
      %v6104 = vadd.f32 %v6075, %v6103
      %6105 = vmatmul.bf16.gmra.mxu0 %v4839
      %v6106 = vpop.f32.mrf.mxu0
      %v6107 = vadd.f32 %v6078, %v6106
      %v6108 = vpop.f32.mrf.mxu0
      %v6109 = vadd.f32 %v6080, %v6108
      %6110 = vmatmul.bf16.gmra.mxu0 %v4840
      %v6111 = vpop.f32.mrf.mxu0
      %v6112 = vadd.f32 %v6083, %v6111
      %v6113 = vpop.f32.mrf.mxu0
      %v6114 = vadd.f32 %v6085, %v6113
      %6115 = vmatmul.bf16.gmra.mxu0 %v4841
      %v6116 = vpop.f32.mrf.mxu0
      %v6117 = vadd.f32 %v6088, %v6116
      %v6118 = vpop.f32.mrf.mxu0
      %v6119 = vadd.f32 %v6090, %v6118
      %6120 = vdwg.mxu0
      %6121 = vmatpush.bf16.msra.mxu0 %v2381
      %6122 = vmatpush.bf16.msra.mxu0 %v2377
      %6123 = vmatpush.bf16.msra.mxu0 %v2373
      %6124 = vmatpush.bf16.msra.mxu0 %v2369
      %6125 = vmatpush.bf16.msra.mxu0 %v2365
      %6126 = vmatpush.bf16.msra.mxu0 %v2361
      %6127 = vmatpush.bf16.msra.mxu0 %v2357
      %6128 = vmatpush.bf16.msra.mxu0 %v2353
      %6129 = vmatmul.bf16.gmra.mxu0 %v4854
      %v6130 = vpop.f32.mrf.mxu0
      %v6131 = vadd.f32 %v6102, %v6130
      %v6132 = vpop.f32.mrf.mxu0
      %v6133 = vadd.f32 %v6104, %v6132
      %6134 = vmatmul.bf16.gmra.mxu0 %v4855
      %v6135 = vpop.f32.mrf.mxu0
      %v6136 = vadd.f32 %v6107, %v6135
      %v6137 = vpop.f32.mrf.mxu0
      %v6138 = vadd.f32 %v6109, %v6137
      %6139 = vmatmul.bf16.gmra.mxu0 %v4856
      %v6140 = vpop.f32.mrf.mxu0
      %v6141 = vadd.f32 %v6112, %v6140
      %v6142 = vpop.f32.mrf.mxu0
      %v6143 = vadd.f32 %v6114, %v6142
      %6144 = vmatmul.bf16.gmra.mxu0 %v4857
      %v6145 = vpop.f32.mrf.mxu0
      %v6146 = vadd.f32 %v6117, %v6145
      %v6147 = vpop.f32.mrf.mxu0
      %v6148 = vadd.f32 %v6119, %v6147
      %6149 = vdwg.mxu0
      %6150 = vmatpush.bf16.msra.mxu0 %v2413
      %6151 = vmatpush.bf16.msra.mxu0 %v2409
      %6152 = vmatpush.bf16.msra.mxu0 %v2405
      %6153 = vmatpush.bf16.msra.mxu0 %v2401
      %6154 = vmatpush.bf16.msra.mxu0 %v2397
      %6155 = vmatpush.bf16.msra.mxu0 %v2393
      %6156 = vmatpush.bf16.msra.mxu0 %v2389
      %6157 = vmatpush.bf16.msra.mxu0 %v2385
      %6158 = vmatmul.bf16.gmra.mxu0 %v4870
      %v6159 = vpop.f32.mrf.mxu0
      %v6160 = vadd.f32 %v6131, %v6159
      %v6161 = vpop.f32.mrf.mxu0
      %v6162 = vadd.f32 %v6133, %v6161
      %6163 = vmatmul.bf16.gmra.mxu0 %v4871
      %v6164 = vpop.f32.mrf.mxu0
      %v6165 = vadd.f32 %v6136, %v6164
      %v6166 = vpop.f32.mrf.mxu0
      %v6167 = vadd.f32 %v6138, %v6166
      %6168 = vmatmul.bf16.gmra.mxu0 %v4872
      %v6169 = vpop.f32.mrf.mxu0
      %v6170 = vadd.f32 %v6141, %v6169
      %v6171 = vpop.f32.mrf.mxu0
      %v6172 = vadd.f32 %v6143, %v6171
      %6173 = vmatmul.bf16.gmra.mxu0 %v4873
      %v6174 = vpop.f32.mrf.mxu0
      %v6175 = vadd.f32 %v6146, %v6174
      %v6176 = vpop.f32.mrf.mxu0
      %v6177 = vadd.f32 %v6148, %v6176
      %6178 = vdwg.mxu0
      %6179 = vmatpush.bf16.msra.mxu0 %v2445
      %6180 = vmatpush.bf16.msra.mxu0 %v2441
      %6181 = vmatpush.bf16.msra.mxu0 %v2437
      %6182 = vmatpush.bf16.msra.mxu0 %v2433
      %6183 = vmatpush.bf16.msra.mxu0 %v2429
      %6184 = vmatpush.bf16.msra.mxu0 %v2425
      %6185 = vmatpush.bf16.msra.mxu0 %v2421
      %6186 = vmatpush.bf16.msra.mxu0 %v2417
      %6187 = vmatmul.bf16.gmra.mxu0 %v4886
      %v6188 = vpop.f32.mrf.mxu0
      %v6189 = vadd.f32 %v6160, %v6188
      %v6190 = vpop.f32.mrf.mxu0
      %v6191 = vadd.f32 %v6162, %v6190
      %6192 = vmatmul.bf16.gmra.mxu0 %v4887
      %v6193 = vpop.f32.mrf.mxu0
      %v6194 = vadd.f32 %v6165, %v6193
      %v6195 = vpop.f32.mrf.mxu0
      %v6196 = vadd.f32 %v6167, %v6195
      %6197 = vmatmul.bf16.gmra.mxu0 %v4888
      %v6198 = vpop.f32.mrf.mxu0
      %v6199 = vadd.f32 %v6170, %v6198
      %v6200 = vpop.f32.mrf.mxu0
      %v6201 = vadd.f32 %v6172, %v6200
      %6202 = vmatmul.bf16.gmra.mxu0 %v4889
      %v6203 = vpop.f32.mrf.mxu0
      %v6204 = vadd.f32 %v6175, %v6203
      %v6205 = vpop.f32.mrf.mxu0
      %v6206 = vadd.f32 %v6177, %v6205
      %6207 = vdwg.mxu0
      %6208 = vmatpush.bf16.msra.mxu0 %v2477
      %6209 = vmatpush.bf16.msra.mxu0 %v2473
      %6210 = vmatpush.bf16.msra.mxu0 %v2469
      %6211 = vmatpush.bf16.msra.mxu0 %v2465
      %6212 = vmatpush.bf16.msra.mxu0 %v2461
      %6213 = vmatpush.bf16.msra.mxu0 %v2457
      %6214 = vmatpush.bf16.msra.mxu0 %v2453
      %6215 = vmatpush.bf16.msra.mxu0 %v2449
      %6216 = vmatmul.bf16.gmra.mxu0 %v4902
      %v6217 = vpop.f32.mrf.mxu0
      %v6218 = vadd.f32 %v6189, %v6217
      %v6219 = vpop.f32.mrf.mxu0
      %v6220 = vadd.f32 %v6191, %v6219
      %6221 = vmatmul.bf16.gmra.mxu0 %v4903
      %v6222 = vpop.f32.mrf.mxu0
      %v6223 = vadd.f32 %v6194, %v6222
      %v6224 = vpop.f32.mrf.mxu0
      %v6225 = vadd.f32 %v6196, %v6224
      %6226 = vmatmul.bf16.gmra.mxu0 %v4904
      %v6227 = vpop.f32.mrf.mxu0
      %v6228 = vadd.f32 %v6199, %v6227
      %v6229 = vpop.f32.mrf.mxu0
      %v6230 = vadd.f32 %v6201, %v6229
      %6231 = vmatmul.bf16.gmra.mxu0 %v4905
      %v6232 = vpop.f32.mrf.mxu0
      %v6233 = vadd.f32 %v6204, %v6232
      %v6234 = vpop.f32.mrf.mxu0
      %v6235 = vadd.f32 %v6206, %v6234
      %6236 = vdwg.mxu0
      %6237 = vmatpush.bf16.msra.mxu0 %v2509
      %6238 = vmatpush.bf16.msra.mxu0 %v2505
      %6239 = vmatpush.bf16.msra.mxu0 %v2501
      %6240 = vmatpush.bf16.msra.mxu0 %v2497
      %6241 = vmatpush.bf16.msra.mxu0 %v2493
      %6242 = vmatpush.bf16.msra.mxu0 %v2489
      %6243 = vmatpush.bf16.msra.mxu0 %v2485
      %6244 = vmatpush.bf16.msra.mxu0 %v2481
      %6245 = vmatmul.bf16.gmra.mxu0 %v4918
      %v6246 = vpop.f32.mrf.mxu0
      %v6247 = vadd.f32 %v6218, %v6246
      %v6248 = vpop.f32.mrf.mxu0
      %v6249 = vadd.f32 %v6220, %v6248
      %6250 = vmatmul.bf16.gmra.mxu0 %v4919
      %v6251 = vpop.f32.mrf.mxu0
      %v6252 = vadd.f32 %v6223, %v6251
      %v6253 = vpop.f32.mrf.mxu0
      %v6254 = vadd.f32 %v6225, %v6253
      %6255 = vmatmul.bf16.gmra.mxu0 %v4920
      %v6256 = vpop.f32.mrf.mxu0
      %v6257 = vadd.f32 %v6228, %v6256
      %v6258 = vpop.f32.mrf.mxu0
      %v6259 = vadd.f32 %v6230, %v6258
      %6260 = vmatmul.bf16.gmra.mxu0 %v4921
      %v6261 = vpop.f32.mrf.mxu0
      %v6262 = vadd.f32 %v6233, %v6261
      %v6263 = vpop.f32.mrf.mxu0
      %v6264 = vadd.f32 %v6235, %v6263
      %6265 = vdwg.mxu0
      %6266 = vmatpush.bf16.msra.mxu0 %v2541
      %6267 = vmatpush.bf16.msra.mxu0 %v2537
      %6268 = vmatpush.bf16.msra.mxu0 %v2533
      %6269 = vmatpush.bf16.msra.mxu0 %v2529
      %6270 = vmatpush.bf16.msra.mxu0 %v2525
      %6271 = vmatpush.bf16.msra.mxu0 %v2521
      %6272 = vmatpush.bf16.msra.mxu0 %v2517
      %6273 = vmatpush.bf16.msra.mxu0 %v2513
      %6274 = vmatmul.bf16.gmra.mxu0 %v4934
      %v6275 = vpop.f32.mrf.mxu0
      %v6276 = vadd.f32 %v6247, %v6275
      %v6277 = vpop.f32.mrf.mxu0
      %v6278 = vadd.f32 %v6249, %v6277
      %6279 = vmatmul.bf16.gmra.mxu0 %v4935
      %v6280 = vpop.f32.mrf.mxu0
      %v6281 = vadd.f32 %v6252, %v6280
      %v6282 = vpop.f32.mrf.mxu0
      %v6283 = vadd.f32 %v6254, %v6282
      %6284 = vmatmul.bf16.gmra.mxu0 %v4936
      %v6285 = vpop.f32.mrf.mxu0
      %v6286 = vadd.f32 %v6257, %v6285
      %v6287 = vpop.f32.mrf.mxu0
      %v6288 = vadd.f32 %v6259, %v6287
      %6289 = vmatmul.bf16.gmra.mxu0 %v4937
      %v6290 = vpop.f32.mrf.mxu0
      %v6291 = vadd.f32 %v6262, %v6290
      %v6292 = vpop.f32.mrf.mxu0
      %v6293 = vadd.f32 %v6264, %v6292
      %6294 = vdwg.mxu0
      %6295 = vmatpush.bf16.msra.mxu0 %v2573
      %6296 = vmatpush.bf16.msra.mxu0 %v2569
      %6297 = vmatpush.bf16.msra.mxu0 %v2565
      %6298 = vmatpush.bf16.msra.mxu0 %v2561
      %6299 = vmatpush.bf16.msra.mxu0 %v2557
      %6300 = vmatpush.bf16.msra.mxu0 %v2553
      %6301 = vmatpush.bf16.msra.mxu0 %v2549
      %6302 = vmatpush.bf16.msra.mxu0 %v2545
      %6303 = vmatmul.bf16.gmra.mxu0 %v4950
      %v6304 = vpop.f32.mrf.mxu0
      %v6305 = vadd.f32 %v6276, %v6304
      %v6306 = vpop.f32.mrf.mxu0
      %v6307 = vadd.f32 %v6278, %v6306
      %6308 = vmatmul.bf16.gmra.mxu0 %v4951
      %v6309 = vpop.f32.mrf.mxu0
      %v6310 = vadd.f32 %v6281, %v6309
      %v6311 = vpop.f32.mrf.mxu0
      %v6312 = vadd.f32 %v6283, %v6311
      %6313 = vmatmul.bf16.gmra.mxu0 %v4952
      %v6314 = vpop.f32.mrf.mxu0
      %v6315 = vadd.f32 %v6286, %v6314
      %v6316 = vpop.f32.mrf.mxu0
      %v6317 = vadd.f32 %v6288, %v6316
      %6318 = vmatmul.bf16.gmra.mxu0 %v4953
      %v6319 = vpop.f32.mrf.mxu0
      %v6320 = vadd.f32 %v6291, %v6319
      %v6321 = vpop.f32.mrf.mxu0
      %v6322 = vadd.f32 %v6293, %v6321
      %6323 = vdwg.mxu0
      %6324 = vmatpush.bf16.msra.mxu0 %v2605
      %6325 = vmatpush.bf16.msra.mxu0 %v2601
      %6326 = vmatpush.bf16.msra.mxu0 %v2597
      %6327 = vmatpush.bf16.msra.mxu0 %v2593
      %6328 = vmatpush.bf16.msra.mxu0 %v2589
      %6329 = vmatpush.bf16.msra.mxu0 %v2585
      %6330 = vmatpush.bf16.msra.mxu0 %v2581
      %6331 = vmatpush.bf16.msra.mxu0 %v2577
      %6332 = vmatmul.bf16.gmra.mxu0 %v4966
      %v6333 = vpop.f32.mrf.mxu0
      %v6334 = vadd.f32 %v6305, %v6333
      %v6335 = vpop.f32.mrf.mxu0
      %v6336 = vadd.f32 %v6307, %v6335
      %6337 = vmatmul.bf16.gmra.mxu0 %v4967
      %v6338 = vpop.f32.mrf.mxu0
      %v6339 = vadd.f32 %v6310, %v6338
      %v6340 = vpop.f32.mrf.mxu0
      %v6341 = vadd.f32 %v6312, %v6340
      %6342 = vmatmul.bf16.gmra.mxu0 %v4968
      %v6343 = vpop.f32.mrf.mxu0
      %v6344 = vadd.f32 %v6315, %v6343
      %v6345 = vpop.f32.mrf.mxu0
      %v6346 = vadd.f32 %v6317, %v6345
      %6347 = vmatmul.bf16.gmra.mxu0 %v4969
      %v6348 = vpop.f32.mrf.mxu0
      %v6349 = vadd.f32 %v6320, %v6348
      %v6350 = vpop.f32.mrf.mxu0
      %v6351 = vadd.f32 %v6322, %v6350
      %6352 = vdwg.mxu0
      %6353 = vmatpush.bf16.msra.mxu0 %v2637
      %6354 = vmatpush.bf16.msra.mxu0 %v2633
      %6355 = vmatpush.bf16.msra.mxu0 %v2629
      %6356 = vmatpush.bf16.msra.mxu0 %v2625
      %6357 = vmatpush.bf16.msra.mxu0 %v2621
      %6358 = vmatpush.bf16.msra.mxu0 %v2617
      %6359 = vmatpush.bf16.msra.mxu0 %v2613
      %6360 = vmatpush.bf16.msra.mxu0 %v2609
      %6361 = vmatmul.bf16.gmra.mxu0 %v4982
      %v6362 = vpop.f32.mrf.mxu0
      %v6363 = vadd.f32 %v6334, %v6362
      %v6364 = vpop.f32.mrf.mxu0
      %v6365 = vadd.f32 %v6336, %v6364
      %6366 = vmatmul.bf16.gmra.mxu0 %v4983
      %v6367 = vpop.f32.mrf.mxu0
      %v6368 = vadd.f32 %v6339, %v6367
      %v6369 = vpop.f32.mrf.mxu0
      %v6370 = vadd.f32 %v6341, %v6369
      %6371 = vmatmul.bf16.gmra.mxu0 %v4984
      %v6372 = vpop.f32.mrf.mxu0
      %v6373 = vadd.f32 %v6344, %v6372
      %v6374 = vpop.f32.mrf.mxu0
      %v6375 = vadd.f32 %v6346, %v6374
      %6376 = vmatmul.bf16.gmra.mxu0 %v4985
      %v6377 = vpop.f32.mrf.mxu0
      %v6378 = vadd.f32 %v6349, %v6377
      %v6379 = vpop.f32.mrf.mxu0
      %v6380 = vadd.f32 %v6351, %v6379
      %6381 = vdwg.mxu0
      %v6382 = vmax.f32 %v5319, 0.0
      %v6383 = vmax.f32 %v5667, 0.0
      %v6384 = vmax.f32 %v6015, 0.0
      %v6385 = vmax.f32 %v6363, 0.0
      %v6386 = vmax.f32 %v5321, 0.0
      %v6387 = vmax.f32 %v5669, 0.0
      %v6388 = vmax.f32 %v6017, 0.0
      %v6389 = vmax.f32 %v6365, 0.0
      %v6390 = vmax.f32 %v5324, 0.0
      %v6391 = vmax.f32 %v5672, 0.0
      %v6392 = vmax.f32 %v6020, 0.0
      %v6393 = vmax.f32 %v6368, 0.0
      %v6394 = vmax.f32 %v5326, 0.0
      %v6395 = vmax.f32 %v5674, 0.0
      %v6396 = vmax.f32 %v6022, 0.0
      %v6397 = vmax.f32 %v6370, 0.0
      %v6398 = vmax.f32 %v5329, 0.0
      %v6399 = vmax.f32 %v5677, 0.0
      %v6400 = vmax.f32 %v6025, 0.0
      %v6401 = vmax.f32 %v6373, 0.0
      %v6402 = vmax.f32 %v5331, 0.0
      %v6403 = vmax.f32 %v5679, 0.0
      %v6404 = vmax.f32 %v6027, 0.0
      %v6405 = vmax.f32 %v6375, 0.0
      %v6406 = vmax.f32 %v5334, 0.0
      %v6407 = vmax.f32 %v5682, 0.0
      %v6408 = vmax.f32 %v6030, 0.0
      %v6409 = vmax.f32 %v6378, 0.0
      %v6410 = vmax.f32 %v5336, 0.0
      %v6411 = vmax.f32 %v5684, 0.0
      %v6412 = vmax.f32 %v6032, 0.0
      %v6413 = vmax.f32 %v6380, 0.0
      %v6414 = vadd.f32 %v6382, %v6386
      %v6415 = vadd.f32 %v6414, %v6390
      %v6416 = vadd.f32 %v6415, %v6394
      %v6417 = vadd.f32 %v6416, %v6398
      %v6418 = vadd.f32 %v6417, %v6402
      %v6419 = vadd.f32 %v6418, %v6406
      %v6420 = vadd.f32 %v6419, %v6410
      %v6421 = vrot.slane %v6420, 4
      %v6422 = vadd.f32 %v6420, %v6421
      %v6423 = vrot.slane %v6422, 2
      %v6424 = vadd.f32 %v6422, %v6423
      %v6425 = vrot.slane %v6424, 1
      %v6426 = vadd.f32 %v6424, %v6425
      %v6427 = vadd.f32 %v6383, %v6387
      %v6428 = vadd.f32 %v6427, %v6391
      %v6429 = vadd.f32 %v6428, %v6395
      %v6430 = vadd.f32 %v6429, %v6399
      %v6431 = vadd.f32 %v6430, %v6403
      %v6432 = vadd.f32 %v6431, %v6407
      %v6433 = vadd.f32 %v6432, %v6411
      %v6434 = vrot.slane %v6433, 4
      %v6435 = vadd.f32 %v6433, %v6434
      %v6436 = vrot.slane %v6435, 2
      %v6437 = vadd.f32 %v6435, %v6436
      %v6438 = vrot.slane %v6437, 1
      %v6439 = vadd.f32 %v6437, %v6438
      %v6440 = vadd.f32 %v6384, %v6388
      %v6441 = vadd.f32 %v6440, %v6392
      %v6442 = vadd.f32 %v6441, %v6396
      %v6443 = vadd.f32 %v6442, %v6400
      %v6444 = vadd.f32 %v6443, %v6404
      %v6445 = vadd.f32 %v6444, %v6408
      %v6446 = vadd.f32 %v6445, %v6412
      %v6447 = vrot.slane %v6446, 4
      %v6448 = vadd.f32 %v6446, %v6447
      %v6449 = vrot.slane %v6448, 2
      %v6450 = vadd.f32 %v6448, %v6449
      %v6451 = vrot.slane %v6450, 1
      %v6452 = vadd.f32 %v6450, %v6451
      %v6453 = vadd.f32 %v6385, %v6389
      %v6454 = vadd.f32 %v6453, %v6393
      %v6455 = vadd.f32 %v6454, %v6397
      %v6456 = vadd.f32 %v6455, %v6401
      %v6457 = vadd.f32 %v6456, %v6405
      %v6458 = vadd.f32 %v6457, %v6409
      %v6459 = vadd.f32 %v6458, %v6413
      %v6460 = vrot.slane %v6459, 4
      %v6461 = vadd.f32 %v6459, %v6460
      %v6462 = vrot.slane %v6461, 2
      %v6463 = vadd.f32 %v6461, %v6462
      %v6464 = vrot.slane %v6463, 1
      %v6465 = vadd.f32 %v6463, %v6464
      %v6466 = vmul.f32 %v6426, %v4504
      %v6467 = vmul.f32 %v6439, %v4504
      %v6468 = vmul.f32 %v6452, %v4504
      %v6469 = vmul.f32 %v6465, %v4504
      %s6470 = scalar_lea.vmem %s222, 3072
      %v6471 = vld [vmem:[%s6470] sm:$0xff]
      %v6472 = vld [vmem:[%s6470 + $0x8] sm:$0xff]
      %v6473 = vld [vmem:[%s6470 + $0x10] sm:$0xff]
      %v6474 = vld [vmem:[%s6470 + $0x18] sm:$0xff]
      %v6475 = vld [vmem:[%s6470 + $0x20] sm:$0xff]
      %v6476 = vld [vmem:[%s6470 + $0x28] sm:$0xff]
      %v6477 = vld [vmem:[%s6470 + $0x30] sm:$0xff]
      %v6478 = vld [vmem:[%s6470 + $0x38] sm:$0xff]
      %v6479 = vld [vmem:[%s6470 + $0x40] sm:$0xff]
      %v6480 = vld [vmem:[%s6470 + $0x48] sm:$0xff]
      %v6481 = vld [vmem:[%s6470 + $0x50] sm:$0xff]
      %v6482 = vld [vmem:[%s6470 + $0x58] sm:$0xff]
      %v6483 = vld [vmem:[%s6470 + $0x60] sm:$0xff]
      %v6484 = vld [vmem:[%s6470 + $0x68] sm:$0xff]
      %v6485 = vld [vmem:[%s6470 + $0x70] sm:$0xff]
      %v6486 = vld [vmem:[%s6470 + $0x78] sm:$0xff]
      %v6487 = vld [vmem:[%s6470 + $0x80] sm:$0xff]
      %v6488 = vld [vmem:[%s6470 + $0x88] sm:$0xff]
      %v6489 = vld [vmem:[%s6470 + $0x90] sm:$0xff]
      %v6490 = vld [vmem:[%s6470 + $0x98] sm:$0xff]
      %v6491 = vld [vmem:[%s6470 + $0xa0] sm:$0xff]
      %v6492 = vld [vmem:[%s6470 + $0xa8] sm:$0xff]
      %v6493 = vld [vmem:[%s6470 + $0xb0] sm:$0xff]
      %v6494 = vld [vmem:[%s6470 + $0xb8] sm:$0xff]
      %v6495 = vld [vmem:[%s6470 + $0xc0] sm:$0xff]
      %v6496 = vld [vmem:[%s6470 + $0xc8] sm:$0xff]
      %v6497 = vld [vmem:[%s6470 + $0xd0] sm:$0xff]
      %v6498 = vld [vmem:[%s6470 + $0xd8] sm:$0xff]
      %v6499 = vld [vmem:[%s6470 + $0xe0] sm:$0xff]
      %v6500 = vld [vmem:[%s6470 + $0xe8] sm:$0xff]
      %v6501 = vld [vmem:[%s6470 + $0xf0] sm:$0xff]
      %v6502 = vld [vmem:[%s6470 + $0xf8] sm:$0xff]
      %v6503 = vld [vmem:[%s6470 + $0x100] sm:$0xff]
      %v6504 = vld [vmem:[%s6470 + $0x108] sm:$0xff]
      %v6505 = vld [vmem:[%s6470 + $0x110] sm:$0xff]
      %v6506 = vld [vmem:[%s6470 + $0x118] sm:$0xff]
      %v6507 = vld [vmem:[%s6470 + $0x120] sm:$0xff]
      %v6508 = vld [vmem:[%s6470 + $0x128] sm:$0xff]
      %v6509 = vld [vmem:[%s6470 + $0x130] sm:$0xff]
      %v6510 = vld [vmem:[%s6470 + $0x138] sm:$0xff]
      %v6511 = vld [vmem:[%s6470 + $0x140] sm:$0xff]
      %v6512 = vld [vmem:[%s6470 + $0x148] sm:$0xff]
      %v6513 = vld [vmem:[%s6470 + $0x150] sm:$0xff]
      %v6514 = vld [vmem:[%s6470 + $0x158] sm:$0xff]
      %v6515 = vld [vmem:[%s6470 + $0x160] sm:$0xff]
      %v6516 = vld [vmem:[%s6470 + $0x168] sm:$0xff]
      %v6517 = vld [vmem:[%s6470 + $0x170] sm:$0xff]
      %v6518 = vld [vmem:[%s6470 + $0x178] sm:$0xff]
      %v6519 = vld [vmem:[%s6470 + $0x180] sm:$0xff]
      %v6520 = vld [vmem:[%s6470 + $0x188] sm:$0xff]
      %v6521 = vld [vmem:[%s6470 + $0x190] sm:$0xff]
      %v6522 = vld [vmem:[%s6470 + $0x198] sm:$0xff]
      %v6523 = vld [vmem:[%s6470 + $0x1a0] sm:$0xff]
      %v6524 = vld [vmem:[%s6470 + $0x1a8] sm:$0xff]
      %v6525 = vld [vmem:[%s6470 + $0x1b0] sm:$0xff]
      %v6526 = vld [vmem:[%s6470 + $0x1b8] sm:$0xff]
      %v6527 = vld [vmem:[%s6470 + $0x1c0] sm:$0xff]
      %v6528 = vld [vmem:[%s6470 + $0x1c8] sm:$0xff]
      %v6529 = vld [vmem:[%s6470 + $0x1d0] sm:$0xff]
      %v6530 = vld [vmem:[%s6470 + $0x1d8] sm:$0xff]
      %v6531 = vld [vmem:[%s6470 + $0x1e0] sm:$0xff]
      %v6532 = vld [vmem:[%s6470 + $0x1e8] sm:$0xff]
      %v6533 = vld [vmem:[%s6470 + $0x1f0] sm:$0xff]
      %v6534 = vld [vmem:[%s6470 + $0x1f8] sm:$0xff]
      %v6535 = vld [vmem:[%s6470 + $0x200] sm:$0xff]
      %v6536 = vld [vmem:[%s6470 + $0x208] sm:$0xff]
      %v6537 = vld [vmem:[%s6470 + $0x210] sm:$0xff]
      %v6538 = vld [vmem:[%s6470 + $0x218] sm:$0xff]
      %v6539 = vld [vmem:[%s6470 + $0x220] sm:$0xff]
      %v6540 = vld [vmem:[%s6470 + $0x228] sm:$0xff]
      %v6541 = vld [vmem:[%s6470 + $0x230] sm:$0xff]
      %v6542 = vld [vmem:[%s6470 + $0x238] sm:$0xff]
      %v6543 = vld [vmem:[%s6470 + $0x240] sm:$0xff]
      %v6544 = vld [vmem:[%s6470 + $0x248] sm:$0xff]
      %v6545 = vld [vmem:[%s6470 + $0x250] sm:$0xff]
      %v6546 = vld [vmem:[%s6470 + $0x258] sm:$0xff]
      %v6547 = vld [vmem:[%s6470 + $0x260] sm:$0xff]
      %v6548 = vld [vmem:[%s6470 + $0x268] sm:$0xff]
      %v6549 = vld [vmem:[%s6470 + $0x270] sm:$0xff]
      %v6550 = vld [vmem:[%s6470 + $0x278] sm:$0xff]
      %v6551 = vld [vmem:[%s6470 + $0x280] sm:$0xff]
      %v6552 = vld [vmem:[%s6470 + $0x288] sm:$0xff]
      %v6553 = vld [vmem:[%s6470 + $0x290] sm:$0xff]
      %v6554 = vld [vmem:[%s6470 + $0x298] sm:$0xff]
      %v6555 = vld [vmem:[%s6470 + $0x2a0] sm:$0xff]
      %v6556 = vld [vmem:[%s6470 + $0x2a8] sm:$0xff]
      %v6557 = vld [vmem:[%s6470 + $0x2b0] sm:$0xff]
      %v6558 = vld [vmem:[%s6470 + $0x2b8] sm:$0xff]
      %v6559 = vld [vmem:[%s6470 + $0x2c0] sm:$0xff]
      %v6560 = vld [vmem:[%s6470 + $0x2c8] sm:$0xff]
      %v6561 = vld [vmem:[%s6470 + $0x2d0] sm:$0xff]
      %v6562 = vld [vmem:[%s6470 + $0x2d8] sm:$0xff]
      %v6563 = vld [vmem:[%s6470 + $0x2e0] sm:$0xff]
      %v6564 = vld [vmem:[%s6470 + $0x2e8] sm:$0xff]
      %v6565 = vld [vmem:[%s6470 + $0x2f0] sm:$0xff]
      %v6566 = vld [vmem:[%s6470 + $0x2f8] sm:$0xff]
      %v6567 = vld [vmem:[%s6470 + $0x300] sm:$0xff]
      %v6568 = vld [vmem:[%s6470 + $0x308] sm:$0xff]
      %v6569 = vld [vmem:[%s6470 + $0x310] sm:$0xff]
      %v6570 = vld [vmem:[%s6470 + $0x318] sm:$0xff]
      %v6571 = vld [vmem:[%s6470 + $0x320] sm:$0xff]
      %v6572 = vld [vmem:[%s6470 + $0x328] sm:$0xff]
      %v6573 = vld [vmem:[%s6470 + $0x330] sm:$0xff]
      %v6574 = vld [vmem:[%s6470 + $0x338] sm:$0xff]
      %v6575 = vld [vmem:[%s6470 + $0x340] sm:$0xff]
      %v6576 = vld [vmem:[%s6470 + $0x348] sm:$0xff]
      %v6577 = vld [vmem:[%s6470 + $0x350] sm:$0xff]
      %v6578 = vld [vmem:[%s6470 + $0x358] sm:$0xff]
      %v6579 = vld [vmem:[%s6470 + $0x360] sm:$0xff]
      %v6580 = vld [vmem:[%s6470 + $0x368] sm:$0xff]
      %v6581 = vld [vmem:[%s6470 + $0x370] sm:$0xff]
      %v6582 = vld [vmem:[%s6470 + $0x378] sm:$0xff]
      %v6583 = vld [vmem:[%s6470 + $0x380] sm:$0xff]
      %v6584 = vld [vmem:[%s6470 + $0x388] sm:$0xff]
      %v6585 = vld [vmem:[%s6470 + $0x390] sm:$0xff]
      %v6586 = vld [vmem:[%s6470 + $0x398] sm:$0xff]
      %v6587 = vld [vmem:[%s6470 + $0x3a0] sm:$0xff]
      %v6588 = vld [vmem:[%s6470 + $0x3a8] sm:$0xff]
      %v6589 = vld [vmem:[%s6470 + $0x3b0] sm:$0xff]
      %v6590 = vld [vmem:[%s6470 + $0x3b8] sm:$0xff]
      %v6591 = vld [vmem:[%s6470 + $0x3c0] sm:$0xff]
      %v6592 = vld [vmem:[%s6470 + $0x3c8] sm:$0xff]
      %v6593 = vld [vmem:[%s6470 + $0x3d0] sm:$0xff]
      %v6594 = vld [vmem:[%s6470 + $0x3d8] sm:$0xff]
      %v6595 = vld [vmem:[%s6470 + $0x3e0] sm:$0xff]
      %v6596 = vld [vmem:[%s6470 + $0x3e8] sm:$0xff]
      %v6597 = vld [vmem:[%s6470 + $0x3f0] sm:$0xff]
      %v6598 = vld [vmem:[%s6470 + $0x3f8] sm:$0xff]
      %v6599 = vld [vmem:[%s6470 + $0x400] sm:$0xff]
      %v6600 = vld [vmem:[%s6470 + $0x408] sm:$0xff]
      %v6601 = vld [vmem:[%s6470 + $0x410] sm:$0xff]
      %v6602 = vld [vmem:[%s6470 + $0x418] sm:$0xff]
      %v6603 = vld [vmem:[%s6470 + $0x420] sm:$0xff]
      %v6604 = vld [vmem:[%s6470 + $0x428] sm:$0xff]
      %v6605 = vld [vmem:[%s6470 + $0x430] sm:$0xff]
      %v6606 = vld [vmem:[%s6470 + $0x438] sm:$0xff]
      %v6607 = vld [vmem:[%s6470 + $0x440] sm:$0xff]
      %v6608 = vld [vmem:[%s6470 + $0x448] sm:$0xff]
      %v6609 = vld [vmem:[%s6470 + $0x450] sm:$0xff]
      %v6610 = vld [vmem:[%s6470 + $0x458] sm:$0xff]
      %v6611 = vld [vmem:[%s6470 + $0x460] sm:$0xff]
      %v6612 = vld [vmem:[%s6470 + $0x468] sm:$0xff]
      %v6613 = vld [vmem:[%s6470 + $0x470] sm:$0xff]
      %v6614 = vld [vmem:[%s6470 + $0x478] sm:$0xff]
      %v6615 = vld [vmem:[%s6470 + $0x480] sm:$0xff]
      %v6616 = vld [vmem:[%s6470 + $0x488] sm:$0xff]
      %v6617 = vld [vmem:[%s6470 + $0x490] sm:$0xff]
      %v6618 = vld [vmem:[%s6470 + $0x498] sm:$0xff]
      %v6619 = vld [vmem:[%s6470 + $0x4a0] sm:$0xff]
      %v6620 = vld [vmem:[%s6470 + $0x4a8] sm:$0xff]
      %v6621 = vld [vmem:[%s6470 + $0x4b0] sm:$0xff]
      %v6622 = vld [vmem:[%s6470 + $0x4b8] sm:$0xff]
      %v6623 = vld [vmem:[%s6470 + $0x4c0] sm:$0xff]
      %v6624 = vld [vmem:[%s6470 + $0x4c8] sm:$0xff]
      %v6625 = vld [vmem:[%s6470 + $0x4d0] sm:$0xff]
      %v6626 = vld [vmem:[%s6470 + $0x4d8] sm:$0xff]
      %v6627 = vld [vmem:[%s6470 + $0x4e0] sm:$0xff]
      %v6628 = vld [vmem:[%s6470 + $0x4e8] sm:$0xff]
      %v6629 = vld [vmem:[%s6470 + $0x4f0] sm:$0xff]
      %v6630 = vld [vmem:[%s6470 + $0x4f8] sm:$0xff]
      %v6631 = vld [vmem:[%s6470 + $0x500] sm:$0xff]
      %v6632 = vld [vmem:[%s6470 + $0x508] sm:$0xff]
      %v6633 = vld [vmem:[%s6470 + $0x510] sm:$0xff]
      %v6634 = vld [vmem:[%s6470 + $0x518] sm:$0xff]
      %v6635 = vld [vmem:[%s6470 + $0x520] sm:$0xff]
      %v6636 = vld [vmem:[%s6470 + $0x528] sm:$0xff]
      %v6637 = vld [vmem:[%s6470 + $0x530] sm:$0xff]
      %v6638 = vld [vmem:[%s6470 + $0x538] sm:$0xff]
      %v6639 = vld [vmem:[%s6470 + $0x540] sm:$0xff]
      %v6640 = vld [vmem:[%s6470 + $0x548] sm:$0xff]
      %v6641 = vld [vmem:[%s6470 + $0x550] sm:$0xff]
      %v6642 = vld [vmem:[%s6470 + $0x558] sm:$0xff]
      %v6643 = vld [vmem:[%s6470 + $0x560] sm:$0xff]
      %v6644 = vld [vmem:[%s6470 + $0x568] sm:$0xff]
      %v6645 = vld [vmem:[%s6470 + $0x570] sm:$0xff]
      %v6646 = vld [vmem:[%s6470 + $0x578] sm:$0xff]
      %v6647 = vld [vmem:[%s6470 + $0x580] sm:$0xff]
      %v6648 = vld [vmem:[%s6470 + $0x588] sm:$0xff]
      %v6649 = vld [vmem:[%s6470 + $0x590] sm:$0xff]
      %v6650 = vld [vmem:[%s6470 + $0x598] sm:$0xff]
      %v6651 = vld [vmem:[%s6470 + $0x5a0] sm:$0xff]
      %v6652 = vld [vmem:[%s6470 + $0x5a8] sm:$0xff]
      %v6653 = vld [vmem:[%s6470 + $0x5b0] sm:$0xff]
      %v6654 = vld [vmem:[%s6470 + $0x5b8] sm:$0xff]
      %v6655 = vld [vmem:[%s6470 + $0x5c0] sm:$0xff]
      %v6656 = vld [vmem:[%s6470 + $0x5c8] sm:$0xff]
      %v6657 = vld [vmem:[%s6470 + $0x5d0] sm:$0xff]
      %v6658 = vld [vmem:[%s6470 + $0x5d8] sm:$0xff]
      %v6659 = vld [vmem:[%s6470 + $0x5e0] sm:$0xff]
      %v6660 = vld [vmem:[%s6470 + $0x5e8] sm:$0xff]
      %v6661 = vld [vmem:[%s6470 + $0x5f0] sm:$0xff]
      %v6662 = vld [vmem:[%s6470 + $0x5f8] sm:$0xff]
      %v6663 = vpack.c.bf16 %v6472, %v6471
      %v6664 = vpack.c.bf16 %v6474, %v6473
      %v6665 = vpack.c.bf16 %v6476, %v6475
      %v6666 = vpack.c.bf16 %v6478, %v6477
      %v6667 = vpack.c.bf16 %v6480, %v6479
      %v6668 = vpack.c.bf16 %v6482, %v6481
      %v6669 = vpack.c.bf16 %v6484, %v6483
      %v6670 = vpack.c.bf16 %v6486, %v6485
      %v6671 = vpack.c.bf16 %v6488, %v6487
      %v6672 = vpack.c.bf16 %v6490, %v6489
      %v6673 = vpack.c.bf16 %v6492, %v6491
      %v6674 = vpack.c.bf16 %v6494, %v6493
      %v6675 = vpack.c.bf16 %v6496, %v6495
      %v6676 = vpack.c.bf16 %v6498, %v6497
      %v6677 = vpack.c.bf16 %v6500, %v6499
      %v6678 = vpack.c.bf16 %v6502, %v6501
      %v6679 = vpack.c.bf16 %v6504, %v6503
      %v6680 = vpack.c.bf16 %v6506, %v6505
      %v6681 = vpack.c.bf16 %v6508, %v6507
      %v6682 = vpack.c.bf16 %v6510, %v6509
      %v6683 = vpack.c.bf16 %v6512, %v6511
      %v6684 = vpack.c.bf16 %v6514, %v6513
      %v6685 = vpack.c.bf16 %v6516, %v6515
      %v6686 = vpack.c.bf16 %v6518, %v6517
      %v6687 = vpack.c.bf16 %v6520, %v6519
      %v6688 = vpack.c.bf16 %v6522, %v6521
      %v6689 = vpack.c.bf16 %v6524, %v6523
      %v6690 = vpack.c.bf16 %v6526, %v6525
      %v6691 = vpack.c.bf16 %v6528, %v6527
      %v6692 = vpack.c.bf16 %v6530, %v6529
      %v6693 = vpack.c.bf16 %v6532, %v6531
      %v6694 = vpack.c.bf16 %v6534, %v6533
      %v6695 = vpack.c.bf16 %v6536, %v6535
      %v6696 = vpack.c.bf16 %v6538, %v6537
      %v6697 = vpack.c.bf16 %v6540, %v6539
      %v6698 = vpack.c.bf16 %v6542, %v6541
      %v6699 = vpack.c.bf16 %v6544, %v6543
      %v6700 = vpack.c.bf16 %v6546, %v6545
      %v6701 = vpack.c.bf16 %v6548, %v6547
      %v6702 = vpack.c.bf16 %v6550, %v6549
      %v6703 = vpack.c.bf16 %v6552, %v6551
      %v6704 = vpack.c.bf16 %v6554, %v6553
      %v6705 = vpack.c.bf16 %v6556, %v6555
      %v6706 = vpack.c.bf16 %v6558, %v6557
      %v6707 = vpack.c.bf16 %v6560, %v6559
      %v6708 = vpack.c.bf16 %v6562, %v6561
      %v6709 = vpack.c.bf16 %v6564, %v6563
      %v6710 = vpack.c.bf16 %v6566, %v6565
      %v6711 = vpack.c.bf16 %v6568, %v6567
      %v6712 = vpack.c.bf16 %v6570, %v6569
      %v6713 = vpack.c.bf16 %v6572, %v6571
      %v6714 = vpack.c.bf16 %v6574, %v6573
      %v6715 = vpack.c.bf16 %v6576, %v6575
      %v6716 = vpack.c.bf16 %v6578, %v6577
      %v6717 = vpack.c.bf16 %v6580, %v6579
      %v6718 = vpack.c.bf16 %v6582, %v6581
      %v6719 = vpack.c.bf16 %v6584, %v6583
      %v6720 = vpack.c.bf16 %v6586, %v6585
      %v6721 = vpack.c.bf16 %v6588, %v6587
      %v6722 = vpack.c.bf16 %v6590, %v6589
      %v6723 = vpack.c.bf16 %v6592, %v6591
      %v6724 = vpack.c.bf16 %v6594, %v6593
      %v6725 = vpack.c.bf16 %v6596, %v6595
      %v6726 = vpack.c.bf16 %v6598, %v6597
      %v6727 = vpack.c.bf16 %v6600, %v6599
      %v6728 = vpack.c.bf16 %v6602, %v6601
      %v6729 = vpack.c.bf16 %v6604, %v6603
      %v6730 = vpack.c.bf16 %v6606, %v6605
      %v6731 = vpack.c.bf16 %v6608, %v6607
      %v6732 = vpack.c.bf16 %v6610, %v6609
      %v6733 = vpack.c.bf16 %v6612, %v6611
      %v6734 = vpack.c.bf16 %v6614, %v6613
      %v6735 = vpack.c.bf16 %v6616, %v6615
      %v6736 = vpack.c.bf16 %v6618, %v6617
      %v6737 = vpack.c.bf16 %v6620, %v6619
      %v6738 = vpack.c.bf16 %v6622, %v6621
      %v6739 = vpack.c.bf16 %v6624, %v6623
      %v6740 = vpack.c.bf16 %v6626, %v6625
      %v6741 = vpack.c.bf16 %v6628, %v6627
      %v6742 = vpack.c.bf16 %v6630, %v6629
      %v6743 = vpack.c.bf16 %v6632, %v6631
      %v6744 = vpack.c.bf16 %v6634, %v6633
      %v6745 = vpack.c.bf16 %v6636, %v6635
      %v6746 = vpack.c.bf16 %v6638, %v6637
      %v6747 = vpack.c.bf16 %v6640, %v6639
      %v6748 = vpack.c.bf16 %v6642, %v6641
      %v6749 = vpack.c.bf16 %v6644, %v6643
      %v6750 = vpack.c.bf16 %v6646, %v6645
      %v6751 = vpack.c.bf16 %v6648, %v6647
      %v6752 = vpack.c.bf16 %v6650, %v6649
      %v6753 = vpack.c.bf16 %v6652, %v6651
      %v6754 = vpack.c.bf16 %v6654, %v6653
      %v6755 = vpack.c.bf16 %v6656, %v6655
      %v6756 = vpack.c.bf16 %v6658, %v6657
      %v6757 = vpack.c.bf16 %v6660, %v6659
      %v6758 = vpack.c.bf16 %v6662, %v6661
      %6759 = vxpose.xlu0.c.b16.start [1/8] %v6663, 128
      %6760 = vxpose.xlu0.c.b16.cont [2/8] %v6664, 128
      %6761 = vxpose.xlu0.c.b16.cont [3/8] %v6665, 128
      %6762 = vxpose.xlu0.c.b16.cont [4/8] %v6666, 128
      %6763 = vxpose.xlu0.c.b16.cont [5/8] %v6667, 128
      %6764 = vxpose.xlu0.c.b16.cont [6/8] %v6668, 128
      %6765 = vxpose.xlu0.c.b16.cont [7/8] %v6669, 128
      %6766 = vxpose.xlu0.c.b16.end [8/8] %v6670, 128
      %v6767 = vpop.trf.xlu0
      %v6768 = vpop.trf.xlu0
      %v6769 = vpop.trf.xlu0
      %v6770 = vpop.trf.xlu0
      %v6771 = vpop.trf.xlu0
      %v6772 = vpop.trf.xlu0
      %v6773 = vpop.trf.xlu0
      %v6774 = vpop.trf.xlu0
      %6775 = vxpose.xlu0.c.b16.start [1/8] %v6671, 128
      %6776 = vxpose.xlu0.c.b16.cont [2/8] %v6672, 128
      %6777 = vxpose.xlu0.c.b16.cont [3/8] %v6673, 128
      %6778 = vxpose.xlu0.c.b16.cont [4/8] %v6674, 128
      %6779 = vxpose.xlu0.c.b16.cont [5/8] %v6675, 128
      %6780 = vxpose.xlu0.c.b16.cont [6/8] %v6676, 128
      %6781 = vxpose.xlu0.c.b16.cont [7/8] %v6677, 128
      %6782 = vxpose.xlu0.c.b16.end [8/8] %v6678, 128
      %v6783 = vpop.trf.xlu0
      %v6784 = vpop.trf.xlu0
      %v6785 = vpop.trf.xlu0
      %v6786 = vpop.trf.xlu0
      %v6787 = vpop.trf.xlu0
      %v6788 = vpop.trf.xlu0
      %v6789 = vpop.trf.xlu0
      %v6790 = vpop.trf.xlu0
      %6791 = vxpose.xlu0.c.b16.start [1/8] %v6679, 128
      %6792 = vxpose.xlu0.c.b16.cont [2/8] %v6680, 128
      %6793 = vxpose.xlu0.c.b16.cont [3/8] %v6681, 128
      %6794 = vxpose.xlu0.c.b16.cont [4/8] %v6682, 128
      %6795 = vxpose.xlu0.c.b16.cont [5/8] %v6683, 128
      %6796 = vxpose.xlu0.c.b16.cont [6/8] %v6684, 128
      %6797 = vxpose.xlu0.c.b16.cont [7/8] %v6685, 128
      %6798 = vxpose.xlu0.c.b16.end [8/8] %v6686, 128
      %v6799 = vpop.trf.xlu0
      %v6800 = vpop.trf.xlu0
      %v6801 = vpop.trf.xlu0
      %v6802 = vpop.trf.xlu0
      %v6803 = vpop.trf.xlu0
      %v6804 = vpop.trf.xlu0
      %v6805 = vpop.trf.xlu0
      %v6806 = vpop.trf.xlu0
      %6807 = vxpose.xlu0.c.b16.start [1/8] %v6687, 128
      %6808 = vxpose.xlu0.c.b16.cont [2/8] %v6688, 128
      %6809 = vxpose.xlu0.c.b16.cont [3/8] %v6689, 128
      %6810 = vxpose.xlu0.c.b16.cont [4/8] %v6690, 128
      %6811 = vxpose.xlu0.c.b16.cont [5/8] %v6691, 128
      %6812 = vxpose.xlu0.c.b16.cont [6/8] %v6692, 128
      %6813 = vxpose.xlu0.c.b16.cont [7/8] %v6693, 128
      %6814 = vxpose.xlu0.c.b16.end [8/8] %v6694, 128
      %v6815 = vpop.trf.xlu0
      %v6816 = vpop.trf.xlu0
      %v6817 = vpop.trf.xlu0
      %v6818 = vpop.trf.xlu0
      %v6819 = vpop.trf.xlu0
      %v6820 = vpop.trf.xlu0
      %v6821 = vpop.trf.xlu0
      %v6822 = vpop.trf.xlu0
      %6823 = vxpose.xlu0.c.b16.start [1/8] %v6695, 128
      %6824 = vxpose.xlu0.c.b16.cont [2/8] %v6696, 128
      %6825 = vxpose.xlu0.c.b16.cont [3/8] %v6697, 128
      %6826 = vxpose.xlu0.c.b16.cont [4/8] %v6698, 128
      %6827 = vxpose.xlu0.c.b16.cont [5/8] %v6699, 128
      %6828 = vxpose.xlu0.c.b16.cont [6/8] %v6700, 128
      %6829 = vxpose.xlu0.c.b16.cont [7/8] %v6701, 128
      %6830 = vxpose.xlu0.c.b16.end [8/8] %v6702, 128
      %v6831 = vpop.trf.xlu0
      %v6832 = vpop.trf.xlu0
      %v6833 = vpop.trf.xlu0
      %v6834 = vpop.trf.xlu0
      %v6835 = vpop.trf.xlu0
      %v6836 = vpop.trf.xlu0
      %v6837 = vpop.trf.xlu0
      %v6838 = vpop.trf.xlu0
      %6839 = vxpose.xlu0.c.b16.start [1/8] %v6703, 128
      %6840 = vxpose.xlu0.c.b16.cont [2/8] %v6704, 128
      %6841 = vxpose.xlu0.c.b16.cont [3/8] %v6705, 128
      %6842 = vxpose.xlu0.c.b16.cont [4/8] %v6706, 128
      %6843 = vxpose.xlu0.c.b16.cont [5/8] %v6707, 128
      %6844 = vxpose.xlu0.c.b16.cont [6/8] %v6708, 128
      %6845 = vxpose.xlu0.c.b16.cont [7/8] %v6709, 128
      %6846 = vxpose.xlu0.c.b16.end [8/8] %v6710, 128
      %v6847 = vpop.trf.xlu0
      %v6848 = vpop.trf.xlu0
      %v6849 = vpop.trf.xlu0
      %v6850 = vpop.trf.xlu0
      %v6851 = vpop.trf.xlu0
      %v6852 = vpop.trf.xlu0
      %v6853 = vpop.trf.xlu0
      %v6854 = vpop.trf.xlu0
      %6855 = vxpose.xlu0.c.b16.start [1/8] %v6711, 128
      %6856 = vxpose.xlu0.c.b16.cont [2/8] %v6712, 128
      %6857 = vxpose.xlu0.c.b16.cont [3/8] %v6713, 128
      %6858 = vxpose.xlu0.c.b16.cont [4/8] %v6714, 128
      %6859 = vxpose.xlu0.c.b16.cont [5/8] %v6715, 128
      %6860 = vxpose.xlu0.c.b16.cont [6/8] %v6716, 128
      %6861 = vxpose.xlu0.c.b16.cont [7/8] %v6717, 128
      %6862 = vxpose.xlu0.c.b16.end [8/8] %v6718, 128
      %v6863 = vpop.trf.xlu0
      %v6864 = vpop.trf.xlu0
      %v6865 = vpop.trf.xlu0
      %v6866 = vpop.trf.xlu0
      %v6867 = vpop.trf.xlu0
      %v6868 = vpop.trf.xlu0
      %v6869 = vpop.trf.xlu0
      %v6870 = vpop.trf.xlu0
      %6871 = vxpose.xlu0.c.b16.start [1/8] %v6719, 128
      %6872 = vxpose.xlu0.c.b16.cont [2/8] %v6720, 128
      %6873 = vxpose.xlu0.c.b16.cont [3/8] %v6721, 128
      %6874 = vxpose.xlu0.c.b16.cont [4/8] %v6722, 128
      %6875 = vxpose.xlu0.c.b16.cont [5/8] %v6723, 128
      %6876 = vxpose.xlu0.c.b16.cont [6/8] %v6724, 128
      %6877 = vxpose.xlu0.c.b16.cont [7/8] %v6725, 128
      %6878 = vxpose.xlu0.c.b16.end [8/8] %v6726, 128
      %v6879 = vpop.trf.xlu0
      %v6880 = vpop.trf.xlu0
      %v6881 = vpop.trf.xlu0
      %v6882 = vpop.trf.xlu0
      %v6883 = vpop.trf.xlu0
      %v6884 = vpop.trf.xlu0
      %v6885 = vpop.trf.xlu0
      %v6886 = vpop.trf.xlu0
      %6887 = vxpose.xlu0.c.b16.start [1/8] %v6727, 128
      %6888 = vxpose.xlu0.c.b16.cont [2/8] %v6728, 128
      %6889 = vxpose.xlu0.c.b16.cont [3/8] %v6729, 128
      %6890 = vxpose.xlu0.c.b16.cont [4/8] %v6730, 128
      %6891 = vxpose.xlu0.c.b16.cont [5/8] %v6731, 128
      %6892 = vxpose.xlu0.c.b16.cont [6/8] %v6732, 128
      %6893 = vxpose.xlu0.c.b16.cont [7/8] %v6733, 128
      %6894 = vxpose.xlu0.c.b16.end [8/8] %v6734, 128
      %v6895 = vpop.trf.xlu0
      %v6896 = vpop.trf.xlu0
      %v6897 = vpop.trf.xlu0
      %v6898 = vpop.trf.xlu0
      %v6899 = vpop.trf.xlu0
      %v6900 = vpop.trf.xlu0
      %v6901 = vpop.trf.xlu0
      %v6902 = vpop.trf.xlu0
      %6903 = vxpose.xlu0.c.b16.start [1/8] %v6735, 128
      %6904 = vxpose.xlu0.c.b16.cont [2/8] %v6736, 128
      %6905 = vxpose.xlu0.c.b16.cont [3/8] %v6737, 128
      %6906 = vxpose.xlu0.c.b16.cont [4/8] %v6738, 128
      %6907 = vxpose.xlu0.c.b16.cont [5/8] %v6739, 128
      %6908 = vxpose.xlu0.c.b16.cont [6/8] %v6740, 128
      %6909 = vxpose.xlu0.c.b16.cont [7/8] %v6741, 128
      %6910 = vxpose.xlu0.c.b16.end [8/8] %v6742, 128
      %v6911 = vpop.trf.xlu0
      %v6912 = vpop.trf.xlu0
      %v6913 = vpop.trf.xlu0
      %v6914 = vpop.trf.xlu0
      %v6915 = vpop.trf.xlu0
      %v6916 = vpop.trf.xlu0
      %v6917 = vpop.trf.xlu0
      %v6918 = vpop.trf.xlu0
      %6919 = vxpose.xlu0.c.b16.start [1/8] %v6743, 128
      %6920 = vxpose.xlu0.c.b16.cont [2/8] %v6744, 128
      %6921 = vxpose.xlu0.c.b16.cont [3/8] %v6745, 128
      %6922 = vxpose.xlu0.c.b16.cont [4/8] %v6746, 128
      %6923 = vxpose.xlu0.c.b16.cont [5/8] %v6747, 128
      %6924 = vxpose.xlu0.c.b16.cont [6/8] %v6748, 128
      %6925 = vxpose.xlu0.c.b16.cont [7/8] %v6749, 128
      %6926 = vxpose.xlu0.c.b16.end [8/8] %v6750, 128
      %v6927 = vpop.trf.xlu0
      %v6928 = vpop.trf.xlu0
      %v6929 = vpop.trf.xlu0
      %v6930 = vpop.trf.xlu0
      %v6931 = vpop.trf.xlu0
      %v6932 = vpop.trf.xlu0
      %v6933 = vpop.trf.xlu0
      %v6934 = vpop.trf.xlu0
      %6935 = vxpose.xlu0.c.b16.start [1/8] %v6751, 128
      %6936 = vxpose.xlu0.c.b16.cont [2/8] %v6752, 128
      %6937 = vxpose.xlu0.c.b16.cont [3/8] %v6753, 128
      %6938 = vxpose.xlu0.c.b16.cont [4/8] %v6754, 128
      %6939 = vxpose.xlu0.c.b16.cont [5/8] %v6755, 128
      %6940 = vxpose.xlu0.c.b16.cont [6/8] %v6756, 128
      %6941 = vxpose.xlu0.c.b16.cont [7/8] %v6757, 128
      %6942 = vxpose.xlu0.c.b16.end [8/8] %v6758, 128
      %v6943 = vpop.trf.xlu0
      %v6944 = vpop.trf.xlu0
      %v6945 = vpop.trf.xlu0
      %v6946 = vpop.trf.xlu0
      %v6947 = vpop.trf.xlu0
      %v6948 = vpop.trf.xlu0
      %v6949 = vpop.trf.xlu0
      %v6950 = vpop.trf.xlu0
      %6951 = vmatpush.bf16.msra.mxu0 %v2282
      %6952 = vmatpush.bf16.msra.mxu0 %v2278
      %6953 = vmatpush.bf16.msra.mxu0 %v2274
      %6954 = vmatpush.bf16.msra.mxu0 %v2270
      %6955 = vmatpush.bf16.msra.mxu0 %v2266
      %6956 = vmatpush.bf16.msra.mxu0 %v2262
      %6957 = vmatpush.bf16.msra.mxu0 %v2258
      %6958 = vmatpush.bf16.msra.mxu0 %v2254
      %6959 = vmatmul.bf16.gmra.mxu0 %v6767
      %v6960 = vpop.f32.mrf.mxu0
      %v6961 = vadd.f32 %v902, %v6960
      %v6962 = vpop.f32.mrf.mxu0
      %v6963 = vadd.f32 %v902, %v6962
      %6964 = vmatmul.bf16.gmra.mxu0 %v6768
      %v6965 = vpop.f32.mrf.mxu0
      %v6966 = vadd.f32 %v902, %v6965
      %v6967 = vpop.f32.mrf.mxu0
      %v6968 = vadd.f32 %v902, %v6967
      %6969 = vmatmul.bf16.gmra.mxu0 %v6769
      %v6970 = vpop.f32.mrf.mxu0
      %v6971 = vadd.f32 %v902, %v6970
      %v6972 = vpop.f32.mrf.mxu0
      %v6973 = vadd.f32 %v902, %v6972
      %6974 = vmatmul.bf16.gmra.mxu0 %v6770
      %v6975 = vpop.f32.mrf.mxu0
      %v6976 = vadd.f32 %v902, %v6975
      %v6977 = vpop.f32.mrf.mxu0
      %v6978 = vadd.f32 %v902, %v6977
      %6979 = vdwg.mxu0
      %6980 = vmatpush.bf16.msra.mxu0 %v2314
      %6981 = vmatpush.bf16.msra.mxu0 %v2310
      %6982 = vmatpush.bf16.msra.mxu0 %v2306
      %6983 = vmatpush.bf16.msra.mxu0 %v2302
      %6984 = vmatpush.bf16.msra.mxu0 %v2298
      %6985 = vmatpush.bf16.msra.mxu0 %v2294
      %6986 = vmatpush.bf16.msra.mxu0 %v2290
      %6987 = vmatpush.bf16.msra.mxu0 %v2286
      %6988 = vmatmul.bf16.gmra.mxu0 %v6783
      %v6989 = vpop.f32.mrf.mxu0
      %v6990 = vadd.f32 %v6961, %v6989
      %v6991 = vpop.f32.mrf.mxu0
      %v6992 = vadd.f32 %v6963, %v6991
      %6993 = vmatmul.bf16.gmra.mxu0 %v6784
      %v6994 = vpop.f32.mrf.mxu0
      %v6995 = vadd.f32 %v6966, %v6994
      %v6996 = vpop.f32.mrf.mxu0
      %v6997 = vadd.f32 %v6968, %v6996
      %6998 = vmatmul.bf16.gmra.mxu0 %v6785
      %v6999 = vpop.f32.mrf.mxu0
      %v7000 = vadd.f32 %v6971, %v6999
      %v7001 = vpop.f32.mrf.mxu0
      %v7002 = vadd.f32 %v6973, %v7001
      %7003 = vmatmul.bf16.gmra.mxu0 %v6786
      %v7004 = vpop.f32.mrf.mxu0
      %v7005 = vadd.f32 %v6976, %v7004
      %v7006 = vpop.f32.mrf.mxu0
      %v7007 = vadd.f32 %v6978, %v7006
      %7008 = vdwg.mxu0
      %7009 = vmatpush.bf16.msra.mxu0 %v2346
      %7010 = vmatpush.bf16.msra.mxu0 %v2342
      %7011 = vmatpush.bf16.msra.mxu0 %v2338
      %7012 = vmatpush.bf16.msra.mxu0 %v2334
      %7013 = vmatpush.bf16.msra.mxu0 %v2330
      %7014 = vmatpush.bf16.msra.mxu0 %v2326
      %7015 = vmatpush.bf16.msra.mxu0 %v2322
      %7016 = vmatpush.bf16.msra.mxu0 %v2318
      %7017 = vmatmul.bf16.gmra.mxu0 %v6799
      %v7018 = vpop.f32.mrf.mxu0
      %v7019 = vadd.f32 %v6990, %v7018
      %v7020 = vpop.f32.mrf.mxu0
      %v7021 = vadd.f32 %v6992, %v7020
      %7022 = vmatmul.bf16.gmra.mxu0 %v6800
      %v7023 = vpop.f32.mrf.mxu0
      %v7024 = vadd.f32 %v6995, %v7023
      %v7025 = vpop.f32.mrf.mxu0
      %v7026 = vadd.f32 %v6997, %v7025
      %7027 = vmatmul.bf16.gmra.mxu0 %v6801
      %v7028 = vpop.f32.mrf.mxu0
      %v7029 = vadd.f32 %v7000, %v7028
      %v7030 = vpop.f32.mrf.mxu0
      %v7031 = vadd.f32 %v7002, %v7030
      %7032 = vmatmul.bf16.gmra.mxu0 %v6802
      %v7033 = vpop.f32.mrf.mxu0
      %v7034 = vadd.f32 %v7005, %v7033
      %v7035 = vpop.f32.mrf.mxu0
      %v7036 = vadd.f32 %v7007, %v7035
      %7037 = vdwg.mxu0
      %7038 = vmatpush.bf16.msra.mxu0 %v2378
      %7039 = vmatpush.bf16.msra.mxu0 %v2374
      %7040 = vmatpush.bf16.msra.mxu0 %v2370
      %7041 = vmatpush.bf16.msra.mxu0 %v2366
      %7042 = vmatpush.bf16.msra.mxu0 %v2362
      %7043 = vmatpush.bf16.msra.mxu0 %v2358
      %7044 = vmatpush.bf16.msra.mxu0 %v2354
      %7045 = vmatpush.bf16.msra.mxu0 %v2350
      %7046 = vmatmul.bf16.gmra.mxu0 %v6815
      %v7047 = vpop.f32.mrf.mxu0
      %v7048 = vadd.f32 %v7019, %v7047
      %v7049 = vpop.f32.mrf.mxu0
      %v7050 = vadd.f32 %v7021, %v7049
      %7051 = vmatmul.bf16.gmra.mxu0 %v6816
      %v7052 = vpop.f32.mrf.mxu0
      %v7053 = vadd.f32 %v7024, %v7052
      %v7054 = vpop.f32.mrf.mxu0
      %v7055 = vadd.f32 %v7026, %v7054
      %7056 = vmatmul.bf16.gmra.mxu0 %v6817
      %v7057 = vpop.f32.mrf.mxu0
      %v7058 = vadd.f32 %v7029, %v7057
      %v7059 = vpop.f32.mrf.mxu0
      %v7060 = vadd.f32 %v7031, %v7059
      %7061 = vmatmul.bf16.gmra.mxu0 %v6818
      %v7062 = vpop.f32.mrf.mxu0
      %v7063 = vadd.f32 %v7034, %v7062
      %v7064 = vpop.f32.mrf.mxu0
      %v7065 = vadd.f32 %v7036, %v7064
      %7066 = vdwg.mxu0
      %7067 = vmatpush.bf16.msra.mxu0 %v2410
      %7068 = vmatpush.bf16.msra.mxu0 %v2406
      %7069 = vmatpush.bf16.msra.mxu0 %v2402
      %7070 = vmatpush.bf16.msra.mxu0 %v2398
      %7071 = vmatpush.bf16.msra.mxu0 %v2394
      %7072 = vmatpush.bf16.msra.mxu0 %v2390
      %7073 = vmatpush.bf16.msra.mxu0 %v2386
      %7074 = vmatpush.bf16.msra.mxu0 %v2382
      %7075 = vmatmul.bf16.gmra.mxu0 %v6831
      %v7076 = vpop.f32.mrf.mxu0
      %v7077 = vadd.f32 %v7048, %v7076
      %v7078 = vpop.f32.mrf.mxu0
      %v7079 = vadd.f32 %v7050, %v7078
      %7080 = vmatmul.bf16.gmra.mxu0 %v6832
      %v7081 = vpop.f32.mrf.mxu0
      %v7082 = vadd.f32 %v7053, %v7081
      %v7083 = vpop.f32.mrf.mxu0
      %v7084 = vadd.f32 %v7055, %v7083
      %7085 = vmatmul.bf16.gmra.mxu0 %v6833
      %v7086 = vpop.f32.mrf.mxu0
      %v7087 = vadd.f32 %v7058, %v7086
      %v7088 = vpop.f32.mrf.mxu0
      %v7089 = vadd.f32 %v7060, %v7088
      %7090 = vmatmul.bf16.gmra.mxu0 %v6834
      %v7091 = vpop.f32.mrf.mxu0
      %v7092 = vadd.f32 %v7063, %v7091
      %v7093 = vpop.f32.mrf.mxu0
      %v7094 = vadd.f32 %v7065, %v7093
      %7095 = vdwg.mxu0
      %7096 = vmatpush.bf16.msra.mxu0 %v2442
      %7097 = vmatpush.bf16.msra.mxu0 %v2438
      %7098 = vmatpush.bf16.msra.mxu0 %v2434
      %7099 = vmatpush.bf16.msra.mxu0 %v2430
      %7100 = vmatpush.bf16.msra.mxu0 %v2426
      %7101 = vmatpush.bf16.msra.mxu0 %v2422
      %7102 = vmatpush.bf16.msra.mxu0 %v2418
      %7103 = vmatpush.bf16.msra.mxu0 %v2414
      %7104 = vmatmul.bf16.gmra.mxu0 %v6847
      %v7105 = vpop.f32.mrf.mxu0
      %v7106 = vadd.f32 %v7077, %v7105
      %v7107 = vpop.f32.mrf.mxu0
      %v7108 = vadd.f32 %v7079, %v7107
      %7109 = vmatmul.bf16.gmra.mxu0 %v6848
      %v7110 = vpop.f32.mrf.mxu0
      %v7111 = vadd.f32 %v7082, %v7110
      %v7112 = vpop.f32.mrf.mxu0
      %v7113 = vadd.f32 %v7084, %v7112
      %7114 = vmatmul.bf16.gmra.mxu0 %v6849
      %v7115 = vpop.f32.mrf.mxu0
      %v7116 = vadd.f32 %v7087, %v7115
      %v7117 = vpop.f32.mrf.mxu0
      %v7118 = vadd.f32 %v7089, %v7117
      %7119 = vmatmul.bf16.gmra.mxu0 %v6850
      %v7120 = vpop.f32.mrf.mxu0
      %v7121 = vadd.f32 %v7092, %v7120
      %v7122 = vpop.f32.mrf.mxu0
      %v7123 = vadd.f32 %v7094, %v7122
      %7124 = vdwg.mxu0
      %7125 = vmatpush.bf16.msra.mxu0 %v2474
      %7126 = vmatpush.bf16.msra.mxu0 %v2470
      %7127 = vmatpush.bf16.msra.mxu0 %v2466
      %7128 = vmatpush.bf16.msra.mxu0 %v2462
      %7129 = vmatpush.bf16.msra.mxu0 %v2458
      %7130 = vmatpush.bf16.msra.mxu0 %v2454
      %7131 = vmatpush.bf16.msra.mxu0 %v2450
      %7132 = vmatpush.bf16.msra.mxu0 %v2446
      %7133 = vmatmul.bf16.gmra.mxu0 %v6863
      %v7134 = vpop.f32.mrf.mxu0
      %v7135 = vadd.f32 %v7106, %v7134
      %v7136 = vpop.f32.mrf.mxu0
      %v7137 = vadd.f32 %v7108, %v7136
      %7138 = vmatmul.bf16.gmra.mxu0 %v6864
      %v7139 = vpop.f32.mrf.mxu0
      %v7140 = vadd.f32 %v7111, %v7139
      %v7141 = vpop.f32.mrf.mxu0
      %v7142 = vadd.f32 %v7113, %v7141
      %7143 = vmatmul.bf16.gmra.mxu0 %v6865
      %v7144 = vpop.f32.mrf.mxu0
      %v7145 = vadd.f32 %v7116, %v7144
      %v7146 = vpop.f32.mrf.mxu0
      %v7147 = vadd.f32 %v7118, %v7146
      %7148 = vmatmul.bf16.gmra.mxu0 %v6866
      %v7149 = vpop.f32.mrf.mxu0
      %v7150 = vadd.f32 %v7121, %v7149
      %v7151 = vpop.f32.mrf.mxu0
      %v7152 = vadd.f32 %v7123, %v7151
      %7153 = vdwg.mxu0
      %7154 = vmatpush.bf16.msra.mxu0 %v2506
      %7155 = vmatpush.bf16.msra.mxu0 %v2502
      %7156 = vmatpush.bf16.msra.mxu0 %v2498
      %7157 = vmatpush.bf16.msra.mxu0 %v2494
      %7158 = vmatpush.bf16.msra.mxu0 %v2490
      %7159 = vmatpush.bf16.msra.mxu0 %v2486
      %7160 = vmatpush.bf16.msra.mxu0 %v2482
      %7161 = vmatpush.bf16.msra.mxu0 %v2478
      %7162 = vmatmul.bf16.gmra.mxu0 %v6879
      %v7163 = vpop.f32.mrf.mxu0
      %v7164 = vadd.f32 %v7135, %v7163
      %v7165 = vpop.f32.mrf.mxu0
      %v7166 = vadd.f32 %v7137, %v7165
      %7167 = vmatmul.bf16.gmra.mxu0 %v6880
      %v7168 = vpop.f32.mrf.mxu0
      %v7169 = vadd.f32 %v7140, %v7168
      %v7170 = vpop.f32.mrf.mxu0
      %v7171 = vadd.f32 %v7142, %v7170
      %7172 = vmatmul.bf16.gmra.mxu0 %v6881
      %v7173 = vpop.f32.mrf.mxu0
      %v7174 = vadd.f32 %v7145, %v7173
      %v7175 = vpop.f32.mrf.mxu0
      %v7176 = vadd.f32 %v7147, %v7175
      %7177 = vmatmul.bf16.gmra.mxu0 %v6882
      %v7178 = vpop.f32.mrf.mxu0
      %v7179 = vadd.f32 %v7150, %v7178
      %v7180 = vpop.f32.mrf.mxu0
      %v7181 = vadd.f32 %v7152, %v7180
      %7182 = vdwg.mxu0
      %7183 = vmatpush.bf16.msra.mxu0 %v2538
      %7184 = vmatpush.bf16.msra.mxu0 %v2534
      %7185 = vmatpush.bf16.msra.mxu0 %v2530
      %7186 = vmatpush.bf16.msra.mxu0 %v2526
      %7187 = vmatpush.bf16.msra.mxu0 %v2522
      %7188 = vmatpush.bf16.msra.mxu0 %v2518
      %7189 = vmatpush.bf16.msra.mxu0 %v2514
      %7190 = vmatpush.bf16.msra.mxu0 %v2510
      %7191 = vmatmul.bf16.gmra.mxu0 %v6895
      %v7192 = vpop.f32.mrf.mxu0
      %v7193 = vadd.f32 %v7164, %v7192
      %v7194 = vpop.f32.mrf.mxu0
      %v7195 = vadd.f32 %v7166, %v7194
      %7196 = vmatmul.bf16.gmra.mxu0 %v6896
      %v7197 = vpop.f32.mrf.mxu0
      %v7198 = vadd.f32 %v7169, %v7197
      %v7199 = vpop.f32.mrf.mxu0
      %v7200 = vadd.f32 %v7171, %v7199
      %7201 = vmatmul.bf16.gmra.mxu0 %v6897
      %v7202 = vpop.f32.mrf.mxu0
      %v7203 = vadd.f32 %v7174, %v7202
      %v7204 = vpop.f32.mrf.mxu0
      %v7205 = vadd.f32 %v7176, %v7204
      %7206 = vmatmul.bf16.gmra.mxu0 %v6898
      %v7207 = vpop.f32.mrf.mxu0
      %v7208 = vadd.f32 %v7179, %v7207
      %v7209 = vpop.f32.mrf.mxu0
      %v7210 = vadd.f32 %v7181, %v7209
      %7211 = vdwg.mxu0
      %7212 = vmatpush.bf16.msra.mxu0 %v2570
      %7213 = vmatpush.bf16.msra.mxu0 %v2566
      %7214 = vmatpush.bf16.msra.mxu0 %v2562
      %7215 = vmatpush.bf16.msra.mxu0 %v2558
      %7216 = vmatpush.bf16.msra.mxu0 %v2554
      %7217 = vmatpush.bf16.msra.mxu0 %v2550
      %7218 = vmatpush.bf16.msra.mxu0 %v2546
      %7219 = vmatpush.bf16.msra.mxu0 %v2542
      %7220 = vmatmul.bf16.gmra.mxu0 %v6911
      %v7221 = vpop.f32.mrf.mxu0
      %v7222 = vadd.f32 %v7193, %v7221
      %v7223 = vpop.f32.mrf.mxu0
      %v7224 = vadd.f32 %v7195, %v7223
      %7225 = vmatmul.bf16.gmra.mxu0 %v6912
      %v7226 = vpop.f32.mrf.mxu0
      %v7227 = vadd.f32 %v7198, %v7226
      %v7228 = vpop.f32.mrf.mxu0
      %v7229 = vadd.f32 %v7200, %v7228
      %7230 = vmatmul.bf16.gmra.mxu0 %v6913
      %v7231 = vpop.f32.mrf.mxu0
      %v7232 = vadd.f32 %v7203, %v7231
      %v7233 = vpop.f32.mrf.mxu0
      %v7234 = vadd.f32 %v7205, %v7233
      %7235 = vmatmul.bf16.gmra.mxu0 %v6914
      %v7236 = vpop.f32.mrf.mxu0
      %v7237 = vadd.f32 %v7208, %v7236
      %v7238 = vpop.f32.mrf.mxu0
      %v7239 = vadd.f32 %v7210, %v7238
      %7240 = vdwg.mxu0
      %7241 = vmatpush.bf16.msra.mxu0 %v2602
      %7242 = vmatpush.bf16.msra.mxu0 %v2598
      %7243 = vmatpush.bf16.msra.mxu0 %v2594
      %7244 = vmatpush.bf16.msra.mxu0 %v2590
      %7245 = vmatpush.bf16.msra.mxu0 %v2586
      %7246 = vmatpush.bf16.msra.mxu0 %v2582
      %7247 = vmatpush.bf16.msra.mxu0 %v2578
      %7248 = vmatpush.bf16.msra.mxu0 %v2574
      %7249 = vmatmul.bf16.gmra.mxu0 %v6927
      %v7250 = vpop.f32.mrf.mxu0
      %v7251 = vadd.f32 %v7222, %v7250
      %v7252 = vpop.f32.mrf.mxu0
      %v7253 = vadd.f32 %v7224, %v7252
      %7254 = vmatmul.bf16.gmra.mxu0 %v6928
      %v7255 = vpop.f32.mrf.mxu0
      %v7256 = vadd.f32 %v7227, %v7255
      %v7257 = vpop.f32.mrf.mxu0
      %v7258 = vadd.f32 %v7229, %v7257
      %7259 = vmatmul.bf16.gmra.mxu0 %v6929
      %v7260 = vpop.f32.mrf.mxu0
      %v7261 = vadd.f32 %v7232, %v7260
      %v7262 = vpop.f32.mrf.mxu0
      %v7263 = vadd.f32 %v7234, %v7262
      %7264 = vmatmul.bf16.gmra.mxu0 %v6930
      %v7265 = vpop.f32.mrf.mxu0
      %v7266 = vadd.f32 %v7237, %v7265
      %v7267 = vpop.f32.mrf.mxu0
      %v7268 = vadd.f32 %v7239, %v7267
      %7269 = vdwg.mxu0
      %7270 = vmatpush.bf16.msra.mxu0 %v2634
      %7271 = vmatpush.bf16.msra.mxu0 %v2630
      %7272 = vmatpush.bf16.msra.mxu0 %v2626
      %7273 = vmatpush.bf16.msra.mxu0 %v2622
      %7274 = vmatpush.bf16.msra.mxu0 %v2618
      %7275 = vmatpush.bf16.msra.mxu0 %v2614
      %7276 = vmatpush.bf16.msra.mxu0 %v2610
      %7277 = vmatpush.bf16.msra.mxu0 %v2606
      %7278 = vmatmul.bf16.gmra.mxu0 %v6943
      %v7279 = vpop.f32.mrf.mxu0
      %v7280 = vadd.f32 %v7251, %v7279
      %v7281 = vpop.f32.mrf.mxu0
      %v7282 = vadd.f32 %v7253, %v7281
      %7283 = vmatmul.bf16.gmra.mxu0 %v6944
      %v7284 = vpop.f32.mrf.mxu0
      %v7285 = vadd.f32 %v7256, %v7284
      %v7286 = vpop.f32.mrf.mxu0
      %v7287 = vadd.f32 %v7258, %v7286
      %7288 = vmatmul.bf16.gmra.mxu0 %v6945
      %v7289 = vpop.f32.mrf.mxu0
      %v7290 = vadd.f32 %v7261, %v7289
      %v7291 = vpop.f32.mrf.mxu0
      %v7292 = vadd.f32 %v7263, %v7291
      %7293 = vmatmul.bf16.gmra.mxu0 %v6946
      %v7294 = vpop.f32.mrf.mxu0
      %v7295 = vadd.f32 %v7266, %v7294
      %v7296 = vpop.f32.mrf.mxu0
      %v7297 = vadd.f32 %v7268, %v7296
      %7298 = vdwg.mxu0
      %7299 = vmatpush.bf16.msra.mxu0 %v2283
      %7300 = vmatpush.bf16.msra.mxu0 %v2279
      %7301 = vmatpush.bf16.msra.mxu0 %v2275
      %7302 = vmatpush.bf16.msra.mxu0 %v2271
      %7303 = vmatpush.bf16.msra.mxu0 %v2267
      %7304 = vmatpush.bf16.msra.mxu0 %v2263
      %7305 = vmatpush.bf16.msra.mxu0 %v2259
      %7306 = vmatpush.bf16.msra.mxu0 %v2255
      %7307 = vmatmul.bf16.gmra.mxu0 %v6767
      %v7308 = vpop.f32.mrf.mxu0
      %v7309 = vadd.f32 %v903, %v7308
      %v7310 = vpop.f32.mrf.mxu0
      %v7311 = vadd.f32 %v903, %v7310
      %7312 = vmatmul.bf16.gmra.mxu0 %v6768
      %v7313 = vpop.f32.mrf.mxu0
      %v7314 = vadd.f32 %v903, %v7313
      %v7315 = vpop.f32.mrf.mxu0
      %v7316 = vadd.f32 %v903, %v7315
      %7317 = vmatmul.bf16.gmra.mxu0 %v6769
      %v7318 = vpop.f32.mrf.mxu0
      %v7319 = vadd.f32 %v903, %v7318
      %v7320 = vpop.f32.mrf.mxu0
      %v7321 = vadd.f32 %v903, %v7320
      %7322 = vmatmul.bf16.gmra.mxu0 %v6770
      %v7323 = vpop.f32.mrf.mxu0
      %v7324 = vadd.f32 %v903, %v7323
      %v7325 = vpop.f32.mrf.mxu0
      %v7326 = vadd.f32 %v903, %v7325
      %7327 = vdwg.mxu0
      %7328 = vmatpush.bf16.msra.mxu0 %v2315
      %7329 = vmatpush.bf16.msra.mxu0 %v2311
      %7330 = vmatpush.bf16.msra.mxu0 %v2307
      %7331 = vmatpush.bf16.msra.mxu0 %v2303
      %7332 = vmatpush.bf16.msra.mxu0 %v2299
      %7333 = vmatpush.bf16.msra.mxu0 %v2295
      %7334 = vmatpush.bf16.msra.mxu0 %v2291
      %7335 = vmatpush.bf16.msra.mxu0 %v2287
      %7336 = vmatmul.bf16.gmra.mxu0 %v6783
      %v7337 = vpop.f32.mrf.mxu0
      %v7338 = vadd.f32 %v7309, %v7337
      %v7339 = vpop.f32.mrf.mxu0
      %v7340 = vadd.f32 %v7311, %v7339
      %7341 = vmatmul.bf16.gmra.mxu0 %v6784
      %v7342 = vpop.f32.mrf.mxu0
      %v7343 = vadd.f32 %v7314, %v7342
      %v7344 = vpop.f32.mrf.mxu0
      %v7345 = vadd.f32 %v7316, %v7344
      %7346 = vmatmul.bf16.gmra.mxu0 %v6785
      %v7347 = vpop.f32.mrf.mxu0
      %v7348 = vadd.f32 %v7319, %v7347
      %v7349 = vpop.f32.mrf.mxu0
      %v7350 = vadd.f32 %v7321, %v7349
      %7351 = vmatmul.bf16.gmra.mxu0 %v6786
      %v7352 = vpop.f32.mrf.mxu0
      %v7353 = vadd.f32 %v7324, %v7352
      %v7354 = vpop.f32.mrf.mxu0
      %v7355 = vadd.f32 %v7326, %v7354
      %7356 = vdwg.mxu0
      %7357 = vmatpush.bf16.msra.mxu0 %v2347
      %7358 = vmatpush.bf16.msra.mxu0 %v2343
      %7359 = vmatpush.bf16.msra.mxu0 %v2339
      %7360 = vmatpush.bf16.msra.mxu0 %v2335
      %7361 = vmatpush.bf16.msra.mxu0 %v2331
      %7362 = vmatpush.bf16.msra.mxu0 %v2327
      %7363 = vmatpush.bf16.msra.mxu0 %v2323
      %7364 = vmatpush.bf16.msra.mxu0 %v2319
      %7365 = vmatmul.bf16.gmra.mxu0 %v6799
      %v7366 = vpop.f32.mrf.mxu0
      %v7367 = vadd.f32 %v7338, %v7366
      %v7368 = vpop.f32.mrf.mxu0
      %v7369 = vadd.f32 %v7340, %v7368
      %7370 = vmatmul.bf16.gmra.mxu0 %v6800
      %v7371 = vpop.f32.mrf.mxu0
      %v7372 = vadd.f32 %v7343, %v7371
      %v7373 = vpop.f32.mrf.mxu0
      %v7374 = vadd.f32 %v7345, %v7373
      %7375 = vmatmul.bf16.gmra.mxu0 %v6801
      %v7376 = vpop.f32.mrf.mxu0
      %v7377 = vadd.f32 %v7348, %v7376
      %v7378 = vpop.f32.mrf.mxu0
      %v7379 = vadd.f32 %v7350, %v7378
      %7380 = vmatmul.bf16.gmra.mxu0 %v6802
      %v7381 = vpop.f32.mrf.mxu0
      %v7382 = vadd.f32 %v7353, %v7381
      %v7383 = vpop.f32.mrf.mxu0
      %v7384 = vadd.f32 %v7355, %v7383
      %7385 = vdwg.mxu0
      %7386 = vmatpush.bf16.msra.mxu0 %v2379
      %7387 = vmatpush.bf16.msra.mxu0 %v2375
      %7388 = vmatpush.bf16.msra.mxu0 %v2371
      %7389 = vmatpush.bf16.msra.mxu0 %v2367
      %7390 = vmatpush.bf16.msra.mxu0 %v2363
      %7391 = vmatpush.bf16.msra.mxu0 %v2359
      %7392 = vmatpush.bf16.msra.mxu0 %v2355
      %7393 = vmatpush.bf16.msra.mxu0 %v2351
      %7394 = vmatmul.bf16.gmra.mxu0 %v6815
      %v7395 = vpop.f32.mrf.mxu0
      %v7396 = vadd.f32 %v7367, %v7395
      %v7397 = vpop.f32.mrf.mxu0
      %v7398 = vadd.f32 %v7369, %v7397
      %7399 = vmatmul.bf16.gmra.mxu0 %v6816
      %v7400 = vpop.f32.mrf.mxu0
      %v7401 = vadd.f32 %v7372, %v7400
      %v7402 = vpop.f32.mrf.mxu0
      %v7403 = vadd.f32 %v7374, %v7402
      %7404 = vmatmul.bf16.gmra.mxu0 %v6817
      %v7405 = vpop.f32.mrf.mxu0
      %v7406 = vadd.f32 %v7377, %v7405
      %v7407 = vpop.f32.mrf.mxu0
      %v7408 = vadd.f32 %v7379, %v7407
      %7409 = vmatmul.bf16.gmra.mxu0 %v6818
      %v7410 = vpop.f32.mrf.mxu0
      %v7411 = vadd.f32 %v7382, %v7410
      %v7412 = vpop.f32.mrf.mxu0
      %v7413 = vadd.f32 %v7384, %v7412
      %7414 = vdwg.mxu0
      %7415 = vmatpush.bf16.msra.mxu0 %v2411
      %7416 = vmatpush.bf16.msra.mxu0 %v2407
      %7417 = vmatpush.bf16.msra.mxu0 %v2403
      %7418 = vmatpush.bf16.msra.mxu0 %v2399
      %7419 = vmatpush.bf16.msra.mxu0 %v2395
      %7420 = vmatpush.bf16.msra.mxu0 %v2391
      %7421 = vmatpush.bf16.msra.mxu0 %v2387
      %7422 = vmatpush.bf16.msra.mxu0 %v2383
      %7423 = vmatmul.bf16.gmra.mxu0 %v6831
      %v7424 = vpop.f32.mrf.mxu0
      %v7425 = vadd.f32 %v7396, %v7424
      %v7426 = vpop.f32.mrf.mxu0
      %v7427 = vadd.f32 %v7398, %v7426
      %7428 = vmatmul.bf16.gmra.mxu0 %v6832
      %v7429 = vpop.f32.mrf.mxu0
      %v7430 = vadd.f32 %v7401, %v7429
      %v7431 = vpop.f32.mrf.mxu0
      %v7432 = vadd.f32 %v7403, %v7431
      %7433 = vmatmul.bf16.gmra.mxu0 %v6833
      %v7434 = vpop.f32.mrf.mxu0
      %v7435 = vadd.f32 %v7406, %v7434
      %v7436 = vpop.f32.mrf.mxu0
      %v7437 = vadd.f32 %v7408, %v7436
      %7438 = vmatmul.bf16.gmra.mxu0 %v6834
      %v7439 = vpop.f32.mrf.mxu0
      %v7440 = vadd.f32 %v7411, %v7439
      %v7441 = vpop.f32.mrf.mxu0
      %v7442 = vadd.f32 %v7413, %v7441
      %7443 = vdwg.mxu0
      %7444 = vmatpush.bf16.msra.mxu0 %v2443
      %7445 = vmatpush.bf16.msra.mxu0 %v2439
      %7446 = vmatpush.bf16.msra.mxu0 %v2435
      %7447 = vmatpush.bf16.msra.mxu0 %v2431
      %7448 = vmatpush.bf16.msra.mxu0 %v2427
      %7449 = vmatpush.bf16.msra.mxu0 %v2423
      %7450 = vmatpush.bf16.msra.mxu0 %v2419
      %7451 = vmatpush.bf16.msra.mxu0 %v2415
      %7452 = vmatmul.bf16.gmra.mxu0 %v6847
      %v7453 = vpop.f32.mrf.mxu0
      %v7454 = vadd.f32 %v7425, %v7453
      %v7455 = vpop.f32.mrf.mxu0
      %v7456 = vadd.f32 %v7427, %v7455
      %7457 = vmatmul.bf16.gmra.mxu0 %v6848
      %v7458 = vpop.f32.mrf.mxu0
      %v7459 = vadd.f32 %v7430, %v7458
      %v7460 = vpop.f32.mrf.mxu0
      %v7461 = vadd.f32 %v7432, %v7460
      %7462 = vmatmul.bf16.gmra.mxu0 %v6849
      %v7463 = vpop.f32.mrf.mxu0
      %v7464 = vadd.f32 %v7435, %v7463
      %v7465 = vpop.f32.mrf.mxu0
      %v7466 = vadd.f32 %v7437, %v7465
      %7467 = vmatmul.bf16.gmra.mxu0 %v6850
      %v7468 = vpop.f32.mrf.mxu0
      %v7469 = vadd.f32 %v7440, %v7468
      %v7470 = vpop.f32.mrf.mxu0
      %v7471 = vadd.f32 %v7442, %v7470
      %7472 = vdwg.mxu0
      %7473 = vmatpush.bf16.msra.mxu0 %v2475
      %7474 = vmatpush.bf16.msra.mxu0 %v2471
      %7475 = vmatpush.bf16.msra.mxu0 %v2467
      %7476 = vmatpush.bf16.msra.mxu0 %v2463
      %7477 = vmatpush.bf16.msra.mxu0 %v2459
      %7478 = vmatpush.bf16.msra.mxu0 %v2455
      %7479 = vmatpush.bf16.msra.mxu0 %v2451
      %7480 = vmatpush.bf16.msra.mxu0 %v2447
      %7481 = vmatmul.bf16.gmra.mxu0 %v6863
      %v7482 = vpop.f32.mrf.mxu0
      %v7483 = vadd.f32 %v7454, %v7482
      %v7484 = vpop.f32.mrf.mxu0
      %v7485 = vadd.f32 %v7456, %v7484
      %7486 = vmatmul.bf16.gmra.mxu0 %v6864
      %v7487 = vpop.f32.mrf.mxu0
      %v7488 = vadd.f32 %v7459, %v7487
      %v7489 = vpop.f32.mrf.mxu0
      %v7490 = vadd.f32 %v7461, %v7489
      %7491 = vmatmul.bf16.gmra.mxu0 %v6865
      %v7492 = vpop.f32.mrf.mxu0
      %v7493 = vadd.f32 %v7464, %v7492
      %v7494 = vpop.f32.mrf.mxu0
      %v7495 = vadd.f32 %v7466, %v7494
      %7496 = vmatmul.bf16.gmra.mxu0 %v6866
      %v7497 = vpop.f32.mrf.mxu0
      %v7498 = vadd.f32 %v7469, %v7497
      %v7499 = vpop.f32.mrf.mxu0
      %v7500 = vadd.f32 %v7471, %v7499
      %7501 = vdwg.mxu0
      %7502 = vmatpush.bf16.msra.mxu0 %v2507
      %7503 = vmatpush.bf16.msra.mxu0 %v2503
      %7504 = vmatpush.bf16.msra.mxu0 %v2499
      %7505 = vmatpush.bf16.msra.mxu0 %v2495
      %7506 = vmatpush.bf16.msra.mxu0 %v2491
      %7507 = vmatpush.bf16.msra.mxu0 %v2487
      %7508 = vmatpush.bf16.msra.mxu0 %v2483
      %7509 = vmatpush.bf16.msra.mxu0 %v2479
      %7510 = vmatmul.bf16.gmra.mxu0 %v6879
      %v7511 = vpop.f32.mrf.mxu0
      %v7512 = vadd.f32 %v7483, %v7511
      %v7513 = vpop.f32.mrf.mxu0
      %v7514 = vadd.f32 %v7485, %v7513
      %7515 = vmatmul.bf16.gmra.mxu0 %v6880
      %v7516 = vpop.f32.mrf.mxu0
      %v7517 = vadd.f32 %v7488, %v7516
      %v7518 = vpop.f32.mrf.mxu0
      %v7519 = vadd.f32 %v7490, %v7518
      %7520 = vmatmul.bf16.gmra.mxu0 %v6881
      %v7521 = vpop.f32.mrf.mxu0
      %v7522 = vadd.f32 %v7493, %v7521
      %v7523 = vpop.f32.mrf.mxu0
      %v7524 = vadd.f32 %v7495, %v7523
      %7525 = vmatmul.bf16.gmra.mxu0 %v6882
      %v7526 = vpop.f32.mrf.mxu0
      %v7527 = vadd.f32 %v7498, %v7526
      %v7528 = vpop.f32.mrf.mxu0
      %v7529 = vadd.f32 %v7500, %v7528
      %7530 = vdwg.mxu0
      %7531 = vmatpush.bf16.msra.mxu0 %v2539
      %7532 = vmatpush.bf16.msra.mxu0 %v2535
      %7533 = vmatpush.bf16.msra.mxu0 %v2531
      %7534 = vmatpush.bf16.msra.mxu0 %v2527
      %7535 = vmatpush.bf16.msra.mxu0 %v2523
      %7536 = vmatpush.bf16.msra.mxu0 %v2519
      %7537 = vmatpush.bf16.msra.mxu0 %v2515
      %7538 = vmatpush.bf16.msra.mxu0 %v2511
      %7539 = vmatmul.bf16.gmra.mxu0 %v6895
      %v7540 = vpop.f32.mrf.mxu0
      %v7541 = vadd.f32 %v7512, %v7540
      %v7542 = vpop.f32.mrf.mxu0
      %v7543 = vadd.f32 %v7514, %v7542
      %7544 = vmatmul.bf16.gmra.mxu0 %v6896
      %v7545 = vpop.f32.mrf.mxu0
      %v7546 = vadd.f32 %v7517, %v7545
      %v7547 = vpop.f32.mrf.mxu0
      %v7548 = vadd.f32 %v7519, %v7547
      %7549 = vmatmul.bf16.gmra.mxu0 %v6897
      %v7550 = vpop.f32.mrf.mxu0
      %v7551 = vadd.f32 %v7522, %v7550
      %v7552 = vpop.f32.mrf.mxu0
      %v7553 = vadd.f32 %v7524, %v7552
      %7554 = vmatmul.bf16.gmra.mxu0 %v6898
      %v7555 = vpop.f32.mrf.mxu0
      %v7556 = vadd.f32 %v7527, %v7555
      %v7557 = vpop.f32.mrf.mxu0
      %v7558 = vadd.f32 %v7529, %v7557
      %7559 = vdwg.mxu0
      %7560 = vmatpush.bf16.msra.mxu0 %v2571
      %7561 = vmatpush.bf16.msra.mxu0 %v2567
      %7562 = vmatpush.bf16.msra.mxu0 %v2563
      %7563 = vmatpush.bf16.msra.mxu0 %v2559
      %7564 = vmatpush.bf16.msra.mxu0 %v2555
      %7565 = vmatpush.bf16.msra.mxu0 %v2551
      %7566 = vmatpush.bf16.msra.mxu0 %v2547
      %7567 = vmatpush.bf16.msra.mxu0 %v2543
      %7568 = vmatmul.bf16.gmra.mxu0 %v6911
      %v7569 = vpop.f32.mrf.mxu0
      %v7570 = vadd.f32 %v7541, %v7569
      %v7571 = vpop.f32.mrf.mxu0
      %v7572 = vadd.f32 %v7543, %v7571
      %7573 = vmatmul.bf16.gmra.mxu0 %v6912
      %v7574 = vpop.f32.mrf.mxu0
      %v7575 = vadd.f32 %v7546, %v7574
      %v7576 = vpop.f32.mrf.mxu0
      %v7577 = vadd.f32 %v7548, %v7576
      %7578 = vmatmul.bf16.gmra.mxu0 %v6913
      %v7579 = vpop.f32.mrf.mxu0
      %v7580 = vadd.f32 %v7551, %v7579
      %v7581 = vpop.f32.mrf.mxu0
      %v7582 = vadd.f32 %v7553, %v7581
      %7583 = vmatmul.bf16.gmra.mxu0 %v6914
      %v7584 = vpop.f32.mrf.mxu0
      %v7585 = vadd.f32 %v7556, %v7584
      %v7586 = vpop.f32.mrf.mxu0
      %v7587 = vadd.f32 %v7558, %v7586
      %7588 = vdwg.mxu0
      %7589 = vmatpush.bf16.msra.mxu0 %v2603
      %7590 = vmatpush.bf16.msra.mxu0 %v2599
      %7591 = vmatpush.bf16.msra.mxu0 %v2595
      %7592 = vmatpush.bf16.msra.mxu0 %v2591
      %7593 = vmatpush.bf16.msra.mxu0 %v2587
      %7594 = vmatpush.bf16.msra.mxu0 %v2583
      %7595 = vmatpush.bf16.msra.mxu0 %v2579
      %7596 = vmatpush.bf16.msra.mxu0 %v2575
      %7597 = vmatmul.bf16.gmra.mxu0 %v6927
      %v7598 = vpop.f32.mrf.mxu0
      %v7599 = vadd.f32 %v7570, %v7598
      %v7600 = vpop.f32.mrf.mxu0
      %v7601 = vadd.f32 %v7572, %v7600
      %7602 = vmatmul.bf16.gmra.mxu0 %v6928
      %v7603 = vpop.f32.mrf.mxu0
      %v7604 = vadd.f32 %v7575, %v7603
      %v7605 = vpop.f32.mrf.mxu0
      %v7606 = vadd.f32 %v7577, %v7605
      %7607 = vmatmul.bf16.gmra.mxu0 %v6929
      %v7608 = vpop.f32.mrf.mxu0
      %v7609 = vadd.f32 %v7580, %v7608
      %v7610 = vpop.f32.mrf.mxu0
      %v7611 = vadd.f32 %v7582, %v7610
      %7612 = vmatmul.bf16.gmra.mxu0 %v6930
      %v7613 = vpop.f32.mrf.mxu0
      %v7614 = vadd.f32 %v7585, %v7613
      %v7615 = vpop.f32.mrf.mxu0
      %v7616 = vadd.f32 %v7587, %v7615
      %7617 = vdwg.mxu0
      %7618 = vmatpush.bf16.msra.mxu0 %v2635
      %7619 = vmatpush.bf16.msra.mxu0 %v2631
      %7620 = vmatpush.bf16.msra.mxu0 %v2627
      %7621 = vmatpush.bf16.msra.mxu0 %v2623
      %7622 = vmatpush.bf16.msra.mxu0 %v2619
      %7623 = vmatpush.bf16.msra.mxu0 %v2615
      %7624 = vmatpush.bf16.msra.mxu0 %v2611
      %7625 = vmatpush.bf16.msra.mxu0 %v2607
      %7626 = vmatmul.bf16.gmra.mxu0 %v6943
      %v7627 = vpop.f32.mrf.mxu0
      %v7628 = vadd.f32 %v7599, %v7627
      %v7629 = vpop.f32.mrf.mxu0
      %v7630 = vadd.f32 %v7601, %v7629
      %7631 = vmatmul.bf16.gmra.mxu0 %v6944
      %v7632 = vpop.f32.mrf.mxu0
      %v7633 = vadd.f32 %v7604, %v7632
      %v7634 = vpop.f32.mrf.mxu0
      %v7635 = vadd.f32 %v7606, %v7634
      %7636 = vmatmul.bf16.gmra.mxu0 %v6945
      %v7637 = vpop.f32.mrf.mxu0
      %v7638 = vadd.f32 %v7609, %v7637
      %v7639 = vpop.f32.mrf.mxu0
      %v7640 = vadd.f32 %v7611, %v7639
      %7641 = vmatmul.bf16.gmra.mxu0 %v6946
      %v7642 = vpop.f32.mrf.mxu0
      %v7643 = vadd.f32 %v7614, %v7642
      %v7644 = vpop.f32.mrf.mxu0
      %v7645 = vadd.f32 %v7616, %v7644
      %7646 = vdwg.mxu0
      %7647 = vmatpush.bf16.msra.mxu0 %v2284
      %7648 = vmatpush.bf16.msra.mxu0 %v2280
      %7649 = vmatpush.bf16.msra.mxu0 %v2276
      %7650 = vmatpush.bf16.msra.mxu0 %v2272
      %7651 = vmatpush.bf16.msra.mxu0 %v2268
      %7652 = vmatpush.bf16.msra.mxu0 %v2264
      %7653 = vmatpush.bf16.msra.mxu0 %v2260
      %7654 = vmatpush.bf16.msra.mxu0 %v2256
      %7655 = vmatmul.bf16.gmra.mxu0 %v6767
      %v7656 = vpop.f32.mrf.mxu0
      %v7657 = vadd.f32 %v904, %v7656
      %v7658 = vpop.f32.mrf.mxu0
      %v7659 = vadd.f32 %v904, %v7658
      %7660 = vmatmul.bf16.gmra.mxu0 %v6768
      %v7661 = vpop.f32.mrf.mxu0
      %v7662 = vadd.f32 %v904, %v7661
      %v7663 = vpop.f32.mrf.mxu0
      %v7664 = vadd.f32 %v904, %v7663
      %7665 = vmatmul.bf16.gmra.mxu0 %v6769
      %v7666 = vpop.f32.mrf.mxu0
      %v7667 = vadd.f32 %v904, %v7666
      %v7668 = vpop.f32.mrf.mxu0
      %v7669 = vadd.f32 %v904, %v7668
      %7670 = vmatmul.bf16.gmra.mxu0 %v6770
      %v7671 = vpop.f32.mrf.mxu0
      %v7672 = vadd.f32 %v904, %v7671
      %v7673 = vpop.f32.mrf.mxu0
      %v7674 = vadd.f32 %v904, %v7673
      %7675 = vdwg.mxu0
      %7676 = vmatpush.bf16.msra.mxu0 %v2316
      %7677 = vmatpush.bf16.msra.mxu0 %v2312
      %7678 = vmatpush.bf16.msra.mxu0 %v2308
      %7679 = vmatpush.bf16.msra.mxu0 %v2304
      %7680 = vmatpush.bf16.msra.mxu0 %v2300
      %7681 = vmatpush.bf16.msra.mxu0 %v2296
      %7682 = vmatpush.bf16.msra.mxu0 %v2292
      %7683 = vmatpush.bf16.msra.mxu0 %v2288
      %7684 = vmatmul.bf16.gmra.mxu0 %v6783
      %v7685 = vpop.f32.mrf.mxu0
      %v7686 = vadd.f32 %v7657, %v7685
      %v7687 = vpop.f32.mrf.mxu0
      %v7688 = vadd.f32 %v7659, %v7687
      %7689 = vmatmul.bf16.gmra.mxu0 %v6784
      %v7690 = vpop.f32.mrf.mxu0
      %v7691 = vadd.f32 %v7662, %v7690
      %v7692 = vpop.f32.mrf.mxu0
      %v7693 = vadd.f32 %v7664, %v7692
      %7694 = vmatmul.bf16.gmra.mxu0 %v6785
      %v7695 = vpop.f32.mrf.mxu0
      %v7696 = vadd.f32 %v7667, %v7695
      %v7697 = vpop.f32.mrf.mxu0
      %v7698 = vadd.f32 %v7669, %v7697
      %7699 = vmatmul.bf16.gmra.mxu0 %v6786
      %v7700 = vpop.f32.mrf.mxu0
      %v7701 = vadd.f32 %v7672, %v7700
      %v7702 = vpop.f32.mrf.mxu0
      %v7703 = vadd.f32 %v7674, %v7702
      %7704 = vdwg.mxu0
      %7705 = vmatpush.bf16.msra.mxu0 %v2348
      %7706 = vmatpush.bf16.msra.mxu0 %v2344
      %7707 = vmatpush.bf16.msra.mxu0 %v2340
      %7708 = vmatpush.bf16.msra.mxu0 %v2336
      %7709 = vmatpush.bf16.msra.mxu0 %v2332
      %7710 = vmatpush.bf16.msra.mxu0 %v2328
      %7711 = vmatpush.bf16.msra.mxu0 %v2324
      %7712 = vmatpush.bf16.msra.mxu0 %v2320
      %7713 = vmatmul.bf16.gmra.mxu0 %v6799
      %v7714 = vpop.f32.mrf.mxu0
      %v7715 = vadd.f32 %v7686, %v7714
      %v7716 = vpop.f32.mrf.mxu0
      %v7717 = vadd.f32 %v7688, %v7716
      %7718 = vmatmul.bf16.gmra.mxu0 %v6800
      %v7719 = vpop.f32.mrf.mxu0
      %v7720 = vadd.f32 %v7691, %v7719
      %v7721 = vpop.f32.mrf.mxu0
      %v7722 = vadd.f32 %v7693, %v7721
      %7723 = vmatmul.bf16.gmra.mxu0 %v6801
      %v7724 = vpop.f32.mrf.mxu0
      %v7725 = vadd.f32 %v7696, %v7724
      %v7726 = vpop.f32.mrf.mxu0
      %v7727 = vadd.f32 %v7698, %v7726
      %7728 = vmatmul.bf16.gmra.mxu0 %v6802
      %v7729 = vpop.f32.mrf.mxu0
      %v7730 = vadd.f32 %v7701, %v7729
      %v7731 = vpop.f32.mrf.mxu0
      %v7732 = vadd.f32 %v7703, %v7731
      %7733 = vdwg.mxu0
      %7734 = vmatpush.bf16.msra.mxu0 %v2380
      %7735 = vmatpush.bf16.msra.mxu0 %v2376
      %7736 = vmatpush.bf16.msra.mxu0 %v2372
      %7737 = vmatpush.bf16.msra.mxu0 %v2368
      %7738 = vmatpush.bf16.msra.mxu0 %v2364
      %7739 = vmatpush.bf16.msra.mxu0 %v2360
      %7740 = vmatpush.bf16.msra.mxu0 %v2356
      %7741 = vmatpush.bf16.msra.mxu0 %v2352
      %7742 = vmatmul.bf16.gmra.mxu0 %v6815
      %v7743 = vpop.f32.mrf.mxu0
      %v7744 = vadd.f32 %v7715, %v7743
      %v7745 = vpop.f32.mrf.mxu0
      %v7746 = vadd.f32 %v7717, %v7745
      %7747 = vmatmul.bf16.gmra.mxu0 %v6816
      %v7748 = vpop.f32.mrf.mxu0
      %v7749 = vadd.f32 %v7720, %v7748
      %v7750 = vpop.f32.mrf.mxu0
      %v7751 = vadd.f32 %v7722, %v7750
      %7752 = vmatmul.bf16.gmra.mxu0 %v6817
      %v7753 = vpop.f32.mrf.mxu0
      %v7754 = vadd.f32 %v7725, %v7753
      %v7755 = vpop.f32.mrf.mxu0
      %v7756 = vadd.f32 %v7727, %v7755
      %7757 = vmatmul.bf16.gmra.mxu0 %v6818
      %v7758 = vpop.f32.mrf.mxu0
      %v7759 = vadd.f32 %v7730, %v7758
      %v7760 = vpop.f32.mrf.mxu0
      %v7761 = vadd.f32 %v7732, %v7760
      %7762 = vdwg.mxu0
      %7763 = vmatpush.bf16.msra.mxu0 %v2412
      %7764 = vmatpush.bf16.msra.mxu0 %v2408
      %7765 = vmatpush.bf16.msra.mxu0 %v2404
      %7766 = vmatpush.bf16.msra.mxu0 %v2400
      %7767 = vmatpush.bf16.msra.mxu0 %v2396
      %7768 = vmatpush.bf16.msra.mxu0 %v2392
      %7769 = vmatpush.bf16.msra.mxu0 %v2388
      %7770 = vmatpush.bf16.msra.mxu0 %v2384
      %7771 = vmatmul.bf16.gmra.mxu0 %v6831
      %v7772 = vpop.f32.mrf.mxu0
      %v7773 = vadd.f32 %v7744, %v7772
      %v7774 = vpop.f32.mrf.mxu0
      %v7775 = vadd.f32 %v7746, %v7774
      %7776 = vmatmul.bf16.gmra.mxu0 %v6832
      %v7777 = vpop.f32.mrf.mxu0
      %v7778 = vadd.f32 %v7749, %v7777
      %v7779 = vpop.f32.mrf.mxu0
      %v7780 = vadd.f32 %v7751, %v7779
      %7781 = vmatmul.bf16.gmra.mxu0 %v6833
      %v7782 = vpop.f32.mrf.mxu0
      %v7783 = vadd.f32 %v7754, %v7782
      %v7784 = vpop.f32.mrf.mxu0
      %v7785 = vadd.f32 %v7756, %v7784
      %7786 = vmatmul.bf16.gmra.mxu0 %v6834
      %v7787 = vpop.f32.mrf.mxu0
      %v7788 = vadd.f32 %v7759, %v7787
      %v7789 = vpop.f32.mrf.mxu0
      %v7790 = vadd.f32 %v7761, %v7789
      %7791 = vdwg.mxu0
      %7792 = vmatpush.bf16.msra.mxu0 %v2444
      %7793 = vmatpush.bf16.msra.mxu0 %v2440
      %7794 = vmatpush.bf16.msra.mxu0 %v2436
      %7795 = vmatpush.bf16.msra.mxu0 %v2432
      %7796 = vmatpush.bf16.msra.mxu0 %v2428
      %7797 = vmatpush.bf16.msra.mxu0 %v2424
      %7798 = vmatpush.bf16.msra.mxu0 %v2420
      %7799 = vmatpush.bf16.msra.mxu0 %v2416
      %7800 = vmatmul.bf16.gmra.mxu0 %v6847
      %v7801 = vpop.f32.mrf.mxu0
      %v7802 = vadd.f32 %v7773, %v7801
      %v7803 = vpop.f32.mrf.mxu0
      %v7804 = vadd.f32 %v7775, %v7803
      %7805 = vmatmul.bf16.gmra.mxu0 %v6848
      %v7806 = vpop.f32.mrf.mxu0
      %v7807 = vadd.f32 %v7778, %v7806
      %v7808 = vpop.f32.mrf.mxu0
      %v7809 = vadd.f32 %v7780, %v7808
      %7810 = vmatmul.bf16.gmra.mxu0 %v6849
      %v7811 = vpop.f32.mrf.mxu0
      %v7812 = vadd.f32 %v7783, %v7811
      %v7813 = vpop.f32.mrf.mxu0
      %v7814 = vadd.f32 %v7785, %v7813
      %7815 = vmatmul.bf16.gmra.mxu0 %v6850
      %v7816 = vpop.f32.mrf.mxu0
      %v7817 = vadd.f32 %v7788, %v7816
      %v7818 = vpop.f32.mrf.mxu0
      %v7819 = vadd.f32 %v7790, %v7818
      %7820 = vdwg.mxu0
      %7821 = vmatpush.bf16.msra.mxu0 %v2476
      %7822 = vmatpush.bf16.msra.mxu0 %v2472
      %7823 = vmatpush.bf16.msra.mxu0 %v2468
      %7824 = vmatpush.bf16.msra.mxu0 %v2464
      %7825 = vmatpush.bf16.msra.mxu0 %v2460
      %7826 = vmatpush.bf16.msra.mxu0 %v2456
      %7827 = vmatpush.bf16.msra.mxu0 %v2452
      %7828 = vmatpush.bf16.msra.mxu0 %v2448
      %7829 = vmatmul.bf16.gmra.mxu0 %v6863
      %v7830 = vpop.f32.mrf.mxu0
      %v7831 = vadd.f32 %v7802, %v7830
      %v7832 = vpop.f32.mrf.mxu0
      %v7833 = vadd.f32 %v7804, %v7832
      %7834 = vmatmul.bf16.gmra.mxu0 %v6864
      %v7835 = vpop.f32.mrf.mxu0
      %v7836 = vadd.f32 %v7807, %v7835
      %v7837 = vpop.f32.mrf.mxu0
      %v7838 = vadd.f32 %v7809, %v7837
      %7839 = vmatmul.bf16.gmra.mxu0 %v6865
      %v7840 = vpop.f32.mrf.mxu0
      %v7841 = vadd.f32 %v7812, %v7840
      %v7842 = vpop.f32.mrf.mxu0
      %v7843 = vadd.f32 %v7814, %v7842
      %7844 = vmatmul.bf16.gmra.mxu0 %v6866
      %v7845 = vpop.f32.mrf.mxu0
      %v7846 = vadd.f32 %v7817, %v7845
      %v7847 = vpop.f32.mrf.mxu0
      %v7848 = vadd.f32 %v7819, %v7847
      %7849 = vdwg.mxu0
      %7850 = vmatpush.bf16.msra.mxu0 %v2508
      %7851 = vmatpush.bf16.msra.mxu0 %v2504
      %7852 = vmatpush.bf16.msra.mxu0 %v2500
      %7853 = vmatpush.bf16.msra.mxu0 %v2496
      %7854 = vmatpush.bf16.msra.mxu0 %v2492
      %7855 = vmatpush.bf16.msra.mxu0 %v2488
      %7856 = vmatpush.bf16.msra.mxu0 %v2484
      %7857 = vmatpush.bf16.msra.mxu0 %v2480
      %7858 = vmatmul.bf16.gmra.mxu0 %v6879
      %v7859 = vpop.f32.mrf.mxu0
      %v7860 = vadd.f32 %v7831, %v7859
      %v7861 = vpop.f32.mrf.mxu0
      %v7862 = vadd.f32 %v7833, %v7861
      %7863 = vmatmul.bf16.gmra.mxu0 %v6880
      %v7864 = vpop.f32.mrf.mxu0
      %v7865 = vadd.f32 %v7836, %v7864
      %v7866 = vpop.f32.mrf.mxu0
      %v7867 = vadd.f32 %v7838, %v7866
      %7868 = vmatmul.bf16.gmra.mxu0 %v6881
      %v7869 = vpop.f32.mrf.mxu0
      %v7870 = vadd.f32 %v7841, %v7869
      %v7871 = vpop.f32.mrf.mxu0
      %v7872 = vadd.f32 %v7843, %v7871
      %7873 = vmatmul.bf16.gmra.mxu0 %v6882
      %v7874 = vpop.f32.mrf.mxu0
      %v7875 = vadd.f32 %v7846, %v7874
      %v7876 = vpop.f32.mrf.mxu0
      %v7877 = vadd.f32 %v7848, %v7876
      %7878 = vdwg.mxu0
      %7879 = vmatpush.bf16.msra.mxu0 %v2540
      %7880 = vmatpush.bf16.msra.mxu0 %v2536
      %7881 = vmatpush.bf16.msra.mxu0 %v2532
      %7882 = vmatpush.bf16.msra.mxu0 %v2528
      %7883 = vmatpush.bf16.msra.mxu0 %v2524
      %7884 = vmatpush.bf16.msra.mxu0 %v2520
      %7885 = vmatpush.bf16.msra.mxu0 %v2516
      %7886 = vmatpush.bf16.msra.mxu0 %v2512
      %7887 = vmatmul.bf16.gmra.mxu0 %v6895
      %v7888 = vpop.f32.mrf.mxu0
      %v7889 = vadd.f32 %v7860, %v7888
      %v7890 = vpop.f32.mrf.mxu0
      %v7891 = vadd.f32 %v7862, %v7890
      %7892 = vmatmul.bf16.gmra.mxu0 %v6896
      %v7893 = vpop.f32.mrf.mxu0
      %v7894 = vadd.f32 %v7865, %v7893
      %v7895 = vpop.f32.mrf.mxu0
      %v7896 = vadd.f32 %v7867, %v7895
      %7897 = vmatmul.bf16.gmra.mxu0 %v6897
      %v7898 = vpop.f32.mrf.mxu0
      %v7899 = vadd.f32 %v7870, %v7898
      %v7900 = vpop.f32.mrf.mxu0
      %v7901 = vadd.f32 %v7872, %v7900
      %7902 = vmatmul.bf16.gmra.mxu0 %v6898
      %v7903 = vpop.f32.mrf.mxu0
      %v7904 = vadd.f32 %v7875, %v7903
      %v7905 = vpop.f32.mrf.mxu0
      %v7906 = vadd.f32 %v7877, %v7905
      %7907 = vdwg.mxu0
      %7908 = vmatpush.bf16.msra.mxu0 %v2572
      %7909 = vmatpush.bf16.msra.mxu0 %v2568
      %7910 = vmatpush.bf16.msra.mxu0 %v2564
      %7911 = vmatpush.bf16.msra.mxu0 %v2560
      %7912 = vmatpush.bf16.msra.mxu0 %v2556
      %7913 = vmatpush.bf16.msra.mxu0 %v2552
      %7914 = vmatpush.bf16.msra.mxu0 %v2548
      %7915 = vmatpush.bf16.msra.mxu0 %v2544
      %7916 = vmatmul.bf16.gmra.mxu0 %v6911
      %v7917 = vpop.f32.mrf.mxu0
      %v7918 = vadd.f32 %v7889, %v7917
      %v7919 = vpop.f32.mrf.mxu0
      %v7920 = vadd.f32 %v7891, %v7919
      %7921 = vmatmul.bf16.gmra.mxu0 %v6912
      %v7922 = vpop.f32.mrf.mxu0
      %v7923 = vadd.f32 %v7894, %v7922
      %v7924 = vpop.f32.mrf.mxu0
      %v7925 = vadd.f32 %v7896, %v7924
      %7926 = vmatmul.bf16.gmra.mxu0 %v6913
      %v7927 = vpop.f32.mrf.mxu0
      %v7928 = vadd.f32 %v7899, %v7927
      %v7929 = vpop.f32.mrf.mxu0
      %v7930 = vadd.f32 %v7901, %v7929
      %7931 = vmatmul.bf16.gmra.mxu0 %v6914
      %v7932 = vpop.f32.mrf.mxu0
      %v7933 = vadd.f32 %v7904, %v7932
      %v7934 = vpop.f32.mrf.mxu0
      %v7935 = vadd.f32 %v7906, %v7934
      %7936 = vdwg.mxu0
      %7937 = vmatpush.bf16.msra.mxu0 %v2604
      %7938 = vmatpush.bf16.msra.mxu0 %v2600
      %7939 = vmatpush.bf16.msra.mxu0 %v2596
      %7940 = vmatpush.bf16.msra.mxu0 %v2592
      %7941 = vmatpush.bf16.msra.mxu0 %v2588
      %7942 = vmatpush.bf16.msra.mxu0 %v2584
      %7943 = vmatpush.bf16.msra.mxu0 %v2580
      %7944 = vmatpush.bf16.msra.mxu0 %v2576
      %7945 = vmatmul.bf16.gmra.mxu0 %v6927
      %v7946 = vpop.f32.mrf.mxu0
      %v7947 = vadd.f32 %v7918, %v7946
      %v7948 = vpop.f32.mrf.mxu0
      %v7949 = vadd.f32 %v7920, %v7948
      %7950 = vmatmul.bf16.gmra.mxu0 %v6928
      %v7951 = vpop.f32.mrf.mxu0
      %v7952 = vadd.f32 %v7923, %v7951
      %v7953 = vpop.f32.mrf.mxu0
      %v7954 = vadd.f32 %v7925, %v7953
      %7955 = vmatmul.bf16.gmra.mxu0 %v6929
      %v7956 = vpop.f32.mrf.mxu0
      %v7957 = vadd.f32 %v7928, %v7956
      %v7958 = vpop.f32.mrf.mxu0
      %v7959 = vadd.f32 %v7930, %v7958
      %7960 = vmatmul.bf16.gmra.mxu0 %v6930
      %v7961 = vpop.f32.mrf.mxu0
      %v7962 = vadd.f32 %v7933, %v7961
      %v7963 = vpop.f32.mrf.mxu0
      %v7964 = vadd.f32 %v7935, %v7963
      %7965 = vdwg.mxu0
      %7966 = vmatpush.bf16.msra.mxu0 %v2636
      %7967 = vmatpush.bf16.msra.mxu0 %v2632
      %7968 = vmatpush.bf16.msra.mxu0 %v2628
      %7969 = vmatpush.bf16.msra.mxu0 %v2624
      %7970 = vmatpush.bf16.msra.mxu0 %v2620
      %7971 = vmatpush.bf16.msra.mxu0 %v2616
      %7972 = vmatpush.bf16.msra.mxu0 %v2612
      %7973 = vmatpush.bf16.msra.mxu0 %v2608
      %7974 = vmatmul.bf16.gmra.mxu0 %v6943
      %v7975 = vpop.f32.mrf.mxu0
      %v7976 = vadd.f32 %v7947, %v7975
      %v7977 = vpop.f32.mrf.mxu0
      %v7978 = vadd.f32 %v7949, %v7977
      %7979 = vmatmul.bf16.gmra.mxu0 %v6944
      %v7980 = vpop.f32.mrf.mxu0
      %v7981 = vadd.f32 %v7952, %v7980
      %v7982 = vpop.f32.mrf.mxu0
      %v7983 = vadd.f32 %v7954, %v7982
      %7984 = vmatmul.bf16.gmra.mxu0 %v6945
      %v7985 = vpop.f32.mrf.mxu0
      %v7986 = vadd.f32 %v7957, %v7985
      %v7987 = vpop.f32.mrf.mxu0
      %v7988 = vadd.f32 %v7959, %v7987
      %7989 = vmatmul.bf16.gmra.mxu0 %v6946
      %v7990 = vpop.f32.mrf.mxu0
      %v7991 = vadd.f32 %v7962, %v7990
      %v7992 = vpop.f32.mrf.mxu0
      %v7993 = vadd.f32 %v7964, %v7992
      %7994 = vdwg.mxu0
      %7995 = vmatpush.bf16.msra.mxu0 %v2285
      %7996 = vmatpush.bf16.msra.mxu0 %v2281
      %7997 = vmatpush.bf16.msra.mxu0 %v2277
      %7998 = vmatpush.bf16.msra.mxu0 %v2273
      %7999 = vmatpush.bf16.msra.mxu0 %v2269
      %8000 = vmatpush.bf16.msra.mxu0 %v2265
      %8001 = vmatpush.bf16.msra.mxu0 %v2261
      %8002 = vmatpush.bf16.msra.mxu0 %v2257
      %8003 = vmatmul.bf16.gmra.mxu0 %v6767
      %v8004 = vpop.f32.mrf.mxu0
      %v8005 = vadd.f32 %v905, %v8004
      %v8006 = vpop.f32.mrf.mxu0
      %v8007 = vadd.f32 %v905, %v8006
      %8008 = vmatmul.bf16.gmra.mxu0 %v6768
      %v8009 = vpop.f32.mrf.mxu0
      %v8010 = vadd.f32 %v905, %v8009
      %v8011 = vpop.f32.mrf.mxu0
      %v8012 = vadd.f32 %v905, %v8011
      %8013 = vmatmul.bf16.gmra.mxu0 %v6769
      %v8014 = vpop.f32.mrf.mxu0
      %v8015 = vadd.f32 %v905, %v8014
      %v8016 = vpop.f32.mrf.mxu0
      %v8017 = vadd.f32 %v905, %v8016
      %8018 = vmatmul.bf16.gmra.mxu0 %v6770
      %v8019 = vpop.f32.mrf.mxu0
      %v8020 = vadd.f32 %v905, %v8019
      %v8021 = vpop.f32.mrf.mxu0
      %v8022 = vadd.f32 %v905, %v8021
      %8023 = vdwg.mxu0
      %8024 = vmatpush.bf16.msra.mxu0 %v2317
      %8025 = vmatpush.bf16.msra.mxu0 %v2313
      %8026 = vmatpush.bf16.msra.mxu0 %v2309
      %8027 = vmatpush.bf16.msra.mxu0 %v2305
      %8028 = vmatpush.bf16.msra.mxu0 %v2301
      %8029 = vmatpush.bf16.msra.mxu0 %v2297
      %8030 = vmatpush.bf16.msra.mxu0 %v2293
      %8031 = vmatpush.bf16.msra.mxu0 %v2289
      %8032 = vmatmul.bf16.gmra.mxu0 %v6783
      %v8033 = vpop.f32.mrf.mxu0
      %v8034 = vadd.f32 %v8005, %v8033
      %v8035 = vpop.f32.mrf.mxu0
      %v8036 = vadd.f32 %v8007, %v8035
      %8037 = vmatmul.bf16.gmra.mxu0 %v6784
      %v8038 = vpop.f32.mrf.mxu0
      %v8039 = vadd.f32 %v8010, %v8038
      %v8040 = vpop.f32.mrf.mxu0
      %v8041 = vadd.f32 %v8012, %v8040
      %8042 = vmatmul.bf16.gmra.mxu0 %v6785
      %v8043 = vpop.f32.mrf.mxu0
      %v8044 = vadd.f32 %v8015, %v8043
      %v8045 = vpop.f32.mrf.mxu0
      %v8046 = vadd.f32 %v8017, %v8045
      %8047 = vmatmul.bf16.gmra.mxu0 %v6786
      %v8048 = vpop.f32.mrf.mxu0
      %v8049 = vadd.f32 %v8020, %v8048
      %v8050 = vpop.f32.mrf.mxu0
      %v8051 = vadd.f32 %v8022, %v8050
      %8052 = vdwg.mxu0
      %8053 = vmatpush.bf16.msra.mxu0 %v2349
      %8054 = vmatpush.bf16.msra.mxu0 %v2345
      %8055 = vmatpush.bf16.msra.mxu0 %v2341
      %8056 = vmatpush.bf16.msra.mxu0 %v2337
      %8057 = vmatpush.bf16.msra.mxu0 %v2333
      %8058 = vmatpush.bf16.msra.mxu0 %v2329
      %8059 = vmatpush.bf16.msra.mxu0 %v2325
      %8060 = vmatpush.bf16.msra.mxu0 %v2321
      %8061 = vmatmul.bf16.gmra.mxu0 %v6799
      %v8062 = vpop.f32.mrf.mxu0
      %v8063 = vadd.f32 %v8034, %v8062
      %v8064 = vpop.f32.mrf.mxu0
      %v8065 = vadd.f32 %v8036, %v8064
      %8066 = vmatmul.bf16.gmra.mxu0 %v6800
      %v8067 = vpop.f32.mrf.mxu0
      %v8068 = vadd.f32 %v8039, %v8067
      %v8069 = vpop.f32.mrf.mxu0
      %v8070 = vadd.f32 %v8041, %v8069
      %8071 = vmatmul.bf16.gmra.mxu0 %v6801
      %v8072 = vpop.f32.mrf.mxu0
      %v8073 = vadd.f32 %v8044, %v8072
      %v8074 = vpop.f32.mrf.mxu0
      %v8075 = vadd.f32 %v8046, %v8074
      %8076 = vmatmul.bf16.gmra.mxu0 %v6802
      %v8077 = vpop.f32.mrf.mxu0
      %v8078 = vadd.f32 %v8049, %v8077
      %v8079 = vpop.f32.mrf.mxu0
      %v8080 = vadd.f32 %v8051, %v8079
      %8081 = vdwg.mxu0
      %8082 = vmatpush.bf16.msra.mxu0 %v2381
      %8083 = vmatpush.bf16.msra.mxu0 %v2377
      %8084 = vmatpush.bf16.msra.mxu0 %v2373
      %8085 = vmatpush.bf16.msra.mxu0 %v2369
      %8086 = vmatpush.bf16.msra.mxu0 %v2365
      %8087 = vmatpush.bf16.msra.mxu0 %v2361
      %8088 = vmatpush.bf16.msra.mxu0 %v2357
      %8089 = vmatpush.bf16.msra.mxu0 %v2353
      %8090 = vmatmul.bf16.gmra.mxu0 %v6815
      %v8091 = vpop.f32.mrf.mxu0
      %v8092 = vadd.f32 %v8063, %v8091
      %v8093 = vpop.f32.mrf.mxu0
      %v8094 = vadd.f32 %v8065, %v8093
      %8095 = vmatmul.bf16.gmra.mxu0 %v6816
      %v8096 = vpop.f32.mrf.mxu0
      %v8097 = vadd.f32 %v8068, %v8096
      %v8098 = vpop.f32.mrf.mxu0
      %v8099 = vadd.f32 %v8070, %v8098
      %8100 = vmatmul.bf16.gmra.mxu0 %v6817
      %v8101 = vpop.f32.mrf.mxu0
      %v8102 = vadd.f32 %v8073, %v8101
      %v8103 = vpop.f32.mrf.mxu0
      %v8104 = vadd.f32 %v8075, %v8103
      %8105 = vmatmul.bf16.gmra.mxu0 %v6818
      %v8106 = vpop.f32.mrf.mxu0
      %v8107 = vadd.f32 %v8078, %v8106
      %v8108 = vpop.f32.mrf.mxu0
      %v8109 = vadd.f32 %v8080, %v8108
      %8110 = vdwg.mxu0
      %8111 = vmatpush.bf16.msra.mxu0 %v2413
      %8112 = vmatpush.bf16.msra.mxu0 %v2409
      %8113 = vmatpush.bf16.msra.mxu0 %v2405
      %8114 = vmatpush.bf16.msra.mxu0 %v2401
      %8115 = vmatpush.bf16.msra.mxu0 %v2397
      %8116 = vmatpush.bf16.msra.mxu0 %v2393
      %8117 = vmatpush.bf16.msra.mxu0 %v2389
      %8118 = vmatpush.bf16.msra.mxu0 %v2385
      %8119 = vmatmul.bf16.gmra.mxu0 %v6831
      %v8120 = vpop.f32.mrf.mxu0
      %v8121 = vadd.f32 %v8092, %v8120
      %v8122 = vpop.f32.mrf.mxu0
      %v8123 = vadd.f32 %v8094, %v8122
      %8124 = vmatmul.bf16.gmra.mxu0 %v6832
      %v8125 = vpop.f32.mrf.mxu0
      %v8126 = vadd.f32 %v8097, %v8125
      %v8127 = vpop.f32.mrf.mxu0
      %v8128 = vadd.f32 %v8099, %v8127
      %8129 = vmatmul.bf16.gmra.mxu0 %v6833
      %v8130 = vpop.f32.mrf.mxu0
      %v8131 = vadd.f32 %v8102, %v8130
      %v8132 = vpop.f32.mrf.mxu0
      %v8133 = vadd.f32 %v8104, %v8132
      %8134 = vmatmul.bf16.gmra.mxu0 %v6834
      %v8135 = vpop.f32.mrf.mxu0
      %v8136 = vadd.f32 %v8107, %v8135
      %v8137 = vpop.f32.mrf.mxu0
      %v8138 = vadd.f32 %v8109, %v8137
      %8139 = vdwg.mxu0
      %8140 = vmatpush.bf16.msra.mxu0 %v2445
      %8141 = vmatpush.bf16.msra.mxu0 %v2441
      %8142 = vmatpush.bf16.msra.mxu0 %v2437
      %8143 = vmatpush.bf16.msra.mxu0 %v2433
      %8144 = vmatpush.bf16.msra.mxu0 %v2429
      %8145 = vmatpush.bf16.msra.mxu0 %v2425
      %8146 = vmatpush.bf16.msra.mxu0 %v2421
      %8147 = vmatpush.bf16.msra.mxu0 %v2417
      %8148 = vmatmul.bf16.gmra.mxu0 %v6847
      %v8149 = vpop.f32.mrf.mxu0
      %v8150 = vadd.f32 %v8121, %v8149
      %v8151 = vpop.f32.mrf.mxu0
      %v8152 = vadd.f32 %v8123, %v8151
      %8153 = vmatmul.bf16.gmra.mxu0 %v6848
      %v8154 = vpop.f32.mrf.mxu0
      %v8155 = vadd.f32 %v8126, %v8154
      %v8156 = vpop.f32.mrf.mxu0
      %v8157 = vadd.f32 %v8128, %v8156
      %8158 = vmatmul.bf16.gmra.mxu0 %v6849
      %v8159 = vpop.f32.mrf.mxu0
      %v8160 = vadd.f32 %v8131, %v8159
      %v8161 = vpop.f32.mrf.mxu0
      %v8162 = vadd.f32 %v8133, %v8161
      %8163 = vmatmul.bf16.gmra.mxu0 %v6850
      %v8164 = vpop.f32.mrf.mxu0
      %v8165 = vadd.f32 %v8136, %v8164
      %v8166 = vpop.f32.mrf.mxu0
      %v8167 = vadd.f32 %v8138, %v8166
      %8168 = vdwg.mxu0
      %8169 = vmatpush.bf16.msra.mxu0 %v2477
      %8170 = vmatpush.bf16.msra.mxu0 %v2473
      %8171 = vmatpush.bf16.msra.mxu0 %v2469
      %8172 = vmatpush.bf16.msra.mxu0 %v2465
      %8173 = vmatpush.bf16.msra.mxu0 %v2461
      %8174 = vmatpush.bf16.msra.mxu0 %v2457
      %8175 = vmatpush.bf16.msra.mxu0 %v2453
      %8176 = vmatpush.bf16.msra.mxu0 %v2449
      %8177 = vmatmul.bf16.gmra.mxu0 %v6863
      %v8178 = vpop.f32.mrf.mxu0
      %v8179 = vadd.f32 %v8150, %v8178
      %v8180 = vpop.f32.mrf.mxu0
      %v8181 = vadd.f32 %v8152, %v8180
      %8182 = vmatmul.bf16.gmra.mxu0 %v6864
      %v8183 = vpop.f32.mrf.mxu0
      %v8184 = vadd.f32 %v8155, %v8183
      %v8185 = vpop.f32.mrf.mxu0
      %v8186 = vadd.f32 %v8157, %v8185
      %8187 = vmatmul.bf16.gmra.mxu0 %v6865
      %v8188 = vpop.f32.mrf.mxu0
      %v8189 = vadd.f32 %v8160, %v8188
      %v8190 = vpop.f32.mrf.mxu0
      %v8191 = vadd.f32 %v8162, %v8190
      %8192 = vmatmul.bf16.gmra.mxu0 %v6866
      %v8193 = vpop.f32.mrf.mxu0
      %v8194 = vadd.f32 %v8165, %v8193
      %v8195 = vpop.f32.mrf.mxu0
      %v8196 = vadd.f32 %v8167, %v8195
      %8197 = vdwg.mxu0
      %8198 = vmatpush.bf16.msra.mxu0 %v2509
      %8199 = vmatpush.bf16.msra.mxu0 %v2505
      %8200 = vmatpush.bf16.msra.mxu0 %v2501
      %8201 = vmatpush.bf16.msra.mxu0 %v2497
      %8202 = vmatpush.bf16.msra.mxu0 %v2493
      %8203 = vmatpush.bf16.msra.mxu0 %v2489
      %8204 = vmatpush.bf16.msra.mxu0 %v2485
      %8205 = vmatpush.bf16.msra.mxu0 %v2481
      %8206 = vmatmul.bf16.gmra.mxu0 %v6879
      %v8207 = vpop.f32.mrf.mxu0
      %v8208 = vadd.f32 %v8179, %v8207
      %v8209 = vpop.f32.mrf.mxu0
      %v8210 = vadd.f32 %v8181, %v8209
      %8211 = vmatmul.bf16.gmra.mxu0 %v6880
      %v8212 = vpop.f32.mrf.mxu0
      %v8213 = vadd.f32 %v8184, %v8212
      %v8214 = vpop.f32.mrf.mxu0
      %v8215 = vadd.f32 %v8186, %v8214
      %8216 = vmatmul.bf16.gmra.mxu0 %v6881
      %v8217 = vpop.f32.mrf.mxu0
      %v8218 = vadd.f32 %v8189, %v8217
      %v8219 = vpop.f32.mrf.mxu0
      %v8220 = vadd.f32 %v8191, %v8219
      %8221 = vmatmul.bf16.gmra.mxu0 %v6882
      %v8222 = vpop.f32.mrf.mxu0
      %v8223 = vadd.f32 %v8194, %v8222
      %v8224 = vpop.f32.mrf.mxu0
      %v8225 = vadd.f32 %v8196, %v8224
      %8226 = vdwg.mxu0
      %8227 = vmatpush.bf16.msra.mxu0 %v2541
      %8228 = vmatpush.bf16.msra.mxu0 %v2537
      %8229 = vmatpush.bf16.msra.mxu0 %v2533
      %8230 = vmatpush.bf16.msra.mxu0 %v2529
      %8231 = vmatpush.bf16.msra.mxu0 %v2525
      %8232 = vmatpush.bf16.msra.mxu0 %v2521
      %8233 = vmatpush.bf16.msra.mxu0 %v2517
      %8234 = vmatpush.bf16.msra.mxu0 %v2513
      %8235 = vmatmul.bf16.gmra.mxu0 %v6895
      %v8236 = vpop.f32.mrf.mxu0
      %v8237 = vadd.f32 %v8208, %v8236
      %v8238 = vpop.f32.mrf.mxu0
      %v8239 = vadd.f32 %v8210, %v8238
      %8240 = vmatmul.bf16.gmra.mxu0 %v6896
      %v8241 = vpop.f32.mrf.mxu0
      %v8242 = vadd.f32 %v8213, %v8241
      %v8243 = vpop.f32.mrf.mxu0
      %v8244 = vadd.f32 %v8215, %v8243
      %8245 = vmatmul.bf16.gmra.mxu0 %v6897
      %v8246 = vpop.f32.mrf.mxu0
      %v8247 = vadd.f32 %v8218, %v8246
      %v8248 = vpop.f32.mrf.mxu0
      %v8249 = vadd.f32 %v8220, %v8248
      %8250 = vmatmul.bf16.gmra.mxu0 %v6898
      %v8251 = vpop.f32.mrf.mxu0
      %v8252 = vadd.f32 %v8223, %v8251
      %v8253 = vpop.f32.mrf.mxu0
      %v8254 = vadd.f32 %v8225, %v8253
      %8255 = vdwg.mxu0
      %8256 = vmatpush.bf16.msra.mxu0 %v2573
      %8257 = vmatpush.bf16.msra.mxu0 %v2569
      %8258 = vmatpush.bf16.msra.mxu0 %v2565
      %8259 = vmatpush.bf16.msra.mxu0 %v2561
      %8260 = vmatpush.bf16.msra.mxu0 %v2557
      %8261 = vmatpush.bf16.msra.mxu0 %v2553
      %8262 = vmatpush.bf16.msra.mxu0 %v2549
      %8263 = vmatpush.bf16.msra.mxu0 %v2545
      %8264 = vmatmul.bf16.gmra.mxu0 %v6911
      %v8265 = vpop.f32.mrf.mxu0
      %v8266 = vadd.f32 %v8237, %v8265
      %v8267 = vpop.f32.mrf.mxu0
      %v8268 = vadd.f32 %v8239, %v8267
      %8269 = vmatmul.bf16.gmra.mxu0 %v6912
      %v8270 = vpop.f32.mrf.mxu0
      %v8271 = vadd.f32 %v8242, %v8270
      %v8272 = vpop.f32.mrf.mxu0
      %v8273 = vadd.f32 %v8244, %v8272
      %8274 = vmatmul.bf16.gmra.mxu0 %v6913
      %v8275 = vpop.f32.mrf.mxu0
      %v8276 = vadd.f32 %v8247, %v8275
      %v8277 = vpop.f32.mrf.mxu0
      %v8278 = vadd.f32 %v8249, %v8277
      %8279 = vmatmul.bf16.gmra.mxu0 %v6914
      %v8280 = vpop.f32.mrf.mxu0
      %v8281 = vadd.f32 %v8252, %v8280
      %v8282 = vpop.f32.mrf.mxu0
      %v8283 = vadd.f32 %v8254, %v8282
      %8284 = vdwg.mxu0
      %8285 = vmatpush.bf16.msra.mxu0 %v2605
      %8286 = vmatpush.bf16.msra.mxu0 %v2601
      %8287 = vmatpush.bf16.msra.mxu0 %v2597
      %8288 = vmatpush.bf16.msra.mxu0 %v2593
      %8289 = vmatpush.bf16.msra.mxu0 %v2589
      %8290 = vmatpush.bf16.msra.mxu0 %v2585
      %8291 = vmatpush.bf16.msra.mxu0 %v2581
      %8292 = vmatpush.bf16.msra.mxu0 %v2577
      %8293 = vmatmul.bf16.gmra.mxu0 %v6927
      %v8294 = vpop.f32.mrf.mxu0
      %v8295 = vadd.f32 %v8266, %v8294
      %v8296 = vpop.f32.mrf.mxu0
      %v8297 = vadd.f32 %v8268, %v8296
      %8298 = vmatmul.bf16.gmra.mxu0 %v6928
      %v8299 = vpop.f32.mrf.mxu0
      %v8300 = vadd.f32 %v8271, %v8299
      %v8301 = vpop.f32.mrf.mxu0
      %v8302 = vadd.f32 %v8273, %v8301
      %8303 = vmatmul.bf16.gmra.mxu0 %v6929
      %v8304 = vpop.f32.mrf.mxu0
      %v8305 = vadd.f32 %v8276, %v8304
      %v8306 = vpop.f32.mrf.mxu0
      %v8307 = vadd.f32 %v8278, %v8306
      %8308 = vmatmul.bf16.gmra.mxu0 %v6930
      %v8309 = vpop.f32.mrf.mxu0
      %v8310 = vadd.f32 %v8281, %v8309
      %v8311 = vpop.f32.mrf.mxu0
      %v8312 = vadd.f32 %v8283, %v8311
      %8313 = vdwg.mxu0
      %8314 = vmatpush.bf16.msra.mxu0 %v2637
      %8315 = vmatpush.bf16.msra.mxu0 %v2633
      %8316 = vmatpush.bf16.msra.mxu0 %v2629
      %8317 = vmatpush.bf16.msra.mxu0 %v2625
      %8318 = vmatpush.bf16.msra.mxu0 %v2621
      %8319 = vmatpush.bf16.msra.mxu0 %v2617
      %8320 = vmatpush.bf16.msra.mxu0 %v2613
      %8321 = vmatpush.bf16.msra.mxu0 %v2609
      %8322 = vmatmul.bf16.gmra.mxu0 %v6943
      %v8323 = vpop.f32.mrf.mxu0
      %v8324 = vadd.f32 %v8295, %v8323
      %v8325 = vpop.f32.mrf.mxu0
      %v8326 = vadd.f32 %v8297, %v8325
      %8327 = vmatmul.bf16.gmra.mxu0 %v6944
      %v8328 = vpop.f32.mrf.mxu0
      %v8329 = vadd.f32 %v8300, %v8328
      %v8330 = vpop.f32.mrf.mxu0
      %v8331 = vadd.f32 %v8302, %v8330
      %8332 = vmatmul.bf16.gmra.mxu0 %v6945
      %v8333 = vpop.f32.mrf.mxu0
      %v8334 = vadd.f32 %v8305, %v8333
      %v8335 = vpop.f32.mrf.mxu0
      %v8336 = vadd.f32 %v8307, %v8335
      %8337 = vmatmul.bf16.gmra.mxu0 %v6946
      %v8338 = vpop.f32.mrf.mxu0
      %v8339 = vadd.f32 %v8310, %v8338
      %v8340 = vpop.f32.mrf.mxu0
      %v8341 = vadd.f32 %v8312, %v8340
      %8342 = vdwg.mxu0
      %v8343 = vmax.f32 %v7280, 0.0
      %v8344 = vmax.f32 %v7628, 0.0
      %v8345 = vmax.f32 %v7976, 0.0
      %v8346 = vmax.f32 %v8324, 0.0
      %v8347 = vmax.f32 %v7282, 0.0
      %v8348 = vmax.f32 %v7630, 0.0
      %v8349 = vmax.f32 %v7978, 0.0
      %v8350 = vmax.f32 %v8326, 0.0
      %v8351 = vmax.f32 %v7285, 0.0
      %v8352 = vmax.f32 %v7633, 0.0
      %v8353 = vmax.f32 %v7981, 0.0
      %v8354 = vmax.f32 %v8329, 0.0
      %v8355 = vmax.f32 %v7287, 0.0
      %v8356 = vmax.f32 %v7635, 0.0
      %v8357 = vmax.f32 %v7983, 0.0
      %v8358 = vmax.f32 %v8331, 0.0
      %v8359 = vmax.f32 %v7290, 0.0
      %v8360 = vmax.f32 %v7638, 0.0
      %v8361 = vmax.f32 %v7986, 0.0
      %v8362 = vmax.f32 %v8334, 0.0
      %v8363 = vmax.f32 %v7292, 0.0
      %v8364 = vmax.f32 %v7640, 0.0
      %v8365 = vmax.f32 %v7988, 0.0
      %v8366 = vmax.f32 %v8336, 0.0
      %v8367 = vmax.f32 %v7295, 0.0
      %v8368 = vmax.f32 %v7643, 0.0
      %v8369 = vmax.f32 %v7991, 0.0
      %v8370 = vmax.f32 %v8339, 0.0
      %v8371 = vmax.f32 %v7297, 0.0
      %v8372 = vmax.f32 %v7645, 0.0
      %v8373 = vmax.f32 %v7993, 0.0
      %v8374 = vmax.f32 %v8341, 0.0
      %v8375 = vadd.f32 %v8343, %v8347
      %v8376 = vadd.f32 %v8375, %v8351
      %v8377 = vadd.f32 %v8376, %v8355
      %v8378 = vadd.f32 %v8377, %v8359
      %v8379 = vadd.f32 %v8378, %v8363
      %v8380 = vadd.f32 %v8379, %v8367
      %v8381 = vadd.f32 %v8380, %v8371
      %v8382 = vrot.slane %v8381, 4
      %v8383 = vadd.f32 %v8381, %v8382
      %v8384 = vrot.slane %v8383, 2
      %v8385 = vadd.f32 %v8383, %v8384
      %v8386 = vrot.slane %v8385, 1
      %v8387 = vadd.f32 %v8385, %v8386
      %v8388 = vadd.f32 %v8344, %v8348
      %v8389 = vadd.f32 %v8388, %v8352
      %v8390 = vadd.f32 %v8389, %v8356
      %v8391 = vadd.f32 %v8390, %v8360
      %v8392 = vadd.f32 %v8391, %v8364
      %v8393 = vadd.f32 %v8392, %v8368
      %v8394 = vadd.f32 %v8393, %v8372
      %v8395 = vrot.slane %v8394, 4
      %v8396 = vadd.f32 %v8394, %v8395
      %v8397 = vrot.slane %v8396, 2
      %v8398 = vadd.f32 %v8396, %v8397
      %v8399 = vrot.slane %v8398, 1
      %v8400 = vadd.f32 %v8398, %v8399
      %v8401 = vadd.f32 %v8345, %v8349
      %v8402 = vadd.f32 %v8401, %v8353
      %v8403 = vadd.f32 %v8402, %v8357
      %v8404 = vadd.f32 %v8403, %v8361
      %v8405 = vadd.f32 %v8404, %v8365
      %v8406 = vadd.f32 %v8405, %v8369
      %v8407 = vadd.f32 %v8406, %v8373
      %v8408 = vrot.slane %v8407, 4
      %v8409 = vadd.f32 %v8407, %v8408
      %v8410 = vrot.slane %v8409, 2
      %v8411 = vadd.f32 %v8409, %v8410
      %v8412 = vrot.slane %v8411, 1
      %v8413 = vadd.f32 %v8411, %v8412
      %v8414 = vadd.f32 %v8346, %v8350
      %v8415 = vadd.f32 %v8414, %v8354
      %v8416 = vadd.f32 %v8415, %v8358
      %v8417 = vadd.f32 %v8416, %v8362
      %v8418 = vadd.f32 %v8417, %v8366
      %v8419 = vadd.f32 %v8418, %v8370
      %v8420 = vadd.f32 %v8419, %v8374
      %v8421 = vrot.slane %v8420, 4
      %v8422 = vadd.f32 %v8420, %v8421
      %v8423 = vrot.slane %v8422, 2
      %v8424 = vadd.f32 %v8422, %v8423
      %v8425 = vrot.slane %v8424, 1
      %v8426 = vadd.f32 %v8424, %v8425
      %v8427 = vmul.f32 %v8387, %v4504
      %v8428 = vmul.f32 %v8400, %v4504
      %v8429 = vmul.f32 %v8413, %v4504
      %v8430 = vmul.f32 %v8426, %v4504
      %s8431 = scalar_lea.vmem %s222, 4608
      %v8432 = vld [vmem:[%s8431] sm:$0xff]
      %v8433 = vld [vmem:[%s8431 + $0x8] sm:$0xff]
      %v8434 = vld [vmem:[%s8431 + $0x10] sm:$0xff]
      %v8435 = vld [vmem:[%s8431 + $0x18] sm:$0xff]
      %v8436 = vld [vmem:[%s8431 + $0x20] sm:$0xff]
      %v8437 = vld [vmem:[%s8431 + $0x28] sm:$0xff]
      %v8438 = vld [vmem:[%s8431 + $0x30] sm:$0xff]
      %v8439 = vld [vmem:[%s8431 + $0x38] sm:$0xff]
      %v8440 = vld [vmem:[%s8431 + $0x40] sm:$0xff]
      %v8441 = vld [vmem:[%s8431 + $0x48] sm:$0xff]
      %v8442 = vld [vmem:[%s8431 + $0x50] sm:$0xff]
      %v8443 = vld [vmem:[%s8431 + $0x58] sm:$0xff]
      %v8444 = vld [vmem:[%s8431 + $0x60] sm:$0xff]
      %v8445 = vld [vmem:[%s8431 + $0x68] sm:$0xff]
      %v8446 = vld [vmem:[%s8431 + $0x70] sm:$0xff]
      %v8447 = vld [vmem:[%s8431 + $0x78] sm:$0xff]
      %v8448 = vld [vmem:[%s8431 + $0x80] sm:$0xff]
      %v8449 = vld [vmem:[%s8431 + $0x88] sm:$0xff]
      %v8450 = vld [vmem:[%s8431 + $0x90] sm:$0xff]
      %v8451 = vld [vmem:[%s8431 + $0x98] sm:$0xff]
      %v8452 = vld [vmem:[%s8431 + $0xa0] sm:$0xff]
      %v8453 = vld [vmem:[%s8431 + $0xa8] sm:$0xff]
      %v8454 = vld [vmem:[%s8431 + $0xb0] sm:$0xff]
      %v8455 = vld [vmem:[%s8431 + $0xb8] sm:$0xff]
      %v8456 = vld [vmem:[%s8431 + $0xc0] sm:$0xff]
      %v8457 = vld [vmem:[%s8431 + $0xc8] sm:$0xff]
      %v8458 = vld [vmem:[%s8431 + $0xd0] sm:$0xff]
      %v8459 = vld [vmem:[%s8431 + $0xd8] sm:$0xff]
      %v8460 = vld [vmem:[%s8431 + $0xe0] sm:$0xff]
      %v8461 = vld [vmem:[%s8431 + $0xe8] sm:$0xff]
      %v8462 = vld [vmem:[%s8431 + $0xf0] sm:$0xff]
      %v8463 = vld [vmem:[%s8431 + $0xf8] sm:$0xff]
      %v8464 = vld [vmem:[%s8431 + $0x100] sm:$0xff]
      %v8465 = vld [vmem:[%s8431 + $0x108] sm:$0xff]
      %v8466 = vld [vmem:[%s8431 + $0x110] sm:$0xff]
      %v8467 = vld [vmem:[%s8431 + $0x118] sm:$0xff]
      %v8468 = vld [vmem:[%s8431 + $0x120] sm:$0xff]
      %v8469 = vld [vmem:[%s8431 + $0x128] sm:$0xff]
      %v8470 = vld [vmem:[%s8431 + $0x130] sm:$0xff]
      %v8471 = vld [vmem:[%s8431 + $0x138] sm:$0xff]
      %v8472 = vld [vmem:[%s8431 + $0x140] sm:$0xff]
      %v8473 = vld [vmem:[%s8431 + $0x148] sm:$0xff]
      %v8474 = vld [vmem:[%s8431 + $0x150] sm:$0xff]
      %v8475 = vld [vmem:[%s8431 + $0x158] sm:$0xff]
      %v8476 = vld [vmem:[%s8431 + $0x160] sm:$0xff]
      %v8477 = vld [vmem:[%s8431 + $0x168] sm:$0xff]
      %v8478 = vld [vmem:[%s8431 + $0x170] sm:$0xff]
      %v8479 = vld [vmem:[%s8431 + $0x178] sm:$0xff]
      %v8480 = vld [vmem:[%s8431 + $0x180] sm:$0xff]
      %v8481 = vld [vmem:[%s8431 + $0x188] sm:$0xff]
      %v8482 = vld [vmem:[%s8431 + $0x190] sm:$0xff]
      %v8483 = vld [vmem:[%s8431 + $0x198] sm:$0xff]
      %v8484 = vld [vmem:[%s8431 + $0x1a0] sm:$0xff]
      %v8485 = vld [vmem:[%s8431 + $0x1a8] sm:$0xff]
      %v8486 = vld [vmem:[%s8431 + $0x1b0] sm:$0xff]
      %v8487 = vld [vmem:[%s8431 + $0x1b8] sm:$0xff]
      %v8488 = vld [vmem:[%s8431 + $0x1c0] sm:$0xff]
      %v8489 = vld [vmem:[%s8431 + $0x1c8] sm:$0xff]
      %v8490 = vld [vmem:[%s8431 + $0x1d0] sm:$0xff]
      %v8491 = vld [vmem:[%s8431 + $0x1d8] sm:$0xff]
      %v8492 = vld [vmem:[%s8431 + $0x1e0] sm:$0xff]
      %v8493 = vld [vmem:[%s8431 + $0x1e8] sm:$0xff]
      %v8494 = vld [vmem:[%s8431 + $0x1f0] sm:$0xff]
      %v8495 = vld [vmem:[%s8431 + $0x1f8] sm:$0xff]
      %v8496 = vld [vmem:[%s8431 + $0x200] sm:$0xff]
      %v8497 = vld [vmem:[%s8431 + $0x208] sm:$0xff]
      %v8498 = vld [vmem:[%s8431 + $0x210] sm:$0xff]
      %v8499 = vld [vmem:[%s8431 + $0x218] sm:$0xff]
      %v8500 = vld [vmem:[%s8431 + $0x220] sm:$0xff]
      %v8501 = vld [vmem:[%s8431 + $0x228] sm:$0xff]
      %v8502 = vld [vmem:[%s8431 + $0x230] sm:$0xff]
      %v8503 = vld [vmem:[%s8431 + $0x238] sm:$0xff]
      %v8504 = vld [vmem:[%s8431 + $0x240] sm:$0xff]
      %v8505 = vld [vmem:[%s8431 + $0x248] sm:$0xff]
      %v8506 = vld [vmem:[%s8431 + $0x250] sm:$0xff]
      %v8507 = vld [vmem:[%s8431 + $0x258] sm:$0xff]
      %v8508 = vld [vmem:[%s8431 + $0x260] sm:$0xff]
      %v8509 = vld [vmem:[%s8431 + $0x268] sm:$0xff]
      %v8510 = vld [vmem:[%s8431 + $0x270] sm:$0xff]
      %v8511 = vld [vmem:[%s8431 + $0x278] sm:$0xff]
      %v8512 = vld [vmem:[%s8431 + $0x280] sm:$0xff]
      %v8513 = vld [vmem:[%s8431 + $0x288] sm:$0xff]
      %v8514 = vld [vmem:[%s8431 + $0x290] sm:$0xff]
      %v8515 = vld [vmem:[%s8431 + $0x298] sm:$0xff]
      %v8516 = vld [vmem:[%s8431 + $0x2a0] sm:$0xff]
      %v8517 = vld [vmem:[%s8431 + $0x2a8] sm:$0xff]
      %v8518 = vld [vmem:[%s8431 + $0x2b0] sm:$0xff]
      %v8519 = vld [vmem:[%s8431 + $0x2b8] sm:$0xff]
      %v8520 = vld [vmem:[%s8431 + $0x2c0] sm:$0xff]
      %v8521 = vld [vmem:[%s8431 + $0x2c8] sm:$0xff]
      %v8522 = vld [vmem:[%s8431 + $0x2d0] sm:$0xff]
      %v8523 = vld [vmem:[%s8431 + $0x2d8] sm:$0xff]
      %v8524 = vld [vmem:[%s8431 + $0x2e0] sm:$0xff]
      %v8525 = vld [vmem:[%s8431 + $0x2e8] sm:$0xff]
      %v8526 = vld [vmem:[%s8431 + $0x2f0] sm:$0xff]
      %v8527 = vld [vmem:[%s8431 + $0x2f8] sm:$0xff]
      %v8528 = vld [vmem:[%s8431 + $0x300] sm:$0xff]
      %v8529 = vld [vmem:[%s8431 + $0x308] sm:$0xff]
      %v8530 = vld [vmem:[%s8431 + $0x310] sm:$0xff]
      %v8531 = vld [vmem:[%s8431 + $0x318] sm:$0xff]
      %v8532 = vld [vmem:[%s8431 + $0x320] sm:$0xff]
      %v8533 = vld [vmem:[%s8431 + $0x328] sm:$0xff]
      %v8534 = vld [vmem:[%s8431 + $0x330] sm:$0xff]
      %v8535 = vld [vmem:[%s8431 + $0x338] sm:$0xff]
      %v8536 = vld [vmem:[%s8431 + $0x340] sm:$0xff]
      %v8537 = vld [vmem:[%s8431 + $0x348] sm:$0xff]
      %v8538 = vld [vmem:[%s8431 + $0x350] sm:$0xff]
      %v8539 = vld [vmem:[%s8431 + $0x358] sm:$0xff]
      %v8540 = vld [vmem:[%s8431 + $0x360] sm:$0xff]
      %v8541 = vld [vmem:[%s8431 + $0x368] sm:$0xff]
      %v8542 = vld [vmem:[%s8431 + $0x370] sm:$0xff]
      %v8543 = vld [vmem:[%s8431 + $0x378] sm:$0xff]
      %v8544 = vld [vmem:[%s8431 + $0x380] sm:$0xff]
      %v8545 = vld [vmem:[%s8431 + $0x388] sm:$0xff]
      %v8546 = vld [vmem:[%s8431 + $0x390] sm:$0xff]
      %v8547 = vld [vmem:[%s8431 + $0x398] sm:$0xff]
      %v8548 = vld [vmem:[%s8431 + $0x3a0] sm:$0xff]
      %v8549 = vld [vmem:[%s8431 + $0x3a8] sm:$0xff]
      %v8550 = vld [vmem:[%s8431 + $0x3b0] sm:$0xff]
      %v8551 = vld [vmem:[%s8431 + $0x3b8] sm:$0xff]
      %v8552 = vld [vmem:[%s8431 + $0x3c0] sm:$0xff]
      %v8553 = vld [vmem:[%s8431 + $0x3c8] sm:$0xff]
      %v8554 = vld [vmem:[%s8431 + $0x3d0] sm:$0xff]
      %v8555 = vld [vmem:[%s8431 + $0x3d8] sm:$0xff]
      %v8556 = vld [vmem:[%s8431 + $0x3e0] sm:$0xff]
      %v8557 = vld [vmem:[%s8431 + $0x3e8] sm:$0xff]
      %v8558 = vld [vmem:[%s8431 + $0x3f0] sm:$0xff]
      %v8559 = vld [vmem:[%s8431 + $0x3f8] sm:$0xff]
      %v8560 = vld [vmem:[%s8431 + $0x400] sm:$0xff]
      %v8561 = vld [vmem:[%s8431 + $0x408] sm:$0xff]
      %v8562 = vld [vmem:[%s8431 + $0x410] sm:$0xff]
      %v8563 = vld [vmem:[%s8431 + $0x418] sm:$0xff]
      %v8564 = vld [vmem:[%s8431 + $0x420] sm:$0xff]
      %v8565 = vld [vmem:[%s8431 + $0x428] sm:$0xff]
      %v8566 = vld [vmem:[%s8431 + $0x430] sm:$0xff]
      %v8567 = vld [vmem:[%s8431 + $0x438] sm:$0xff]
      %v8568 = vld [vmem:[%s8431 + $0x440] sm:$0xff]
      %v8569 = vld [vmem:[%s8431 + $0x448] sm:$0xff]
      %v8570 = vld [vmem:[%s8431 + $0x450] sm:$0xff]
      %v8571 = vld [vmem:[%s8431 + $0x458] sm:$0xff]
      %v8572 = vld [vmem:[%s8431 + $0x460] sm:$0xff]
      %v8573 = vld [vmem:[%s8431 + $0x468] sm:$0xff]
      %v8574 = vld [vmem:[%s8431 + $0x470] sm:$0xff]
      %v8575 = vld [vmem:[%s8431 + $0x478] sm:$0xff]
      %v8576 = vld [vmem:[%s8431 + $0x480] sm:$0xff]
      %v8577 = vld [vmem:[%s8431 + $0x488] sm:$0xff]
      %v8578 = vld [vmem:[%s8431 + $0x490] sm:$0xff]
      %v8579 = vld [vmem:[%s8431 + $0x498] sm:$0xff]
      %v8580 = vld [vmem:[%s8431 + $0x4a0] sm:$0xff]
      %v8581 = vld [vmem:[%s8431 + $0x4a8] sm:$0xff]
      %v8582 = vld [vmem:[%s8431 + $0x4b0] sm:$0xff]
      %v8583 = vld [vmem:[%s8431 + $0x4b8] sm:$0xff]
      %v8584 = vld [vmem:[%s8431 + $0x4c0] sm:$0xff]
      %v8585 = vld [vmem:[%s8431 + $0x4c8] sm:$0xff]
      %v8586 = vld [vmem:[%s8431 + $0x4d0] sm:$0xff]
      %v8587 = vld [vmem:[%s8431 + $0x4d8] sm:$0xff]
      %v8588 = vld [vmem:[%s8431 + $0x4e0] sm:$0xff]
      %v8589 = vld [vmem:[%s8431 + $0x4e8] sm:$0xff]
      %v8590 = vld [vmem:[%s8431 + $0x4f0] sm:$0xff]
      %v8591 = vld [vmem:[%s8431 + $0x4f8] sm:$0xff]
      %v8592 = vld [vmem:[%s8431 + $0x500] sm:$0xff]
      %v8593 = vld [vmem:[%s8431 + $0x508] sm:$0xff]
      %v8594 = vld [vmem:[%s8431 + $0x510] sm:$0xff]
      %v8595 = vld [vmem:[%s8431 + $0x518] sm:$0xff]
      %v8596 = vld [vmem:[%s8431 + $0x520] sm:$0xff]
      %v8597 = vld [vmem:[%s8431 + $0x528] sm:$0xff]
      %v8598 = vld [vmem:[%s8431 + $0x530] sm:$0xff]
      %v8599 = vld [vmem:[%s8431 + $0x538] sm:$0xff]
      %v8600 = vld [vmem:[%s8431 + $0x540] sm:$0xff]
      %v8601 = vld [vmem:[%s8431 + $0x548] sm:$0xff]
      %v8602 = vld [vmem:[%s8431 + $0x550] sm:$0xff]
      %v8603 = vld [vmem:[%s8431 + $0x558] sm:$0xff]
      %v8604 = vld [vmem:[%s8431 + $0x560] sm:$0xff]
      %v8605 = vld [vmem:[%s8431 + $0x568] sm:$0xff]
      %v8606 = vld [vmem:[%s8431 + $0x570] sm:$0xff]
      %v8607 = vld [vmem:[%s8431 + $0x578] sm:$0xff]
      %v8608 = vld [vmem:[%s8431 + $0x580] sm:$0xff]
      %v8609 = vld [vmem:[%s8431 + $0x588] sm:$0xff]
      %v8610 = vld [vmem:[%s8431 + $0x590] sm:$0xff]
      %v8611 = vld [vmem:[%s8431 + $0x598] sm:$0xff]
      %v8612 = vld [vmem:[%s8431 + $0x5a0] sm:$0xff]
      %v8613 = vld [vmem:[%s8431 + $0x5a8] sm:$0xff]
      %v8614 = vld [vmem:[%s8431 + $0x5b0] sm:$0xff]
      %v8615 = vld [vmem:[%s8431 + $0x5b8] sm:$0xff]
      %v8616 = vld [vmem:[%s8431 + $0x5c0] sm:$0xff]
      %v8617 = vld [vmem:[%s8431 + $0x5c8] sm:$0xff]
      %v8618 = vld [vmem:[%s8431 + $0x5d0] sm:$0xff]
      %v8619 = vld [vmem:[%s8431 + $0x5d8] sm:$0xff]
      %v8620 = vld [vmem:[%s8431 + $0x5e0] sm:$0xff]
      %v8621 = vld [vmem:[%s8431 + $0x5e8] sm:$0xff]
      %v8622 = vld [vmem:[%s8431 + $0x5f0] sm:$0xff]
      %v8623 = vld [vmem:[%s8431 + $0x5f8] sm:$0xff]
      %v8624 = vpack.c.bf16 %v8433, %v8432
      %v8625 = vpack.c.bf16 %v8435, %v8434
      %v8626 = vpack.c.bf16 %v8437, %v8436
      %v8627 = vpack.c.bf16 %v8439, %v8438
      %v8628 = vpack.c.bf16 %v8441, %v8440
      %v8629 = vpack.c.bf16 %v8443, %v8442
      %v8630 = vpack.c.bf16 %v8445, %v8444
      %v8631 = vpack.c.bf16 %v8447, %v8446
      %v8632 = vpack.c.bf16 %v8449, %v8448
      %v8633 = vpack.c.bf16 %v8451, %v8450
      %v8634 = vpack.c.bf16 %v8453, %v8452
      %v8635 = vpack.c.bf16 %v8455, %v8454
      %v8636 = vpack.c.bf16 %v8457, %v8456
      %v8637 = vpack.c.bf16 %v8459, %v8458
      %v8638 = vpack.c.bf16 %v8461, %v8460
      %v8639 = vpack.c.bf16 %v8463, %v8462
      %v8640 = vpack.c.bf16 %v8465, %v8464
      %v8641 = vpack.c.bf16 %v8467, %v8466
      %v8642 = vpack.c.bf16 %v8469, %v8468
      %v8643 = vpack.c.bf16 %v8471, %v8470
      %v8644 = vpack.c.bf16 %v8473, %v8472
      %v8645 = vpack.c.bf16 %v8475, %v8474
      %v8646 = vpack.c.bf16 %v8477, %v8476
      %v8647 = vpack.c.bf16 %v8479, %v8478
      %v8648 = vpack.c.bf16 %v8481, %v8480
      %v8649 = vpack.c.bf16 %v8483, %v8482
      %v8650 = vpack.c.bf16 %v8485, %v8484
      %v8651 = vpack.c.bf16 %v8487, %v8486
      %v8652 = vpack.c.bf16 %v8489, %v8488
      %v8653 = vpack.c.bf16 %v8491, %v8490
      %v8654 = vpack.c.bf16 %v8493, %v8492
      %v8655 = vpack.c.bf16 %v8495, %v8494
      %v8656 = vpack.c.bf16 %v8497, %v8496
      %v8657 = vpack.c.bf16 %v8499, %v8498
      %v8658 = vpack.c.bf16 %v8501, %v8500
      %v8659 = vpack.c.bf16 %v8503, %v8502
      %v8660 = vpack.c.bf16 %v8505, %v8504
      %v8661 = vpack.c.bf16 %v8507, %v8506
      %v8662 = vpack.c.bf16 %v8509, %v8508
      %v8663 = vpack.c.bf16 %v8511, %v8510
      %v8664 = vpack.c.bf16 %v8513, %v8512
      %v8665 = vpack.c.bf16 %v8515, %v8514
      %v8666 = vpack.c.bf16 %v8517, %v8516
      %v8667 = vpack.c.bf16 %v8519, %v8518
      %v8668 = vpack.c.bf16 %v8521, %v8520
      %v8669 = vpack.c.bf16 %v8523, %v8522
      %v8670 = vpack.c.bf16 %v8525, %v8524
      %v8671 = vpack.c.bf16 %v8527, %v8526
      %v8672 = vpack.c.bf16 %v8529, %v8528
      %v8673 = vpack.c.bf16 %v8531, %v8530
      %v8674 = vpack.c.bf16 %v8533, %v8532
      %v8675 = vpack.c.bf16 %v8535, %v8534
      %v8676 = vpack.c.bf16 %v8537, %v8536
      %v8677 = vpack.c.bf16 %v8539, %v8538
      %v8678 = vpack.c.bf16 %v8541, %v8540
      %v8679 = vpack.c.bf16 %v8543, %v8542
      %v8680 = vpack.c.bf16 %v8545, %v8544
      %v8681 = vpack.c.bf16 %v8547, %v8546
      %v8682 = vpack.c.bf16 %v8549, %v8548
      %v8683 = vpack.c.bf16 %v8551, %v8550
      %v8684 = vpack.c.bf16 %v8553, %v8552
      %v8685 = vpack.c.bf16 %v8555, %v8554
      %v8686 = vpack.c.bf16 %v8557, %v8556
      %v8687 = vpack.c.bf16 %v8559, %v8558
      %v8688 = vpack.c.bf16 %v8561, %v8560
      %v8689 = vpack.c.bf16 %v8563, %v8562
      %v8690 = vpack.c.bf16 %v8565, %v8564
      %v8691 = vpack.c.bf16 %v8567, %v8566
      %v8692 = vpack.c.bf16 %v8569, %v8568
      %v8693 = vpack.c.bf16 %v8571, %v8570
      %v8694 = vpack.c.bf16 %v8573, %v8572
      %v8695 = vpack.c.bf16 %v8575, %v8574
      %v8696 = vpack.c.bf16 %v8577, %v8576
      %v8697 = vpack.c.bf16 %v8579, %v8578
      %v8698 = vpack.c.bf16 %v8581, %v8580
      %v8699 = vpack.c.bf16 %v8583, %v8582
      %v8700 = vpack.c.bf16 %v8585, %v8584
      %v8701 = vpack.c.bf16 %v8587, %v8586
      %v8702 = vpack.c.bf16 %v8589, %v8588
      %v8703 = vpack.c.bf16 %v8591, %v8590
      %v8704 = vpack.c.bf16 %v8593, %v8592
      %v8705 = vpack.c.bf16 %v8595, %v8594
      %v8706 = vpack.c.bf16 %v8597, %v8596
      %v8707 = vpack.c.bf16 %v8599, %v8598
      %v8708 = vpack.c.bf16 %v8601, %v8600
      %v8709 = vpack.c.bf16 %v8603, %v8602
      %v8710 = vpack.c.bf16 %v8605, %v8604
      %v8711 = vpack.c.bf16 %v8607, %v8606
      %v8712 = vpack.c.bf16 %v8609, %v8608
      %v8713 = vpack.c.bf16 %v8611, %v8610
      %v8714 = vpack.c.bf16 %v8613, %v8612
      %v8715 = vpack.c.bf16 %v8615, %v8614
      %v8716 = vpack.c.bf16 %v8617, %v8616
      %v8717 = vpack.c.bf16 %v8619, %v8618
      %v8718 = vpack.c.bf16 %v8621, %v8620
      %v8719 = vpack.c.bf16 %v8623, %v8622
      %8720 = vxpose.xlu0.c.b16.start [1/8] %v8624, 128
      %8721 = vxpose.xlu0.c.b16.cont [2/8] %v8625, 128
      %8722 = vxpose.xlu0.c.b16.cont [3/8] %v8626, 128
      %8723 = vxpose.xlu0.c.b16.cont [4/8] %v8627, 128
      %8724 = vxpose.xlu0.c.b16.cont [5/8] %v8628, 128
      %8725 = vxpose.xlu0.c.b16.cont [6/8] %v8629, 128
      %8726 = vxpose.xlu0.c.b16.cont [7/8] %v8630, 128
      %8727 = vxpose.xlu0.c.b16.end [8/8] %v8631, 128
      %v8728 = vpop.trf.xlu0
      %v8729 = vpop.trf.xlu0
      %v8730 = vpop.trf.xlu0
      %v8731 = vpop.trf.xlu0
      %v8732 = vpop.trf.xlu0
      %v8733 = vpop.trf.xlu0
      %v8734 = vpop.trf.xlu0
      %v8735 = vpop.trf.xlu0
      %8736 = vxpose.xlu0.c.b16.start [1/8] %v8632, 128
      %8737 = vxpose.xlu0.c.b16.cont [2/8] %v8633, 128
      %8738 = vxpose.xlu0.c.b16.cont [3/8] %v8634, 128
      %8739 = vxpose.xlu0.c.b16.cont [4/8] %v8635, 128
      %8740 = vxpose.xlu0.c.b16.cont [5/8] %v8636, 128
      %8741 = vxpose.xlu0.c.b16.cont [6/8] %v8637, 128
      %8742 = vxpose.xlu0.c.b16.cont [7/8] %v8638, 128
      %8743 = vxpose.xlu0.c.b16.end [8/8] %v8639, 128
      %v8744 = vpop.trf.xlu0
      %v8745 = vpop.trf.xlu0
      %v8746 = vpop.trf.xlu0
      %v8747 = vpop.trf.xlu0
      %v8748 = vpop.trf.xlu0
      %v8749 = vpop.trf.xlu0
      %v8750 = vpop.trf.xlu0
      %v8751 = vpop.trf.xlu0
      %8752 = vxpose.xlu0.c.b16.start [1/8] %v8640, 128
      %8753 = vxpose.xlu0.c.b16.cont [2/8] %v8641, 128
      %8754 = vxpose.xlu0.c.b16.cont [3/8] %v8642, 128
      %8755 = vxpose.xlu0.c.b16.cont [4/8] %v8643, 128
      %8756 = vxpose.xlu0.c.b16.cont [5/8] %v8644, 128
      %8757 = vxpose.xlu0.c.b16.cont [6/8] %v8645, 128
      %8758 = vxpose.xlu0.c.b16.cont [7/8] %v8646, 128
      %8759 = vxpose.xlu0.c.b16.end [8/8] %v8647, 128
      %v8760 = vpop.trf.xlu0
      %v8761 = vpop.trf.xlu0
      %v8762 = vpop.trf.xlu0
      %v8763 = vpop.trf.xlu0
      %v8764 = vpop.trf.xlu0
      %v8765 = vpop.trf.xlu0
      %v8766 = vpop.trf.xlu0
      %v8767 = vpop.trf.xlu0
      %8768 = vxpose.xlu0.c.b16.start [1/8] %v8648, 128
      %8769 = vxpose.xlu0.c.b16.cont [2/8] %v8649, 128
      %8770 = vxpose.xlu0.c.b16.cont [3/8] %v8650, 128
      %8771 = vxpose.xlu0.c.b16.cont [4/8] %v8651, 128
      %8772 = vxpose.xlu0.c.b16.cont [5/8] %v8652, 128
      %8773 = vxpose.xlu0.c.b16.cont [6/8] %v8653, 128
      %8774 = vxpose.xlu0.c.b16.cont [7/8] %v8654, 128
      %8775 = vxpose.xlu0.c.b16.end [8/8] %v8655, 128
      %v8776 = vpop.trf.xlu0
      %v8777 = vpop.trf.xlu0
      %v8778 = vpop.trf.xlu0
      %v8779 = vpop.trf.xlu0
      %v8780 = vpop.trf.xlu0
      %v8781 = vpop.trf.xlu0
      %v8782 = vpop.trf.xlu0
      %v8783 = vpop.trf.xlu0
      %8784 = vxpose.xlu0.c.b16.start [1/8] %v8656, 128
      %8785 = vxpose.xlu0.c.b16.cont [2/8] %v8657, 128
      %8786 = vxpose.xlu0.c.b16.cont [3/8] %v8658, 128
      %8787 = vxpose.xlu0.c.b16.cont [4/8] %v8659, 128
      %8788 = vxpose.xlu0.c.b16.cont [5/8] %v8660, 128
      %8789 = vxpose.xlu0.c.b16.cont [6/8] %v8661, 128
      %8790 = vxpose.xlu0.c.b16.cont [7/8] %v8662, 128
      %8791 = vxpose.xlu0.c.b16.end [8/8] %v8663, 128
      %v8792 = vpop.trf.xlu0
      %v8793 = vpop.trf.xlu0
      %v8794 = vpop.trf.xlu0
      %v8795 = vpop.trf.xlu0
      %v8796 = vpop.trf.xlu0
      %v8797 = vpop.trf.xlu0
      %v8798 = vpop.trf.xlu0
      %v8799 = vpop.trf.xlu0
      %8800 = vxpose.xlu0.c.b16.start [1/8] %v8664, 128
      %8801 = vxpose.xlu0.c.b16.cont [2/8] %v8665, 128
      %8802 = vxpose.xlu0.c.b16.cont [3/8] %v8666, 128
      %8803 = vxpose.xlu0.c.b16.cont [4/8] %v8667, 128
      %8804 = vxpose.xlu0.c.b16.cont [5/8] %v8668, 128
      %8805 = vxpose.xlu0.c.b16.cont [6/8] %v8669, 128
      %8806 = vxpose.xlu0.c.b16.cont [7/8] %v8670, 128
      %8807 = vxpose.xlu0.c.b16.end [8/8] %v8671, 128
      %v8808 = vpop.trf.xlu0
      %v8809 = vpop.trf.xlu0
      %v8810 = vpop.trf.xlu0
      %v8811 = vpop.trf.xlu0
      %v8812 = vpop.trf.xlu0
      %v8813 = vpop.trf.xlu0
      %v8814 = vpop.trf.xlu0
      %v8815 = vpop.trf.xlu0
      %8816 = vxpose.xlu0.c.b16.start [1/8] %v8672, 128
      %8817 = vxpose.xlu0.c.b16.cont [2/8] %v8673, 128
      %8818 = vxpose.xlu0.c.b16.cont [3/8] %v8674, 128
      %8819 = vxpose.xlu0.c.b16.cont [4/8] %v8675, 128
      %8820 = vxpose.xlu0.c.b16.cont [5/8] %v8676, 128
      %8821 = vxpose.xlu0.c.b16.cont [6/8] %v8677, 128
      %8822 = vxpose.xlu0.c.b16.cont [7/8] %v8678, 128
      %8823 = vxpose.xlu0.c.b16.end [8/8] %v8679, 128
      %v8824 = vpop.trf.xlu0
      %v8825 = vpop.trf.xlu0
      %v8826 = vpop.trf.xlu0
      %v8827 = vpop.trf.xlu0
      %v8828 = vpop.trf.xlu0
      %v8829 = vpop.trf.xlu0
      %v8830 = vpop.trf.xlu0
      %v8831 = vpop.trf.xlu0
      %8832 = vxpose.xlu0.c.b16.start [1/8] %v8680, 128
      %8833 = vxpose.xlu0.c.b16.cont [2/8] %v8681, 128
      %8834 = vxpose.xlu0.c.b16.cont [3/8] %v8682, 128
      %8835 = vxpose.xlu0.c.b16.cont [4/8] %v8683, 128
      %8836 = vxpose.xlu0.c.b16.cont [5/8] %v8684, 128
      %8837 = vxpose.xlu0.c.b16.cont [6/8] %v8685, 128
      %8838 = vxpose.xlu0.c.b16.cont [7/8] %v8686, 128
      %8839 = vxpose.xlu0.c.b16.end [8/8] %v8687, 128
      %v8840 = vpop.trf.xlu0
      %v8841 = vpop.trf.xlu0
      %v8842 = vpop.trf.xlu0
      %v8843 = vpop.trf.xlu0
      %v8844 = vpop.trf.xlu0
      %v8845 = vpop.trf.xlu0
      %v8846 = vpop.trf.xlu0
      %v8847 = vpop.trf.xlu0
      %8848 = vxpose.xlu0.c.b16.start [1/8] %v8688, 128
      %8849 = vxpose.xlu0.c.b16.cont [2/8] %v8689, 128
      %8850 = vxpose.xlu0.c.b16.cont [3/8] %v8690, 128
      %8851 = vxpose.xlu0.c.b16.cont [4/8] %v8691, 128
      %8852 = vxpose.xlu0.c.b16.cont [5/8] %v8692, 128
      %8853 = vxpose.xlu0.c.b16.cont [6/8] %v8693, 128
      %8854 = vxpose.xlu0.c.b16.cont [7/8] %v8694, 128
      %8855 = vxpose.xlu0.c.b16.end [8/8] %v8695, 128
      %v8856 = vpop.trf.xlu0
      %v8857 = vpop.trf.xlu0
      %v8858 = vpop.trf.xlu0
      %v8859 = vpop.trf.xlu0
      %v8860 = vpop.trf.xlu0
      %v8861 = vpop.trf.xlu0
      %v8862 = vpop.trf.xlu0
      %v8863 = vpop.trf.xlu0
      %8864 = vxpose.xlu0.c.b16.start [1/8] %v8696, 128
      %8865 = vxpose.xlu0.c.b16.cont [2/8] %v8697, 128
      %8866 = vxpose.xlu0.c.b16.cont [3/8] %v8698, 128
      %8867 = vxpose.xlu0.c.b16.cont [4/8] %v8699, 128
      %8868 = vxpose.xlu0.c.b16.cont [5/8] %v8700, 128
      %8869 = vxpose.xlu0.c.b16.cont [6/8] %v8701, 128
      %8870 = vxpose.xlu0.c.b16.cont [7/8] %v8702, 128
      %8871 = vxpose.xlu0.c.b16.end [8/8] %v8703, 128
      %v8872 = vpop.trf.xlu0
      %v8873 = vpop.trf.xlu0
      %v8874 = vpop.trf.xlu0
      %v8875 = vpop.trf.xlu0
      %v8876 = vpop.trf.xlu0
      %v8877 = vpop.trf.xlu0
      %v8878 = vpop.trf.xlu0
      %v8879 = vpop.trf.xlu0
      %8880 = vxpose.xlu0.c.b16.start [1/8] %v8704, 128
      %8881 = vxpose.xlu0.c.b16.cont [2/8] %v8705, 128
      %8882 = vxpose.xlu0.c.b16.cont [3/8] %v8706, 128
      %8883 = vxpose.xlu0.c.b16.cont [4/8] %v8707, 128
      %8884 = vxpose.xlu0.c.b16.cont [5/8] %v8708, 128
      %8885 = vxpose.xlu0.c.b16.cont [6/8] %v8709, 128
      %8886 = vxpose.xlu0.c.b16.cont [7/8] %v8710, 128
      %8887 = vxpose.xlu0.c.b16.end [8/8] %v8711, 128
      %v8888 = vpop.trf.xlu0
      %v8889 = vpop.trf.xlu0
      %v8890 = vpop.trf.xlu0
      %v8891 = vpop.trf.xlu0
      %v8892 = vpop.trf.xlu0
      %v8893 = vpop.trf.xlu0
      %v8894 = vpop.trf.xlu0
      %v8895 = vpop.trf.xlu0
      %8896 = vxpose.xlu0.c.b16.start [1/8] %v8712, 128
      %8897 = vxpose.xlu0.c.b16.cont [2/8] %v8713, 128
      %8898 = vxpose.xlu0.c.b16.cont [3/8] %v8714, 128
      %8899 = vxpose.xlu0.c.b16.cont [4/8] %v8715, 128
      %8900 = vxpose.xlu0.c.b16.cont [5/8] %v8716, 128
      %8901 = vxpose.xlu0.c.b16.cont [6/8] %v8717, 128
      %8902 = vxpose.xlu0.c.b16.cont [7/8] %v8718, 128
      %8903 = vxpose.xlu0.c.b16.end [8/8] %v8719, 128
      %v8904 = vpop.trf.xlu0
      %v8905 = vpop.trf.xlu0
      %v8906 = vpop.trf.xlu0
      %v8907 = vpop.trf.xlu0
      %v8908 = vpop.trf.xlu0
      %v8909 = vpop.trf.xlu0
      %v8910 = vpop.trf.xlu0
      %v8911 = vpop.trf.xlu0
      %8912 = vmatpush.bf16.msra.mxu0 %v2282
      %8913 = vmatpush.bf16.msra.mxu0 %v2278
      %8914 = vmatpush.bf16.msra.mxu0 %v2274
      %8915 = vmatpush.bf16.msra.mxu0 %v2270
      %8916 = vmatpush.bf16.msra.mxu0 %v2266
      %8917 = vmatpush.bf16.msra.mxu0 %v2262
      %8918 = vmatpush.bf16.msra.mxu0 %v2258
      %8919 = vmatpush.bf16.msra.mxu0 %v2254
      %8920 = vmatmul.bf16.gmra.mxu0 %v8728
      %v8921 = vpop.f32.mrf.mxu0
      %v8922 = vadd.f32 %v902, %v8921
      %v8923 = vpop.f32.mrf.mxu0
      %v8924 = vadd.f32 %v902, %v8923
      %8925 = vmatmul.bf16.gmra.mxu0 %v8729
      %v8926 = vpop.f32.mrf.mxu0
      %v8927 = vadd.f32 %v902, %v8926
      %v8928 = vpop.f32.mrf.mxu0
      %v8929 = vadd.f32 %v902, %v8928
      %8930 = vmatmul.bf16.gmra.mxu0 %v8730
      %v8931 = vpop.f32.mrf.mxu0
      %v8932 = vadd.f32 %v902, %v8931
      %v8933 = vpop.f32.mrf.mxu0
      %v8934 = vadd.f32 %v902, %v8933
      %8935 = vmatmul.bf16.gmra.mxu0 %v8731
      %v8936 = vpop.f32.mrf.mxu0
      %v8937 = vadd.f32 %v902, %v8936
      %v8938 = vpop.f32.mrf.mxu0
      %v8939 = vadd.f32 %v902, %v8938
      %8940 = vdwg.mxu0
      %8941 = vmatpush.bf16.msra.mxu0 %v2314
      %8942 = vmatpush.bf16.msra.mxu0 %v2310
      %8943 = vmatpush.bf16.msra.mxu0 %v2306
      %8944 = vmatpush.bf16.msra.mxu0 %v2302
      %8945 = vmatpush.bf16.msra.mxu0 %v2298
      %8946 = vmatpush.bf16.msra.mxu0 %v2294
      %8947 = vmatpush.bf16.msra.mxu0 %v2290
      %8948 = vmatpush.bf16.msra.mxu0 %v2286
      %8949 = vmatmul.bf16.gmra.mxu0 %v8744
      %v8950 = vpop.f32.mrf.mxu0
      %v8951 = vadd.f32 %v8922, %v8950
      %v8952 = vpop.f32.mrf.mxu0
      %v8953 = vadd.f32 %v8924, %v8952
      %8954 = vmatmul.bf16.gmra.mxu0 %v8745
      %v8955 = vpop.f32.mrf.mxu0
      %v8956 = vadd.f32 %v8927, %v8955
      %v8957 = vpop.f32.mrf.mxu0
      %v8958 = vadd.f32 %v8929, %v8957
      %8959 = vmatmul.bf16.gmra.mxu0 %v8746
      %v8960 = vpop.f32.mrf.mxu0
      %v8961 = vadd.f32 %v8932, %v8960
      %v8962 = vpop.f32.mrf.mxu0
      %v8963 = vadd.f32 %v8934, %v8962
      %8964 = vmatmul.bf16.gmra.mxu0 %v8747
      %v8965 = vpop.f32.mrf.mxu0
      %v8966 = vadd.f32 %v8937, %v8965
      %v8967 = vpop.f32.mrf.mxu0
      %v8968 = vadd.f32 %v8939, %v8967
      %8969 = vdwg.mxu0
      %8970 = vmatpush.bf16.msra.mxu0 %v2346
      %8971 = vmatpush.bf16.msra.mxu0 %v2342
      %8972 = vmatpush.bf16.msra.mxu0 %v2338
      %8973 = vmatpush.bf16.msra.mxu0 %v2334
      %8974 = vmatpush.bf16.msra.mxu0 %v2330
      %8975 = vmatpush.bf16.msra.mxu0 %v2326
      %8976 = vmatpush.bf16.msra.mxu0 %v2322
      %8977 = vmatpush.bf16.msra.mxu0 %v2318
      %8978 = vmatmul.bf16.gmra.mxu0 %v8760
      %v8979 = vpop.f32.mrf.mxu0
      %v8980 = vadd.f32 %v8951, %v8979
      %v8981 = vpop.f32.mrf.mxu0
      %v8982 = vadd.f32 %v8953, %v8981
      %8983 = vmatmul.bf16.gmra.mxu0 %v8761
      %v8984 = vpop.f32.mrf.mxu0
      %v8985 = vadd.f32 %v8956, %v8984
      %v8986 = vpop.f32.mrf.mxu0
      %v8987 = vadd.f32 %v8958, %v8986
      %8988 = vmatmul.bf16.gmra.mxu0 %v8762
      %v8989 = vpop.f32.mrf.mxu0
      %v8990 = vadd.f32 %v8961, %v8989
      %v8991 = vpop.f32.mrf.mxu0
      %v8992 = vadd.f32 %v8963, %v8991
      %8993 = vmatmul.bf16.gmra.mxu0 %v8763
      %v8994 = vpop.f32.mrf.mxu0
      %v8995 = vadd.f32 %v8966, %v8994
      %v8996 = vpop.f32.mrf.mxu0
      %v8997 = vadd.f32 %v8968, %v8996
      %8998 = vdwg.mxu0
      %8999 = vmatpush.bf16.msra.mxu0 %v2378
      %9000 = vmatpush.bf16.msra.mxu0 %v2374
      %9001 = vmatpush.bf16.msra.mxu0 %v2370
      %9002 = vmatpush.bf16.msra.mxu0 %v2366
      %9003 = vmatpush.bf16.msra.mxu0 %v2362
      %9004 = vmatpush.bf16.msra.mxu0 %v2358
      %9005 = vmatpush.bf16.msra.mxu0 %v2354
      %9006 = vmatpush.bf16.msra.mxu0 %v2350
      %9007 = vmatmul.bf16.gmra.mxu0 %v8776
      %v9008 = vpop.f32.mrf.mxu0
      %v9009 = vadd.f32 %v8980, %v9008
      %v9010 = vpop.f32.mrf.mxu0
      %v9011 = vadd.f32 %v8982, %v9010
      %9012 = vmatmul.bf16.gmra.mxu0 %v8777
      %v9013 = vpop.f32.mrf.mxu0
      %v9014 = vadd.f32 %v8985, %v9013
      %v9015 = vpop.f32.mrf.mxu0
      %v9016 = vadd.f32 %v8987, %v9015
      %9017 = vmatmul.bf16.gmra.mxu0 %v8778
      %v9018 = vpop.f32.mrf.mxu0
      %v9019 = vadd.f32 %v8990, %v9018
      %v9020 = vpop.f32.mrf.mxu0
      %v9021 = vadd.f32 %v8992, %v9020
      %9022 = vmatmul.bf16.gmra.mxu0 %v8779
      %v9023 = vpop.f32.mrf.mxu0
      %v9024 = vadd.f32 %v8995, %v9023
      %v9025 = vpop.f32.mrf.mxu0
      %v9026 = vadd.f32 %v8997, %v9025
      %9027 = vdwg.mxu0
      %9028 = vmatpush.bf16.msra.mxu0 %v2410
      %9029 = vmatpush.bf16.msra.mxu0 %v2406
      %9030 = vmatpush.bf16.msra.mxu0 %v2402
      %9031 = vmatpush.bf16.msra.mxu0 %v2398
      %9032 = vmatpush.bf16.msra.mxu0 %v2394
      %9033 = vmatpush.bf16.msra.mxu0 %v2390
      %9034 = vmatpush.bf16.msra.mxu0 %v2386
      %9035 = vmatpush.bf16.msra.mxu0 %v2382
      %9036 = vmatmul.bf16.gmra.mxu0 %v8792
      %v9037 = vpop.f32.mrf.mxu0
      %v9038 = vadd.f32 %v9009, %v9037
      %v9039 = vpop.f32.mrf.mxu0
      %v9040 = vadd.f32 %v9011, %v9039
      %9041 = vmatmul.bf16.gmra.mxu0 %v8793
      %v9042 = vpop.f32.mrf.mxu0
      %v9043 = vadd.f32 %v9014, %v9042
      %v9044 = vpop.f32.mrf.mxu0
      %v9045 = vadd.f32 %v9016, %v9044
      %9046 = vmatmul.bf16.gmra.mxu0 %v8794
      %v9047 = vpop.f32.mrf.mxu0
      %v9048 = vadd.f32 %v9019, %v9047
      %v9049 = vpop.f32.mrf.mxu0
      %v9050 = vadd.f32 %v9021, %v9049
      %9051 = vmatmul.bf16.gmra.mxu0 %v8795
      %v9052 = vpop.f32.mrf.mxu0
      %v9053 = vadd.f32 %v9024, %v9052
      %v9054 = vpop.f32.mrf.mxu0
      %v9055 = vadd.f32 %v9026, %v9054
      %9056 = vdwg.mxu0
      %9057 = vmatpush.bf16.msra.mxu0 %v2442
      %9058 = vmatpush.bf16.msra.mxu0 %v2438
      %9059 = vmatpush.bf16.msra.mxu0 %v2434
      %9060 = vmatpush.bf16.msra.mxu0 %v2430
      %9061 = vmatpush.bf16.msra.mxu0 %v2426
      %9062 = vmatpush.bf16.msra.mxu0 %v2422
      %9063 = vmatpush.bf16.msra.mxu0 %v2418
      %9064 = vmatpush.bf16.msra.mxu0 %v2414
      %9065 = vmatmul.bf16.gmra.mxu0 %v8808
      %v9066 = vpop.f32.mrf.mxu0
      %v9067 = vadd.f32 %v9038, %v9066
      %v9068 = vpop.f32.mrf.mxu0
      %v9069 = vadd.f32 %v9040, %v9068
      %9070 = vmatmul.bf16.gmra.mxu0 %v8809
      %v9071 = vpop.f32.mrf.mxu0
      %v9072 = vadd.f32 %v9043, %v9071
      %v9073 = vpop.f32.mrf.mxu0
      %v9074 = vadd.f32 %v9045, %v9073
      %9075 = vmatmul.bf16.gmra.mxu0 %v8810
      %v9076 = vpop.f32.mrf.mxu0
      %v9077 = vadd.f32 %v9048, %v9076
      %v9078 = vpop.f32.mrf.mxu0
      %v9079 = vadd.f32 %v9050, %v9078
      %9080 = vmatmul.bf16.gmra.mxu0 %v8811
      %v9081 = vpop.f32.mrf.mxu0
      %v9082 = vadd.f32 %v9053, %v9081
      %v9083 = vpop.f32.mrf.mxu0
      %v9084 = vadd.f32 %v9055, %v9083
      %9085 = vdwg.mxu0
      %9086 = vmatpush.bf16.msra.mxu0 %v2474
      %9087 = vmatpush.bf16.msra.mxu0 %v2470
      %9088 = vmatpush.bf16.msra.mxu0 %v2466
      %9089 = vmatpush.bf16.msra.mxu0 %v2462
      %9090 = vmatpush.bf16.msra.mxu0 %v2458
      %9091 = vmatpush.bf16.msra.mxu0 %v2454
      %9092 = vmatpush.bf16.msra.mxu0 %v2450
      %9093 = vmatpush.bf16.msra.mxu0 %v2446
      %9094 = vmatmul.bf16.gmra.mxu0 %v8824
      %v9095 = vpop.f32.mrf.mxu0
      %v9096 = vadd.f32 %v9067, %v9095
      %v9097 = vpop.f32.mrf.mxu0
      %v9098 = vadd.f32 %v9069, %v9097
      %9099 = vmatmul.bf16.gmra.mxu0 %v8825
      %v9100 = vpop.f32.mrf.mxu0
      %v9101 = vadd.f32 %v9072, %v9100
      %v9102 = vpop.f32.mrf.mxu0
      %v9103 = vadd.f32 %v9074, %v9102
      %9104 = vmatmul.bf16.gmra.mxu0 %v8826
      %v9105 = vpop.f32.mrf.mxu0
      %v9106 = vadd.f32 %v9077, %v9105
      %v9107 = vpop.f32.mrf.mxu0
      %v9108 = vadd.f32 %v9079, %v9107
      %9109 = vmatmul.bf16.gmra.mxu0 %v8827
      %v9110 = vpop.f32.mrf.mxu0
      %v9111 = vadd.f32 %v9082, %v9110
      %v9112 = vpop.f32.mrf.mxu0
      %v9113 = vadd.f32 %v9084, %v9112
      %9114 = vdwg.mxu0
      %9115 = vmatpush.bf16.msra.mxu0 %v2506
      %9116 = vmatpush.bf16.msra.mxu0 %v2502
      %9117 = vmatpush.bf16.msra.mxu0 %v2498
      %9118 = vmatpush.bf16.msra.mxu0 %v2494
      %9119 = vmatpush.bf16.msra.mxu0 %v2490
      %9120 = vmatpush.bf16.msra.mxu0 %v2486
      %9121 = vmatpush.bf16.msra.mxu0 %v2482
      %9122 = vmatpush.bf16.msra.mxu0 %v2478
      %9123 = vmatmul.bf16.gmra.mxu0 %v8840
      %v9124 = vpop.f32.mrf.mxu0
      %v9125 = vadd.f32 %v9096, %v9124
      %v9126 = vpop.f32.mrf.mxu0
      %v9127 = vadd.f32 %v9098, %v9126
      %9128 = vmatmul.bf16.gmra.mxu0 %v8841
      %v9129 = vpop.f32.mrf.mxu0
      %v9130 = vadd.f32 %v9101, %v9129
      %v9131 = vpop.f32.mrf.mxu0
      %v9132 = vadd.f32 %v9103, %v9131
      %9133 = vmatmul.bf16.gmra.mxu0 %v8842
      %v9134 = vpop.f32.mrf.mxu0
      %v9135 = vadd.f32 %v9106, %v9134
      %v9136 = vpop.f32.mrf.mxu0
      %v9137 = vadd.f32 %v9108, %v9136
      %9138 = vmatmul.bf16.gmra.mxu0 %v8843
      %v9139 = vpop.f32.mrf.mxu0
      %v9140 = vadd.f32 %v9111, %v9139
      %v9141 = vpop.f32.mrf.mxu0
      %v9142 = vadd.f32 %v9113, %v9141
      %9143 = vdwg.mxu0
      %9144 = vmatpush.bf16.msra.mxu0 %v2538
      %9145 = vmatpush.bf16.msra.mxu0 %v2534
      %9146 = vmatpush.bf16.msra.mxu0 %v2530
      %9147 = vmatpush.bf16.msra.mxu0 %v2526
      %9148 = vmatpush.bf16.msra.mxu0 %v2522
      %9149 = vmatpush.bf16.msra.mxu0 %v2518
      %9150 = vmatpush.bf16.msra.mxu0 %v2514
      %9151 = vmatpush.bf16.msra.mxu0 %v2510
      %9152 = vmatmul.bf16.gmra.mxu0 %v8856
      %v9153 = vpop.f32.mrf.mxu0
      %v9154 = vadd.f32 %v9125, %v9153
      %v9155 = vpop.f32.mrf.mxu0
      %v9156 = vadd.f32 %v9127, %v9155
      %9157 = vmatmul.bf16.gmra.mxu0 %v8857
      %v9158 = vpop.f32.mrf.mxu0
      %v9159 = vadd.f32 %v9130, %v9158
      %v9160 = vpop.f32.mrf.mxu0
      %v9161 = vadd.f32 %v9132, %v9160
      %9162 = vmatmul.bf16.gmra.mxu0 %v8858
      %v9163 = vpop.f32.mrf.mxu0
      %v9164 = vadd.f32 %v9135, %v9163
      %v9165 = vpop.f32.mrf.mxu0
      %v9166 = vadd.f32 %v9137, %v9165
      %9167 = vmatmul.bf16.gmra.mxu0 %v8859
      %v9168 = vpop.f32.mrf.mxu0
      %v9169 = vadd.f32 %v9140, %v9168
      %v9170 = vpop.f32.mrf.mxu0
      %v9171 = vadd.f32 %v9142, %v9170
      %9172 = vdwg.mxu0
      %9173 = vmatpush.bf16.msra.mxu0 %v2570
      %9174 = vmatpush.bf16.msra.mxu0 %v2566
      %9175 = vmatpush.bf16.msra.mxu0 %v2562
      %9176 = vmatpush.bf16.msra.mxu0 %v2558
      %9177 = vmatpush.bf16.msra.mxu0 %v2554
      %9178 = vmatpush.bf16.msra.mxu0 %v2550
      %9179 = vmatpush.bf16.msra.mxu0 %v2546
      %9180 = vmatpush.bf16.msra.mxu0 %v2542
      %9181 = vmatmul.bf16.gmra.mxu0 %v8872
      %v9182 = vpop.f32.mrf.mxu0
      %v9183 = vadd.f32 %v9154, %v9182
      %v9184 = vpop.f32.mrf.mxu0
      %v9185 = vadd.f32 %v9156, %v9184
      %9186 = vmatmul.bf16.gmra.mxu0 %v8873
      %v9187 = vpop.f32.mrf.mxu0
      %v9188 = vadd.f32 %v9159, %v9187
      %v9189 = vpop.f32.mrf.mxu0
      %v9190 = vadd.f32 %v9161, %v9189
      %9191 = vmatmul.bf16.gmra.mxu0 %v8874
      %v9192 = vpop.f32.mrf.mxu0
      %v9193 = vadd.f32 %v9164, %v9192
      %v9194 = vpop.f32.mrf.mxu0
      %v9195 = vadd.f32 %v9166, %v9194
      %9196 = vmatmul.bf16.gmra.mxu0 %v8875
      %v9197 = vpop.f32.mrf.mxu0
      %v9198 = vadd.f32 %v9169, %v9197
      %v9199 = vpop.f32.mrf.mxu0
      %v9200 = vadd.f32 %v9171, %v9199
      %9201 = vdwg.mxu0
      %9202 = vmatpush.bf16.msra.mxu0 %v2602
      %9203 = vmatpush.bf16.msra.mxu0 %v2598
      %9204 = vmatpush.bf16.msra.mxu0 %v2594
      %9205 = vmatpush.bf16.msra.mxu0 %v2590
      %9206 = vmatpush.bf16.msra.mxu0 %v2586
      %9207 = vmatpush.bf16.msra.mxu0 %v2582
      %9208 = vmatpush.bf16.msra.mxu0 %v2578
      %9209 = vmatpush.bf16.msra.mxu0 %v2574
      %9210 = vmatmul.bf16.gmra.mxu0 %v8888
      %v9211 = vpop.f32.mrf.mxu0
      %v9212 = vadd.f32 %v9183, %v9211
      %v9213 = vpop.f32.mrf.mxu0
      %v9214 = vadd.f32 %v9185, %v9213
      %9215 = vmatmul.bf16.gmra.mxu0 %v8889
      %v9216 = vpop.f32.mrf.mxu0
      %v9217 = vadd.f32 %v9188, %v9216
      %v9218 = vpop.f32.mrf.mxu0
      %v9219 = vadd.f32 %v9190, %v9218
      %9220 = vmatmul.bf16.gmra.mxu0 %v8890
      %v9221 = vpop.f32.mrf.mxu0
      %v9222 = vadd.f32 %v9193, %v9221
      %v9223 = vpop.f32.mrf.mxu0
      %v9224 = vadd.f32 %v9195, %v9223
      %9225 = vmatmul.bf16.gmra.mxu0 %v8891
      %v9226 = vpop.f32.mrf.mxu0
      %v9227 = vadd.f32 %v9198, %v9226
      %v9228 = vpop.f32.mrf.mxu0
      %v9229 = vadd.f32 %v9200, %v9228
      %9230 = vdwg.mxu0
      %9231 = vmatpush.bf16.msra.mxu0 %v2634
      %9232 = vmatpush.bf16.msra.mxu0 %v2630
      %9233 = vmatpush.bf16.msra.mxu0 %v2626
      %9234 = vmatpush.bf16.msra.mxu0 %v2622
      %9235 = vmatpush.bf16.msra.mxu0 %v2618
      %9236 = vmatpush.bf16.msra.mxu0 %v2614
      %9237 = vmatpush.bf16.msra.mxu0 %v2610
      %9238 = vmatpush.bf16.msra.mxu0 %v2606
      %9239 = vmatmul.bf16.gmra.mxu0 %v8904
      %v9240 = vpop.f32.mrf.mxu0
      %v9241 = vadd.f32 %v9212, %v9240
      %v9242 = vpop.f32.mrf.mxu0
      %v9243 = vadd.f32 %v9214, %v9242
      %9244 = vmatmul.bf16.gmra.mxu0 %v8905
      %v9245 = vpop.f32.mrf.mxu0
      %v9246 = vadd.f32 %v9217, %v9245
      %v9247 = vpop.f32.mrf.mxu0
      %v9248 = vadd.f32 %v9219, %v9247
      %9249 = vmatmul.bf16.gmra.mxu0 %v8906
      %v9250 = vpop.f32.mrf.mxu0
      %v9251 = vadd.f32 %v9222, %v9250
      %v9252 = vpop.f32.mrf.mxu0
      %v9253 = vadd.f32 %v9224, %v9252
      %9254 = vmatmul.bf16.gmra.mxu0 %v8907
      %v9255 = vpop.f32.mrf.mxu0
      %v9256 = vadd.f32 %v9227, %v9255
      %v9257 = vpop.f32.mrf.mxu0
      %v9258 = vadd.f32 %v9229, %v9257
      %9259 = vdwg.mxu0
      %9260 = vmatpush.bf16.msra.mxu0 %v2283
      %9261 = vmatpush.bf16.msra.mxu0 %v2279
      %9262 = vmatpush.bf16.msra.mxu0 %v2275
      %9263 = vmatpush.bf16.msra.mxu0 %v2271
      %9264 = vmatpush.bf16.msra.mxu0 %v2267
      %9265 = vmatpush.bf16.msra.mxu0 %v2263
      %9266 = vmatpush.bf16.msra.mxu0 %v2259
      %9267 = vmatpush.bf16.msra.mxu0 %v2255
      %9268 = vmatmul.bf16.gmra.mxu0 %v8728
      %v9269 = vpop.f32.mrf.mxu0
      %v9270 = vadd.f32 %v903, %v9269
      %v9271 = vpop.f32.mrf.mxu0
      %v9272 = vadd.f32 %v903, %v9271
      %9273 = vmatmul.bf16.gmra.mxu0 %v8729
      %v9274 = vpop.f32.mrf.mxu0
      %v9275 = vadd.f32 %v903, %v9274
      %v9276 = vpop.f32.mrf.mxu0
      %v9277 = vadd.f32 %v903, %v9276
      %9278 = vmatmul.bf16.gmra.mxu0 %v8730
      %v9279 = vpop.f32.mrf.mxu0
      %v9280 = vadd.f32 %v903, %v9279
      %v9281 = vpop.f32.mrf.mxu0
      %v9282 = vadd.f32 %v903, %v9281
      %9283 = vmatmul.bf16.gmra.mxu0 %v8731
      %v9284 = vpop.f32.mrf.mxu0
      %v9285 = vadd.f32 %v903, %v9284
      %v9286 = vpop.f32.mrf.mxu0
      %v9287 = vadd.f32 %v903, %v9286
      %9288 = vdwg.mxu0
      %9289 = vmatpush.bf16.msra.mxu0 %v2315
      %9290 = vmatpush.bf16.msra.mxu0 %v2311
      %9291 = vmatpush.bf16.msra.mxu0 %v2307
      %9292 = vmatpush.bf16.msra.mxu0 %v2303
      %9293 = vmatpush.bf16.msra.mxu0 %v2299
      %9294 = vmatpush.bf16.msra.mxu0 %v2295
      %9295 = vmatpush.bf16.msra.mxu0 %v2291
      %9296 = vmatpush.bf16.msra.mxu0 %v2287
      %9297 = vmatmul.bf16.gmra.mxu0 %v8744
      %v9298 = vpop.f32.mrf.mxu0
      %v9299 = vadd.f32 %v9270, %v9298
      %v9300 = vpop.f32.mrf.mxu0
      %v9301 = vadd.f32 %v9272, %v9300
      %9302 = vmatmul.bf16.gmra.mxu0 %v8745
      %v9303 = vpop.f32.mrf.mxu0
      %v9304 = vadd.f32 %v9275, %v9303
      %v9305 = vpop.f32.mrf.mxu0
      %v9306 = vadd.f32 %v9277, %v9305
      %9307 = vmatmul.bf16.gmra.mxu0 %v8746
      %v9308 = vpop.f32.mrf.mxu0
      %v9309 = vadd.f32 %v9280, %v9308
      %v9310 = vpop.f32.mrf.mxu0
      %v9311 = vadd.f32 %v9282, %v9310
      %9312 = vmatmul.bf16.gmra.mxu0 %v8747
      %v9313 = vpop.f32.mrf.mxu0
      %v9314 = vadd.f32 %v9285, %v9313
      %v9315 = vpop.f32.mrf.mxu0
      %v9316 = vadd.f32 %v9287, %v9315
      %9317 = vdwg.mxu0
      %9318 = vmatpush.bf16.msra.mxu0 %v2347
      %9319 = vmatpush.bf16.msra.mxu0 %v2343
      %9320 = vmatpush.bf16.msra.mxu0 %v2339
      %9321 = vmatpush.bf16.msra.mxu0 %v2335
      %9322 = vmatpush.bf16.msra.mxu0 %v2331
      %9323 = vmatpush.bf16.msra.mxu0 %v2327
      %9324 = vmatpush.bf16.msra.mxu0 %v2323
      %9325 = vmatpush.bf16.msra.mxu0 %v2319
      %9326 = vmatmul.bf16.gmra.mxu0 %v8760
      %v9327 = vpop.f32.mrf.mxu0
      %v9328 = vadd.f32 %v9299, %v9327
      %v9329 = vpop.f32.mrf.mxu0
      %v9330 = vadd.f32 %v9301, %v9329
      %9331 = vmatmul.bf16.gmra.mxu0 %v8761
      %v9332 = vpop.f32.mrf.mxu0
      %v9333 = vadd.f32 %v9304, %v9332
      %v9334 = vpop.f32.mrf.mxu0
      %v9335 = vadd.f32 %v9306, %v9334
      %9336 = vmatmul.bf16.gmra.mxu0 %v8762
      %v9337 = vpop.f32.mrf.mxu0
      %v9338 = vadd.f32 %v9309, %v9337
      %v9339 = vpop.f32.mrf.mxu0
      %v9340 = vadd.f32 %v9311, %v9339
      %9341 = vmatmul.bf16.gmra.mxu0 %v8763
      %v9342 = vpop.f32.mrf.mxu0
      %v9343 = vadd.f32 %v9314, %v9342
      %v9344 = vpop.f32.mrf.mxu0
      %v9345 = vadd.f32 %v9316, %v9344
      %9346 = vdwg.mxu0
      %9347 = vmatpush.bf16.msra.mxu0 %v2379
      %9348 = vmatpush.bf16.msra.mxu0 %v2375
      %9349 = vmatpush.bf16.msra.mxu0 %v2371
      %9350 = vmatpush.bf16.msra.mxu0 %v2367
      %9351 = vmatpush.bf16.msra.mxu0 %v2363
      %9352 = vmatpush.bf16.msra.mxu0 %v2359
      %9353 = vmatpush.bf16.msra.mxu0 %v2355
      %9354 = vmatpush.bf16.msra.mxu0 %v2351
      %9355 = vmatmul.bf16.gmra.mxu0 %v8776
      %v9356 = vpop.f32.mrf.mxu0
      %v9357 = vadd.f32 %v9328, %v9356
      %v9358 = vpop.f32.mrf.mxu0
      %v9359 = vadd.f32 %v9330, %v9358
      %9360 = vmatmul.bf16.gmra.mxu0 %v8777
      %v9361 = vpop.f32.mrf.mxu0
      %v9362 = vadd.f32 %v9333, %v9361
      %v9363 = vpop.f32.mrf.mxu0
      %v9364 = vadd.f32 %v9335, %v9363
      %9365 = vmatmul.bf16.gmra.mxu0 %v8778
      %v9366 = vpop.f32.mrf.mxu0
      %v9367 = vadd.f32 %v9338, %v9366
      %v9368 = vpop.f32.mrf.mxu0
      %v9369 = vadd.f32 %v9340, %v9368
      %9370 = vmatmul.bf16.gmra.mxu0 %v8779
      %v9371 = vpop.f32.mrf.mxu0
      %v9372 = vadd.f32 %v9343, %v9371
      %v9373 = vpop.f32.mrf.mxu0
      %v9374 = vadd.f32 %v9345, %v9373
      %9375 = vdwg.mxu0
      %9376 = vmatpush.bf16.msra.mxu0 %v2411
      %9377 = vmatpush.bf16.msra.mxu0 %v2407
      %9378 = vmatpush.bf16.msra.mxu0 %v2403
      %9379 = vmatpush.bf16.msra.mxu0 %v2399
      %9380 = vmatpush.bf16.msra.mxu0 %v2395
      %9381 = vmatpush.bf16.msra.mxu0 %v2391
      %9382 = vmatpush.bf16.msra.mxu0 %v2387
      %9383 = vmatpush.bf16.msra.mxu0 %v2383
      %9384 = vmatmul.bf16.gmra.mxu0 %v8792
      %v9385 = vpop.f32.mrf.mxu0
      %v9386 = vadd.f32 %v9357, %v9385
      %v9387 = vpop.f32.mrf.mxu0
      %v9388 = vadd.f32 %v9359, %v9387
      %9389 = vmatmul.bf16.gmra.mxu0 %v8793
      %v9390 = vpop.f32.mrf.mxu0
      %v9391 = vadd.f32 %v9362, %v9390
      %v9392 = vpop.f32.mrf.mxu0
      %v9393 = vadd.f32 %v9364, %v9392
      %9394 = vmatmul.bf16.gmra.mxu0 %v8794
      %v9395 = vpop.f32.mrf.mxu0
      %v9396 = vadd.f32 %v9367, %v9395
      %v9397 = vpop.f32.mrf.mxu0
      %v9398 = vadd.f32 %v9369, %v9397
      %9399 = vmatmul.bf16.gmra.mxu0 %v8795
      %v9400 = vpop.f32.mrf.mxu0
      %v9401 = vadd.f32 %v9372, %v9400
      %v9402 = vpop.f32.mrf.mxu0
      %v9403 = vadd.f32 %v9374, %v9402
      %9404 = vdwg.mxu0
      %9405 = vmatpush.bf16.msra.mxu0 %v2443
      %9406 = vmatpush.bf16.msra.mxu0 %v2439
      %9407 = vmatpush.bf16.msra.mxu0 %v2435
      %9408 = vmatpush.bf16.msra.mxu0 %v2431
      %9409 = vmatpush.bf16.msra.mxu0 %v2427
      %9410 = vmatpush.bf16.msra.mxu0 %v2423
      %9411 = vmatpush.bf16.msra.mxu0 %v2419
      %9412 = vmatpush.bf16.msra.mxu0 %v2415
      %9413 = vmatmul.bf16.gmra.mxu0 %v8808
      %v9414 = vpop.f32.mrf.mxu0
      %v9415 = vadd.f32 %v9386, %v9414
      %v9416 = vpop.f32.mrf.mxu0
      %v9417 = vadd.f32 %v9388, %v9416
      %9418 = vmatmul.bf16.gmra.mxu0 %v8809
      %v9419 = vpop.f32.mrf.mxu0
      %v9420 = vadd.f32 %v9391, %v9419
      %v9421 = vpop.f32.mrf.mxu0
      %v9422 = vadd.f32 %v9393, %v9421
      %9423 = vmatmul.bf16.gmra.mxu0 %v8810
      %v9424 = vpop.f32.mrf.mxu0
      %v9425 = vadd.f32 %v9396, %v9424
      %v9426 = vpop.f32.mrf.mxu0
      %v9427 = vadd.f32 %v9398, %v9426
      %9428 = vmatmul.bf16.gmra.mxu0 %v8811
      %v9429 = vpop.f32.mrf.mxu0
      %v9430 = vadd.f32 %v9401, %v9429
      %v9431 = vpop.f32.mrf.mxu0
      %v9432 = vadd.f32 %v9403, %v9431
      %9433 = vdwg.mxu0
      %9434 = vmatpush.bf16.msra.mxu0 %v2475
      %9435 = vmatpush.bf16.msra.mxu0 %v2471
      %9436 = vmatpush.bf16.msra.mxu0 %v2467
      %9437 = vmatpush.bf16.msra.mxu0 %v2463
      %9438 = vmatpush.bf16.msra.mxu0 %v2459
      %9439 = vmatpush.bf16.msra.mxu0 %v2455
      %9440 = vmatpush.bf16.msra.mxu0 %v2451
      %9441 = vmatpush.bf16.msra.mxu0 %v2447
      %9442 = vmatmul.bf16.gmra.mxu0 %v8824
      %v9443 = vpop.f32.mrf.mxu0
      %v9444 = vadd.f32 %v9415, %v9443
      %v9445 = vpop.f32.mrf.mxu0
      %v9446 = vadd.f32 %v9417, %v9445
      %9447 = vmatmul.bf16.gmra.mxu0 %v8825
      %v9448 = vpop.f32.mrf.mxu0
      %v9449 = vadd.f32 %v9420, %v9448
      %v9450 = vpop.f32.mrf.mxu0
      %v9451 = vadd.f32 %v9422, %v9450
      %9452 = vmatmul.bf16.gmra.mxu0 %v8826
      %v9453 = vpop.f32.mrf.mxu0
      %v9454 = vadd.f32 %v9425, %v9453
      %v9455 = vpop.f32.mrf.mxu0
      %v9456 = vadd.f32 %v9427, %v9455
      %9457 = vmatmul.bf16.gmra.mxu0 %v8827
      %v9458 = vpop.f32.mrf.mxu0
      %v9459 = vadd.f32 %v9430, %v9458
      %v9460 = vpop.f32.mrf.mxu0
      %v9461 = vadd.f32 %v9432, %v9460
      %9462 = vdwg.mxu0
      %9463 = vmatpush.bf16.msra.mxu0 %v2507
      %9464 = vmatpush.bf16.msra.mxu0 %v2503
      %9465 = vmatpush.bf16.msra.mxu0 %v2499
      %9466 = vmatpush.bf16.msra.mxu0 %v2495
      %9467 = vmatpush.bf16.msra.mxu0 %v2491
      %9468 = vmatpush.bf16.msra.mxu0 %v2487
      %9469 = vmatpush.bf16.msra.mxu0 %v2483
      %9470 = vmatpush.bf16.msra.mxu0 %v2479
      %9471 = vmatmul.bf16.gmra.mxu0 %v8840
      %v9472 = vpop.f32.mrf.mxu0
      %v9473 = vadd.f32 %v9444, %v9472
      %v9474 = vpop.f32.mrf.mxu0
      %v9475 = vadd.f32 %v9446, %v9474
      %9476 = vmatmul.bf16.gmra.mxu0 %v8841
      %v9477 = vpop.f32.mrf.mxu0
      %v9478 = vadd.f32 %v9449, %v9477
      %v9479 = vpop.f32.mrf.mxu0
      %v9480 = vadd.f32 %v9451, %v9479
      %9481 = vmatmul.bf16.gmra.mxu0 %v8842
      %v9482 = vpop.f32.mrf.mxu0
      %v9483 = vadd.f32 %v9454, %v9482
      %v9484 = vpop.f32.mrf.mxu0
      %v9485 = vadd.f32 %v9456, %v9484
      %9486 = vmatmul.bf16.gmra.mxu0 %v8843
      %v9487 = vpop.f32.mrf.mxu0
      %v9488 = vadd.f32 %v9459, %v9487
      %v9489 = vpop.f32.mrf.mxu0
      %v9490 = vadd.f32 %v9461, %v9489
      %9491 = vdwg.mxu0
      %9492 = vmatpush.bf16.msra.mxu0 %v2539
      %9493 = vmatpush.bf16.msra.mxu0 %v2535
      %9494 = vmatpush.bf16.msra.mxu0 %v2531
      %9495 = vmatpush.bf16.msra.mxu0 %v2527
      %9496 = vmatpush.bf16.msra.mxu0 %v2523
      %9497 = vmatpush.bf16.msra.mxu0 %v2519
      %9498 = vmatpush.bf16.msra.mxu0 %v2515
      %9499 = vmatpush.bf16.msra.mxu0 %v2511
      %9500 = vmatmul.bf16.gmra.mxu0 %v8856
      %v9501 = vpop.f32.mrf.mxu0
      %v9502 = vadd.f32 %v9473, %v9501
      %v9503 = vpop.f32.mrf.mxu0
      %v9504 = vadd.f32 %v9475, %v9503
      %9505 = vmatmul.bf16.gmra.mxu0 %v8857
      %v9506 = vpop.f32.mrf.mxu0
      %v9507 = vadd.f32 %v9478, %v9506
      %v9508 = vpop.f32.mrf.mxu0
      %v9509 = vadd.f32 %v9480, %v9508
      %9510 = vmatmul.bf16.gmra.mxu0 %v8858
      %v9511 = vpop.f32.mrf.mxu0
      %v9512 = vadd.f32 %v9483, %v9511
      %v9513 = vpop.f32.mrf.mxu0
      %v9514 = vadd.f32 %v9485, %v9513
      %9515 = vmatmul.bf16.gmra.mxu0 %v8859
      %v9516 = vpop.f32.mrf.mxu0
      %v9517 = vadd.f32 %v9488, %v9516
      %v9518 = vpop.f32.mrf.mxu0
      %v9519 = vadd.f32 %v9490, %v9518
      %9520 = vdwg.mxu0
      %9521 = vmatpush.bf16.msra.mxu0 %v2571
      %9522 = vmatpush.bf16.msra.mxu0 %v2567
      %9523 = vmatpush.bf16.msra.mxu0 %v2563
      %9524 = vmatpush.bf16.msra.mxu0 %v2559
      %9525 = vmatpush.bf16.msra.mxu0 %v2555
      %9526 = vmatpush.bf16.msra.mxu0 %v2551
      %9527 = vmatpush.bf16.msra.mxu0 %v2547
      %9528 = vmatpush.bf16.msra.mxu0 %v2543
      %9529 = vmatmul.bf16.gmra.mxu0 %v8872
      %v9530 = vpop.f32.mrf.mxu0
      %v9531 = vadd.f32 %v9502, %v9530
      %v9532 = vpop.f32.mrf.mxu0
      %v9533 = vadd.f32 %v9504, %v9532
      %9534 = vmatmul.bf16.gmra.mxu0 %v8873
      %v9535 = vpop.f32.mrf.mxu0
      %v9536 = vadd.f32 %v9507, %v9535
      %v9537 = vpop.f32.mrf.mxu0
      %v9538 = vadd.f32 %v9509, %v9537
      %9539 = vmatmul.bf16.gmra.mxu0 %v8874
      %v9540 = vpop.f32.mrf.mxu0
      %v9541 = vadd.f32 %v9512, %v9540
      %v9542 = vpop.f32.mrf.mxu0
      %v9543 = vadd.f32 %v9514, %v9542
      %9544 = vmatmul.bf16.gmra.mxu0 %v8875
      %v9545 = vpop.f32.mrf.mxu0
      %v9546 = vadd.f32 %v9517, %v9545
      %v9547 = vpop.f32.mrf.mxu0
      %v9548 = vadd.f32 %v9519, %v9547
      %9549 = vdwg.mxu0
      %9550 = vmatpush.bf16.msra.mxu0 %v2603
      %9551 = vmatpush.bf16.msra.mxu0 %v2599
      %9552 = vmatpush.bf16.msra.mxu0 %v2595
      %9553 = vmatpush.bf16.msra.mxu0 %v2591
      %9554 = vmatpush.bf16.msra.mxu0 %v2587
      %9555 = vmatpush.bf16.msra.mxu0 %v2583
      %9556 = vmatpush.bf16.msra.mxu0 %v2579
      %9557 = vmatpush.bf16.msra.mxu0 %v2575
      %9558 = vmatmul.bf16.gmra.mxu0 %v8888
      %v9559 = vpop.f32.mrf.mxu0
      %v9560 = vadd.f32 %v9531, %v9559
      %v9561 = vpop.f32.mrf.mxu0
      %v9562 = vadd.f32 %v9533, %v9561
      %9563 = vmatmul.bf16.gmra.mxu0 %v8889
      %v9564 = vpop.f32.mrf.mxu0
      %v9565 = vadd.f32 %v9536, %v9564
      %v9566 = vpop.f32.mrf.mxu0
      %v9567 = vadd.f32 %v9538, %v9566
      %9568 = vmatmul.bf16.gmra.mxu0 %v8890
      %v9569 = vpop.f32.mrf.mxu0
      %v9570 = vadd.f32 %v9541, %v9569
      %v9571 = vpop.f32.mrf.mxu0
      %v9572 = vadd.f32 %v9543, %v9571
      %9573 = vmatmul.bf16.gmra.mxu0 %v8891
      %v9574 = vpop.f32.mrf.mxu0
      %v9575 = vadd.f32 %v9546, %v9574
      %v9576 = vpop.f32.mrf.mxu0
      %v9577 = vadd.f32 %v9548, %v9576
      %9578 = vdwg.mxu0
      %9579 = vmatpush.bf16.msra.mxu0 %v2635
      %9580 = vmatpush.bf16.msra.mxu0 %v2631
      %9581 = vmatpush.bf16.msra.mxu0 %v2627
      %9582 = vmatpush.bf16.msra.mxu0 %v2623
      %9583 = vmatpush.bf16.msra.mxu0 %v2619
      %9584 = vmatpush.bf16.msra.mxu0 %v2615
      %9585 = vmatpush.bf16.msra.mxu0 %v2611
      %9586 = vmatpush.bf16.msra.mxu0 %v2607
      %9587 = vmatmul.bf16.gmra.mxu0 %v8904
      %v9588 = vpop.f32.mrf.mxu0
      %v9589 = vadd.f32 %v9560, %v9588
      %v9590 = vpop.f32.mrf.mxu0
      %v9591 = vadd.f32 %v9562, %v9590
      %9592 = vmatmul.bf16.gmra.mxu0 %v8905
      %v9593 = vpop.f32.mrf.mxu0
      %v9594 = vadd.f32 %v9565, %v9593
      %v9595 = vpop.f32.mrf.mxu0
      %v9596 = vadd.f32 %v9567, %v9595
      %9597 = vmatmul.bf16.gmra.mxu0 %v8906
      %v9598 = vpop.f32.mrf.mxu0
      %v9599 = vadd.f32 %v9570, %v9598
      %v9600 = vpop.f32.mrf.mxu0
      %v9601 = vadd.f32 %v9572, %v9600
      %9602 = vmatmul.bf16.gmra.mxu0 %v8907
      %v9603 = vpop.f32.mrf.mxu0
      %v9604 = vadd.f32 %v9575, %v9603
      %v9605 = vpop.f32.mrf.mxu0
      %v9606 = vadd.f32 %v9577, %v9605
      %9607 = vdwg.mxu0
      %9608 = vmatpush.bf16.msra.mxu0 %v2284
      %9609 = vmatpush.bf16.msra.mxu0 %v2280
      %9610 = vmatpush.bf16.msra.mxu0 %v2276
      %9611 = vmatpush.bf16.msra.mxu0 %v2272
      %9612 = vmatpush.bf16.msra.mxu0 %v2268
      %9613 = vmatpush.bf16.msra.mxu0 %v2264
      %9614 = vmatpush.bf16.msra.mxu0 %v2260
      %9615 = vmatpush.bf16.msra.mxu0 %v2256
      %9616 = vmatmul.bf16.gmra.mxu0 %v8728
      %v9617 = vpop.f32.mrf.mxu0
      %v9618 = vadd.f32 %v904, %v9617
      %v9619 = vpop.f32.mrf.mxu0
      %v9620 = vadd.f32 %v904, %v9619
      %9621 = vmatmul.bf16.gmra.mxu0 %v8729
      %v9622 = vpop.f32.mrf.mxu0
      %v9623 = vadd.f32 %v904, %v9622
      %v9624 = vpop.f32.mrf.mxu0
      %v9625 = vadd.f32 %v904, %v9624
      %9626 = vmatmul.bf16.gmra.mxu0 %v8730
      %v9627 = vpop.f32.mrf.mxu0
      %v9628 = vadd.f32 %v904, %v9627
      %v9629 = vpop.f32.mrf.mxu0
      %v9630 = vadd.f32 %v904, %v9629
      %9631 = vmatmul.bf16.gmra.mxu0 %v8731
      %v9632 = vpop.f32.mrf.mxu0
      %v9633 = vadd.f32 %v904, %v9632
      %v9634 = vpop.f32.mrf.mxu0
      %v9635 = vadd.f32 %v904, %v9634
      %9636 = vdwg.mxu0
      %9637 = vmatpush.bf16.msra.mxu0 %v2316
      %9638 = vmatpush.bf16.msra.mxu0 %v2312
      %9639 = vmatpush.bf16.msra.mxu0 %v2308
      %9640 = vmatpush.bf16.msra.mxu0 %v2304
      %9641 = vmatpush.bf16.msra.mxu0 %v2300
      %9642 = vmatpush.bf16.msra.mxu0 %v2296
      %9643 = vmatpush.bf16.msra.mxu0 %v2292
      %9644 = vmatpush.bf16.msra.mxu0 %v2288
      %9645 = vmatmul.bf16.gmra.mxu0 %v8744
      %v9646 = vpop.f32.mrf.mxu0
      %v9647 = vadd.f32 %v9618, %v9646
      %v9648 = vpop.f32.mrf.mxu0
      %v9649 = vadd.f32 %v9620, %v9648
      %9650 = vmatmul.bf16.gmra.mxu0 %v8745
      %v9651 = vpop.f32.mrf.mxu0
      %v9652 = vadd.f32 %v9623, %v9651
      %v9653 = vpop.f32.mrf.mxu0
      %v9654 = vadd.f32 %v9625, %v9653
      %9655 = vmatmul.bf16.gmra.mxu0 %v8746
      %v9656 = vpop.f32.mrf.mxu0
      %v9657 = vadd.f32 %v9628, %v9656
      %v9658 = vpop.f32.mrf.mxu0
      %v9659 = vadd.f32 %v9630, %v9658
      %9660 = vmatmul.bf16.gmra.mxu0 %v8747
      %v9661 = vpop.f32.mrf.mxu0
      %v9662 = vadd.f32 %v9633, %v9661
      %v9663 = vpop.f32.mrf.mxu0
      %v9664 = vadd.f32 %v9635, %v9663
      %9665 = vdwg.mxu0
      %9666 = vmatpush.bf16.msra.mxu0 %v2348
      %9667 = vmatpush.bf16.msra.mxu0 %v2344
      %9668 = vmatpush.bf16.msra.mxu0 %v2340
      %9669 = vmatpush.bf16.msra.mxu0 %v2336
      %9670 = vmatpush.bf16.msra.mxu0 %v2332
      %9671 = vmatpush.bf16.msra.mxu0 %v2328
      %9672 = vmatpush.bf16.msra.mxu0 %v2324
      %9673 = vmatpush.bf16.msra.mxu0 %v2320
      %9674 = vmatmul.bf16.gmra.mxu0 %v8760
      %v9675 = vpop.f32.mrf.mxu0
      %v9676 = vadd.f32 %v9647, %v9675
      %v9677 = vpop.f32.mrf.mxu0
      %v9678 = vadd.f32 %v9649, %v9677
      %9679 = vmatmul.bf16.gmra.mxu0 %v8761
      %v9680 = vpop.f32.mrf.mxu0
      %v9681 = vadd.f32 %v9652, %v9680
      %v9682 = vpop.f32.mrf.mxu0
      %v9683 = vadd.f32 %v9654, %v9682
      %9684 = vmatmul.bf16.gmra.mxu0 %v8762
      %v9685 = vpop.f32.mrf.mxu0
      %v9686 = vadd.f32 %v9657, %v9685
      %v9687 = vpop.f32.mrf.mxu0
      %v9688 = vadd.f32 %v9659, %v9687
      %9689 = vmatmul.bf16.gmra.mxu0 %v8763
      %v9690 = vpop.f32.mrf.mxu0
      %v9691 = vadd.f32 %v9662, %v9690
      %v9692 = vpop.f32.mrf.mxu0
      %v9693 = vadd.f32 %v9664, %v9692
      %9694 = vdwg.mxu0
      %9695 = vmatpush.bf16.msra.mxu0 %v2380
      %9696 = vmatpush.bf16.msra.mxu0 %v2376
      %9697 = vmatpush.bf16.msra.mxu0 %v2372
      %9698 = vmatpush.bf16.msra.mxu0 %v2368
      %9699 = vmatpush.bf16.msra.mxu0 %v2364
      %9700 = vmatpush.bf16.msra.mxu0 %v2360
      %9701 = vmatpush.bf16.msra.mxu0 %v2356
      %9702 = vmatpush.bf16.msra.mxu0 %v2352
      %9703 = vmatmul.bf16.gmra.mxu0 %v8776
      %v9704 = vpop.f32.mrf.mxu0
      %v9705 = vadd.f32 %v9676, %v9704
      %v9706 = vpop.f32.mrf.mxu0
      %v9707 = vadd.f32 %v9678, %v9706
      %9708 = vmatmul.bf16.gmra.mxu0 %v8777
      %v9709 = vpop.f32.mrf.mxu0
      %v9710 = vadd.f32 %v9681, %v9709
      %v9711 = vpop.f32.mrf.mxu0
      %v9712 = vadd.f32 %v9683, %v9711
      %9713 = vmatmul.bf16.gmra.mxu0 %v8778
      %v9714 = vpop.f32.mrf.mxu0
      %v9715 = vadd.f32 %v9686, %v9714
      %v9716 = vpop.f32.mrf.mxu0
      %v9717 = vadd.f32 %v9688, %v9716
      %9718 = vmatmul.bf16.gmra.mxu0 %v8779
      %v9719 = vpop.f32.mrf.mxu0
      %v9720 = vadd.f32 %v9691, %v9719
      %v9721 = vpop.f32.mrf.mxu0
      %v9722 = vadd.f32 %v9693, %v9721
      %9723 = vdwg.mxu0
      %9724 = vmatpush.bf16.msra.mxu0 %v2412
      %9725 = vmatpush.bf16.msra.mxu0 %v2408
      %9726 = vmatpush.bf16.msra.mxu0 %v2404
      %9727 = vmatpush.bf16.msra.mxu0 %v2400
      %9728 = vmatpush.bf16.msra.mxu0 %v2396
      %9729 = vmatpush.bf16.msra.mxu0 %v2392
      %9730 = vmatpush.bf16.msra.mxu0 %v2388
      %9731 = vmatpush.bf16.msra.mxu0 %v2384
      %9732 = vmatmul.bf16.gmra.mxu0 %v8792
      %v9733 = vpop.f32.mrf.mxu0
      %v9734 = vadd.f32 %v9705, %v9733
      %v9735 = vpop.f32.mrf.mxu0
      %v9736 = vadd.f32 %v9707, %v9735
      %9737 = vmatmul.bf16.gmra.mxu0 %v8793
      %v9738 = vpop.f32.mrf.mxu0
      %v9739 = vadd.f32 %v9710, %v9738
      %v9740 = vpop.f32.mrf.mxu0
      %v9741 = vadd.f32 %v9712, %v9740
      %9742 = vmatmul.bf16.gmra.mxu0 %v8794
      %v9743 = vpop.f32.mrf.mxu0
      %v9744 = vadd.f32 %v9715, %v9743
      %v9745 = vpop.f32.mrf.mxu0
      %v9746 = vadd.f32 %v9717, %v9745
      %9747 = vmatmul.bf16.gmra.mxu0 %v8795
      %v9748 = vpop.f32.mrf.mxu0
      %v9749 = vadd.f32 %v9720, %v9748
      %v9750 = vpop.f32.mrf.mxu0
      %v9751 = vadd.f32 %v9722, %v9750
      %9752 = vdwg.mxu0
      %9753 = vmatpush.bf16.msra.mxu0 %v2444
      %9754 = vmatpush.bf16.msra.mxu0 %v2440
      %9755 = vmatpush.bf16.msra.mxu0 %v2436
      %9756 = vmatpush.bf16.msra.mxu0 %v2432
      %9757 = vmatpush.bf16.msra.mxu0 %v2428
      %9758 = vmatpush.bf16.msra.mxu0 %v2424
      %9759 = vmatpush.bf16.msra.mxu0 %v2420
      %9760 = vmatpush.bf16.msra.mxu0 %v2416
      %9761 = vmatmul.bf16.gmra.mxu0 %v8808
      %v9762 = vpop.f32.mrf.mxu0
      %v9763 = vadd.f32 %v9734, %v9762
      %v9764 = vpop.f32.mrf.mxu0
      %v9765 = vadd.f32 %v9736, %v9764
      %9766 = vmatmul.bf16.gmra.mxu0 %v8809
      %v9767 = vpop.f32.mrf.mxu0
      %v9768 = vadd.f32 %v9739, %v9767
      %v9769 = vpop.f32.mrf.mxu0
      %v9770 = vadd.f32 %v9741, %v9769
      %9771 = vmatmul.bf16.gmra.mxu0 %v8810
      %v9772 = vpop.f32.mrf.mxu0
      %v9773 = vadd.f32 %v9744, %v9772
      %v9774 = vpop.f32.mrf.mxu0
      %v9775 = vadd.f32 %v9746, %v9774
      %9776 = vmatmul.bf16.gmra.mxu0 %v8811
      %v9777 = vpop.f32.mrf.mxu0
      %v9778 = vadd.f32 %v9749, %v9777
      %v9779 = vpop.f32.mrf.mxu0
      %v9780 = vadd.f32 %v9751, %v9779
      %9781 = vdwg.mxu0
      %9782 = vmatpush.bf16.msra.mxu0 %v2476
      %9783 = vmatpush.bf16.msra.mxu0 %v2472
      %9784 = vmatpush.bf16.msra.mxu0 %v2468
      %9785 = vmatpush.bf16.msra.mxu0 %v2464
      %9786 = vmatpush.bf16.msra.mxu0 %v2460
      %9787 = vmatpush.bf16.msra.mxu0 %v2456
      %9788 = vmatpush.bf16.msra.mxu0 %v2452
      %9789 = vmatpush.bf16.msra.mxu0 %v2448
      %9790 = vmatmul.bf16.gmra.mxu0 %v8824
      %v9791 = vpop.f32.mrf.mxu0
      %v9792 = vadd.f32 %v9763, %v9791
      %v9793 = vpop.f32.mrf.mxu0
      %v9794 = vadd.f32 %v9765, %v9793
      %9795 = vmatmul.bf16.gmra.mxu0 %v8825
      %v9796 = vpop.f32.mrf.mxu0
      %v9797 = vadd.f32 %v9768, %v9796
      %v9798 = vpop.f32.mrf.mxu0
      %v9799 = vadd.f32 %v9770, %v9798
      %9800 = vmatmul.bf16.gmra.mxu0 %v8826
      %v9801 = vpop.f32.mrf.mxu0
      %v9802 = vadd.f32 %v9773, %v9801
      %v9803 = vpop.f32.mrf.mxu0
      %v9804 = vadd.f32 %v9775, %v9803
      %9805 = vmatmul.bf16.gmra.mxu0 %v8827
      %v9806 = vpop.f32.mrf.mxu0
      %v9807 = vadd.f32 %v9778, %v9806
      %v9808 = vpop.f32.mrf.mxu0
      %v9809 = vadd.f32 %v9780, %v9808
      %9810 = vdwg.mxu0
      %9811 = vmatpush.bf16.msra.mxu0 %v2508
      %9812 = vmatpush.bf16.msra.mxu0 %v2504
      %9813 = vmatpush.bf16.msra.mxu0 %v2500
      %9814 = vmatpush.bf16.msra.mxu0 %v2496
      %9815 = vmatpush.bf16.msra.mxu0 %v2492
      %9816 = vmatpush.bf16.msra.mxu0 %v2488
      %9817 = vmatpush.bf16.msra.mxu0 %v2484
      %9818 = vmatpush.bf16.msra.mxu0 %v2480
      %9819 = vmatmul.bf16.gmra.mxu0 %v8840
      %v9820 = vpop.f32.mrf.mxu0
      %v9821 = vadd.f32 %v9792, %v9820
      %v9822 = vpop.f32.mrf.mxu0
      %v9823 = vadd.f32 %v9794, %v9822
      %9824 = vmatmul.bf16.gmra.mxu0 %v8841
      %v9825 = vpop.f32.mrf.mxu0
      %v9826 = vadd.f32 %v9797, %v9825
      %v9827 = vpop.f32.mrf.mxu0
      %v9828 = vadd.f32 %v9799, %v9827
      %9829 = vmatmul.bf16.gmra.mxu0 %v8842
      %v9830 = vpop.f32.mrf.mxu0
      %v9831 = vadd.f32 %v9802, %v9830
      %v9832 = vpop.f32.mrf.mxu0
      %v9833 = vadd.f32 %v9804, %v9832
      %9834 = vmatmul.bf16.gmra.mxu0 %v8843
      %v9835 = vpop.f32.mrf.mxu0
      %v9836 = vadd.f32 %v9807, %v9835
      %v9837 = vpop.f32.mrf.mxu0
      %v9838 = vadd.f32 %v9809, %v9837
      %9839 = vdwg.mxu0
      %9840 = vmatpush.bf16.msra.mxu0 %v2540
      %9841 = vmatpush.bf16.msra.mxu0 %v2536
      %9842 = vmatpush.bf16.msra.mxu0 %v2532
      %9843 = vmatpush.bf16.msra.mxu0 %v2528
      %9844 = vmatpush.bf16.msra.mxu0 %v2524
      %9845 = vmatpush.bf16.msra.mxu0 %v2520
      %9846 = vmatpush.bf16.msra.mxu0 %v2516
      %9847 = vmatpush.bf16.msra.mxu0 %v2512
      %9848 = vmatmul.bf16.gmra.mxu0 %v8856
      %v9849 = vpop.f32.mrf.mxu0
      %v9850 = vadd.f32 %v9821, %v9849
      %v9851 = vpop.f32.mrf.mxu0
      %v9852 = vadd.f32 %v9823, %v9851
      %9853 = vmatmul.bf16.gmra.mxu0 %v8857
      %v9854 = vpop.f32.mrf.mxu0
      %v9855 = vadd.f32 %v9826, %v9854
      %v9856 = vpop.f32.mrf.mxu0
      %v9857 = vadd.f32 %v9828, %v9856
      %9858 = vmatmul.bf16.gmra.mxu0 %v8858
      %v9859 = vpop.f32.mrf.mxu0
      %v9860 = vadd.f32 %v9831, %v9859
      %v9861 = vpop.f32.mrf.mxu0
      %v9862 = vadd.f32 %v9833, %v9861
      %9863 = vmatmul.bf16.gmra.mxu0 %v8859
      %v9864 = vpop.f32.mrf.mxu0
      %v9865 = vadd.f32 %v9836, %v9864
      %v9866 = vpop.f32.mrf.mxu0
      %v9867 = vadd.f32 %v9838, %v9866
      %9868 = vdwg.mxu0
      %9869 = vmatpush.bf16.msra.mxu0 %v2572
      %9870 = vmatpush.bf16.msra.mxu0 %v2568
      %9871 = vmatpush.bf16.msra.mxu0 %v2564
      %9872 = vmatpush.bf16.msra.mxu0 %v2560
      %9873 = vmatpush.bf16.msra.mxu0 %v2556
      %9874 = vmatpush.bf16.msra.mxu0 %v2552
      %9875 = vmatpush.bf16.msra.mxu0 %v2548
      %9876 = vmatpush.bf16.msra.mxu0 %v2544
      %9877 = vmatmul.bf16.gmra.mxu0 %v8872
      %v9878 = vpop.f32.mrf.mxu0
      %v9879 = vadd.f32 %v9850, %v9878
      %v9880 = vpop.f32.mrf.mxu0
      %v9881 = vadd.f32 %v9852, %v9880
      %9882 = vmatmul.bf16.gmra.mxu0 %v8873
      %v9883 = vpop.f32.mrf.mxu0
      %v9884 = vadd.f32 %v9855, %v9883
      %v9885 = vpop.f32.mrf.mxu0
      %v9886 = vadd.f32 %v9857, %v9885
      %9887 = vmatmul.bf16.gmra.mxu0 %v8874
      %v9888 = vpop.f32.mrf.mxu0
      %v9889 = vadd.f32 %v9860, %v9888
      %v9890 = vpop.f32.mrf.mxu0
      %v9891 = vadd.f32 %v9862, %v9890
      %9892 = vmatmul.bf16.gmra.mxu0 %v8875
      %v9893 = vpop.f32.mrf.mxu0
      %v9894 = vadd.f32 %v9865, %v9893
      %v9895 = vpop.f32.mrf.mxu0
      %v9896 = vadd.f32 %v9867, %v9895
      %9897 = vdwg.mxu0
      %9898 = vmatpush.bf16.msra.mxu0 %v2604
      %9899 = vmatpush.bf16.msra.mxu0 %v2600
      %9900 = vmatpush.bf16.msra.mxu0 %v2596
      %9901 = vmatpush.bf16.msra.mxu0 %v2592
      %9902 = vmatpush.bf16.msra.mxu0 %v2588
      %9903 = vmatpush.bf16.msra.mxu0 %v2584
      %9904 = vmatpush.bf16.msra.mxu0 %v2580
      %9905 = vmatpush.bf16.msra.mxu0 %v2576
      %9906 = vmatmul.bf16.gmra.mxu0 %v8888
      %v9907 = vpop.f32.mrf.mxu0
      %v9908 = vadd.f32 %v9879, %v9907
      %v9909 = vpop.f32.mrf.mxu0
      %v9910 = vadd.f32 %v9881, %v9909
      %9911 = vmatmul.bf16.gmra.mxu0 %v8889
      %v9912 = vpop.f32.mrf.mxu0
      %v9913 = vadd.f32 %v9884, %v9912
      %v9914 = vpop.f32.mrf.mxu0
      %v9915 = vadd.f32 %v9886, %v9914
      %9916 = vmatmul.bf16.gmra.mxu0 %v8890
      %v9917 = vpop.f32.mrf.mxu0
      %v9918 = vadd.f32 %v9889, %v9917
      %v9919 = vpop.f32.mrf.mxu0
      %v9920 = vadd.f32 %v9891, %v9919
      %9921 = vmatmul.bf16.gmra.mxu0 %v8891
      %v9922 = vpop.f32.mrf.mxu0
      %v9923 = vadd.f32 %v9894, %v9922
      %v9924 = vpop.f32.mrf.mxu0
      %v9925 = vadd.f32 %v9896, %v9924
      %9926 = vdwg.mxu0
      %9927 = vmatpush.bf16.msra.mxu0 %v2636
      %9928 = vmatpush.bf16.msra.mxu0 %v2632
      %9929 = vmatpush.bf16.msra.mxu0 %v2628
      %9930 = vmatpush.bf16.msra.mxu0 %v2624
      %9931 = vmatpush.bf16.msra.mxu0 %v2620
      %9932 = vmatpush.bf16.msra.mxu0 %v2616
      %9933 = vmatpush.bf16.msra.mxu0 %v2612
      %9934 = vmatpush.bf16.msra.mxu0 %v2608
      %9935 = vmatmul.bf16.gmra.mxu0 %v8904
      %v9936 = vpop.f32.mrf.mxu0
      %v9937 = vadd.f32 %v9908, %v9936
      %v9938 = vpop.f32.mrf.mxu0
      %v9939 = vadd.f32 %v9910, %v9938
      %9940 = vmatmul.bf16.gmra.mxu0 %v8905
      %v9941 = vpop.f32.mrf.mxu0
      %v9942 = vadd.f32 %v9913, %v9941
      %v9943 = vpop.f32.mrf.mxu0
      %v9944 = vadd.f32 %v9915, %v9943
      %9945 = vmatmul.bf16.gmra.mxu0 %v8906
      %v9946 = vpop.f32.mrf.mxu0
      %v9947 = vadd.f32 %v9918, %v9946
      %v9948 = vpop.f32.mrf.mxu0
      %v9949 = vadd.f32 %v9920, %v9948
      %9950 = vmatmul.bf16.gmra.mxu0 %v8907
      %v9951 = vpop.f32.mrf.mxu0
      %v9952 = vadd.f32 %v9923, %v9951
      %v9953 = vpop.f32.mrf.mxu0
      %v9954 = vadd.f32 %v9925, %v9953
      %9955 = vdwg.mxu0
      %9956 = vmatpush.bf16.msra.mxu0 %v2285
      %9957 = vmatpush.bf16.msra.mxu0 %v2281
      %9958 = vmatpush.bf16.msra.mxu0 %v2277
      %9959 = vmatpush.bf16.msra.mxu0 %v2273
      %9960 = vmatpush.bf16.msra.mxu0 %v2269
      %9961 = vmatpush.bf16.msra.mxu0 %v2265
      %9962 = vmatpush.bf16.msra.mxu0 %v2261
      %9963 = vmatpush.bf16.msra.mxu0 %v2257
      %9964 = vmatmul.bf16.gmra.mxu0 %v8728
      %v9965 = vpop.f32.mrf.mxu0
      %v9966 = vadd.f32 %v905, %v9965
      %v9967 = vpop.f32.mrf.mxu0
      %v9968 = vadd.f32 %v905, %v9967
      %9969 = vmatmul.bf16.gmra.mxu0 %v8729
      %v9970 = vpop.f32.mrf.mxu0
      %v9971 = vadd.f32 %v905, %v9970
      %v9972 = vpop.f32.mrf.mxu0
      %v9973 = vadd.f32 %v905, %v9972
      %9974 = vmatmul.bf16.gmra.mxu0 %v8730
      %v9975 = vpop.f32.mrf.mxu0
      %v9976 = vadd.f32 %v905, %v9975
      %v9977 = vpop.f32.mrf.mxu0
      %v9978 = vadd.f32 %v905, %v9977
      %9979 = vmatmul.bf16.gmra.mxu0 %v8731
      %v9980 = vpop.f32.mrf.mxu0
      %v9981 = vadd.f32 %v905, %v9980
      %v9982 = vpop.f32.mrf.mxu0
      %v9983 = vadd.f32 %v905, %v9982
      %9984 = vdwg.mxu0
      %9985 = vmatpush.bf16.msra.mxu0 %v2317
      %9986 = vmatpush.bf16.msra.mxu0 %v2313
      %9987 = vmatpush.bf16.msra.mxu0 %v2309
      %9988 = vmatpush.bf16.msra.mxu0 %v2305
      %9989 = vmatpush.bf16.msra.mxu0 %v2301
      %9990 = vmatpush.bf16.msra.mxu0 %v2297
      %9991 = vmatpush.bf16.msra.mxu0 %v2293
      %9992 = vmatpush.bf16.msra.mxu0 %v2289
      %9993 = vmatmul.bf16.gmra.mxu0 %v8744
      %v9994 = vpop.f32.mrf.mxu0
      %v9995 = vadd.f32 %v9966, %v9994
      %v9996 = vpop.f32.mrf.mxu0
      %v9997 = vadd.f32 %v9968, %v9996
      %9998 = vmatmul.bf16.gmra.mxu0 %v8745
      %v9999 = vpop.f32.mrf.mxu0
      %v10000 = vadd.f32 %v9971, %v9999
      %v10001 = vpop.f32.mrf.mxu0
      %v10002 = vadd.f32 %v9973, %v10001
      %10003 = vmatmul.bf16.gmra.mxu0 %v8746
      %v10004 = vpop.f32.mrf.mxu0
      %v10005 = vadd.f32 %v9976, %v10004
      %v10006 = vpop.f32.mrf.mxu0
      %v10007 = vadd.f32 %v9978, %v10006
      %10008 = vmatmul.bf16.gmra.mxu0 %v8747
      %v10009 = vpop.f32.mrf.mxu0
      %v10010 = vadd.f32 %v9981, %v10009
      %v10011 = vpop.f32.mrf.mxu0
      %v10012 = vadd.f32 %v9983, %v10011
      %10013 = vdwg.mxu0
      %10014 = vmatpush.bf16.msra.mxu0 %v2349
      %10015 = vmatpush.bf16.msra.mxu0 %v2345
      %10016 = vmatpush.bf16.msra.mxu0 %v2341
      %10017 = vmatpush.bf16.msra.mxu0 %v2337
      %10018 = vmatpush.bf16.msra.mxu0 %v2333
      %10019 = vmatpush.bf16.msra.mxu0 %v2329
      %10020 = vmatpush.bf16.msra.mxu0 %v2325
      %10021 = vmatpush.bf16.msra.mxu0 %v2321
      %10022 = vmatmul.bf16.gmra.mxu0 %v8760
      %v10023 = vpop.f32.mrf.mxu0
      %v10024 = vadd.f32 %v9995, %v10023
      %v10025 = vpop.f32.mrf.mxu0
      %v10026 = vadd.f32 %v9997, %v10025
      %10027 = vmatmul.bf16.gmra.mxu0 %v8761
      %v10028 = vpop.f32.mrf.mxu0
      %v10029 = vadd.f32 %v10000, %v10028
      %v10030 = vpop.f32.mrf.mxu0
      %v10031 = vadd.f32 %v10002, %v10030
      %10032 = vmatmul.bf16.gmra.mxu0 %v8762
      %v10033 = vpop.f32.mrf.mxu0
      %v10034 = vadd.f32 %v10005, %v10033
      %v10035 = vpop.f32.mrf.mxu0
      %v10036 = vadd.f32 %v10007, %v10035
      %10037 = vmatmul.bf16.gmra.mxu0 %v8763
      %v10038 = vpop.f32.mrf.mxu0
      %v10039 = vadd.f32 %v10010, %v10038
      %v10040 = vpop.f32.mrf.mxu0
      %v10041 = vadd.f32 %v10012, %v10040
      %10042 = vdwg.mxu0
      %10043 = vmatpush.bf16.msra.mxu0 %v2381
      %10044 = vmatpush.bf16.msra.mxu0 %v2377
      %10045 = vmatpush.bf16.msra.mxu0 %v2373
      %10046 = vmatpush.bf16.msra.mxu0 %v2369
      %10047 = vmatpush.bf16.msra.mxu0 %v2365
      %10048 = vmatpush.bf16.msra.mxu0 %v2361
      %10049 = vmatpush.bf16.msra.mxu0 %v2357
      %10050 = vmatpush.bf16.msra.mxu0 %v2353
      %10051 = vmatmul.bf16.gmra.mxu0 %v8776
      %v10052 = vpop.f32.mrf.mxu0
      %v10053 = vadd.f32 %v10024, %v10052
      %v10054 = vpop.f32.mrf.mxu0
      %v10055 = vadd.f32 %v10026, %v10054
      %10056 = vmatmul.bf16.gmra.mxu0 %v8777
      %v10057 = vpop.f32.mrf.mxu0
      %v10058 = vadd.f32 %v10029, %v10057
      %v10059 = vpop.f32.mrf.mxu0
      %v10060 = vadd.f32 %v10031, %v10059
      %10061 = vmatmul.bf16.gmra.mxu0 %v8778
      %v10062 = vpop.f32.mrf.mxu0
      %v10063 = vadd.f32 %v10034, %v10062
      %v10064 = vpop.f32.mrf.mxu0
      %v10065 = vadd.f32 %v10036, %v10064
      %10066 = vmatmul.bf16.gmra.mxu0 %v8779
      %v10067 = vpop.f32.mrf.mxu0
      %v10068 = vadd.f32 %v10039, %v10067
      %v10069 = vpop.f32.mrf.mxu0
      %v10070 = vadd.f32 %v10041, %v10069
      %10071 = vdwg.mxu0
      %10072 = vmatpush.bf16.msra.mxu0 %v2413
      %10073 = vmatpush.bf16.msra.mxu0 %v2409
      %10074 = vmatpush.bf16.msra.mxu0 %v2405
      %10075 = vmatpush.bf16.msra.mxu0 %v2401
      %10076 = vmatpush.bf16.msra.mxu0 %v2397
      %10077 = vmatpush.bf16.msra.mxu0 %v2393
      %10078 = vmatpush.bf16.msra.mxu0 %v2389
      %10079 = vmatpush.bf16.msra.mxu0 %v2385
      %10080 = vmatmul.bf16.gmra.mxu0 %v8792
      %v10081 = vpop.f32.mrf.mxu0
      %v10082 = vadd.f32 %v10053, %v10081
      %v10083 = vpop.f32.mrf.mxu0
      %v10084 = vadd.f32 %v10055, %v10083
      %10085 = vmatmul.bf16.gmra.mxu0 %v8793
      %v10086 = vpop.f32.mrf.mxu0
      %v10087 = vadd.f32 %v10058, %v10086
      %v10088 = vpop.f32.mrf.mxu0
      %v10089 = vadd.f32 %v10060, %v10088
      %10090 = vmatmul.bf16.gmra.mxu0 %v8794
      %v10091 = vpop.f32.mrf.mxu0
      %v10092 = vadd.f32 %v10063, %v10091
      %v10093 = vpop.f32.mrf.mxu0
      %v10094 = vadd.f32 %v10065, %v10093
      %10095 = vmatmul.bf16.gmra.mxu0 %v8795
      %v10096 = vpop.f32.mrf.mxu0
      %v10097 = vadd.f32 %v10068, %v10096
      %v10098 = vpop.f32.mrf.mxu0
      %v10099 = vadd.f32 %v10070, %v10098
      %10100 = vdwg.mxu0
      %10101 = vmatpush.bf16.msra.mxu0 %v2445
      %10102 = vmatpush.bf16.msra.mxu0 %v2441
      %10103 = vmatpush.bf16.msra.mxu0 %v2437
      %10104 = vmatpush.bf16.msra.mxu0 %v2433
      %10105 = vmatpush.bf16.msra.mxu0 %v2429
      %10106 = vmatpush.bf16.msra.mxu0 %v2425
      %10107 = vmatpush.bf16.msra.mxu0 %v2421
      %10108 = vmatpush.bf16.msra.mxu0 %v2417
      %10109 = vmatmul.bf16.gmra.mxu0 %v8808
      %v10110 = vpop.f32.mrf.mxu0
      %v10111 = vadd.f32 %v10082, %v10110
      %v10112 = vpop.f32.mrf.mxu0
      %v10113 = vadd.f32 %v10084, %v10112
      %10114 = vmatmul.bf16.gmra.mxu0 %v8809
      %v10115 = vpop.f32.mrf.mxu0
      %v10116 = vadd.f32 %v10087, %v10115
      %v10117 = vpop.f32.mrf.mxu0
      %v10118 = vadd.f32 %v10089, %v10117
      %10119 = vmatmul.bf16.gmra.mxu0 %v8810
      %v10120 = vpop.f32.mrf.mxu0
      %v10121 = vadd.f32 %v10092, %v10120
      %v10122 = vpop.f32.mrf.mxu0
      %v10123 = vadd.f32 %v10094, %v10122
      %10124 = vmatmul.bf16.gmra.mxu0 %v8811
      %v10125 = vpop.f32.mrf.mxu0
      %v10126 = vadd.f32 %v10097, %v10125
      %v10127 = vpop.f32.mrf.mxu0
      %v10128 = vadd.f32 %v10099, %v10127
      %10129 = vdwg.mxu0
      %10130 = vmatpush.bf16.msra.mxu0 %v2477
      %10131 = vmatpush.bf16.msra.mxu0 %v2473
      %10132 = vmatpush.bf16.msra.mxu0 %v2469
      %10133 = vmatpush.bf16.msra.mxu0 %v2465
      %10134 = vmatpush.bf16.msra.mxu0 %v2461
      %10135 = vmatpush.bf16.msra.mxu0 %v2457
      %10136 = vmatpush.bf16.msra.mxu0 %v2453
      %10137 = vmatpush.bf16.msra.mxu0 %v2449
      %10138 = vmatmul.bf16.gmra.mxu0 %v8824
      %v10139 = vpop.f32.mrf.mxu0
      %v10140 = vadd.f32 %v10111, %v10139
      %v10141 = vpop.f32.mrf.mxu0
      %v10142 = vadd.f32 %v10113, %v10141
      %10143 = vmatmul.bf16.gmra.mxu0 %v8825
      %v10144 = vpop.f32.mrf.mxu0
      %v10145 = vadd.f32 %v10116, %v10144
      %v10146 = vpop.f32.mrf.mxu0
      %v10147 = vadd.f32 %v10118, %v10146
      %10148 = vmatmul.bf16.gmra.mxu0 %v8826
      %v10149 = vpop.f32.mrf.mxu0
      %v10150 = vadd.f32 %v10121, %v10149
      %v10151 = vpop.f32.mrf.mxu0
      %v10152 = vadd.f32 %v10123, %v10151
      %10153 = vmatmul.bf16.gmra.mxu0 %v8827
      %v10154 = vpop.f32.mrf.mxu0
      %v10155 = vadd.f32 %v10126, %v10154
      %v10156 = vpop.f32.mrf.mxu0
      %v10157 = vadd.f32 %v10128, %v10156
      %10158 = vdwg.mxu0
      %10159 = vmatpush.bf16.msra.mxu0 %v2509
      %10160 = vmatpush.bf16.msra.mxu0 %v2505
      %10161 = vmatpush.bf16.msra.mxu0 %v2501
      %10162 = vmatpush.bf16.msra.mxu0 %v2497
      %10163 = vmatpush.bf16.msra.mxu0 %v2493
      %10164 = vmatpush.bf16.msra.mxu0 %v2489
      %10165 = vmatpush.bf16.msra.mxu0 %v2485
      %10166 = vmatpush.bf16.msra.mxu0 %v2481
      %10167 = vmatmul.bf16.gmra.mxu0 %v8840
      %v10168 = vpop.f32.mrf.mxu0
      %v10169 = vadd.f32 %v10140, %v10168
      %v10170 = vpop.f32.mrf.mxu0
      %v10171 = vadd.f32 %v10142, %v10170
      %10172 = vmatmul.bf16.gmra.mxu0 %v8841
      %v10173 = vpop.f32.mrf.mxu0
      %v10174 = vadd.f32 %v10145, %v10173
      %v10175 = vpop.f32.mrf.mxu0
      %v10176 = vadd.f32 %v10147, %v10175
      %10177 = vmatmul.bf16.gmra.mxu0 %v8842
      %v10178 = vpop.f32.mrf.mxu0
      %v10179 = vadd.f32 %v10150, %v10178
      %v10180 = vpop.f32.mrf.mxu0
      %v10181 = vadd.f32 %v10152, %v10180
      %10182 = vmatmul.bf16.gmra.mxu0 %v8843
      %v10183 = vpop.f32.mrf.mxu0
      %v10184 = vadd.f32 %v10155, %v10183
      %v10185 = vpop.f32.mrf.mxu0
      %v10186 = vadd.f32 %v10157, %v10185
      %10187 = vdwg.mxu0
      %10188 = vmatpush.bf16.msra.mxu0 %v2541
      %10189 = vmatpush.bf16.msra.mxu0 %v2537
      %10190 = vmatpush.bf16.msra.mxu0 %v2533
      %10191 = vmatpush.bf16.msra.mxu0 %v2529
      %10192 = vmatpush.bf16.msra.mxu0 %v2525
      %10193 = vmatpush.bf16.msra.mxu0 %v2521
      %10194 = vmatpush.bf16.msra.mxu0 %v2517
      %10195 = vmatpush.bf16.msra.mxu0 %v2513
      %10196 = vmatmul.bf16.gmra.mxu0 %v8856
      %v10197 = vpop.f32.mrf.mxu0
      %v10198 = vadd.f32 %v10169, %v10197
      %v10199 = vpop.f32.mrf.mxu0
      %v10200 = vadd.f32 %v10171, %v10199
      %10201 = vmatmul.bf16.gmra.mxu0 %v8857
      %v10202 = vpop.f32.mrf.mxu0
      %v10203 = vadd.f32 %v10174, %v10202
      %v10204 = vpop.f32.mrf.mxu0
      %v10205 = vadd.f32 %v10176, %v10204
      %10206 = vmatmul.bf16.gmra.mxu0 %v8858
      %v10207 = vpop.f32.mrf.mxu0
      %v10208 = vadd.f32 %v10179, %v10207
      %v10209 = vpop.f32.mrf.mxu0
      %v10210 = vadd.f32 %v10181, %v10209
      %10211 = vmatmul.bf16.gmra.mxu0 %v8859
      %v10212 = vpop.f32.mrf.mxu0
      %v10213 = vadd.f32 %v10184, %v10212
      %v10214 = vpop.f32.mrf.mxu0
      %v10215 = vadd.f32 %v10186, %v10214
      %10216 = vdwg.mxu0
      %10217 = vmatpush.bf16.msra.mxu0 %v2573
      %10218 = vmatpush.bf16.msra.mxu0 %v2569
      %10219 = vmatpush.bf16.msra.mxu0 %v2565
      %10220 = vmatpush.bf16.msra.mxu0 %v2561
      %10221 = vmatpush.bf16.msra.mxu0 %v2557
      %10222 = vmatpush.bf16.msra.mxu0 %v2553
      %10223 = vmatpush.bf16.msra.mxu0 %v2549
      %10224 = vmatpush.bf16.msra.mxu0 %v2545
      %10225 = vmatmul.bf16.gmra.mxu0 %v8872
      %v10226 = vpop.f32.mrf.mxu0
      %v10227 = vadd.f32 %v10198, %v10226
      %v10228 = vpop.f32.mrf.mxu0
      %v10229 = vadd.f32 %v10200, %v10228
      %10230 = vmatmul.bf16.gmra.mxu0 %v8873
      %v10231 = vpop.f32.mrf.mxu0
      %v10232 = vadd.f32 %v10203, %v10231
      %v10233 = vpop.f32.mrf.mxu0
      %v10234 = vadd.f32 %v10205, %v10233
      %10235 = vmatmul.bf16.gmra.mxu0 %v8874
      %v10236 = vpop.f32.mrf.mxu0
      %v10237 = vadd.f32 %v10208, %v10236
      %v10238 = vpop.f32.mrf.mxu0
      %v10239 = vadd.f32 %v10210, %v10238
      %10240 = vmatmul.bf16.gmra.mxu0 %v8875
      %v10241 = vpop.f32.mrf.mxu0
      %v10242 = vadd.f32 %v10213, %v10241
      %v10243 = vpop.f32.mrf.mxu0
      %v10244 = vadd.f32 %v10215, %v10243
      %10245 = vdwg.mxu0
      %10246 = vmatpush.bf16.msra.mxu0 %v2605
      %10247 = vmatpush.bf16.msra.mxu0 %v2601
      %10248 = vmatpush.bf16.msra.mxu0 %v2597
      %10249 = vmatpush.bf16.msra.mxu0 %v2593
      %10250 = vmatpush.bf16.msra.mxu0 %v2589
      %10251 = vmatpush.bf16.msra.mxu0 %v2585
      %10252 = vmatpush.bf16.msra.mxu0 %v2581
      %10253 = vmatpush.bf16.msra.mxu0 %v2577
      %10254 = vmatmul.bf16.gmra.mxu0 %v8888
      %v10255 = vpop.f32.mrf.mxu0
      %v10256 = vadd.f32 %v10227, %v10255
      %v10257 = vpop.f32.mrf.mxu0
      %v10258 = vadd.f32 %v10229, %v10257
      %10259 = vmatmul.bf16.gmra.mxu0 %v8889
      %v10260 = vpop.f32.mrf.mxu0
      %v10261 = vadd.f32 %v10232, %v10260
      %v10262 = vpop.f32.mrf.mxu0
      %v10263 = vadd.f32 %v10234, %v10262
      %10264 = vmatmul.bf16.gmra.mxu0 %v8890
      %v10265 = vpop.f32.mrf.mxu0
      %v10266 = vadd.f32 %v10237, %v10265
      %v10267 = vpop.f32.mrf.mxu0
      %v10268 = vadd.f32 %v10239, %v10267
      %10269 = vmatmul.bf16.gmra.mxu0 %v8891
      %v10270 = vpop.f32.mrf.mxu0
      %v10271 = vadd.f32 %v10242, %v10270
      %v10272 = vpop.f32.mrf.mxu0
      %v10273 = vadd.f32 %v10244, %v10272
      %10274 = vdwg.mxu0
      %10275 = vmatpush.bf16.msra.mxu0 %v2637
      %10276 = vmatpush.bf16.msra.mxu0 %v2633
      %10277 = vmatpush.bf16.msra.mxu0 %v2629
      %10278 = vmatpush.bf16.msra.mxu0 %v2625
      %10279 = vmatpush.bf16.msra.mxu0 %v2621
      %10280 = vmatpush.bf16.msra.mxu0 %v2617
      %10281 = vmatpush.bf16.msra.mxu0 %v2613
      %10282 = vmatpush.bf16.msra.mxu0 %v2609
      %10283 = vmatmul.bf16.gmra.mxu0 %v8904
      %v10284 = vpop.f32.mrf.mxu0
      %v10285 = vadd.f32 %v10256, %v10284
      %v10286 = vpop.f32.mrf.mxu0
      %v10287 = vadd.f32 %v10258, %v10286
      %10288 = vmatmul.bf16.gmra.mxu0 %v8905
      %v10289 = vpop.f32.mrf.mxu0
      %v10290 = vadd.f32 %v10261, %v10289
      %v10291 = vpop.f32.mrf.mxu0
      %v10292 = vadd.f32 %v10263, %v10291
      %10293 = vmatmul.bf16.gmra.mxu0 %v8906
      %v10294 = vpop.f32.mrf.mxu0
      %v10295 = vadd.f32 %v10266, %v10294
      %v10296 = vpop.f32.mrf.mxu0
      %v10297 = vadd.f32 %v10268, %v10296
      %10298 = vmatmul.bf16.gmra.mxu0 %v8907
      %v10299 = vpop.f32.mrf.mxu0
      %v10300 = vadd.f32 %v10271, %v10299
      %v10301 = vpop.f32.mrf.mxu0
      %v10302 = vadd.f32 %v10273, %v10301
      %10303 = vdwg.mxu0
      %v10304 = vmax.f32 %v9241, 0.0
      %v10305 = vmax.f32 %v9589, 0.0
      %v10306 = vmax.f32 %v9937, 0.0
      %v10307 = vmax.f32 %v10285, 0.0
      %v10308 = vmax.f32 %v9243, 0.0
      %v10309 = vmax.f32 %v9591, 0.0
      %v10310 = vmax.f32 %v9939, 0.0
      %v10311 = vmax.f32 %v10287, 0.0
      %v10312 = vmax.f32 %v9246, 0.0
      %v10313 = vmax.f32 %v9594, 0.0
      %v10314 = vmax.f32 %v9942, 0.0
      %v10315 = vmax.f32 %v10290, 0.0
      %v10316 = vmax.f32 %v9248, 0.0
      %v10317 = vmax.f32 %v9596, 0.0
      %v10318 = vmax.f32 %v9944, 0.0
      %v10319 = vmax.f32 %v10292, 0.0
      %v10320 = vmax.f32 %v9251, 0.0
      %v10321 = vmax.f32 %v9599, 0.0
      %v10322 = vmax.f32 %v9947, 0.0
      %v10323 = vmax.f32 %v10295, 0.0
      %v10324 = vmax.f32 %v9253, 0.0
      %v10325 = vmax.f32 %v9601, 0.0
      %v10326 = vmax.f32 %v9949, 0.0
      %v10327 = vmax.f32 %v10297, 0.0
      %v10328 = vmax.f32 %v9256, 0.0
      %v10329 = vmax.f32 %v9604, 0.0
      %v10330 = vmax.f32 %v9952, 0.0
      %v10331 = vmax.f32 %v10300, 0.0
      %v10332 = vmax.f32 %v9258, 0.0
      %v10333 = vmax.f32 %v9606, 0.0
      %v10334 = vmax.f32 %v9954, 0.0
      %v10335 = vmax.f32 %v10302, 0.0
      %v10336 = vadd.f32 %v10304, %v10308
      %v10337 = vadd.f32 %v10336, %v10312
      %v10338 = vadd.f32 %v10337, %v10316
      %v10339 = vadd.f32 %v10338, %v10320
      %v10340 = vadd.f32 %v10339, %v10324
      %v10341 = vadd.f32 %v10340, %v10328
      %v10342 = vadd.f32 %v10341, %v10332
      %v10343 = vrot.slane %v10342, 4
      %v10344 = vadd.f32 %v10342, %v10343
      %v10345 = vrot.slane %v10344, 2
      %v10346 = vadd.f32 %v10344, %v10345
      %v10347 = vrot.slane %v10346, 1
      %v10348 = vadd.f32 %v10346, %v10347
      %v10349 = vadd.f32 %v10305, %v10309
      %v10350 = vadd.f32 %v10349, %v10313
      %v10351 = vadd.f32 %v10350, %v10317
      %v10352 = vadd.f32 %v10351, %v10321
      %v10353 = vadd.f32 %v10352, %v10325
      %v10354 = vadd.f32 %v10353, %v10329
      %v10355 = vadd.f32 %v10354, %v10333
      %v10356 = vrot.slane %v10355, 4
      %v10357 = vadd.f32 %v10355, %v10356
      %v10358 = vrot.slane %v10357, 2
      %v10359 = vadd.f32 %v10357, %v10358
      %v10360 = vrot.slane %v10359, 1
      %v10361 = vadd.f32 %v10359, %v10360
      %v10362 = vadd.f32 %v10306, %v10310
      %v10363 = vadd.f32 %v10362, %v10314
      %v10364 = vadd.f32 %v10363, %v10318
      %v10365 = vadd.f32 %v10364, %v10322
      %v10366 = vadd.f32 %v10365, %v10326
      %v10367 = vadd.f32 %v10366, %v10330
      %v10368 = vadd.f32 %v10367, %v10334
      %v10369 = vrot.slane %v10368, 4
      %v10370 = vadd.f32 %v10368, %v10369
      %v10371 = vrot.slane %v10370, 2
      %v10372 = vadd.f32 %v10370, %v10371
      %v10373 = vrot.slane %v10372, 1
      %v10374 = vadd.f32 %v10372, %v10373
      %v10375 = vadd.f32 %v10307, %v10311
      %v10376 = vadd.f32 %v10375, %v10315
      %v10377 = vadd.f32 %v10376, %v10319
      %v10378 = vadd.f32 %v10377, %v10323
      %v10379 = vadd.f32 %v10378, %v10327
      %v10380 = vadd.f32 %v10379, %v10331
      %v10381 = vadd.f32 %v10380, %v10335
      %v10382 = vrot.slane %v10381, 4
      %v10383 = vadd.f32 %v10381, %v10382
      %v10384 = vrot.slane %v10383, 2
      %v10385 = vadd.f32 %v10383, %v10384
      %v10386 = vrot.slane %v10385, 1
      %v10387 = vadd.f32 %v10385, %v10386
      %v10388 = vmul.f32 %v10348, %v4504
      %v10389 = vmul.f32 %v10361, %v4504
      %v10390 = vmul.f32 %v10374, %v4504
      %v10391 = vmul.f32 %v10387, %v4504
      %vm10392 = vcmask 1040384
      %v10393 = vsel %vm10392, %v4505, %v6466
      %v10394 = vsel %vm10392, %v4506, %v6467
      %v10395 = vsel %vm10392, %v4507, %v6468
      %v10396 = vsel %vm10392, %v4508, %v6469
      %vm10397 = vcmask 1041408
      %v10398 = vsel %vm10397, %v10393, %v8427
      %v10399 = vsel %vm10397, %v10394, %v8428
      %v10400 = vsel %vm10397, %v10395, %v8429
      %v10401 = vsel %vm10397, %v10396, %v8430
      %vm10402 = vcmask 1042432
      %v10403 = vsel %vm10402, %v10398, %v10388
      %v10404 = vsel %vm10402, %v10399, %v10389
      %v10405 = vsel %vm10402, %v10400, %v10390
      %v10406 = vsel %vm10402, %v10401, %v10391
      %v10407 = vld [vmem:[%s3] sm:$0xff]
      %v10408 = vld [vmem:[%s3 + $0x8] sm:$0xff]
      %v10409 = vld [vmem:[%s3 + $0x10] sm:$0xff]
      %v10410 = vld [vmem:[%s3 + $0x18] sm:$0xff]
      %v10411 = vld [vmem:[%s3 + $0x20] sm:$0xff]
      %v10412 = vld [vmem:[%s3 + $0x28] sm:$0xff]
      %v10413 = vld [vmem:[%s3 + $0x30] sm:$0xff]
      %v10414 = vld [vmem:[%s3 + $0x38] sm:$0xff]
      %v10415 = vld [vmem:[%s3 + $0x40] sm:$0xff]
      %v10416 = vld [vmem:[%s3 + $0x48] sm:$0xff]
      %v10417 = vld [vmem:[%s3 + $0x50] sm:$0xff]
      %v10418 = vld [vmem:[%s3 + $0x58] sm:$0xff]
      %v10419 = vld [vmem:[%s3 + $0x60] sm:$0xff]
      %v10420 = vld [vmem:[%s3 + $0x68] sm:$0xff]
      %v10421 = vld [vmem:[%s3 + $0x70] sm:$0xff]
      %v10422 = vld [vmem:[%s3 + $0x78] sm:$0xff]
      %v10423 = vld [vmem:[%s3 + $0x80] sm:$0xff]
      %v10424 = vld [vmem:[%s3 + $0x88] sm:$0xff]
      %v10425 = vld [vmem:[%s3 + $0x90] sm:$0xff]
      %v10426 = vld [vmem:[%s3 + $0x98] sm:$0xff]
      %v10427 = vld [vmem:[%s3 + $0xa0] sm:$0xff]
      %v10428 = vld [vmem:[%s3 + $0xa8] sm:$0xff]
      %v10429 = vld [vmem:[%s3 + $0xb0] sm:$0xff]
      %v10430 = vld [vmem:[%s3 + $0xb8] sm:$0xff]
      %v10431 = vld [vmem:[%s3 + $0xc0] sm:$0xff]
      %v10432 = vld [vmem:[%s3 + $0xc8] sm:$0xff]
      %v10433 = vld [vmem:[%s3 + $0xd0] sm:$0xff]
      %v10434 = vld [vmem:[%s3 + $0xd8] sm:$0xff]
      %v10435 = vld [vmem:[%s3 + $0xe0] sm:$0xff]
      %v10436 = vld [vmem:[%s3 + $0xe8] sm:$0xff]
      %v10437 = vld [vmem:[%s3 + $0xf0] sm:$0xff]
      %v10438 = vld [vmem:[%s3 + $0xf8] sm:$0xff]
      %v10439 = vld [vmem:[%s3 + $0x100] sm:$0xff]
      %v10440 = vld [vmem:[%s3 + $0x108] sm:$0xff]
      %v10441 = vld [vmem:[%s3 + $0x110] sm:$0xff]
      %v10442 = vld [vmem:[%s3 + $0x118] sm:$0xff]
      %v10443 = vld [vmem:[%s3 + $0x120] sm:$0xff]
      %v10444 = vld [vmem:[%s3 + $0x128] sm:$0xff]
      %v10445 = vld [vmem:[%s3 + $0x130] sm:$0xff]
      %v10446 = vld [vmem:[%s3 + $0x138] sm:$0xff]
      %v10447 = vld [vmem:[%s3 + $0x140] sm:$0xff]
      %v10448 = vld [vmem:[%s3 + $0x148] sm:$0xff]
      %v10449 = vld [vmem:[%s3 + $0x150] sm:$0xff]
      %v10450 = vld [vmem:[%s3 + $0x158] sm:$0xff]
      %v10451 = vld [vmem:[%s3 + $0x160] sm:$0xff]
      %v10452 = vld [vmem:[%s3 + $0x168] sm:$0xff]
      %v10453 = vld [vmem:[%s3 + $0x170] sm:$0xff]
      %v10454 = vld [vmem:[%s3 + $0x178] sm:$0xff]
      %v10455 = vld [vmem:[%s3 + $0x180] sm:$0xff]
      %v10456 = vld [vmem:[%s3 + $0x188] sm:$0xff]
      %v10457 = vld [vmem:[%s3 + $0x190] sm:$0xff]
      %v10458 = vld [vmem:[%s3 + $0x198] sm:$0xff]
      %v10459 = vld [vmem:[%s3 + $0x1a0] sm:$0xff]
      %v10460 = vld [vmem:[%s3 + $0x1a8] sm:$0xff]
      %v10461 = vld [vmem:[%s3 + $0x1b0] sm:$0xff]
      %v10462 = vld [vmem:[%s3 + $0x1b8] sm:$0xff]
      %v10463 = vld [vmem:[%s3 + $0x1c0] sm:$0xff]
      %v10464 = vld [vmem:[%s3 + $0x1c8] sm:$0xff]
      %v10465 = vld [vmem:[%s3 + $0x1d0] sm:$0xff]
      %v10466 = vld [vmem:[%s3 + $0x1d8] sm:$0xff]
      %v10467 = vld [vmem:[%s3 + $0x1e0] sm:$0xff]
      %v10468 = vld [vmem:[%s3 + $0x1e8] sm:$0xff]
      %v10469 = vld [vmem:[%s3 + $0x1f0] sm:$0xff]
      %v10470 = vld [vmem:[%s3 + $0x1f8] sm:$0xff]
      %v10471 = vld [vmem:[%s4] sm:$0x1]
      %v10473 = vperm.slane %v10471, 0
      %10475 = vmatpush.msra.mxu0 %v10422
      %10476 = vmatpush.msra.mxu0 %v10421
      %10477 = vmatpush.msra.mxu0 %v10420
      %10478 = vmatpush.msra.mxu0 %v10419
      %10479 = vmatpush.msra.mxu0 %v10418
      %10480 = vmatpush.msra.mxu0 %v10417
      %10481 = vmatpush.msra.mxu0 %v10416
      %10482 = vmatpush.msra.mxu0 %v10415
      %10483 = vmatpush.msra.mxu0 %v10414
      %10484 = vmatpush.msra.mxu0 %v10413
      %10485 = vmatpush.msra.mxu0 %v10412
      %10486 = vmatpush.msra.mxu0 %v10411
      %10487 = vmatpush.msra.mxu0 %v10410
      %10488 = vmatpush.msra.mxu0 %v10409
      %10489 = vmatpush.msra.mxu0 %v10408
      %10490 = vmatpush.msra.mxu0 %v10407
      %10491 = vmatmul.f32.gmra.mxu0 %v10403
      %v10492 = vpop.f32.mrf.mxu0
      %v10493 = vadd.f32 %v10473, %v10492
      %10494 = vdwg.mxu0
      %10495 = vmatpush.msra.mxu0 %v10438
      %10496 = vmatpush.msra.mxu0 %v10437
      %10497 = vmatpush.msra.mxu0 %v10436
      %10498 = vmatpush.msra.mxu0 %v10435
      %10499 = vmatpush.msra.mxu0 %v10434
      %10500 = vmatpush.msra.mxu0 %v10433
      %10501 = vmatpush.msra.mxu0 %v10432
      %10502 = vmatpush.msra.mxu0 %v10431
      %10503 = vmatpush.msra.mxu0 %v10430
      %10504 = vmatpush.msra.mxu0 %v10429
      %10505 = vmatpush.msra.mxu0 %v10428
      %10506 = vmatpush.msra.mxu0 %v10427
      %10507 = vmatpush.msra.mxu0 %v10426
      %10508 = vmatpush.msra.mxu0 %v10425
      %10509 = vmatpush.msra.mxu0 %v10424
      %10510 = vmatpush.msra.mxu0 %v10423
      %10511 = vmatmul.f32.gmra.mxu0 %v10404
      %v10512 = vpop.f32.mrf.mxu0
      %v10513 = vadd.f32 %v10493, %v10512
      %10514 = vdwg.mxu0
      %10515 = vmatpush.msra.mxu0 %v10454
      %10516 = vmatpush.msra.mxu0 %v10453
      %10517 = vmatpush.msra.mxu0 %v10452
      %10518 = vmatpush.msra.mxu0 %v10451
      %10519 = vmatpush.msra.mxu0 %v10450
      %10520 = vmatpush.msra.mxu0 %v10449
      %10521 = vmatpush.msra.mxu0 %v10448
      %10522 = vmatpush.msra.mxu0 %v10447
      %10523 = vmatpush.msra.mxu0 %v10446
      %10524 = vmatpush.msra.mxu0 %v10445
      %10525 = vmatpush.msra.mxu0 %v10444
      %10526 = vmatpush.msra.mxu0 %v10443
      %10527 = vmatpush.msra.mxu0 %v10442
      %10528 = vmatpush.msra.mxu0 %v10441
      %10529 = vmatpush.msra.mxu0 %v10440
      %10530 = vmatpush.msra.mxu0 %v10439
      %10531 = vmatmul.f32.gmra.mxu0 %v10405
      %v10532 = vpop.f32.mrf.mxu0
      %v10533 = vadd.f32 %v10513, %v10532
      %10534 = vdwg.mxu0
      %10535 = vmatpush.msra.mxu0 %v10470
      %10536 = vmatpush.msra.mxu0 %v10469
      %10537 = vmatpush.msra.mxu0 %v10468
      %10538 = vmatpush.msra.mxu0 %v10467
      %10539 = vmatpush.msra.mxu0 %v10466
      %10540 = vmatpush.msra.mxu0 %v10465
      %10541 = vmatpush.msra.mxu0 %v10464
      %10542 = vmatpush.msra.mxu0 %v10463
      %10543 = vmatpush.msra.mxu0 %v10462
      %10544 = vmatpush.msra.mxu0 %v10461
      %10545 = vmatpush.msra.mxu0 %v10460
      %10546 = vmatpush.msra.mxu0 %v10459
      %10547 = vmatpush.msra.mxu0 %v10458
      %10548 = vmatpush.msra.mxu0 %v10457
      %10549 = vmatpush.msra.mxu0 %v10456
      %10550 = vmatpush.msra.mxu0 %v10455
      %10551 = vmatmul.f32.gmra.mxu0 %v10406
      %v10552 = vpop.f32.mrf.mxu0
      %v10553 = vadd.f32 %v10533, %v10552
      %10554 = vdwg.mxu0
      %10555 = vst [vmem:[%s227] sm:$0xf] %v10553
      %p10556 = scmp.lt.s32.totalorder %s16, 1
      %s10557 = scalar_select %p10556, %s16, 1
      %s10558 = smul.addr %s10557, 4
      %s10559 = scalar_lea.vmem %s5, %s10558
      // Predicated region
      $region41: #{efficientnet_head.1} parent=39 // pred_check
        %p10560 = pneg %p144
      $region42: #{efficientnet_head.1} parent=39 // pred_check_branch
        %10562 = sbr.rel (%p10560) target = $region44
      $region43: #{efficientnet_head.1} parent=39 // pred_region
        _
      $region44: #{efficientnet_head.1} parent=39 // pred_fallthru
        _
    $region40: #{efficientnet_head.1} parent=5 // pred_fallthru
      _
    %p10563 = scmp.le.s32.totalorder 2, %s11
    // Predicated region
    $region45: #{efficientnet_head.1} parent=5 // pred_check
      %p10564 = pneg %p10563
    $region46: #{efficientnet_head.1} parent=5 // pred_check_branch
      %10566 = sbr.rel (%p10564) target = $region48
    $region47: #{efficientnet_head.1} parent=5 // pred_region
      %s10567 = ssub.s32 %s11, 2
      // Predicated region
      $region49: #{efficientnet_head.1} parent=47 // pred_check
        %p10568 = pneg %p150
      $region50: #{efficientnet_head.1} parent=47 // pred_check_branch
        %10570 = sbr.rel (%p10568) target = $region52
      $region51: #{efficientnet_head.1} parent=47 // pred_region
        %p10571 = scmp.lt.s32.totalorder %s17, 1
        %s10572 = scalar_select %p10571, %s17, 1
        %s10573 = smul.addr %s10572, 4
        %s10574 = scalar_lea.vmem %s5, %s10573
      $region52: #{efficientnet_head.1} parent=47 // pred_fallthru
        _
    $region48: #{efficientnet_head.1} parent=5 // pred_fallthru
      _
  $region6: #{efficientnet_head.1} parent=0 // loop_footer
    %s15 = sadd.s32 1, %s11
  $region7: #{efficientnet_head.1} parent=0 // loop_footer_branch
    %10 = sbr.rel target = $region3
  $region8: #{efficientnet_head.1} parent=0 // loop_exit
    _

</llo_original>
